<compile_context>
chip_gen: v6e
topology: v6e:2x2x1
jax: 0.10.0
libtpu: 0.0.40
codegen_flags: <defaults>
</compile_context>

<pallas_src>
import math

import jax
import jax.numpy as jnp
import numpy as np
from jax.experimental import pallas as pl
from jax.experimental.pallas import tpu as pltpu

_EPS = 1e-5                        # BatchNorm2d default eps
_COMPUTE_DTYPE = jnp.bfloat16      # MXU operand / inter-stage activation dtype
_MXU_M_TARGET = 512                # target M (= tile_rows * W) per conv matmul
_PATCH_BUDGET = 6 * 1024 * 1024    # VMEM budget for one im2col patches buffer
_ROW_TILE_TARGET = 1024            # rows per block in the final BN+ReLU pass
_VMEM_CAP = 48 * 1024 * 1024       # scoped-VMEM cap, safe on v5e/v6e/v7x


# ----------------------------------------------------------------------------
# Static bilinear-tap / tiling helpers
# ----------------------------------------------------------------------------
def _bilinear_taps(n_in, n_out):
    """Static (lo, hi, frac) taps for 1-D bilinear resize with align_corners=True."""
    taps = []
    for i in range(n_out):
        src = 0.0 if n_out == 1 else i * (n_in - 1) / (n_out - 1)
        lo = min(int(math.floor(src)), n_in - 1)
        hi = min(lo + 1, n_in - 1)
        taps.append((lo, hi, src - lo))
    return taps


def _upsample_matrix(n_in, n_out):
    """(n_out, n_in) 1-D bilinear resize matrix, align_corners=True."""
    m = np.zeros((n_out, n_in), np.float32)
    for i, (lo, hi, f) in enumerate(_bilinear_taps(n_in, n_out)):
        m[i, lo] += 1.0 - f
        m[i, hi] += f
    return m


def _upsample_pad_matrix(n_in, n_out, pad_lo):
    """Upsample-by-2 matrix with the F.pad offsets folded in as zero rows."""
    n_up = 2 * n_in
    m = np.zeros((n_out, n_in), np.float32)
    m[pad_lo:pad_lo + n_up, :] = _upsample_matrix(n_in, n_up)
    return m


def _h_matrix_ext(n_in, n_out, pad_lo):
    """(n_out+2, n_in): rows 1..n_out = 2x upsample + F.pad; rows 0 / n_out+1 are
    the 3x3-conv zero halo rows, so the H-matmul produces the padded tile rows
    directly."""
    m = np.zeros((n_out + 2, n_in), np.float32)
    m[1:n_out + 1, :] = _upsample_pad_matrix(n_in, n_out, pad_lo)
    return m


def _divisor_tile(total, target):
    """Largest divisor of `total` that is <= target (always >= 1)."""
    target = max(1, min(total, target))
    for d in range(target, 0, -1):
        if total % d == 0:
            return d
    return total


def _conv_row_tile(h_out, w_out, c_in):
    """Conv output rows per tile: M = rows*W sized toward the MXU pipeline depth,
    bounded so the im2col patches buffer stays within a VMEM budget."""
    bytes_per = jnp.dtype(_COMPUTE_DTYPE).itemsize
    t_m = max(1, _MXU_M_TARGET // max(w_out, 1))
    t_v = max(1, _PATCH_BUDGET // max(w_out * 9 * c_in * bytes_per, 1))
    return _divisor_tile(h_out, min(t_m, t_v))


def _row_tile(total, target):
    """Largest multiple-of-8 divisor of `total` <= target; full slab if none
    (full-extent blocks are always layout-legal)."""
    best = None
    for d in range(8, max(target, 8) + 1, 8):
        if total % d == 0:
            best = d
    return best if best is not None else total


def _vmem_limit(need_bytes):
    return int(min(max(int(need_bytes) + (8 << 20), 16 << 20), _VMEM_CAP))


def _bn_affine(stats, gamma, beta, nelem):
    """Fold training-mode BatchNorm (biased batch variance) into y = x*scale+bias.
    stats: (N, n_tiles, 2, C) per-tile [sum, sum-of-squares] partials (f32).
    Note: one-pass E[x^2]-E[x]^2; switch to chunked Welford if conv outputs ever
    have mean >> std."""
    s = jnp.sum(stats[:, :, 0, :], axis=(0, 1))
    ss = jnp.sum(stats[:, :, 1, :], axis=(0, 1))
    mean = s / nelem
    var = jnp.maximum(ss / nelem - mean * mean, 0.0)
    scale = gamma.reshape(-1) * jax.lax.rsqrt(var + _EPS)
    bias = beta.reshape(-1) - mean * scale
    return (scale.reshape(1, -1).astype(jnp.float32),
            bias.reshape(1, -1).astype(jnp.float32))


# ----------------------------------------------------------------------------
# Up.forward in NHWC
# ----------------------------------------------------------------------------
def up_forward_nhwc(x1, x2, params):
    """x1: (N,H1,W1,C1) decoder feature, x2: (N,H2,W2,C2) skip connection."""
    w1, g1, b1, w2, g2, b2 = params          # w*: (9, Cin, Cout) tap-major; g/b: (1, C)
    cdt = _COMPUTE_DTYPE
    cbytes = jnp.dtype(cdt).itemsize
    N, H1, W1d, C1 = x1.shape
    _, H2, W2d, C2 = x2.shape
    Cin = C1 + C2
    Cmid = w1.shape[-1]
    Cout = w2.shape[-1]
    Hu, Wu = 2 * H1, 2 * W1d
    dy, dx = H2 - Hu, W2d - Wu
    assert dy >= 0 and dx >= 0, "upsampled x1 must not exceed x2 spatially"

    # Static tap matrices: H matrix has F.pad rows AND the conv zero-halo rows
    # folded in; W matrix has the F.pad columns folded in and is passed
    # transposed so the in-kernel contraction needs no tap-matrix transpose.
    uh = jnp.asarray(_h_matrix_ext(H1, H2, dy // 2))                  # (H2+2, H1) f32
    uwt = jnp.asarray(_upsample_pad_matrix(W1d, W2d, dx // 2).T)      # (W1, W2)   f32

    # Conv weights flattened for single im2col matmuls: (9*Cin, Cout), bf16.
    w1f = jnp.asarray(w1).reshape(9 * Cin, Cmid).astype(cdt)
    w2f = jnp.asarray(w2).reshape(9 * Cmid, Cout).astype(cdt)

    x1f = x1.reshape(N, H1, W1d * C1).astype(cdt)     # lane-dense rows for the H matmul
    x2c = x2.astype(cdt)

    nelem = N * H2 * W2d                              # BN reduction count
    WPAD = W2d + 16                                   # 8-col zero halo each side

    TH1 = _conv_row_tile(H2, W2d, Cin)
    TH2 = _conv_row_tile(H2, W2d, Cmid)
    NH1, NH2 = H2 // TH1, H2 // TH2

    # ------------------------------------------------------------------------
    # Stage 1: per-tile bilinear up + F.pad + concat + conv1 (+ BN1 partials).
    # ------------------------------------------------------------------------
    def conv1_kernel(x1_ref, x2_ref, uh_ref, uwt_ref, w_ref, h1_ref, st_ref, xpad_ref):
        hidx = pl.program_id(1)
        row0 = pl.multiple_of(hidx * TH1, TH1)

        # Zero only the left/right conv-halo column strips (8 wide so the
        # interior stores below start at sublane offset 8 -> aligned stores).
        xpad_ref[:, 0:8, :] = jnp.zeros((TH1 + 2, 8, Cin), cdt)
        xpad_ref[:, 8 + W2d:, :] = jnp.zeros((TH1 + 2, 8, Cin), cdt)

        # --- x1 path: bilinear 2x upsample (+F.pad) for the TH1+2 padded rows.
        uh_t = uh_ref[pl.ds(row0, TH1 + 2), :]                         # (P, H1)
        th = jnp.dot(uh_t, x1_ref[...].astype(jnp.float32),
                     preferred_element_type=jnp.float32)               # (P, W1*C1)
        th = th.reshape(TH1 + 2, W1d, C1).transpose(0, 2, 1)           # (P, C1, W1)
        th = th.reshape((TH1 + 2) * C1, W1d)
        xu = jnp.dot(th, uwt_ref[...], preferred_element_type=jnp.float32)
        xu = xu.reshape(TH1 + 2, C1, W2d).transpose(0, 2, 1)           # (P, W2, C1)
        xpad_ref[:, 8:8 + W2d, C2:] = xu.astype(cdt)

        # --- x2 path: skip rows + conv halo rows (zero outside the image).
        xpad_ref[1:TH1 + 1, 8:8 + W2d, 0:C2] = x2_ref[pl.ds(row0, TH1)]
        top = x2_ref[pl.ds(jnp.maximum(row0 - 1, 0), 1)]
        xpad_ref[0:1, 8:8 + W2d, 0:C2] = jnp.where(
            row0 > 0, top, jnp.zeros_like(top))
        bot = x2_ref[pl.ds(jnp.minimum(row0 + TH1, H2 - 1), 1)]
        xpad_ref[TH1 + 1:TH1 + 2, 8:8 + W2d, 0:C2] = jnp.where(
            row0 + TH1 < H2, bot, jnp.zeros_like(bot))

        # --- conv1: one im2col build + ONE MXU matmul (K = 9*Cin).
        # TODO(synk): on v7x, benchmark the 9-accumulating-dots (MRB) variant.
        taps = [xpad_ref[ky:ky + TH1, 7 + kx:7 + kx + W2d, :]
                for ky in range(3) for kx in range(3)]
        patches = jnp.concatenate(taps, axis=-1).reshape(TH1 * W2d, 9 * Cin)
        acc = jnp.dot(patches, w_ref[...], preferred_element_type=jnp.float32)

        # Per-tile BN1 partial stats (reduced in XLA) -> no carried dependence,
        # both grid axes are "parallel".
        st_ref[...] = jnp.concatenate(
            [jnp.sum(acc, axis=0, keepdims=True),
             jnp.sum(acc * acc, axis=0, keepdims=True)], axis=0)
        h1_ref[...] = acc.reshape(TH1, W2d, Cmid).astype(h1_ref.dtype)

    blk1 = cbytes * (H1 * W1d * C1 + H2 * W2d * C2 + 9 * Cin * Cmid
                     + TH1 * W2d * Cmid) + 4 * ((H2 + 2) * H1 + W1d * W2d + 2 * Cmid)
    scr1 = cbytes * (TH1 + 2) * WPAD * Cin
    pat1 = cbytes * TH1 * W2d * 9 * Cin
    cost1 = pl.CostEstimate(
        flops=int(N * (2 * (H2 + 2 * NH1) * H1 * W1d * C1
                       + 2 * (H2 + 2 * NH1) * C1 * W1d * W2d
                       + 2 * H2 * W2d * 9 * Cin * Cmid)),
        transcendentals=0,
        bytes_accessed=int(cbytes * (x1f.size + x2c.size + w1f.size
                                     + N * H2 * W2d * Cmid)
                           + 4 * (uh.size + uwt.size + N * NH1 * 2 * Cmid)))

    h1_raw, stat1 = pl.pallas_call(
        conv1_kernel,
        grid=(N, NH1),
        in_specs=[
            # NOTE: x1/x2 stay full-image-resident per n (fetched once per image);
            # for very large spatial dims these should be H-tiled with halo DMA.
            pl.BlockSpec((None, H1, W1d * C1), lambda n, h: (n, 0, 0)),
            pl.BlockSpec((None, H2, W2d, C2), lambda n, h: (n, 0, 0, 0)),
            pl.BlockSpec((H2 + 2, H1), lambda n, h: (0, 0)),
            pl.BlockSpec((W1d, W2d), lambda n, h: (0, 0)),
            pl.BlockSpec((9 * Cin, Cmid), lambda n, h: (0, 0)),
        ],
        out_specs=[
            pl.BlockSpec((None, TH1, W2d, Cmid), lambda n, h: (n, h, 0, 0)),
            pl.BlockSpec((None, None, 2, Cmid), lambda n, h: (n, h, 0, 0)),
        ],
        out_shape=[
            jax.ShapeDtypeStruct((N, H2, W2d, Cmid), cdt),
            jax.ShapeDtypeStruct((N, NH1, 2, Cmid), jnp.float32),
        ],
        scratch_shapes=[pltpu.VMEM((TH1 + 2, WPAD, Cin), cdt)],
        compiler_params=pltpu.CompilerParams(
            dimension_semantics=("parallel", "parallel"),
            vmem_limit_bytes=_vmem_limit(2 * blk1 + scr1 + 3 * pat1)),
        cost_estimate=cost1,
    )(x1f, x2c, uh, uwt, w1f)

    scale1, bias1 = _bn_affine(stat1, g1, b1, nelem)

    # ------------------------------------------------------------------------
    # Stage 2: per-tile fused BN1-normalize + ReLU + conv2 (+ BN2 partials).
    # ------------------------------------------------------------------------
    def conv2_kernel(h1_ref, s1_ref, c1_ref, w_ref, h2_ref, st_ref, ypad_ref):
        hidx = pl.program_id(1)
        row0 = pl.multiple_of(hidx * TH2, TH2)

        ypad_ref[:, 0:8, :] = jnp.zeros((TH2 + 2, 8, Cmid), cdt)
        ypad_ref[:, 8 + W2d:, :] = jnp.zeros((TH2 + 2, 8, Cmid), cdt)

        sb = s1_ref[...].reshape(1, 1, Cmid)
        cb = c1_ref[...].reshape(1, 1, Cmid)

        def bn_relu(rows):
            return jnp.maximum(rows.astype(jnp.float32) * sb + cb, 0.0)

        # Interior rows + the two conv halo rows (recomputed, zero off-image).
        ypad_ref[1:TH2 + 1, 8:8 + W2d, :] = bn_relu(
            h1_ref[pl.ds(row0, TH2)]).astype(cdt)
        top = bn_relu(h1_ref[pl.ds(jnp.maximum(row0 - 1, 0), 1)])
        ypad_ref[0:1, 8:8 + W2d, :] = jnp.where(
            row0 > 0, top, jnp.zeros_like(top)).astype(cdt)
        bot = bn_relu(h1_ref[pl.ds(jnp.minimum(row0 + TH2, H2 - 1), 1)])
        ypad_ref[TH2 + 1:TH2 + 2, 8:8 + W2d, :] = jnp.where(
            row0 + TH2 < H2, bot, jnp.zeros_like(bot)).astype(cdt)

        taps = [ypad_ref[ky:ky + TH2, 7 + kx:7 + kx + W2d, :]
                for ky in range(3) for kx in range(3)]
        patches = jnp.concatenate(taps, axis=-1).reshape(TH2 * W2d, 9 * Cmid)
        acc = jnp.dot(patches, w_ref[...], preferred_element_type=jnp.float32)

        st_ref[...] = jnp.concatenate(
            [jnp.sum(acc, axis=0, keepdims=True),
             jnp.sum(acc * acc, axis=0, keepdims=True)], axis=0)
        h2_ref[...] = acc.reshape(TH2, W2d, Cout).astype(h2_ref.dtype)

    blk2 = cbytes * (H2 * W2d * Cmid + 9 * Cmid * Cout + TH2 * W2d * Cout) \
        + 4 * (2 * Cmid + 2 * Cout)
    scr2 = cbytes * (TH2 + 2) * WPAD * Cmid
    pat2 = cbytes * TH2 * W2d * 9 * Cmid
    cost2 = pl.CostEstimate(
        flops=int(N * H2 * W2d * (4 * Cmid + 2 * 9 * Cmid * Cout)),
        transcendentals=0,
        bytes_accessed=int(cbytes * (N * H2 * W2d * (Cmid + Cout) + w2f.size)
                           + 4 * (2 * Cmid + N * NH2 * 2 * Cout)))

    h2_raw, stat2 = pl.pallas_call(
        conv2_kernel,
        grid=(N, NH2),
        in_specs=[
            pl.BlockSpec((None, H2, W2d, Cmid), lambda n, h: (n, 0, 0, 0)),
            pl.BlockSpec((1, Cmid), lambda n, h: (0, 0)),
            pl.BlockSpec((1, Cmid), lambda n, h: (0, 0)),
            pl.BlockSpec((9 * Cmid, Cout), lambda n, h: (0, 0)),
        ],
        out_specs=[
            pl.BlockSpec((None, TH2, W2d, Cout), lambda n, h: (n, h, 0, 0)),
            pl.BlockSpec((None, None, 2, Cout), lambda n, h: (n, h, 0, 0)),
        ],
        out_shape=[
            jax.ShapeDtypeStruct((N, H2, W2d, Cout), cdt),
            jax.ShapeDtypeStruct((N, NH2, 2, Cout), jnp.float32),
        ],
        scratch_shapes=[pltpu.VMEM((TH2 + 2, WPAD, Cmid), cdt)],
        compiler_params=pltpu.CompilerParams(
            dimension_semantics=("parallel", "parallel"),
            vmem_limit_bytes=_vmem_limit(2 * blk2 + scr2 + 3 * pat2)),
        cost_estimate=cost2,
    )(h1_raw, scale1, bias1, w2f)

    scale2, bias2 = _bn_affine(stat2, g2, b2, nelem)

    # ------------------------------------------------------------------------
    # Stage 3: fused BN2-normalize + ReLU on a lane-dense (N*H2, W2*Cout) slab.
    # (This pass is the module boundary; BN2 needs global stats, so one read of
    #  the bf16 intermediate + one f32 write is the minimum HBM traffic.)
    # ------------------------------------------------------------------------
    NR, WC = N * H2, W2d * Cout
    TR = _row_tile(NR, _ROW_TILE_TARGET)

    def bn2_relu_kernel(x_ref, s_ref, c_ref, o_ref):
        y = x_ref[...].astype(jnp.float32) * s_ref[...] + c_ref[...]
        o_ref[...] = jnp.maximum(y, 0.0).astype(o_ref.dtype)

    s2t = jnp.tile(scale2, (1, W2d))          # channel-fastest -> matches the flatten
    b2t = jnp.tile(bias2, (1, W2d))
    out_flat = pl.pallas_call(
        bn2_relu_kernel,
        grid=(NR // TR,),
        in_specs=[
            pl.BlockSpec((TR, WC), lambda r: (r, 0)),
            pl.BlockSpec((1, WC), lambda r: (0, 0)),
            pl.BlockSpec((1, WC), lambda r: (0, 0)),
        ],
        out_specs=pl.BlockSpec((TR, WC), lambda r: (r, 0)),
        out_shape=jax.ShapeDtypeStruct((NR, WC), jnp.float32),
        compiler_params=pltpu.CompilerParams(
            dimension_semantics=("parallel",),
            vmem_limit_bytes=_vmem_limit(2 * (TR * WC * (cbytes + 4) + 2 * WC * 4))),
    )(h2_raw.reshape(NR, WC), s2t, b2t)

    return out_flat.reshape(N, H2, W2d, Cout)


@jax.jit
def up_forward(x1_nchw, x2_nchw, params):
    """Up.forward(x1, x2) with PyTorch NCHW inputs/outputs (layout shim only)."""
    x1 = jnp.transpose(x1_nchw, (0, 2, 3, 1)).astype(jnp.float32)
    x2 = jnp.transpose(x2_nchw, (0, 2, 3, 1)).astype(jnp.float32)
    out = up_forward_nhwc(x1, x2, params)
    return jnp.transpose(out, (0, 3, 1, 2))


def init_params(key, in_channels, out_channels):
    """Synthetic deterministic params (weights in (9, Cin, Cout) tap-major layout)."""
    mid = in_channels // 2
    k1, k2, k3, k4, k5, k6 = jax.random.split(key, 6)
    w1 = 0.2 * jax.random.normal(k1, (9, in_channels, mid), jnp.float32)
    w2 = 0.2 * jax.random.normal(k2, (9, mid, out_channels), jnp.float32)
    g1 = 1.0 + 0.1 * jax.random.normal(k3, (1, mid), jnp.float32)
    b1 = 0.1 * jax.random.normal(k4, (1, mid), jnp.float32)
    g2 = 1.0 + 0.1 * jax.random.normal(k5, (1, out_channels), jnp.float32)
    b2 = 0.1 * jax.random.normal(k6, (1, out_channels), jnp.float32)
    return (w1, g1, b1, w2, g2, b2)


def ref_forward(x1_nchw, x2_nchw, params):
    """Pure-JAX f32 reference (lax.conv) for cross-validation."""
    w1, g1, b1, w2, g2, b2 = params
    x1 = jnp.transpose(x1_nchw, (0, 2, 3, 1)).astype(jnp.float32)
    x2 = jnp.transpose(x2_nchw, (0, 2, 3, 1)).astype(jnp.float32)
    n, h1, w1s, c1 = x1.shape
    _, h2, w2s, _ = x2.shape
    hu, wu = 2 * h1, 2 * w1s
    uh = jnp.asarray(_upsample_matrix(h1, hu))
    uw = jnp.asarray(_upsample_matrix(w1s, wu))
    xu = jnp.einsum('ih,nhwc->niwc', uh, x1)
    xu = jnp.einsum('jw,niwc->nijc', uw, xu)
    dy, dx = h2 - hu, w2s - wu
    xu = jnp.pad(xu, ((0, 0), (dy // 2, dy - dy // 2), (dx // 2, dx - dx // 2), (0, 0)))
    x = jnp.concatenate([x2, xu], axis=-1)

    def conv(inp, wt):
        hwio = wt.reshape(3, 3, wt.shape[1], wt.shape[2])
        return jax.lax.conv_general_dilated(
            inp, hwio, (1, 1), 'SAME', dimension_numbers=('NHWC', 'HWIO', 'NHWC'))

    def bn_relu(h, gamma, beta):
        mu = jnp.mean(h, axis=(0, 1, 2), keepdims=True)
        var = jnp.mean((h - mu) ** 2, axis=(0, 1, 2), keepdims=True)
        y = (h - mu) * jax.lax.rsqrt(var + _EPS) * gamma.reshape(1, 1, 1, -1) \
            + beta.reshape(1, 1, 1, -1)
        return jnp.maximum(y, 0.0)

    h = bn_relu(conv(x, w1), g1, b1)
    h = bn_relu(conv(h, w2), g2, b2)
    return jnp.transpose(h, (0, 3, 1, 2))


if __name__ == "__main__":
    key = jax.random.PRNGKey(0)
    kx1, kx2, kp = jax.random.split(key, 3)

    in_channels, out_channels = 8, 4          # Up(8, 4, bilinear=True); mid = 4
    params = init_params(kp, in_channels, out_channels)

    # Two spatial configs: the second one gives multiple H-tiles per image so
    # the interior conv-halo paths are exercised as well.
    for (h1s, w1s) in [(8, 8), (16, 16)]:
        x1 = jax.random.normal(kx1, (2, in_channels // 2, h1s, w1s), jnp.float32)
        x2 = jax.random.normal(kx2, (2, in_channels // 2, 2 * h1s, 2 * w1s), jnp.float32)

        out = jax.block_until_ready(up_forward(x1, x2, params))
        assert out.shape == (2, out_channels, 2 * h1s, 2 * w1s), out.shape

        ref = ref_forward(x1, x2, params)
        err = float(jnp.max(jnp.abs(out - ref)))
        # bf16 matmul operands / bf16 inter-stage activations (f32 accumulation).
        assert err < 1e-1, f"mismatch vs reference: {err}"

    print("KERNEL_OK")
</pallas_src>

<mosaic_0001>
module attributes {stable_mosaic.version = 11 : i64} {
  func.func @conv1_kernel(%arg0: i32, %arg1: i32, %arg2: memref<1x8x32xbf16, #tpu.memory_space<vmem>>, %arg3: memref<1x16x16x4xbf16, #tpu.memory_space<vmem>>, %arg4: memref<18x8xf32, #tpu.memory_space<vmem>>, %arg5: memref<8x16xf32, #tpu.memory_space<vmem>>, %arg6: memref<72x4xbf16, #tpu.memory_space<vmem>>, %arg7: memref<1x16x16x4xbf16, #tpu.memory_space<vmem>>, %arg8: memref<1x1x2x4xf32, #tpu.memory_space<vmem>>, %arg9: memref<18x32x8xbf16, #tpu.memory_space<vmem>>) attributes {dimension_semantics = [#tpu.dimension_semantics<parallel>, #tpu.dimension_semantics<parallel>], iteration_bounds = array<i64: 2, 1>, scalar_prefetch = 0 : i64, scratch_operands = 1 : i64, tpu.core_type = #tpu.core_type<tc>, window_params = [{transform_indices = @transform_0, window_bounds = array<i64: 1, 8, 32>}, {transform_indices = @transform_1, window_bounds = array<i64: 1, 16, 16, 4>}, {pipeline_mode = #tpu.pipeline_mode<synchronous>, transform_indices = @transform_2, window_bounds = array<i64: 18, 8>}, {pipeline_mode = #tpu.pipeline_mode<synchronous>, transform_indices = @transform_3, window_bounds = array<i64: 8, 16>}, {pipeline_mode = #tpu.pipeline_mode<synchronous>, transform_indices = @transform_4, window_bounds = array<i64: 72, 4>}, {transform_indices = @transform_5, window_bounds = array<i64: 1, 16, 16, 4>}, {transform_indices = @transform_6, window_bounds = array<i64: 1, 1, 2, 4>}]} {
    %c16_i32 = arith.constant 16 : i32
    %0 = arith.muli %arg1, %c16_i32 : i32
    %1 = tpu.assume_multiple %0, 16 : i32
    %cst = arith.constant 0.000000e+00 : bf16
    %2 = vector.broadcast %cst : bf16 to vector<18x8x8xbf16>
    %c0 = arith.constant 0 : index
    %c0_0 = arith.constant 0 : index
    %c0_1 = arith.constant 0 : index
    %3 = vector.load %arg9[%c0, %c0_0, %c0_1] : memref<18x32x8xbf16, #tpu.memory_space<vmem>>, vector<18x8x8xbf16>
    tpu.vector_store %arg9[%c0, %c0_0, %c0_1], %2 {strides = array<i32>} : memref<18x32x8xbf16, #tpu.memory_space<vmem>>, vector<18x8x8xbf16>,
    %cst_2 = arith.constant 0.000000e+00 : bf16
    %4 = vector.broadcast %cst_2 : bf16 to vector<18x8x8xbf16>
    %c0_3 = arith.constant 0 : index
    %c24 = arith.constant 24 : index
    %c0_4 = arith.constant 0 : index
    %5 = vector.load %arg9[%c0_3, %c24, %c0_4] : memref<18x32x8xbf16, #tpu.memory_space<vmem>>, vector<18x8x8xbf16>
    tpu.vector_store %arg9[%c0_3, %c24, %c0_4], %4 {strides = array<i32>} : memref<18x32x8xbf16, #tpu.memory_space<vmem>>, vector<18x8x8xbf16>,
    %6 = arith.index_cast %1 : i32 to index
    %c0_5 = arith.constant 0 : index
    %7 = vector.load %arg4[%6, %c0_5] : memref<18x8xf32, #tpu.memory_space<vmem>>, vector<18x8xf32>
    %c0_6 = arith.constant 0 : index
    %c0_7 = arith.constant 0 : index
    %c0_8 = arith.constant 0 : index
    %8 = vector.load %arg2[%c0_6, %c0_7, %c0_8] : memref<1x8x32xbf16, #tpu.memory_space<vmem>>, vector<1x8x32xbf16>
    %9 = vector.shape_cast %8 : vector<1x8x32xbf16> to vector<8x32xbf16>
    %10 = arith.extf %9 : vector<8x32xbf16> to vector<8x32xf32>
    %cst_9 = arith.constant dense<0.000000e+00> : vector<18x32xf32>
    %11 = tpu.matmul %7, %10, %cst_9 {dimension_numbers = #tpu.dot_dimension_numbers<[1], [0], [0], [1], [0, 0, 1, 1], [], []>} : vector<18x8xf32>, vector<8x32xf32>, vector<18x32xf32> -> vector<18x32xf32>
    %12 = vector.shape_cast %11 : vector<18x32xf32> to vector<18x8x4xf32>
    %13 = tpu.transpose %12, [0, 2, 1] : vector<18x8x4xf32> -> vector<18x4x8xf32>
    %14 = vector.shape_cast %13 : vector<18x4x8xf32> to vector<72x8xf32>
    %c0_10 = arith.constant 0 : index
    %c0_11 = arith.constant 0 : index
    %15 = vector.load %arg5[%c0_10, %c0_11] : memref<8x16xf32, #tpu.memory_space<vmem>>, vector<8x16xf32>
    %cst_12 = arith.constant dense<0.000000e+00> : vector<72x16xf32>
    %16 = tpu.matmul %14, %15, %cst_12 {dimension_numbers = #tpu.dot_dimension_numbers<[1], [0], [0], [1], [0, 0, 1, 1], [], []>} : vector<72x8xf32>, vector<8x16xf32>, vector<72x16xf32> -> vector<72x16xf32>
    %17 = vector.shape_cast %16 : vector<72x16xf32> to vector<18x4x16xf32>
    %18 = tpu.transpose %17, [0, 2, 1] : vector<18x4x16xf32> -> vector<18x16x4xf32>
    %19 = arith.truncf %18 : vector<18x16x4xf32> to vector<18x16x4xbf16>
    %c0_13 = arith.constant 0 : index
    %c8 = arith.constant 8 : index
    %c4 = arith.constant 4 : index
    %20 = vector.load %arg9[%c0_13, %c8, %c4] : memref<18x32x8xbf16, #tpu.memory_space<vmem>>, vector<18x16x4xbf16>
    tpu.vector_store %arg9[%c0_13, %c8, %c4], %19 {strides = array<i32>} : memref<18x32x8xbf16, #tpu.memory_space<vmem>>, vector<18x16x4xbf16>,
    %c0_14 = arith.constant 0 : index
    %21 = arith.index_cast %1 : i32 to index
    %c0_15 = arith.constant 0 : index
    %c0_16 = arith.constant 0 : index
    %22 = vector.load %arg3[%c0_14, %21, %c0_15, %c0_16] : memref<1x16x16x4xbf16, #tpu.memory_space<vmem>>, vector<1x16x16x4xbf16>
    %23 = vector.shape_cast %22 : vector<1x16x16x4xbf16> to vector<16x16x4xbf16>
    %c1 = arith.constant 1 : index
    %c8_17 = arith.constant 8 : index
    %c0_18 = arith.constant 0 : index
    %24 = vector.load %arg9[%c1, %c8_17, %c0_18] : memref<18x32x8xbf16, #tpu.memory_space<vmem>>, vector<16x16x4xbf16>
    tpu.vector_store %arg9[%c1, %c8_17, %c0_18], %23 {strides = array<i32>} : memref<18x32x8xbf16, #tpu.memory_space<vmem>>, vector<16x16x4xbf16>,
    %c1_i32 = arith.constant 1 : i32
    %25 = arith.subi %1, %c1_i32 : i32
    %c0_i32 = arith.constant 0 : i32
    %26 = arith.maxsi %25, %c0_i32 : i32
    %c0_19 = arith.constant 0 : index
    %27 = arith.index_cast %26 : i32 to index
    %c0_20 = arith.constant 0 : index
    %c0_21 = arith.constant 0 : index
    %28 = vector.load %arg3[%c0_19, %27, %c0_20, %c0_21] : memref<1x16x16x4xbf16, #tpu.memory_space<vmem>>, vector<1x1x16x4xbf16>
    %29 = vector.shape_cast %28 : vector<1x1x16x4xbf16> to vector<1x16x4xbf16>
    %c0_i32_22 = arith.constant 0 : i32
    %30 = arith.cmpi sgt, %1, %c0_i32_22 : i32
    %cst_23 = arith.constant 0.000000e+00 : bf16
    %31 = vector.broadcast %cst_23 : bf16 to vector<1x16x4xbf16>
    %32 = arith.select %30, %29, %31 : vector<1x16x4xbf16>
    %c0_24 = arith.constant 0 : index
    %c8_25 = arith.constant 8 : index
    %c0_26 = arith.constant 0 : index
    %33 = vector.load %arg9[%c0_24, %c8_25, %c0_26] : memref<18x32x8xbf16, #tpu.memory_space<vmem>>, vector<1x16x4xbf16>
    tpu.vector_store %arg9[%c0_24, %c8_25, %c0_26], %32 {strides = array<i32>} : memref<18x32x8xbf16, #tpu.memory_space<vmem>>, vector<1x16x4xbf16>,
    %c16_i32_27 = arith.constant 16 : i32
    %34 = arith.addi %1, %c16_i32_27 : i32
    %c15_i32 = arith.constant 15 : i32
    %35 = arith.minsi %34, %c15_i32 : i32
    %c0_28 = arith.constant 0 : index
    %36 = arith.index_cast %35 : i32 to index
    %c0_29 = arith.constant 0 : index
    %c0_30 = arith.constant 0 : index
    %37 = vector.load %arg3[%c0_28, %36, %c0_29, %c0_30] : memref<1x16x16x4xbf16, #tpu.memory_space<vmem>>, vector<1x1x16x4xbf16>
    %38 = vector.shape_cast %37 : vector<1x1x16x4xbf16> to vector<1x16x4xbf16>
    %c16_i32_31 = arith.constant 16 : i32
    %39 = arith.addi %1, %c16_i32_31 : i32
    %c16_i32_32 = arith.constant 16 : i32
    %40 = arith.cmpi slt, %39, %c16_i32_32 : i32
    %cst_33 = arith.constant 0.000000e+00 : bf16
    %41 = vector.broadcast %cst_33 : bf16 to vector<1x16x4xbf16>
    %42 = arith.select %40, %38, %41 : vector<1x16x4xbf16>
    %c17 = arith.constant 17 : index
    %c8_34 = arith.constant 8 : index
    %c0_35 = arith.constant 0 : index
    %43 = vector.load %arg9[%c17, %c8_34, %c0_35] : memref<18x32x8xbf16, #tpu.memory_space<vmem>>, vector<1x16x4xbf16>
    tpu.vector_store %arg9[%c17, %c8_34, %c0_35], %42 {strides = array<i32>} : memref<18x32x8xbf16, #tpu.memory_space<vmem>>, vector<1x16x4xbf16>,
    %c0_36 = arith.constant 0 : index
    %c7 = arith.constant 7 : index
    %c0_37 = arith.constant 0 : index
    %44 = vector.load %arg9[%c0_36, %c7, %c0_37] : memref<18x32x8xbf16, #tpu.memory_space<vmem>>, vector<16x16x8xbf16>
    %c0_38 = arith.constant 0 : index
    %c8_39 = arith.constant 8 : index
    %c0_40 = arith.constant 0 : index
    %45 = vector.load %arg9[%c0_38, %c8_39, %c0_40] : memref<18x32x8xbf16, #tpu.memory_space<vmem>>, vector<16x16x8xbf16>
    %c0_41 = arith.constant 0 : index
    %c9 = arith.constant 9 : index
    %c0_42 = arith.constant 0 : index
    %46 = vector.load %arg9[%c0_41, %c9, %c0_42] : memref<18x32x8xbf16, #tpu.memory_space<vmem>>, vector<16x16x8xbf16>
    %c1_43 = arith.constant 1 : index
    %c7_44 = arith.constant 7 : index
    %c0_45 = arith.constant 0 : index
    %47 = vector.load %arg9[%c1_43, %c7_44, %c0_45] : memref<18x32x8xbf16, #tpu.memory_space<vmem>>, vector<16x16x8xbf16>
    %c1_46 = arith.constant 1 : index
    %c8_47 = arith.constant 8 : index
    %c0_48 = arith.constant 0 : index
    %48 = vector.load %arg9[%c1_46, %c8_47, %c0_48] : memref<18x32x8xbf16, #tpu.memory_space<vmem>>, vector<16x16x8xbf16>
    %c1_49 = arith.constant 1 : index
    %c9_50 = arith.constant 9 : index
    %c0_51 = arith.constant 0 : index
    %49 = vector.load %arg9[%c1_49, %c9_50, %c0_51] : memref<18x32x8xbf16, #tpu.memory_space<vmem>>, vector<16x16x8xbf16>
    %c2 = arith.constant 2 : index
    %c7_52 = arith.constant 7 : index
    %c0_53 = arith.constant 0 : index
    %50 = vector.load %arg9[%c2, %c7_52, %c0_53] : memref<18x32x8xbf16, #tpu.memory_space<vmem>>, vector<16x16x8xbf16>
    %c2_54 = arith.constant 2 : index
    %c8_55 = arith.constant 8 : index
    %c0_56 = arith.constant 0 : index
    %51 = vector.load %arg9[%c2_54, %c8_55, %c0_56] : memref<18x32x8xbf16, #tpu.memory_space<vmem>>, vector<16x16x8xbf16>
    %c2_57 = arith.constant 2 : index
    %c9_58 = arith.constant 9 : index
    %c0_59 = arith.constant 0 : index
    %52 = vector.load %arg9[%c2_57, %c9_58, %c0_59] : memref<18x32x8xbf16, #tpu.memory_space<vmem>>, vector<16x16x8xbf16>
    %53 = tpu.concatenate %44, %45, %46, %47, %48, %49, %50, %51, %52 in 2 : vector<16x16x8xbf16>, vector<16x16x8xbf16>, vector<16x16x8xbf16>, vector<16x16x8xbf16>, vector<16x16x8xbf16>, vector<16x16x8xbf16>, vector<16x16x8xbf16>, vector<16x16x8xbf16>, vector<16x16x8xbf16> -> vector<16x16x72xbf16>
    %54 = vector.shape_cast %53 : vector<16x16x72xbf16> to vector<256x72xbf16>
    %c0_60 = arith.constant 0 : index
    %c0_61 = arith.constant 0 : index
    %55 = vector.load %arg6[%c0_60, %c0_61] : memref<72x4xbf16, #tpu.memory_space<vmem>>, vector<72x4xbf16>
    %cst_62 = arith.constant dense<0.000000e+00> : vector<256x4xf32>
    %56 = tpu.matmul %54, %55, %cst_62 {dimension_numbers = #tpu.dot_dimension_numbers<[1], [0], [0], [1], [0, 0, 1, 1], [], []>} : vector<256x72xbf16>, vector<72x4xbf16>, vector<256x4xf32> -> vector<256x4xf32>
    %cst_63 = arith.constant dense<0.000000e+00> : vector<4xf32>
    %57 = vector.multi_reduction <add>, %56, %cst_63 [0] : vector<256x4xf32> to vector<4xf32>
    %58 = vector.shape_cast %57 : vector<4xf32> to vector<1x4xf32>
    %59 = arith.mulf %56, %56 : vector<256x4xf32>
    %cst_64 = arith.constant dense<0.000000e+00> : vector<4xf32>
    %60 = vector.multi_reduction <add>, %59, %cst_64 [0] : vector<256x4xf32> to vector<4xf32>
    %61 = vector.shape_cast %60 : vector<4xf32> to vector<1x4xf32>
    %62 = tpu.concatenate %58, %61 in 0 : vector<1x4xf32>, vector<1x4xf32> -> vector<2x4xf32>
    %c0_65 = arith.constant 0 : index
    %c0_66 = arith.constant 0 : index
    %c0_67 = arith.constant 0 : index
    %c0_68 = arith.constant 0 : index
    %63 = vector.load %arg8[%c0_65, %c0_66, %c0_67, %c0_68] : memref<1x1x2x4xf32, #tpu.memory_space<vmem>>, vector<1x1x2x4xf32>
    %64 = vector.shape_cast %63 : vector<1x1x2x4xf32> to vector<2x4xf32>
    %65 = vector.shape_cast %62 : vector<2x4xf32> to vector<1x1x2x4xf32>
    tpu.vector_store %arg8[%c0_65, %c0_66, %c0_67, %c0_68], %65 {strides = array<i32>} : memref<1x1x2x4xf32, #tpu.memory_space<vmem>>, vector<1x1x2x4xf32>,
    %66 = vector.shape_cast %56 : vector<256x4xf32> to vector<16x16x4xf32>
    %67 = arith.truncf %66 : vector<16x16x4xf32> to vector<16x16x4xbf16>
    %c0_69 = arith.constant 0 : index
    %c0_70 = arith.constant 0 : index
    %c0_71 = arith.constant 0 : index
    %c0_72 = arith.constant 0 : index
    %68 = vector.load %arg7[%c0_69, %c0_70, %c0_71, %c0_72] : memref<1x16x16x4xbf16, #tpu.memory_space<vmem>>, vector<1x16x16x4xbf16>
    %69 = vector.shape_cast %68 : vector<1x16x16x4xbf16> to vector<16x16x4xbf16>
    %70 = vector.shape_cast %67 : vector<16x16x4xbf16> to vector<1x16x16x4xbf16>
    tpu.vector_store %arg7[%c0_69, %c0_70, %c0_71, %c0_72], %70 {strides = array<i32>} : memref<1x16x16x4xbf16, #tpu.memory_space<vmem>>, vector<1x16x16x4xbf16>,
    return
  }
  func.func @transform_0(%arg0: i32, %arg1: i32) -> (i32, i32, i32) {
    %c0_i32 = arith.constant 0 : i32
    %c0_i32_0 = arith.constant 0 : i32
    %c0_i32_1 = arith.constant 0 : i32
    return %arg0, %c0_i32, %c0_i32_0 : i32, i32, i32
  }
  func.func @transform_1(%arg0: i32, %arg1: i32) -> (i32, i32, i32, i32) {
    %c0_i32 = arith.constant 0 : i32
    %c0_i32_0 = arith.constant 0 : i32
    %c0_i32_1 = arith.constant 0 : i32
    %c0_i32_2 = arith.constant 0 : i32
    return %arg0, %c0_i32, %c0_i32_0, %c0_i32_1 : i32, i32, i32, i32
  }
  func.func @transform_2(%arg0: i32, %arg1: i32) -> (i32, i32) {
    %c0_i32 = arith.constant 0 : i32
    %c0_i32_0 = arith.constant 0 : i32
    %c0_i32_1 = arith.constant 0 : i32
    return %c0_i32, %c0_i32_0 : i32, i32
  }
  func.func @transform_3(%arg0: i32, %arg1: i32) -> (i32, i32) {
    %c0_i32 = arith.constant 0 : i32
    %c0_i32_0 = arith.constant 0 : i32
    %c0_i32_1 = arith.constant 0 : i32
    return %c0_i32, %c0_i32_0 : i32, i32
  }
  func.func @transform_4(%arg0: i32, %arg1: i32) -> (i32, i32) {
    %c0_i32 = arith.constant 0 : i32
    %c0_i32_0 = arith.constant 0 : i32
    %c0_i32_1 = arith.constant 0 : i32
    return %c0_i32, %c0_i32_0 : i32, i32
  }
  func.func @transform_5(%arg0: i32, %arg1: i32) -> (i32, i32, i32, i32) {
    %c0_i32 = arith.constant 0 : i32
    %c0_i32_0 = arith.constant 0 : i32
    %c0_i32_1 = arith.constant 0 : i32
    return %arg0, %arg1, %c0_i32, %c0_i32_0 : i32, i32, i32, i32
  }
  func.func @transform_6(%arg0: i32, %arg1: i32) -> (i32, i32, i32, i32) {
    %c0_i32 = arith.constant 0 : i32
    %c0_i32_0 = arith.constant 0 : i32
    %c0_i32_1 = arith.constant 0 : i32
    return %arg0, %arg1, %c0_i32, %c0_i32_0 : i32, i32, i32, i32
  }
}

module attributes {stable_mosaic.version = 11 : i64} {
  func.func @bn2_relu_kernel(%arg0: i32, %arg1: memref<32x64xbf16, #tpu.memory_space<vmem>>, %arg2: memref<1x64xf32, #tpu.memory_space<vmem>>, %arg3: memref<1x64xf32, #tpu.memory_space<vmem>>, %arg4: memref<32x64xf32, #tpu.memory_space<vmem>>) attributes {dimension_semantics = [#tpu.dimension_semantics<parallel>], iteration_bounds = array<i64: 1>, scalar_prefetch = 0 : i64, scratch_operands = 0 : i64, tpu.core_type = #tpu.core_type<tc>, window_params = [{transform_indices = @transform_0, window_bounds = array<i64: 32, 64>}, {pipeline_mode = #tpu.pipeline_mode<synchronous>, transform_indices = @transform_1, window_bounds = array<i64: 1, 64>}, {pipeline_mode = #tpu.pipeline_mode<synchronous>, transform_indices = @transform_2, window_bounds = array<i64: 1, 64>}, {transform_indices = @transform_3, window_bounds = array<i64: 32, 64>}]} {
    %c0 = arith.constant 0 : index
    %c0_0 = arith.constant 0 : index
    %0 = vector.load %arg1[%c0, %c0_0] : memref<32x64xbf16, #tpu.memory_space<vmem>>, vector<32x64xbf16>
    %1 = arith.extf %0 : vector<32x64xbf16> to vector<32x64xf32>
    %c0_1 = arith.constant 0 : index
    %c0_2 = arith.constant 0 : index
    %2 = vector.load %arg2[%c0_1, %c0_2] : memref<1x64xf32, #tpu.memory_space<vmem>>, vector<1x64xf32>
    %3 = vector.broadcast %2 : vector<1x64xf32> to vector<32x64xf32>
    %4 = arith.mulf %1, %3 : vector<32x64xf32>
    %c0_3 = arith.constant 0 : index
    %c0_4 = arith.constant 0 : index
    %5 = vector.load %arg3[%c0_3, %c0_4] : memref<1x64xf32, #tpu.memory_space<vmem>>, vector<1x64xf32>
    %6 = vector.broadcast %5 : vector<1x64xf32> to vector<32x64xf32>
    %7 = arith.addf %4, %6 : vector<32x64xf32>
    %cst = arith.constant 0.000000e+00 : f32
    %8 = vector.broadcast %cst : f32 to vector<32x64xf32>
    %9 = arith.maximumf %7, %8 : vector<32x64xf32>
    %c0_5 = arith.constant 0 : index
    %c0_6 = arith.constant 0 : index
    %10 = vector.load %arg4[%c0_5, %c0_6] : memref<32x64xf32, #tpu.memory_space<vmem>>, vector<32x64xf32>
    tpu.vector_store %arg4[%c0_5, %c0_6], %9 {strides = array<i32>} : memref<32x64xf32, #tpu.memory_space<vmem>>, vector<32x64xf32>,
    return
  }
  func.func @transform_0(%arg0: i32) -> (i32, i32) {
    %c0_i32 = arith.constant 0 : i32
    %c0_i32_0 = arith.constant 0 : i32
    return %arg0, %c0_i32 : i32, i32
  }
  func.func @transform_1(%arg0: i32) -> (i32, i32) {
    %c0_i32 = arith.constant 0 : i32
    %c0_i32_0 = arith.constant 0 : i32
    %c0_i32_1 = arith.constant 0 : i32
    return %c0_i32, %c0_i32_0 : i32, i32
  }
  func.func @transform_2(%arg0: i32) -> (i32, i32) {
    %c0_i32 = arith.constant 0 : i32
    %c0_i32_0 = arith.constant 0 : i32
    %c0_i32_1 = arith.constant 0 : i32
    return %c0_i32, %c0_i32_0 : i32, i32
  }
  func.func @transform_3(%arg0: i32) -> (i32, i32) {
    %c0_i32 = arith.constant 0 : i32
    %c0_i32_0 = arith.constant 0 : i32
    return %arg0, %c0_i32 : i32, i32
  }
}

module attributes {stable_mosaic.version = 11 : i64} {
  func.func @conv2_kernel(%arg0: i32, %arg1: i32, %arg2: memref<1x16x16x4xbf16, #tpu.memory_space<vmem>>, %arg3: memref<1x4xf32, #tpu.memory_space<vmem>>, %arg4: memref<1x4xf32, #tpu.memory_space<vmem>>, %arg5: memref<36x4xbf16, #tpu.memory_space<vmem>>, %arg6: memref<1x16x16x4xbf16, #tpu.memory_space<vmem>>, %arg7: memref<1x1x2x4xf32, #tpu.memory_space<vmem>>, %arg8: memref<18x32x4xbf16, #tpu.memory_space<vmem>>) attributes {dimension_semantics = [#tpu.dimension_semantics<parallel>, #tpu.dimension_semantics<parallel>], iteration_bounds = array<i64: 2, 1>, scalar_prefetch = 0 : i64, scratch_operands = 1 : i64, tpu.core_type = #tpu.core_type<tc>, window_params = [{transform_indices = @transform_0, window_bounds = array<i64: 1, 16, 16, 4>}, {pipeline_mode = #tpu.pipeline_mode<synchronous>, transform_indices = @transform_1, window_bounds = array<i64: 1, 4>}, {pipeline_mode = #tpu.pipeline_mode<synchronous>, transform_indices = @transform_2, window_bounds = array<i64: 1, 4>}, {pipeline_mode = #tpu.pipeline_mode<synchronous>, transform_indices = @transform_3, window_bounds = array<i64: 36, 4>}, {transform_indices = @transform_4, window_bounds = array<i64: 1, 16, 16, 4>}, {transform_indices = @transform_5, window_bounds = array<i64: 1, 1, 2, 4>}]} {
    %c16_i32 = arith.constant 16 : i32
    %0 = arith.muli %arg1, %c16_i32 : i32
    %1 = tpu.assume_multiple %0, 16 : i32
    %cst = arith.constant 0.000000e+00 : bf16
    %2 = vector.broadcast %cst : bf16 to vector<18x8x4xbf16>
    %c0 = arith.constant 0 : index
    %c0_0 = arith.constant 0 : index
    %c0_1 = arith.constant 0 : index
    %3 = vector.load %arg8[%c0, %c0_0, %c0_1] : memref<18x32x4xbf16, #tpu.memory_space<vmem>>, vector<18x8x4xbf16>
    tpu.vector_store %arg8[%c0, %c0_0, %c0_1], %2 {strides = array<i32>} : memref<18x32x4xbf16, #tpu.memory_space<vmem>>, vector<18x8x4xbf16>,
    %cst_2 = arith.constant 0.000000e+00 : bf16
    %4 = vector.broadcast %cst_2 : bf16 to vector<18x8x4xbf16>
    %c0_3 = arith.constant 0 : index
    %c24 = arith.constant 24 : index
    %c0_4 = arith.constant 0 : index
    %5 = vector.load %arg8[%c0_3, %c24, %c0_4] : memref<18x32x4xbf16, #tpu.memory_space<vmem>>, vector<18x8x4xbf16>
    tpu.vector_store %arg8[%c0_3, %c24, %c0_4], %4 {strides = array<i32>} : memref<18x32x4xbf16, #tpu.memory_space<vmem>>, vector<18x8x4xbf16>,
    %c0_5 = arith.constant 0 : index
    %c0_6 = arith.constant 0 : index
    %6 = vector.load %arg3[%c0_5, %c0_6] : memref<1x4xf32, #tpu.memory_space<vmem>>, vector<1x4xf32>
    %7 = vector.shape_cast %6 : vector<1x4xf32> to vector<1x1x4xf32>
    %c0_7 = arith.constant 0 : index
    %c0_8 = arith.constant 0 : index
    %8 = vector.load %arg4[%c0_7, %c0_8] : memref<1x4xf32, #tpu.memory_space<vmem>>, vector<1x4xf32>
    %9 = vector.shape_cast %8 : vector<1x4xf32> to vector<1x1x4xf32>
    %c0_9 = arith.constant 0 : index
    %10 = arith.index_cast %1 : i32 to index
    %c0_10 = arith.constant 0 : index
    %c0_11 = arith.constant 0 : index
    %11 = vector.load %arg2[%c0_9, %10, %c0_10, %c0_11] : memref<1x16x16x4xbf16, #tpu.memory_space<vmem>>, vector<1x16x16x4xbf16>
    %12 = vector.shape_cast %11 : vector<1x16x16x4xbf16> to vector<16x16x4xbf16>
    %13 = arith.extf %12 : vector<16x16x4xbf16> to vector<16x16x4xf32>
    %14 = vector.broadcast %7 : vector<1x1x4xf32> to vector<16x16x4xf32>
    %15 = arith.mulf %13, %14 : vector<16x16x4xf32>
    %16 = vector.broadcast %9 : vector<1x1x4xf32> to vector<16x16x4xf32>
    %17 = arith.addf %15, %16 : vector<16x16x4xf32>
    %cst_12 = arith.constant 0.000000e+00 : f32
    %18 = vector.broadcast %cst_12 : f32 to vector<16x16x4xf32>
    %19 = arith.maximumf %17, %18 : vector<16x16x4xf32>
    %20 = arith.truncf %19 : vector<16x16x4xf32> to vector<16x16x4xbf16>
    %c1 = arith.constant 1 : index
    %c8 = arith.constant 8 : index
    %c0_13 = arith.constant 0 : index
    %21 = vector.load %arg8[%c1, %c8, %c0_13] : memref<18x32x4xbf16, #tpu.memory_space<vmem>>, vector<16x16x4xbf16>
    tpu.vector_store %arg8[%c1, %c8, %c0_13], %20 {strides = array<i32>} : memref<18x32x4xbf16, #tpu.memory_space<vmem>>, vector<16x16x4xbf16>,
    %c1_i32 = arith.constant 1 : i32
    %22 = arith.subi %1, %c1_i32 : i32
    %c0_i32 = arith.constant 0 : i32
    %23 = arith.maxsi %22, %c0_i32 : i32
    %c0_14 = arith.constant 0 : index
    %24 = arith.index_cast %23 : i32 to index
    %c0_15 = arith.constant 0 : index
    %c0_16 = arith.constant 0 : index
    %25 = vector.load %arg2[%c0_14, %24, %c0_15, %c0_16] : memref<1x16x16x4xbf16, #tpu.memory_space<vmem>>, vector<1x1x16x4xbf16>
    %26 = vector.shape_cast %25 : vector<1x1x16x4xbf16> to vector<1x16x4xbf16>
    %27 = arith.extf %26 : vector<1x16x4xbf16> to vector<1x16x4xf32>
    %28 = vector.broadcast %7 : vector<1x1x4xf32> to vector<1x16x4xf32>
    %29 = arith.mulf %27, %28 : vector<1x16x4xf32>
    %30 = vector.broadcast %9 : vector<1x1x4xf32> to vector<1x16x4xf32>
    %31 = arith.addf %29, %30 : vector<1x16x4xf32>
    %cst_17 = arith.constant 0.000000e+00 : f32
    %32 = vector.broadcast %cst_17 : f32 to vector<1x16x4xf32>
    %33 = arith.maximumf %31, %32 : vector<1x16x4xf32>
    %c0_i32_18 = arith.constant 0 : i32
    %34 = arith.cmpi sgt, %1, %c0_i32_18 : i32
    %cst_19 = arith.constant 0.000000e+00 : f32
    %35 = vector.broadcast %cst_19 : f32 to vector<1x16x4xf32>
    %36 = arith.select %34, %33, %35 : vector<1x16x4xf32>
    %37 = arith.truncf %36 : vector<1x16x4xf32> to vector<1x16x4xbf16>
    %c0_20 = arith.constant 0 : index
    %c8_21 = arith.constant 8 : index
    %c0_22 = arith.constant 0 : index
    %38 = vector.load %arg8[%c0_20, %c8_21, %c0_22] : memref<18x32x4xbf16, #tpu.memory_space<vmem>>, vector<1x16x4xbf16>
    tpu.vector_store %arg8[%c0_20, %c8_21, %c0_22], %37 {strides = array<i32>} : memref<18x32x4xbf16, #tpu.memory_space<vmem>>, vector<1x16x4xbf16>,
    %c16_i32_23 = arith.constant 16 : i32
    %39 = arith.addi %1, %c16_i32_23 : i32
    %c15_i32 = arith.constant 15 : i32
    %40 = arith.minsi %39, %c15_i32 : i32
    %c0_24 = arith.constant 0 : index
    %41 = arith.index_cast %40 : i32 to index
    %c0_25 = arith.constant 0 : index
    %c0_26 = arith.constant 0 : index
    %42 = vector.load %arg2[%c0_24, %41, %c0_25, %c0_26] : memref<1x16x16x4xbf16, #tpu.memory_space<vmem>>, vector<1x1x16x4xbf16>
    %43 = vector.shape_cast %42 : vector<1x1x16x4xbf16> to vector<1x16x4xbf16>
    %44 = arith.extf %43 : vector<1x16x4xbf16> to vector<1x16x4xf32>
    %45 = vector.broadcast %7 : vector<1x1x4xf32> to vector<1x16x4xf32>
    %46 = arith.mulf %44, %45 : vector<1x16x4xf32>
    %47 = vector.broadcast %9 : vector<1x1x4xf32> to vector<1x16x4xf32>
    %48 = arith.addf %46, %47 : vector<1x16x4xf32>
    %cst_27 = arith.constant 0.000000e+00 : f32
    %49 = vector.broadcast %cst_27 : f32 to vector<1x16x4xf32>
    %50 = arith.maximumf %48, %49 : vector<1x16x4xf32>
    %c16_i32_28 = arith.constant 16 : i32
    %51 = arith.addi %1, %c16_i32_28 : i32
    %c16_i32_29 = arith.constant 16 : i32
    %52 = arith.cmpi slt, %51, %c16_i32_29 : i32
    %cst_30 = arith.constant 0.000000e+00 : f32
    %53 = vector.broadcast %cst_30 : f32 to vector<1x16x4xf32>
    %54 = arith.select %52, %50, %53 : vector<1x16x4xf32>
    %55 = arith.truncf %54 : vector<1x16x4xf32> to vector<1x16x4xbf16>
    %c17 = arith.constant 17 : index
    %c8_31 = arith.constant 8 : index
    %c0_32 = arith.constant 0 : index
    %56 = vector.load %arg8[%c17, %c8_31, %c0_32] : memref<18x32x4xbf16, #tpu.memory_space<vmem>>, vector<1x16x4xbf16>
    tpu.vector_store %arg8[%c17, %c8_31, %c0_32], %55 {strides = array<i32>} : memref<18x32x4xbf16, #tpu.memory_space<vmem>>, vector<1x16x4xbf16>,
    %c0_33 = arith.constant 0 : index
    %c7 = arith.constant 7 : index
    %c0_34 = arith.constant 0 : index
    %57 = vector.load %arg8[%c0_33, %c7, %c0_34] : memref<18x32x4xbf16, #tpu.memory_space<vmem>>, vector<16x16x4xbf16>
    %c0_35 = arith.constant 0 : index
    %c8_36 = arith.constant 8 : index
    %c0_37 = arith.constant 0 : index
    %58 = vector.load %arg8[%c0_35, %c8_36, %c0_37] : memref<18x32x4xbf16, #tpu.memory_space<vmem>>, vector<16x16x4xbf16>
    %c0_38 = arith.constant 0 : index
    %c9 = arith.constant 9 : index
    %c0_39 = arith.constant 0 : index
    %59 = vector.load %arg8[%c0_38, %c9, %c0_39] : memref<18x32x4xbf16, #tpu.memory_space<vmem>>, vector<16x16x4xbf16>
    %c1_40 = arith.constant 1 : index
    %c7_41 = arith.constant 7 : index
    %c0_42 = arith.constant 0 : index
    %60 = vector.load %arg8[%c1_40, %c7_41, %c0_42] : memref<18x32x4xbf16, #tpu.memory_space<vmem>>, vector<16x16x4xbf16>
    %c1_43 = arith.constant 1 : index
    %c8_44 = arith.constant 8 : index
    %c0_45 = arith.constant 0 : index
    %61 = vector.load %arg8[%c1_43, %c8_44, %c0_45] : memref<18x32x4xbf16, #tpu.memory_space<vmem>>, vector<16x16x4xbf16>
    %c1_46 = arith.constant 1 : index
    %c9_47 = arith.constant 9 : index
    %c0_48 = arith.constant 0 : index
    %62 = vector.load %arg8[%c1_46, %c9_47, %c0_48] : memref<18x32x4xbf16, #tpu.memory_space<vmem>>, vector<16x16x4xbf16>
    %c2 = arith.constant 2 : index
    %c7_49 = arith.constant 7 : index
    %c0_50 = arith.constant 0 : index
    %63 = vector.load %arg8[%c2, %c7_49, %c0_50] : memref<18x32x4xbf16, #tpu.memory_space<vmem>>, vector<16x16x4xbf16>
    %c2_51 = arith.constant 2 : index
    %c8_52 = arith.constant 8 : index
    %c0_53 = arith.constant 0 : index
    %64 = vector.load %arg8[%c2_51, %c8_52, %c0_53] : memref<18x32x4xbf16, #tpu.memory_space<vmem>>, vector<16x16x4xbf16>
    %c2_54 = arith.constant 2 : index
    %c9_55 = arith.constant 9 : index
    %c0_56 = arith.constant 0 : index
    %65 = vector.load %arg8[%c2_54, %c9_55, %c0_56] : memref<18x32x4xbf16, #tpu.memory_space<vmem>>, vector<16x16x4xbf16>
    %66 = tpu.concatenate %57, %58, %59, %60, %61, %62, %63, %64, %65 in 2 : vector<16x16x4xbf16>, vector<16x16x4xbf16>, vector<16x16x4xbf16>, vector<16x16x4xbf16>, vector<16x16x4xbf16>, vector<16x16x4xbf16>, vector<16x16x4xbf16>, vector<16x16x4xbf16>, vector<16x16x4xbf16> -> vector<16x16x36xbf16>
    %67 = vector.shape_cast %66 : vector<16x16x36xbf16> to vector<256x36xbf16>
    %c0_57 = arith.constant 0 : index
    %c0_58 = arith.constant 0 : index
    %68 = vector.load %arg5[%c0_57, %c0_58] : memref<36x4xbf16, #tpu.memory_space<vmem>>, vector<36x4xbf16>
    %cst_59 = arith.constant dense<0.000000e+00> : vector<256x4xf32>
    %69 = tpu.matmul %67, %68, %cst_59 {dimension_numbers = #tpu.dot_dimension_numbers<[1], [0], [0], [1], [0, 0, 1, 1], [], []>} : vector<256x36xbf16>, vector<36x4xbf16>, vector<256x4xf32> -> vector<256x4xf32>
    %cst_60 = arith.constant dense<0.000000e+00> : vector<4xf32>
    %70 = vector.multi_reduction <add>, %69, %cst_60 [0] : vector<256x4xf32> to vector<4xf32>
    %71 = vector.shape_cast %70 : vector<4xf32> to vector<1x4xf32>
    %72 = arith.mulf %69, %69 : vector<256x4xf32>
    %cst_61 = arith.constant dense<0.000000e+00> : vector<4xf32>
    %73 = vector.multi_reduction <add>, %72, %cst_61 [0] : vector<256x4xf32> to vector<4xf32>
    %74 = vector.shape_cast %73 : vector<4xf32> to vector<1x4xf32>
    %75 = tpu.concatenate %71, %74 in 0 : vector<1x4xf32>, vector<1x4xf32> -> vector<2x4xf32>
    %c0_62 = arith.constant 0 : index
    %c0_63 = arith.constant 0 : index
    %c0_64 = arith.constant 0 : index
    %c0_65 = arith.constant 0 : index
    %76 = vector.load %arg7[%c0_62, %c0_63, %c0_64, %c0_65] : memref<1x1x2x4xf32, #tpu.memory_space<vmem>>, vector<1x1x2x4xf32>
    %77 = vector.shape_cast %76 : vector<1x1x2x4xf32> to vector<2x4xf32>
    %78 = vector.shape_cast %75 : vector<2x4xf32> to vector<1x1x2x4xf32>
    tpu.vector_store %arg7[%c0_62, %c0_63, %c0_64, %c0_65], %78 {strides = array<i32>} : memref<1x1x2x4xf32, #tpu.memory_space<vmem>>, vector<1x1x2x4xf32>,
    %79 = vector.shape_cast %69 : vector<256x4xf32> to vector<16x16x4xf32>
    %80 = arith.truncf %79 : vector<16x16x4xf32> to vector<16x16x4xbf16>
    %c0_66 = arith.constant 0 : index
    %c0_67 = arith.constant 0 : index
    %c0_68 = arith.constant 0 : index
    %c0_69 = arith.constant 0 : index
    %81 = vector.load %arg6[%c0_66, %c0_67, %c0_68, %c0_69] : memref<1x16x16x4xbf16, #tpu.memory_space<vmem>>, vector<1x16x16x4xbf16>
    %82 = vector.shape_cast %81 : vector<1x16x16x4xbf16> to vector<16x16x4xbf16>
    %83 = vector.shape_cast %80 : vector<16x16x4xbf16> to vector<1x16x16x4xbf16>
    tpu.vector_store %arg6[%c0_66, %c0_67, %c0_68, %c0_69], %83 {strides = array<i32>} : memref<1x16x16x4xbf16, #tpu.memory_space<vmem>>, vector<1x16x16x4xbf16>,
    return
  }
  func.func @transform_0(%arg0: i32, %arg1: i32) -> (i32, i32, i32, i32) {
    %c0_i32 = arith.constant 0 : i32
    %c0_i32_0 = arith.constant 0 : i32
    %c0_i32_1 = arith.constant 0 : i32
    %c0_i32_2 = arith.constant 0 : i32
    return %arg0, %c0_i32, %c0_i32_0, %c0_i32_1 : i32, i32, i32, i32
  }
  func.func @transform_1(%arg0: i32, %arg1: i32) -> (i32, i32) {
    %c0_i32 = arith.constant 0 : i32
    %c0_i32_0 = arith.constant 0 : i32
    %c0_i32_1 = arith.constant 0 : i32
    return %c0_i32, %c0_i32_0 : i32, i32
  }
  func.func @transform_2(%arg0: i32, %arg1: i32) -> (i32, i32) {
    %c0_i32 = arith.constant 0 : i32
    %c0_i32_0 = arith.constant 0 : i32
    %c0_i32_1 = arith.constant 0 : i32
    return %c0_i32, %c0_i32_0 : i32, i32
  }
  func.func @transform_3(%arg0: i32, %arg1: i32) -> (i32, i32) {
    %c0_i32 = arith.constant 0 : i32
    %c0_i32_0 = arith.constant 0 : i32
    %c0_i32_1 = arith.constant 0 : i32
    return %c0_i32, %c0_i32_0 : i32, i32
  }
  func.func @transform_4(%arg0: i32, %arg1: i32) -> (i32, i32, i32, i32) {
    %c0_i32 = arith.constant 0 : i32
    %c0_i32_0 = arith.constant 0 : i32
    %c0_i32_1 = arith.constant 0 : i32
    return %arg0, %arg1, %c0_i32, %c0_i32_0 : i32, i32, i32, i32
  }
  func.func @transform_5(%arg0: i32, %arg1: i32) -> (i32, i32, i32, i32) {
    %c0_i32 = arith.constant 0 : i32
    %c0_i32_0 = arith.constant 0 : i32
    %c0_i32_1 = arith.constant 0 : i32
    return %arg0, %arg1, %c0_i32, %c0_i32_0 : i32, i32, i32, i32
  }
}

</mosaic_0001>

<llo_original>
// kernel: up_forward.5
$region0: #{up_forward.5}
  #allocation0 [shape = 'u32[]', space=smem, size = 0x4, offset = 0x4, fixed_abs, tag = 'smem constant byte address 0x4 - core index']
  #allocation1 [shape = 'u32[144,128]{1,0:T(1,128)}', space=vmem, size = 0x12000, scoped, tag = 'internal scratch']
  %s0 = inlined_call_operand.vmem [shape: bf16[32,64], index: 0, kind: input, shape index: {}]
  %s1 = inlined_call_operand.vmem [shape: f32[1,64], index: 1, kind: input, shape index: {}]
  %s2 = inlined_call_operand.vmem [shape: f32[1,64], index: 2, kind: input, shape index: {}]
  %s3 = inlined_call_operand.vmem [shape: f32[32,64], index: 3, kind: output, shape index: {}]
  %s4 = sld [smem:[#allocation0]]
  $region22: #{up_forward.5} parent=0
    _
  %s6 = ssub.s32 1, %s4
  %s7 = scalar_select 0, %s6, %s4
  // Predicated region
  $region2: #{up_forward.5} parent=0 // pred_check
    _
  $region3: #{up_forward.5} parent=0 // pred_check_branch
    %9 = sbr.rel (0) target = $region5
  $region4: #{up_forward.5} parent=0 // pred_region
    _
  $region5: #{up_forward.5} parent=0 // pred_fallthru
    _
  // Predicated region
  $region6: #{up_forward.5} parent=0 // pred_check
    _
  $region7: #{up_forward.5} parent=0 // pred_check_branch
    %11 = sbr.rel (0) target = $region9
  $region8: #{up_forward.5} parent=0 // pred_region
    _
  $region9: #{up_forward.5} parent=0 // pred_fallthru
    _
  // Predicated region
  $region10: #{up_forward.5} parent=0 // pred_check
    _
  $region11: #{up_forward.5} parent=0 // pred_check_branch
    %13 = sbr.rel (0) target = $region13
  $region12: #{up_forward.5} parent=0 // pred_region
    _
  $region13: #{up_forward.5} parent=0 // pred_fallthru
    _
  %v14 = vld [vmem:[%s0] sm:$0xf]
  %v15 = vld [vmem:[%s0 + $0x4] sm:$0xf]
  %v16 = vld [vmem:[%s0 + $0x8] sm:$0xf]
  %v17 = vld [vmem:[%s0 + $0xc] sm:$0xf]
  %v18 = vunpack.c.l.bf16 %v14
  %v19 = vunpack.c.l.bf16 %v15
  %v20 = vunpack.c.l.bf16 %v16
  %v21 = vunpack.c.l.bf16 %v17
  %v22 = vld [vmem:[%s1] sm:$0x1]
  %v24 = vlaneseq
  %v25 = vshrl.u32 %v24, 7
  %v26 = vsub.s32 0, %v25
  %v27 = vrot.slane %v22, %v26
  %v29 = vmul.f32 %v18, %v27
  %v30 = vmul.f32 %v19, %v27
  %v31 = vmul.f32 %v20, %v27
  %v32 = vmul.f32 %v21, %v27
  %v33 = vld [vmem:[%s2] sm:$0x1]
  %v35 = vlaneseq
  %v36 = vshrl.u32 %v35, 7
  %v37 = vsub.s32 0, %v36
  %v38 = vrot.slane %v33, %v37
  %v40 = vadd.f32 %v29, %v38
  %v41 = vadd.f32 %v30, %v38
  %v42 = vadd.f32 %v31, %v38
  %v43 = vadd.f32 %v32, %v38
  %v44 = vmax.f32 %v40, 0.0
  %v45 = vmax.f32 %v41, 0.0
  %v46 = vmax.f32 %v42, 0.0
  %v47 = vmax.f32 %v43, 0.0
  %vm48 = vcmask 523264
  %49 = vst.msk [vmem:[%s3] sm:$0xff] %vm48, %v44
  %50 = vst.msk [vmem:[%s3 + $0x8] sm:$0xff] %vm48, %v45
  %51 = vst.msk [vmem:[%s3 + $0x10] sm:$0xff] %vm48, %v46
  %52 = vst.msk [vmem:[%s3 + $0x18] sm:$0xff] %vm48, %v47
  // Predicated region
  $region14: #{up_forward.5} parent=0 // pred_check
    _
  $region15: #{up_forward.5} parent=0 // pred_check_branch
    %54 = sbr.rel (0) target = $region17
  $region16: #{up_forward.5} parent=0 // pred_region
    _
  $region17: #{up_forward.5} parent=0 // pred_fallthru
    _
  // Predicated region
  $region18: #{up_forward.5} parent=0 // pred_check
    _
  $region19: #{up_forward.5} parent=0 // pred_check_branch
    %56 = sbr.rel (0) target = $region21
  $region20: #{up_forward.5} parent=0 // pred_region
    _
  $region21: #{up_forward.5} parent=0 // pred_fallthru
    _

// kernel: up_forward.4
$region0: #{up_forward.4}
  #allocation0 [shape = 'u32[]', space=smem, size = 0x4, offset = 0x4, fixed_abs, tag = 'smem constant byte address 0x4 - core index']
  #allocation1 [shape = 'u32[144,128]{1,0:T(1,128)}', space=vmem, size = 0x12000, scoped, tag = 'internal scratch']
  #allocation2 [shape = 'bf16[18,32,4]{2,1,0:T(8,128)(2,1)}', space=vmem, size = 0x24000, scoped, tag = 'scratch operand']
  %s0 = inlined_call_operand.vmem [shape: bf16[2,16,16,4], index: 0, kind: input, shape index: {}]
  %s1 = inlined_call_operand.vmem [shape: f32[1,4], index: 1, kind: input, shape index: {}]
  %s2 = inlined_call_operand.vmem [shape: f32[1,4], index: 2, kind: input, shape index: {}]
  %s3 = inlined_call_operand.vmem [shape: bf16[36,4], index: 3, kind: input, shape index: {}]
  %s4 = inlined_call_operand.vmem [shape: bf16[2,16,16,4], index: 4, kind: output, shape index: {0}]
  %s5 = inlined_call_operand.vmem [shape: f32[2,1,2,4], index: 5, kind: output, shape index: {1}]
  %6 = xla_tuple %s4, %s5
  %s7 = sld [smem:[#allocation0]]
  $region57: #{up_forward.4} parent=0
    _
  %s9 = ssub.s32 1, %s7
  %s10 = scalar_select 0, %s9, %s7
  loop: start=0, step=1, limit=4
  $region2: #{up_forward.4} parent=0 // loop_pre_header
    _
  $region3: #{up_forward.4} parent=0 // loop_header
    %s12 = sphi 0, %s16
    %p13 = scmp.ge.s32.totalorder %s12, 4
    %s19 = sphi 0, %s31
    %s20 = sphi 0, %s27
    %s21 = sphi 0, %s19
    %s22 = sphi 0, %s20
    %s23 = sphi 0, %s21
    %s24 = sphi 0, %s22
    %s34 = sphi 0, %s36
    %s37 = sphi 0, %s34
    %s38 = sphi 0, %s37
    %s54 = sphi 0, %s38
    %s58 = sphi 0, %s58
    %s60 = sphi 0, %s58
    %s61 = sphi 0, %s60
    %s75 = sphi 0, %s61
    %s79 = sphi 0, %s79
    %s81 = sphi 0, %s79
    %s82 = sphi 0, %s81
    %s96 = sphi 0, %s82
    %s100 = sphi 0, %s100
    %s102 = sphi 0, %s100
    %s103 = sphi 0, %s102
    %s117 = sphi 0, %s103
    %s125 = sphi 0, %s127
    %s128 = sphi 0, %s125
    %s129 = sphi 0, %s128
    %s145 = sphi 0, %s129
    %s153 = sphi 0, %s155
    %s156 = sphi 0, %s153
    %s157 = sphi 0, %s156
    %s173 = sphi 0, %s157
  $region4: #{up_forward.4} parent=0 // loop_header_branch
    %15 = sbr.rel (%p13) target = $region8
  $region5: #{up_forward.4} parent=0 // loop_body
    %s17 = ssub.s32 %s12, 1
    %s18 = ssub.s32 %s12, 2
    %s25 = sadd.s32 1, %s20
    %p26 = scmp.ge.s32.totalorder %s25, 1
    %s27 = scalar_select %p26, 0, %s25
    %s28 = sadd.s32 1, %s19
    %s29 = scalar_select %p26, %s28, %s19
    %p30 = scmp.ge.s32.totalorder %s29, 2
    %s31 = scalar_select %p30, 0, %s29
    %s32 = ssub.s32 %s19, %s31
    %p33 = scmp.eq.s32.totalorder %s32, 0
    %s35 = sadd.s32 %s34, 1
    %s36 = scalar_select %p33, %s34, %s35
    %p39 = pneg %p33
    %p40 = scmp.eq.s32.totalorder %s12, 1
    %p41 = por %p39, %p40
    %p42 = scmp.ne.s32.totalorder %s34, %s37
    %p43 = scmp.eq.s32.totalorder %s12, 0
    %p44 = por %p42, %p43
    %p45 = scmp.ne.s32.totalorder %s34, %s37
    %p46 = scmp.eq.s32.totalorder %s17, 1
    %p47 = por %p45, %p46
    %p48 = scmp.ne.s32.totalorder %s37, %s38
    %p49 = scmp.eq.s32.totalorder %s17, 0
    %p50 = por %p48, %p49
    %p51 = scmp.ne.s32.totalorder %s37, %s38
    %p52 = scmp.eq.s32.totalorder %s18, 1
    %p53 = por %p51, %p52
    %p55 = scmp.ne.s32.totalorder %s38, %s54
    %p56 = scmp.eq.s32.totalorder %s18, 0
    %p57 = por %p55, %p56
    %s59 = sadd.s32 %s58, 1
    %p62 = scmp.eq.s32.totalorder %s12, 1
    %p63 = scmp.ne.s32.totalorder %s58, %s60
    %p64 = scmp.eq.s32.totalorder %s12, 0
    %p65 = por %p63, %p64
    %p66 = scmp.ne.s32.totalorder %s58, %s60
    %p67 = scmp.eq.s32.totalorder %s17, 1
    %p68 = por %p66, %p67
    %p69 = scmp.ne.s32.totalorder %s60, %s61
    %p70 = scmp.eq.s32.totalorder %s17, 0
    %p71 = por %p69, %p70
    %p72 = scmp.ne.s32.totalorder %s60, %s61
    %p73 = scmp.eq.s32.totalorder %s18, 1
    %p74 = por %p72, %p73
    %p76 = scmp.ne.s32.totalorder %s61, %s75
    %p77 = scmp.eq.s32.totalorder %s18, 0
    %p78 = por %p76, %p77
    %s80 = sadd.s32 %s79, 1
    %p83 = scmp.eq.s32.totalorder %s12, 1
    %p84 = scmp.ne.s32.totalorder %s79, %s81
    %p85 = scmp.eq.s32.totalorder %s12, 0
    %p86 = por %p84, %p85
    %p87 = scmp.ne.s32.totalorder %s79, %s81
    %p88 = scmp.eq.s32.totalorder %s17, 1
    %p89 = por %p87, %p88
    %p90 = scmp.ne.s32.totalorder %s81, %s82
    %p91 = scmp.eq.s32.totalorder %s17, 0
    %p92 = por %p90, %p91
    %p93 = scmp.ne.s32.totalorder %s81, %s82
    %p94 = scmp.eq.s32.totalorder %s18, 1
    %p95 = por %p93, %p94
    %p97 = scmp.ne.s32.totalorder %s82, %s96
    %p98 = scmp.eq.s32.totalorder %s18, 0
    %p99 = por %p97, %p98
    %s101 = sadd.s32 %s100, 1
    %p104 = scmp.eq.s32.totalorder %s12, 1
    %p105 = scmp.ne.s32.totalorder %s100, %s102
    %p106 = scmp.eq.s32.totalorder %s12, 0
    %p107 = por %p105, %p106
    %p108 = scmp.ne.s32.totalorder %s100, %s102
    %p109 = scmp.eq.s32.totalorder %s17, 1
    %p110 = por %p108, %p109
    %p111 = scmp.ne.s32.totalorder %s102, %s103
    %p112 = scmp.eq.s32.totalorder %s17, 0
    %p113 = por %p111, %p112
    %p114 = scmp.ne.s32.totalorder %s102, %s103
    %p115 = scmp.eq.s32.totalorder %s18, 1
    %p116 = por %p114, %p115
    %p118 = scmp.ne.s32.totalorder %s103, %s117
    %p119 = scmp.eq.s32.totalorder %s18, 0
    %p120 = por %p118, %p119
    %s121 = ssub.s32 %s19, %s31
    %s122 = ssub.s32 %s20, %s27
    %s123 = sor.u32 %s121, %s122
    %p124 = scmp.eq.s32.totalorder %s123, 0
    %s126 = sadd.s32 %s125, 1
    %s127 = scalar_select %p124, %s125, %s126
    %p130 = pneg %p124
    %p131 = scmp.eq.s32.totalorder %s12, 1
    %p132 = por %p130, %p131
    %p133 = scmp.ne.s32.totalorder %s125, %s128
    %p134 = scmp.eq.s32.totalorder %s12, 0
    %p135 = por %p133, %p134
    %p136 = scmp.ne.s32.totalorder %s125, %s128
    %p137 = scmp.eq.s32.totalorder %s17, 1
    %p138 = por %p136, %p137
    %p139 = scmp.ne.s32.totalorder %s128, %s129
    %p140 = scmp.eq.s32.totalorder %s17, 0
    %p141 = por %p139, %p140
    %p142 = scmp.ne.s32.totalorder %s128, %s129
    %p143 = scmp.eq.s32.totalorder %s18, 1
    %p144 = por %p142, %p143
    %p146 = scmp.ne.s32.totalorder %s129, %s145
    %p147 = scmp.eq.s32.totalorder %s18, 0
    %p148 = por %p146, %p147
    %s149 = ssub.s32 %s19, %s31
    %s150 = ssub.s32 %s20, %s27
    %s151 = sor.u32 %s149, %s150
    %p152 = scmp.eq.s32.totalorder %s151, 0
    %s154 = sadd.s32 %s153, 1
    %s155 = scalar_select %p152, %s153, %s154
    %p158 = pneg %p152
    %p159 = scmp.eq.s32.totalorder %s12, 1
    %p160 = por %p158, %p159
    %p161 = scmp.ne.s32.totalorder %s153, %s156
    %p162 = scmp.eq.s32.totalorder %s12, 0
    %p163 = por %p161, %p162
    %p164 = scmp.ne.s32.totalorder %s153, %s156
    %p165 = scmp.eq.s32.totalorder %s17, 1
    %p166 = por %p164, %p165
    %p167 = scmp.ne.s32.totalorder %s156, %s157
    %p168 = scmp.eq.s32.totalorder %s17, 0
    %p169 = por %p167, %p168
    %p170 = scmp.ne.s32.totalorder %s156, %s157
    %p171 = scmp.eq.s32.totalorder %s18, 1
    %p172 = por %p170, %p171
    %p174 = scmp.ne.s32.totalorder %s157, %s173
    %p175 = scmp.eq.s32.totalorder %s18, 0
    %p176 = por %p174, %p175
    %p177 = scmp.le.s32.totalorder 1, %s12
    %p178 = scmp.lt.s32.totalorder %s12, 3
    %p179 = pnand %p177, %p178
    %p180 = pneg %p179
    // Predicated region
    $region9: #{up_forward.4} parent=5 // pred_check
      _
    $region10: #{up_forward.4} parent=5 // pred_check_branch
      %182 = sbr.rel (%p179) target = $region12
    $region11: #{up_forward.4} parent=5 // pred_region
      %s183 = ssub.s32 %s12, 1
      // Predicated region
      $region13: #{up_forward.4} parent=11 // pred_check
        %p184 = pneg %p71
      $region14: #{up_forward.4} parent=11 // pred_check_branch
        %186 = sbr.rel (%p184) target = $region16
      $region15: #{up_forward.4} parent=11 // pred_region
        _
      $region16: #{up_forward.4} parent=11 // pred_fallthru
        _
      // Predicated region
      $region17: #{up_forward.4} parent=11 // pred_check
        %p187 = pneg %p92
      $region18: #{up_forward.4} parent=11 // pred_check_branch
        %189 = sbr.rel (%p187) target = $region20
      $region19: #{up_forward.4} parent=11 // pred_region
        _
      $region20: #{up_forward.4} parent=11 // pred_fallthru
        _
      // Predicated region
      $region21: #{up_forward.4} parent=11 // pred_check
        %p190 = pneg %p113
      $region22: #{up_forward.4} parent=11 // pred_check_branch
        %192 = sbr.rel (%p190) target = $region24
      $region23: #{up_forward.4} parent=11 // pred_region
        _
      $region24: #{up_forward.4} parent=11 // pred_fallthru
        _
    $region12: #{up_forward.4} parent=5 // pred_fallthru
      _
    %p193 = scmp.lt.s32.totalorder %s12, 2
    // Predicated region
    $region25: #{up_forward.4} parent=5 // pred_check
      %p194 = pneg %p193
    $region26: #{up_forward.4} parent=5 // pred_check_branch
      %196 = sbr.rel (%p194) target = $region28
    $region27: #{up_forward.4} parent=5 // pred_region
      // Predicated region
      $region29: #{up_forward.4} parent=27 // pred_check
        %p197 = pneg %p44
      $region30: #{up_forward.4} parent=27 // pred_check_branch
        %199 = sbr.rel (%p197) target = $region32
      $region31: #{up_forward.4} parent=27 // pred_region
        %p200 = scmp.lt.s32.totalorder %s19, 1
        %s201 = scalar_select %p200, %s19, 1
        %s202 = smul.addr %s201, 32
        %s203 = smul.addr %s202, 4
        %s204 = scalar_lea.vmem %s0, %s203
      $region32: #{up_forward.4} parent=27 // pred_fallthru
        _
    $region28: #{up_forward.4} parent=5 // pred_fallthru
      _
    %p205 = scmp.le.s32.totalorder 1, %s12
    %p206 = scmp.lt.s32.totalorder %s12, 3
    %p207 = pnand %p205, %p206
    %p208 = pneg %p207
    // Predicated region
    $region33: #{up_forward.4} parent=5 // pred_check
      _
    $region34: #{up_forward.4} parent=5 // pred_check_branch
      %210 = sbr.rel (%p207) target = $region36
    $region35: #{up_forward.4} parent=5 // pred_region
      %s211 = ssub.s32 %s12, 1
      %p212 = scmp.lt.s32.totalorder %s21, 1
      %s213 = scalar_select %p212, %s21, 1
      %s214 = smul.addr %s213, 32
      %s215 = smul.addr %s214, 4
      %s216 = scalar_lea.vmem %s0, %s215
      %p217 = pneg %p50
      %p218 = pneg %p47
      %p219 = pneg %p71
      %p220 = pneg %p68
      %p221 = pneg %p92
      %p222 = pneg %p89
      %p223 = pneg %p113
      %p224 = pneg %p110
      %p225 = pneg %p141
      %p226 = pneg %p138
      %s227 = smul.u32 16, %s22
      %p228 = scmp.lt.s32.totalorder %s21, 1
      %s229 = scalar_select %p228, %s21, 1
      %p230 = scmp.lt.s32.totalorder %s227, 15
      %s231 = scalar_select %p230, %s227, 15
      %s232 = smul.addr %s231, 2
      %s233 = smul.addr %s229, 32
      %s234 = sadd.s32 %s232, %s233
      %s235 = smul.addr %s234, 4
      %s236 = scalar_lea.vmem %s4, %s235
      %p237 = pneg %p169
      %p238 = pneg %p166
      %p239 = scmp.lt.s32.totalorder %s21, 1
      %s240 = scalar_select %p239, %s21, 1
      %p241 = scmp.lt.s32.totalorder %s22, 0
      %s242 = scalar_select %p241, %s22, 0
      %s243 = sadd.s32 %s242, %s240
      %s244 = smul.addr %s243, 2
      %s245 = scalar_lea.vmem %s5, %s244
      %p246 = scmp.lt.s32.totalorder %s21, 1
      %s247 = scalar_select %p246, %s21, 1
      %s248 = smul.addr %s247, 32
      %s249 = smul.addr %s248, 4
      %s250 = scalar_lea.vmem %s0, %s249
      %s251 = smul.u32 16, %s22
      %p252 = scmp.lt.s32.totalorder %s21, 1
      %s253 = scalar_select %p252, %s21, 1
      %p254 = scmp.lt.s32.totalorder %s251, 15
      %s255 = scalar_select %p254, %s251, 15
      %s256 = smul.addr %s255, 2
      %s257 = smul.addr %s253, 32
      %s258 = sadd.s32 %s256, %s257
      %s259 = smul.addr %s258, 4
      %s260 = scalar_lea.vmem %s4, %s259
      %s261 = smul.u32 16, %s22
      %p262 = scmp.lt.s32.totalorder %s21, 1
      %s263 = scalar_select %p262, %s21, 1
      %p264 = scmp.lt.s32.totalorder %s22, 0
      %s265 = scalar_select %p264, %s22, 0
      %s266 = sadd.s32 %s265, %s263
      %s267 = smul.addr %s266, 2
      %s268 = scalar_lea.vmem %s5, %s267
      %s270 = smul.u32 %s22, 16
      %vm271 = vcmask 27648
      %272 = vst.msk [vmem:[#allocation2] sm:$0xf] %vm271, 0
      %273 = vst.msk [vmem:[#allocation2 + $0x10] sm:$0xf] %vm271, 0
      %274 = vst.msk [vmem:[#allocation2 + $0x20] sm:$0xf] %vm271, 0
      %275 = vst.msk [vmem:[#allocation2 + $0x30] sm:$0xf] %vm271, 0
      %276 = vst.msk [vmem:[#allocation2 + $0x40] sm:$0xf] %vm271, 0
      %277 = vst.msk [vmem:[#allocation2 + $0x50] sm:$0xf] %vm271, 0
      %278 = vst.msk [vmem:[#allocation2 + $0x60] sm:$0xf] %vm271, 0
      %279 = vst.msk [vmem:[#allocation2 + $0x70] sm:$0xf] %vm271, 0
      %280 = vst.msk [vmem:[#allocation2 + $0x80] sm:$0xf] %vm271, 0
      %281 = vst.msk [vmem:[#allocation2 + $0x90] sm:$0xf] %vm271, 0
      %282 = vst.msk [vmem:[#allocation2 + $0xa0] sm:$0xf] %vm271, 0
      %283 = vst.msk [vmem:[#allocation2 + $0xb0] sm:$0xf] %vm271, 0
      %284 = vst.msk [vmem:[#allocation2 + $0xc0] sm:$0xf] %vm271, 0
      %285 = vst.msk [vmem:[#allocation2 + $0xd0] sm:$0xf] %vm271, 0
      %286 = vst.msk [vmem:[#allocation2 + $0xe0] sm:$0xf] %vm271, 0
      %287 = vst.msk [vmem:[#allocation2 + $0xf0] sm:$0xf] %vm271, 0
      %288 = vst.msk [vmem:[#allocation2 + $0x100] sm:$0xf] %vm271, 0
      %289 = vst.msk [vmem:[#allocation2 + $0x110] sm:$0xf] %vm271, 0
      %290 = vst.msk [vmem:[#allocation2 + $0xc] sm:$0xf] %vm271, 0
      %291 = vst.msk [vmem:[#allocation2 + $0x1c] sm:$0xf] %vm271, 0
      %292 = vst.msk [vmem:[#allocation2 + $0x2c] sm:$0xf] %vm271, 0
      %293 = vst.msk [vmem:[#allocation2 + $0x3c] sm:$0xf] %vm271, 0
      %294 = vst.msk [vmem:[#allocation2 + $0x4c] sm:$0xf] %vm271, 0
      %295 = vst.msk [vmem:[#allocation2 + $0x5c] sm:$0xf] %vm271, 0
      %296 = vst.msk [vmem:[#allocation2 + $0x6c] sm:$0xf] %vm271, 0
      %297 = vst.msk [vmem:[#allocation2 + $0x7c] sm:$0xf] %vm271, 0
      %298 = vst.msk [vmem:[#allocation2 + $0x8c] sm:$0xf] %vm271, 0
      %299 = vst.msk [vmem:[#allocation2 + $0x9c] sm:$0xf] %vm271, 0
      %300 = vst.msk [vmem:[#allocation2 + $0xac] sm:$0xf] %vm271, 0
      %301 = vst.msk [vmem:[#allocation2 + $0xbc] sm:$0xf] %vm271, 0
      %302 = vst.msk [vmem:[#allocation2 + $0xcc] sm:$0xf] %vm271, 0
      %303 = vst.msk [vmem:[#allocation2 + $0xdc] sm:$0xf] %vm271, 0
      %304 = vst.msk [vmem:[#allocation2 + $0xec] sm:$0xf] %vm271, 0
      %305 = vst.msk [vmem:[#allocation2 + $0xfc] sm:$0xf] %vm271, 0
      %306 = vst.msk [vmem:[#allocation2 + $0x10c] sm:$0xf] %vm271, 0
      %307 = vst.msk [vmem:[#allocation2 + $0x11c] sm:$0xf] %vm271, 0
      %v308 = vld [vmem:[%s1] sm:$0x1]
      %v309 = vld [vmem:[%s2] sm:$0x1]
      %s310 = smul.u32 %s270, 2
      %s311 = smul.addr %s310, 4
      %s312 = scalar_lea.vmem %s250, %s311
      %v313 = vld [vmem:[%s312] sm:$0xf]
      %v314 = vld [vmem:[%s312 + $0x4] sm:$0xf]
      %v315 = vld [vmem:[%s312 + $0x8] sm:$0xf]
      %v316 = vld [vmem:[%s312 + $0xc] sm:$0xf]
      %v317 = vld [vmem:[%s312 + $0x10] sm:$0xf]
      %v318 = vld [vmem:[%s312 + $0x14] sm:$0xf]
      %v319 = vld [vmem:[%s312 + $0x18] sm:$0xf]
      %v320 = vld [vmem:[%s312 + $0x1c] sm:$0xf]
      %v321 = vld [vmem:[%s312 + $0x20] sm:$0xf]
      %v322 = vld [vmem:[%s312 + $0x24] sm:$0xf]
      %v323 = vld [vmem:[%s312 + $0x28] sm:$0xf]
      %v324 = vld [vmem:[%s312 + $0x2c] sm:$0xf]
      %v325 = vld [vmem:[%s312 + $0x30] sm:$0xf]
      %v326 = vld [vmem:[%s312 + $0x34] sm:$0xf]
      %v327 = vld [vmem:[%s312 + $0x38] sm:$0xf]
      %v328 = vld [vmem:[%s312 + $0x3c] sm:$0xf]
      %v329 = vld [vmem:[%s312 + $0x40] sm:$0xf]
      %v330 = vld [vmem:[%s312 + $0x44] sm:$0xf]
      %v331 = vld [vmem:[%s312 + $0x48] sm:$0xf]
      %v332 = vld [vmem:[%s312 + $0x4c] sm:$0xf]
      %v333 = vld [vmem:[%s312 + $0x50] sm:$0xf]
      %v334 = vld [vmem:[%s312 + $0x54] sm:$0xf]
      %v335 = vld [vmem:[%s312 + $0x58] sm:$0xf]
      %v336 = vld [vmem:[%s312 + $0x5c] sm:$0xf]
      %v337 = vld [vmem:[%s312 + $0x60] sm:$0xf]
      %v338 = vld [vmem:[%s312 + $0x64] sm:$0xf]
      %v339 = vld [vmem:[%s312 + $0x68] sm:$0xf]
      %v340 = vld [vmem:[%s312 + $0x6c] sm:$0xf]
      %v341 = vld [vmem:[%s312 + $0x70] sm:$0xf]
      %v342 = vld [vmem:[%s312 + $0x74] sm:$0xf]
      %v343 = vld [vmem:[%s312 + $0x78] sm:$0xf]
      %v344 = vld [vmem:[%s312 + $0x7c] sm:$0xf]
      %v345 = vunpack.c.l.bf16 %v313
      %v346 = vunpack.c.l.bf16 %v314
      %v347 = vunpack.c.l.bf16 %v315
      %v348 = vunpack.c.l.bf16 %v316
      %v349 = vunpack.c.l.bf16 %v317
      %v350 = vunpack.c.l.bf16 %v318
      %v351 = vunpack.c.l.bf16 %v319
      %v352 = vunpack.c.l.bf16 %v320
      %v353 = vunpack.c.l.bf16 %v321
      %v354 = vunpack.c.l.bf16 %v322
      %v355 = vunpack.c.l.bf16 %v323
      %v356 = vunpack.c.l.bf16 %v324
      %v357 = vunpack.c.l.bf16 %v325
      %v358 = vunpack.c.l.bf16 %v326
      %v359 = vunpack.c.l.bf16 %v327
      %v360 = vunpack.c.l.bf16 %v328
      %v361 = vunpack.c.l.bf16 %v329
      %v362 = vunpack.c.l.bf16 %v330
      %v363 = vunpack.c.l.bf16 %v331
      %v364 = vunpack.c.l.bf16 %v332
      %v365 = vunpack.c.l.bf16 %v333
      %v366 = vunpack.c.l.bf16 %v334
      %v367 = vunpack.c.l.bf16 %v335
      %v368 = vunpack.c.l.bf16 %v336
      %v369 = vunpack.c.l.bf16 %v337
      %v370 = vunpack.c.l.bf16 %v338
      %v371 = vunpack.c.l.bf16 %v339
      %v372 = vunpack.c.l.bf16 %v340
      %v373 = vunpack.c.l.bf16 %v341
      %v374 = vunpack.c.l.bf16 %v342
      %v375 = vunpack.c.l.bf16 %v343
      %v376 = vunpack.c.l.bf16 %v344
      %v378 = vlaneseq
      %v379 = vshrl.u32 %v378, 7
      %v380 = vsub.s32 0, %v379
      %v381 = vrot.slane %v308, %v380
      %v383 = vmul.f32 %v345, %v381
      %v384 = vmul.f32 %v346, %v381
      %v385 = vmul.f32 %v347, %v381
      %v386 = vmul.f32 %v348, %v381
      %v387 = vmul.f32 %v349, %v381
      %v388 = vmul.f32 %v350, %v381
      %v389 = vmul.f32 %v351, %v381
      %v390 = vmul.f32 %v352, %v381
      %v391 = vmul.f32 %v353, %v381
      %v392 = vmul.f32 %v354, %v381
      %v393 = vmul.f32 %v355, %v381
      %v394 = vmul.f32 %v356, %v381
      %v395 = vmul.f32 %v357, %v381
      %v396 = vmul.f32 %v358, %v381
      %v397 = vmul.f32 %v359, %v381
      %v398 = vmul.f32 %v360, %v381
      %v399 = vmul.f32 %v361, %v381
      %v400 = vmul.f32 %v362, %v381
      %v401 = vmul.f32 %v363, %v381
      %v402 = vmul.f32 %v364, %v381
      %v403 = vmul.f32 %v365, %v381
      %v404 = vmul.f32 %v366, %v381
      %v405 = vmul.f32 %v367, %v381
      %v406 = vmul.f32 %v368, %v381
      %v407 = vmul.f32 %v369, %v381
      %v408 = vmul.f32 %v370, %v381
      %v409 = vmul.f32 %v371, %v381
      %v410 = vmul.f32 %v372, %v381
      %v411 = vmul.f32 %v373, %v381
      %v412 = vmul.f32 %v374, %v381
      %v413 = vmul.f32 %v375, %v381
      %v414 = vmul.f32 %v376, %v381
      %v416 = vlaneseq
      %v417 = vshrl.u32 %v416, 7
      %v418 = vsub.s32 0, %v417
      %v419 = vrot.slane %v309, %v418
      %v421 = vadd.f32 %v383, %v419
      %v422 = vadd.f32 %v384, %v419
      %v423 = vadd.f32 %v385, %v419
      %v424 = vadd.f32 %v386, %v419
      %v425 = vadd.f32 %v387, %v419
      %v426 = vadd.f32 %v388, %v419
      %v427 = vadd.f32 %v389, %v419
      %v428 = vadd.f32 %v390, %v419
      %v429 = vadd.f32 %v391, %v419
      %v430 = vadd.f32 %v392, %v419
      %v431 = vadd.f32 %v393, %v419
      %v432 = vadd.f32 %v394, %v419
      %v433 = vadd.f32 %v395, %v419
      %v434 = vadd.f32 %v396, %v419
      %v435 = vadd.f32 %v397, %v419
      %v436 = vadd.f32 %v398, %v419
      %v437 = vadd.f32 %v399, %v419
      %v438 = vadd.f32 %v400, %v419
      %v439 = vadd.f32 %v401, %v419
      %v440 = vadd.f32 %v402, %v419
      %v441 = vadd.f32 %v403, %v419
      %v442 = vadd.f32 %v404, %v419
      %v443 = vadd.f32 %v405, %v419
      %v444 = vadd.f32 %v406, %v419
      %v445 = vadd.f32 %v407, %v419
      %v446 = vadd.f32 %v408, %v419
      %v447 = vadd.f32 %v409, %v419
      %v448 = vadd.f32 %v410, %v419
      %v449 = vadd.f32 %v411, %v419
      %v450 = vadd.f32 %v412, %v419
      %v451 = vadd.f32 %v413, %v419
      %v452 = vadd.f32 %v414, %v419
      %v453 = vmax.f32 %v421, 0.0
      %v454 = vmax.f32 %v422, 0.0
      %v455 = vmax.f32 %v423, 0.0
      %v456 = vmax.f32 %v424, 0.0
      %v457 = vmax.f32 %v425, 0.0
      %v458 = vmax.f32 %v426, 0.0
      %v459 = vmax.f32 %v427, 0.0
      %v460 = vmax.f32 %v428, 0.0
      %v461 = vmax.f32 %v429, 0.0
      %v462 = vmax.f32 %v430, 0.0
      %v463 = vmax.f32 %v431, 0.0
      %v464 = vmax.f32 %v432, 0.0
      %v465 = vmax.f32 %v433, 0.0
      %v466 = vmax.f32 %v434, 0.0
      %v467 = vmax.f32 %v435, 0.0
      %v468 = vmax.f32 %v436, 0.0
      %v469 = vmax.f32 %v437, 0.0
      %v470 = vmax.f32 %v438, 0.0
      %v471 = vmax.f32 %v439, 0.0
      %v472 = vmax.f32 %v440, 0.0
      %v473 = vmax.f32 %v441, 0.0
      %v474 = vmax.f32 %v442, 0.0
      %v475 = vmax.f32 %v443, 0.0
      %v476 = vmax.f32 %v444, 0.0
      %v477 = vmax.f32 %v445, 0.0
      %v478 = vmax.f32 %v446, 0.0
      %v479 = vmax.f32 %v447, 0.0
      %v480 = vmax.f32 %v448, 0.0
      %v481 = vmax.f32 %v449, 0.0
      %v482 = vmax.f32 %v450, 0.0
      %v483 = vmax.f32 %v451, 0.0
      %v484 = vmax.f32 %v452, 0.0
      %v485 = vpack.c.bf16 %v454, %v453
      %v486 = vpack.c.bf16 %v456, %v455
      %v487 = vpack.c.bf16 %v458, %v457
      %v488 = vpack.c.bf16 %v460, %v459
      %v489 = vpack.c.bf16 %v462, %v461
      %v490 = vpack.c.bf16 %v464, %v463
      %v491 = vpack.c.bf16 %v466, %v465
      %v492 = vpack.c.bf16 %v468, %v467
      %v493 = vpack.c.bf16 %v470, %v469
      %v494 = vpack.c.bf16 %v472, %v471
      %v495 = vpack.c.bf16 %v474, %v473
      %v496 = vpack.c.bf16 %v476, %v475
      %v497 = vpack.c.bf16 %v478, %v477
      %v498 = vpack.c.bf16 %v480, %v479
      %v499 = vpack.c.bf16 %v482, %v481
      %v500 = vpack.c.bf16 %v484, %v483
      %v517 = vunpack.c.l.b16 %v485
      %v518 = vunpack.c.h.b16 %v485
      %v519 = vunpack.c.l.b16 %v486
      %v520 = vunpack.c.h.b16 %v486
      %v521 = vunpack.c.l.b16 %v487
      %v522 = vunpack.c.h.b16 %v487
      %v523 = vunpack.c.l.b16 %v488
      %v524 = vunpack.c.h.b16 %v488
      %v525 = vunpack.c.l.b16 %v489
      %v526 = vunpack.c.h.b16 %v489
      %v527 = vunpack.c.l.b16 %v490
      %v528 = vunpack.c.h.b16 %v490
      %v529 = vunpack.c.l.b16 %v491
      %v530 = vunpack.c.h.b16 %v491
      %v531 = vunpack.c.l.b16 %v492
      %v532 = vunpack.c.h.b16 %v492
      %v533 = vunpack.c.l.b16 %v493
      %v534 = vunpack.c.h.b16 %v493
      %v535 = vunpack.c.l.b16 %v494
      %v536 = vunpack.c.h.b16 %v494
      %v537 = vunpack.c.l.b16 %v495
      %v538 = vunpack.c.h.b16 %v495
      %v539 = vunpack.c.l.b16 %v496
      %v540 = vunpack.c.h.b16 %v496
      %v541 = vunpack.c.l.b16 %v497
      %v542 = vunpack.c.h.b16 %v497
      %v543 = vunpack.c.l.b16 %v498
      %v544 = vunpack.c.h.b16 %v498
      %v545 = vunpack.c.l.b16 %v499
      %v546 = vunpack.c.h.b16 %v499
      %v547 = vunpack.c.l.b16 %v500
      %v548 = vunpack.c.h.b16 %v500
      %v549 = vpack.c.b16 %v517, %v517
      %v550 = vpack.c.b16 %v518, %v518
      %v551 = vpack.c.b16 %v519, %v519
      %v552 = vpack.c.b16 %v520, %v520
      %v553 = vpack.c.b16 %v521, %v521
      %v554 = vpack.c.b16 %v522, %v522
      %v555 = vpack.c.b16 %v523, %v523
      %v556 = vpack.c.b16 %v524, %v524
      %v557 = vpack.c.b16 %v525, %v525
      %v558 = vpack.c.b16 %v526, %v526
      %v559 = vpack.c.b16 %v527, %v527
      %v560 = vpack.c.b16 %v528, %v528
      %v561 = vpack.c.b16 %v529, %v529
      %v562 = vpack.c.b16 %v530, %v530
      %v563 = vpack.c.b16 %v531, %v531
      %v564 = vpack.c.b16 %v532, %v532
      %v565 = vpack.c.b16 %v533, %v533
      %v566 = vpack.c.b16 %v534, %v534
      %v567 = vpack.c.b16 %v535, %v535
      %v568 = vpack.c.b16 %v536, %v536
      %v569 = vpack.c.b16 %v537, %v537
      %v570 = vpack.c.b16 %v538, %v538
      %v571 = vpack.c.b16 %v539, %v539
      %v572 = vpack.c.b16 %v540, %v540
      %v573 = vpack.c.b16 %v541, %v541
      %v574 = vpack.c.b16 %v542, %v542
      %v575 = vpack.c.b16 %v543, %v543
      %v576 = vpack.c.b16 %v544, %v544
      %v577 = vpack.c.b16 %v545, %v545
      %v578 = vpack.c.b16 %v546, %v546
      %v579 = vpack.c.b16 %v547, %v547
      %v580 = vpack.c.b16 %v548, %v548
      %s613 = scalar_lea.vmem [#allocation2], 16
      %614 = vst.msk [vmem:[%s613 + $0x4] sm:$0xf] %vm271, %v549
      %615 = vst.msk [vmem:[%s613 + $0x8] sm:$0xf] %vm271, %v550
      %616 = vst.msk [vmem:[%s613 + $0x14] sm:$0xf] %vm271, %v551
      %617 = vst.msk [vmem:[%s613 + $0x18] sm:$0xf] %vm271, %v552
      %618 = vst.msk [vmem:[%s613 + $0x24] sm:$0xf] %vm271, %v553
      %619 = vst.msk [vmem:[%s613 + $0x28] sm:$0xf] %vm271, %v554
      %620 = vst.msk [vmem:[%s613 + $0x34] sm:$0xf] %vm271, %v555
      %621 = vst.msk [vmem:[%s613 + $0x38] sm:$0xf] %vm271, %v556
      %622 = vst.msk [vmem:[%s613 + $0x44] sm:$0xf] %vm271, %v557
      %623 = vst.msk [vmem:[%s613 + $0x48] sm:$0xf] %vm271, %v558
      %624 = vst.msk [vmem:[%s613 + $0x54] sm:$0xf] %vm271, %v559
      %625 = vst.msk [vmem:[%s613 + $0x58] sm:$0xf] %vm271, %v560
      %626 = vst.msk [vmem:[%s613 + $0x64] sm:$0xf] %vm271, %v561
      %627 = vst.msk [vmem:[%s613 + $0x68] sm:$0xf] %vm271, %v562
      %628 = vst.msk [vmem:[%s613 + $0x74] sm:$0xf] %vm271, %v563
      %629 = vst.msk [vmem:[%s613 + $0x78] sm:$0xf] %vm271, %v564
      %630 = vst.msk [vmem:[%s613 + $0x84] sm:$0xf] %vm271, %v565
      %631 = vst.msk [vmem:[%s613 + $0x88] sm:$0xf] %vm271, %v566
      %632 = vst.msk [vmem:[%s613 + $0x94] sm:$0xf] %vm271, %v567
      %633 = vst.msk [vmem:[%s613 + $0x98] sm:$0xf] %vm271, %v568
      %634 = vst.msk [vmem:[%s613 + $0xa4] sm:$0xf] %vm271, %v569
      %635 = vst.msk [vmem:[%s613 + $0xa8] sm:$0xf] %vm271, %v570
      %636 = vst.msk [vmem:[%s613 + $0xb4] sm:$0xf] %vm271, %v571
      %637 = vst.msk [vmem:[%s613 + $0xb8] sm:$0xf] %vm271, %v572
      %638 = vst.msk [vmem:[%s613 + $0xc4] sm:$0xf] %vm271, %v573
      %639 = vst.msk [vmem:[%s613 + $0xc8] sm:$0xf] %vm271, %v574
      %640 = vst.msk [vmem:[%s613 + $0xd4] sm:$0xf] %vm271, %v575
      %641 = vst.msk [vmem:[%s613 + $0xd8] sm:$0xf] %vm271, %v576
      %642 = vst.msk [vmem:[%s613 + $0xe4] sm:$0xf] %vm271, %v577
      %643 = vst.msk [vmem:[%s613 + $0xe8] sm:$0xf] %vm271, %v578
      %644 = vst.msk [vmem:[%s613 + $0xf4] sm:$0xf] %vm271, %v579
      %645 = vst.msk [vmem:[%s613 + $0xf8] sm:$0xf] %vm271, %v580
      %s646 = ssub.s32 %s270, 1
      %p647 = scmp.gt.s32.totalorder %s646, 0
      %s648 = scalar_select %p647, %s646, 0
      %s649 = smul.u32 %s648, 2
      %s650 = smul.addr %s649, 4
      %s651 = scalar_lea.vmem %s250, %s650
      %v652 = vld [vmem:[%s651] sm:$0xf]
      %v653 = vld [vmem:[%s651 + $0x4] sm:$0xf]
      %v654 = vunpack.c.l.bf16 %v652
      %v655 = vunpack.c.l.bf16 %v653
      %v656 = vmul.f32 %v654, %v381
      %v657 = vmul.f32 %v655, %v381
      %v658 = vadd.f32 %v656, %v419
      %v659 = vadd.f32 %v657, %v419
      %v660 = vmax.f32 %v658, 0.0
      %v661 = vmax.f32 %v659, 0.0
      %p662 = scmp.gt.s32.totalorder %s270, 0
      %s663 = scalar_select %p662, 1, 0
      %v664 = vstv %s663
      %vm665 = vcmp.eq.s32.totalorder %v664, 1
      %v666 = vsel %vm665, %v660, 0.0
      %v667 = vsel %vm665, %v661, 0.0
      %v668 = vpack.c.bf16 %v667, %v666
      %v670 = vunpack.c.l.b16 %v668
      %v671 = vunpack.c.h.b16 %v668
      %v672 = vpack.c.b16 %v670, %v670
      %v673 = vpack.c.b16 %v671, %v671
      %676 = vst.msk [vmem:[#allocation2 + $0x4] sm:$0xf] %vm271, %v672
      %677 = vst.msk [vmem:[#allocation2 + $0x8] sm:$0xf] %vm271, %v673
      %s678 = sadd.s32 %s270, 16
      %p679 = scmp.lt.s32.totalorder %s678, 15
      %s680 = scalar_select %p679, %s678, 15
      %s681 = smul.u32 %s680, 2
      %s682 = smul.addr %s681, 4
      %s683 = scalar_lea.vmem %s250, %s682
      %v684 = vld [vmem:[%s683] sm:$0xf]
      %v685 = vld [vmem:[%s683 + $0x4] sm:$0xf]
      %v686 = vunpack.c.l.bf16 %v684
      %v687 = vunpack.c.l.bf16 %v685
      %v688 = vmul.f32 %v686, %v381
      %v689 = vmul.f32 %v687, %v381
      %v690 = vadd.f32 %v688, %v419
      %v691 = vadd.f32 %v689, %v419
      %v692 = vmax.f32 %v690, 0.0
      %v693 = vmax.f32 %v691, 0.0
      %p694 = scmp.lt.s32.totalorder %s678, 16
      %s695 = scalar_select %p694, 1, 0
      %v696 = vstv %s695
      %vm697 = vcmp.eq.s32.totalorder %v696, 1
      %v698 = vsel %vm697, %v692, 0.0
      %v699 = vsel %vm697, %v693, 0.0
      %v700 = vpack.c.bf16 %v699, %v698
      %v702 = vunpack.c.l.b16 %v700
      %v703 = vunpack.c.h.b16 %v700
      %v704 = vpack.c.b16 %v702, %v702
      %v705 = vpack.c.b16 %v703, %v703
      %s708 = scalar_lea.vmem [#allocation2], 272
      %709 = vst.msk [vmem:[%s708 + $0x4] sm:$0xf] %vm271, %v704
      %710 = vst.msk [vmem:[%s708 + $0x8] sm:$0xf] %vm271, %v705
      %v711 = vld [vmem:[#allocation2] sm:$0x8]
      %v712 = vld [vmem:[#allocation2 + $0x4] sm:$0xf]
      %v713 = vld [vmem:[#allocation2 + $0x8] sm:$0xf]
      %v714 = vld [vmem:[#allocation2 + $0x10] sm:$0x8]
      %v715 = vld [vmem:[#allocation2 + $0x14] sm:$0xf]
      %v716 = vld [vmem:[#allocation2 + $0x18] sm:$0xf]
      %v717 = vld [vmem:[#allocation2 + $0x20] sm:$0x8]
      %v718 = vld [vmem:[#allocation2 + $0x24] sm:$0xf]
      %v719 = vld [vmem:[#allocation2 + $0x28] sm:$0xf]
      %v720 = vld [vmem:[#allocation2 + $0x30] sm:$0x8]
      %v721 = vld [vmem:[#allocation2 + $0x34] sm:$0xf]
      %v722 = vld [vmem:[#allocation2 + $0x38] sm:$0xf]
      %v723 = vld [vmem:[#allocation2 + $0x40] sm:$0x8]
      %v724 = vld [vmem:[#allocation2 + $0x44] sm:$0xf]
      %v725 = vld [vmem:[#allocation2 + $0x48] sm:$0xf]
      %v726 = vld [vmem:[#allocation2 + $0x50] sm:$0x8]
      %v727 = vld [vmem:[#allocation2 + $0x54] sm:$0xf]
      %v728 = vld [vmem:[#allocation2 + $0x58] sm:$0xf]
      %v729 = vld [vmem:[#allocation2 + $0x60] sm:$0x8]
      %v730 = vld [vmem:[#allocation2 + $0x64] sm:$0xf]
      %v731 = vld [vmem:[#allocation2 + $0x68] sm:$0xf]
      %v732 = vld [vmem:[#allocation2 + $0x70] sm:$0x8]
      %v733 = vld [vmem:[#allocation2 + $0x74] sm:$0xf]
      %v734 = vld [vmem:[#allocation2 + $0x78] sm:$0xf]
      %v735 = vld [vmem:[#allocation2 + $0x80] sm:$0x8]
      %v736 = vld [vmem:[#allocation2 + $0x84] sm:$0xf]
      %v737 = vld [vmem:[#allocation2 + $0x88] sm:$0xf]
      %v738 = vld [vmem:[#allocation2 + $0x90] sm:$0x8]
      %v739 = vld [vmem:[#allocation2 + $0x94] sm:$0xf]
      %v740 = vld [vmem:[#allocation2 + $0x98] sm:$0xf]
      %v741 = vld [vmem:[#allocation2 + $0xa0] sm:$0x8]
      %v742 = vld [vmem:[#allocation2 + $0xa4] sm:$0xf]
      %v743 = vld [vmem:[#allocation2 + $0xa8] sm:$0xf]
      %v744 = vld [vmem:[#allocation2 + $0xb0] sm:$0x8]
      %v745 = vld [vmem:[#allocation2 + $0xb4] sm:$0xf]
      %v746 = vld [vmem:[#allocation2 + $0xb8] sm:$0xf]
      %v747 = vld [vmem:[#allocation2 + $0xc0] sm:$0x8]
      %v748 = vld [vmem:[#allocation2 + $0xc4] sm:$0xf]
      %v749 = vld [vmem:[#allocation2 + $0xc8] sm:$0xf]
      %v750 = vld [vmem:[#allocation2 + $0xd0] sm:$0x8]
      %v751 = vld [vmem:[#allocation2 + $0xd4] sm:$0xf]
      %v752 = vld [vmem:[#allocation2 + $0xd8] sm:$0xf]
      %v753 = vld [vmem:[#allocation2 + $0xe0] sm:$0x8]
      %v754 = vld [vmem:[#allocation2 + $0xe4] sm:$0xf]
      %v755 = vld [vmem:[#allocation2 + $0xe8] sm:$0xf]
      %v756 = vld [vmem:[#allocation2 + $0xf0] sm:$0x8]
      %v757 = vld [vmem:[#allocation2 + $0xf4] sm:$0xf]
      %v758 = vld [vmem:[#allocation2 + $0xf8] sm:$0xf]
      %v759 = vld [vmem:[#allocation2 + $0xc] sm:$0x1]
      %v760 = vld [vmem:[#allocation2 + $0x1c] sm:$0x1]
      %v761 = vld [vmem:[#allocation2 + $0x2c] sm:$0x1]
      %v762 = vld [vmem:[#allocation2 + $0x3c] sm:$0x1]
      %v763 = vld [vmem:[#allocation2 + $0x4c] sm:$0x1]
      %v764 = vld [vmem:[#allocation2 + $0x5c] sm:$0x1]
      %v765 = vld [vmem:[#allocation2 + $0x6c] sm:$0x1]
      %v766 = vld [vmem:[#allocation2 + $0x7c] sm:$0x1]
      %v767 = vld [vmem:[#allocation2 + $0x8c] sm:$0x1]
      %v768 = vld [vmem:[#allocation2 + $0x9c] sm:$0x1]
      %v769 = vld [vmem:[#allocation2 + $0xac] sm:$0x1]
      %v770 = vld [vmem:[#allocation2 + $0xbc] sm:$0x1]
      %v771 = vld [vmem:[#allocation2 + $0xcc] sm:$0x1]
      %v772 = vld [vmem:[#allocation2 + $0xdc] sm:$0x1]
      %v773 = vld [vmem:[#allocation2 + $0xec] sm:$0x1]
      %v774 = vld [vmem:[#allocation2 + $0xfc] sm:$0x1]
      %v775 = vld [vmem:[%s613] sm:$0x8]
      %v776 = vld [vmem:[%s613 + $0x4] sm:$0xf]
      %v777 = vld [vmem:[%s613 + $0x8] sm:$0xf]
      %v778 = vld [vmem:[%s613 + $0x10] sm:$0x8]
      %v779 = vld [vmem:[%s613 + $0x14] sm:$0xf]
      %v780 = vld [vmem:[%s613 + $0x18] sm:$0xf]
      %v781 = vld [vmem:[%s613 + $0x20] sm:$0x8]
      %v782 = vld [vmem:[%s613 + $0x24] sm:$0xf]
      %v783 = vld [vmem:[%s613 + $0x28] sm:$0xf]
      %v784 = vld [vmem:[%s613 + $0x30] sm:$0x8]
      %v785 = vld [vmem:[%s613 + $0x34] sm:$0xf]
      %v786 = vld [vmem:[%s613 + $0x38] sm:$0xf]
      %v787 = vld [vmem:[%s613 + $0x40] sm:$0x8]
      %v788 = vld [vmem:[%s613 + $0x44] sm:$0xf]
      %v789 = vld [vmem:[%s613 + $0x48] sm:$0xf]
      %v790 = vld [vmem:[%s613 + $0x50] sm:$0x8]
      %v791 = vld [vmem:[%s613 + $0x54] sm:$0xf]
      %v792 = vld [vmem:[%s613 + $0x58] sm:$0xf]
      %v793 = vld [vmem:[%s613 + $0x60] sm:$0x8]
      %v794 = vld [vmem:[%s613 + $0x64] sm:$0xf]
      %v795 = vld [vmem:[%s613 + $0x68] sm:$0xf]
      %v796 = vld [vmem:[%s613 + $0x70] sm:$0x8]
      %v797 = vld [vmem:[%s613 + $0x74] sm:$0xf]
      %v798 = vld [vmem:[%s613 + $0x78] sm:$0xf]
      %v799 = vld [vmem:[%s613 + $0x80] sm:$0x8]
      %v800 = vld [vmem:[%s613 + $0x84] sm:$0xf]
      %v801 = vld [vmem:[%s613 + $0x88] sm:$0xf]
      %v802 = vld [vmem:[%s613 + $0x90] sm:$0x8]
      %v803 = vld [vmem:[%s613 + $0x94] sm:$0xf]
      %v804 = vld [vmem:[%s613 + $0x98] sm:$0xf]
      %v805 = vld [vmem:[%s613 + $0xa0] sm:$0x8]
      %v806 = vld [vmem:[%s613 + $0xa4] sm:$0xf]
      %v807 = vld [vmem:[%s613 + $0xa8] sm:$0xf]
      %v808 = vld [vmem:[%s613 + $0xb0] sm:$0x8]
      %v809 = vld [vmem:[%s613 + $0xb4] sm:$0xf]
      %v810 = vld [vmem:[%s613 + $0xb8] sm:$0xf]
      %v811 = vld [vmem:[%s613 + $0xc0] sm:$0x8]
      %v812 = vld [vmem:[%s613 + $0xc4] sm:$0xf]
      %v813 = vld [vmem:[%s613 + $0xc8] sm:$0xf]
      %v814 = vld [vmem:[%s613 + $0xd0] sm:$0x8]
      %v815 = vld [vmem:[%s613 + $0xd4] sm:$0xf]
      %v816 = vld [vmem:[%s613 + $0xd8] sm:$0xf]
      %v817 = vld [vmem:[%s613 + $0xe0] sm:$0x8]
      %v818 = vld [vmem:[%s613 + $0xe4] sm:$0xf]
      %v819 = vld [vmem:[%s613 + $0xe8] sm:$0xf]
      %v820 = vld [vmem:[%s613 + $0xf0] sm:$0x8]
      %v821 = vld [vmem:[%s613 + $0xf4] sm:$0xf]
      %v822 = vld [vmem:[%s613 + $0xf8] sm:$0xf]
      %v823 = vld [vmem:[%s613 + $0xc] sm:$0x1]
      %v824 = vld [vmem:[%s613 + $0x1c] sm:$0x1]
      %v825 = vld [vmem:[%s613 + $0x2c] sm:$0x1]
      %v826 = vld [vmem:[%s613 + $0x3c] sm:$0x1]
      %v827 = vld [vmem:[%s613 + $0x4c] sm:$0x1]
      %v828 = vld [vmem:[%s613 + $0x5c] sm:$0x1]
      %v829 = vld [vmem:[%s613 + $0x6c] sm:$0x1]
      %v830 = vld [vmem:[%s613 + $0x7c] sm:$0x1]
      %v831 = vld [vmem:[%s613 + $0x8c] sm:$0x1]
      %v832 = vld [vmem:[%s613 + $0x9c] sm:$0x1]
      %v833 = vld [vmem:[%s613 + $0xac] sm:$0x1]
      %v834 = vld [vmem:[%s613 + $0xbc] sm:$0x1]
      %v835 = vld [vmem:[%s613 + $0xcc] sm:$0x1]
      %v836 = vld [vmem:[%s613 + $0xdc] sm:$0x1]
      %v837 = vld [vmem:[%s613 + $0xec] sm:$0x1]
      %v838 = vld [vmem:[%s613 + $0xfc] sm:$0x1]
      %s839 = scalar_lea.vmem [#allocation2], 32
      %v840 = vld [vmem:[%s839] sm:$0x8]
      %v841 = vld [vmem:[%s839 + $0x4] sm:$0xf]
      %v842 = vld [vmem:[%s839 + $0x8] sm:$0xf]
      %v843 = vld [vmem:[%s839 + $0x10] sm:$0x8]
      %v844 = vld [vmem:[%s839 + $0x14] sm:$0xf]
      %v845 = vld [vmem:[%s839 + $0x18] sm:$0xf]
      %v846 = vld [vmem:[%s839 + $0x20] sm:$0x8]
      %v847 = vld [vmem:[%s839 + $0x24] sm:$0xf]
      %v848 = vld [vmem:[%s839 + $0x28] sm:$0xf]
      %v849 = vld [vmem:[%s839 + $0x30] sm:$0x8]
      %v850 = vld [vmem:[%s839 + $0x34] sm:$0xf]
      %v851 = vld [vmem:[%s839 + $0x38] sm:$0xf]
      %v852 = vld [vmem:[%s839 + $0x40] sm:$0x8]
      %v853 = vld [vmem:[%s839 + $0x44] sm:$0xf]
      %v854 = vld [vmem:[%s839 + $0x48] sm:$0xf]
      %v855 = vld [vmem:[%s839 + $0x50] sm:$0x8]
      %v856 = vld [vmem:[%s839 + $0x54] sm:$0xf]
      %v857 = vld [vmem:[%s839 + $0x58] sm:$0xf]
      %v858 = vld [vmem:[%s839 + $0x60] sm:$0x8]
      %v859 = vld [vmem:[%s839 + $0x64] sm:$0xf]
      %v860 = vld [vmem:[%s839 + $0x68] sm:$0xf]
      %v861 = vld [vmem:[%s839 + $0x70] sm:$0x8]
      %v862 = vld [vmem:[%s839 + $0x74] sm:$0xf]
      %v863 = vld [vmem:[%s839 + $0x78] sm:$0xf]
      %v864 = vld [vmem:[%s839 + $0x80] sm:$0x8]
      %v865 = vld [vmem:[%s839 + $0x84] sm:$0xf]
      %v866 = vld [vmem:[%s839 + $0x88] sm:$0xf]
      %v867 = vld [vmem:[%s839 + $0x90] sm:$0x8]
      %v868 = vld [vmem:[%s839 + $0x94] sm:$0xf]
      %v869 = vld [vmem:[%s839 + $0x98] sm:$0xf]
      %v870 = vld [vmem:[%s839 + $0xa0] sm:$0x8]
      %v871 = vld [vmem:[%s839 + $0xa4] sm:$0xf]
      %v872 = vld [vmem:[%s839 + $0xa8] sm:$0xf]
      %v873 = vld [vmem:[%s839 + $0xb0] sm:$0x8]
      %v874 = vld [vmem:[%s839 + $0xb4] sm:$0xf]
      %v875 = vld [vmem:[%s839 + $0xb8] sm:$0xf]
      %v876 = vld [vmem:[%s839 + $0xc0] sm:$0x8]
      %v877 = vld [vmem:[%s839 + $0xc4] sm:$0xf]
      %v878 = vld [vmem:[%s839 + $0xc8] sm:$0xf]
      %v879 = vld [vmem:[%s839 + $0xd0] sm:$0x8]
      %v880 = vld [vmem:[%s839 + $0xd4] sm:$0xf]
      %v881 = vld [vmem:[%s839 + $0xd8] sm:$0xf]
      %v882 = vld [vmem:[%s839 + $0xe0] sm:$0x8]
      %v883 = vld [vmem:[%s839 + $0xe4] sm:$0xf]
      %v884 = vld [vmem:[%s839 + $0xe8] sm:$0xf]
      %v885 = vld [vmem:[%s839 + $0xf0] sm:$0x8]
      %v886 = vld [vmem:[%s839 + $0xf4] sm:$0xf]
      %v887 = vld [vmem:[%s839 + $0xf8] sm:$0xf]
      %v888 = vld [vmem:[%s839 + $0xc] sm:$0x1]
      %v889 = vld [vmem:[%s839 + $0x1c] sm:$0x1]
      %v890 = vld [vmem:[%s839 + $0x2c] sm:$0x1]
      %v891 = vld [vmem:[%s839 + $0x3c] sm:$0x1]
      %v892 = vld [vmem:[%s839 + $0x4c] sm:$0x1]
      %v893 = vld [vmem:[%s839 + $0x5c] sm:$0x1]
      %v894 = vld [vmem:[%s839 + $0x6c] sm:$0x1]
      %v895 = vld [vmem:[%s839 + $0x7c] sm:$0x1]
      %v896 = vld [vmem:[%s839 + $0x8c] sm:$0x1]
      %v897 = vld [vmem:[%s839 + $0x9c] sm:$0x1]
      %v898 = vld [vmem:[%s839 + $0xac] sm:$0x1]
      %v899 = vld [vmem:[%s839 + $0xbc] sm:$0x1]
      %v900 = vld [vmem:[%s839 + $0xcc] sm:$0x1]
      %v901 = vld [vmem:[%s839 + $0xdc] sm:$0x1]
      %v902 = vld [vmem:[%s839 + $0xec] sm:$0x1]
      %v903 = vld [vmem:[%s839 + $0xfc] sm:$0x1]
      %v952 = vunpack.c.l.b16 %v711
      %v953 = vunpack.c.l.b16 %v712
      %v954 = vunpack.c.l.b16 %v713
      %v955 = vunpack.c.l.b16 %v714
      %v956 = vunpack.c.l.b16 %v715
      %v957 = vunpack.c.l.b16 %v716
      %v958 = vunpack.c.l.b16 %v717
      %v959 = vunpack.c.l.b16 %v718
      %v960 = vunpack.c.l.b16 %v719
      %v961 = vunpack.c.l.b16 %v720
      %v962 = vunpack.c.l.b16 %v721
      %v963 = vunpack.c.l.b16 %v722
      %v964 = vunpack.c.l.b16 %v723
      %v965 = vunpack.c.l.b16 %v724
      %v966 = vunpack.c.l.b16 %v725
      %v967 = vunpack.c.l.b16 %v726
      %v968 = vunpack.c.l.b16 %v727
      %v969 = vunpack.c.l.b16 %v728
      %v970 = vunpack.c.l.b16 %v729
      %v971 = vunpack.c.l.b16 %v730
      %v972 = vunpack.c.l.b16 %v731
      %v973 = vunpack.c.l.b16 %v732
      %v974 = vunpack.c.l.b16 %v733
      %v975 = vunpack.c.l.b16 %v734
      %v976 = vunpack.c.l.b16 %v735
      %v977 = vunpack.c.l.b16 %v736
      %v978 = vunpack.c.l.b16 %v737
      %v979 = vunpack.c.l.b16 %v738
      %v980 = vunpack.c.l.b16 %v739
      %v981 = vunpack.c.l.b16 %v740
      %v982 = vunpack.c.l.b16 %v741
      %v983 = vunpack.c.l.b16 %v742
      %v984 = vunpack.c.l.b16 %v743
      %v985 = vunpack.c.l.b16 %v744
      %v986 = vunpack.c.l.b16 %v745
      %v987 = vunpack.c.l.b16 %v746
      %v988 = vunpack.c.l.b16 %v747
      %v989 = vunpack.c.l.b16 %v748
      %v990 = vunpack.c.l.b16 %v749
      %v991 = vunpack.c.l.b16 %v750
      %v992 = vunpack.c.l.b16 %v751
      %v993 = vunpack.c.l.b16 %v752
      %v994 = vunpack.c.l.b16 %v753
      %v995 = vunpack.c.l.b16 %v754
      %v996 = vunpack.c.l.b16 %v755
      %v997 = vunpack.c.l.b16 %v756
      %v998 = vunpack.c.l.b16 %v757
      %v999 = vunpack.c.l.b16 %v758
      %v1000 = vpack.c.b16 %v953, %v952
      %v1001 = vpack.c.b16 %v954, %v954
      %v1002 = vpack.c.b16 %v956, %v955
      %v1003 = vpack.c.b16 %v957, %v957
      %v1004 = vpack.c.b16 %v959, %v958
      %v1005 = vpack.c.b16 %v960, %v960
      %v1006 = vpack.c.b16 %v962, %v961
      %v1007 = vpack.c.b16 %v963, %v963
      %v1008 = vpack.c.b16 %v965, %v964
      %v1009 = vpack.c.b16 %v966, %v966
      %v1010 = vpack.c.b16 %v968, %v967
      %v1011 = vpack.c.b16 %v969, %v969
      %v1012 = vpack.c.b16 %v971, %v970
      %v1013 = vpack.c.b16 %v972, %v972
      %v1014 = vpack.c.b16 %v974, %v973
      %v1015 = vpack.c.b16 %v975, %v975
      %v1016 = vpack.c.b16 %v977, %v976
      %v1017 = vpack.c.b16 %v978, %v978
      %v1018 = vpack.c.b16 %v980, %v979
      %v1019 = vpack.c.b16 %v981, %v981
      %v1020 = vpack.c.b16 %v983, %v982
      %v1021 = vpack.c.b16 %v984, %v984
      %v1022 = vpack.c.b16 %v986, %v985
      %v1023 = vpack.c.b16 %v987, %v987
      %v1024 = vpack.c.b16 %v989, %v988
      %v1025 = vpack.c.b16 %v990, %v990
      %v1026 = vpack.c.b16 %v992, %v991
      %v1027 = vpack.c.b16 %v993, %v993
      %v1028 = vpack.c.b16 %v995, %v994
      %v1029 = vpack.c.b16 %v996, %v996
      %v1030 = vpack.c.b16 %v998, %v997
      %v1031 = vpack.c.b16 %v999, %v999
      %v1032 = vpack.c.b16 %v954, %v953
      %v1033 = vpack.c.b16 %v957, %v956
      %v1034 = vpack.c.b16 %v960, %v959
      %v1035 = vpack.c.b16 %v963, %v962
      %v1036 = vpack.c.b16 %v966, %v965
      %v1037 = vpack.c.b16 %v969, %v968
      %v1038 = vpack.c.b16 %v972, %v971
      %v1039 = vpack.c.b16 %v975, %v974
      %v1040 = vpack.c.b16 %v978, %v977
      %v1041 = vpack.c.b16 %v981, %v980
      %v1042 = vpack.c.b16 %v984, %v983
      %v1043 = vpack.c.b16 %v987, %v986
      %v1044 = vpack.c.b16 %v990, %v989
      %v1045 = vpack.c.b16 %v993, %v992
      %v1046 = vpack.c.b16 %v996, %v995
      %v1047 = vpack.c.b16 %v999, %v998
      %v1049 = vshrl.u32 %v1032, 16
      %v1051 = vrot.slane %v1049, 4
      %v1052 = vshll.u32 %v1032, 16
      %v1054 = vrot.slane %v1052, 5
      %v1055 = vor.u32 %v1051, %v1054
      %v1057 = vshrl.u32 %v1033, 16
      %v1059 = vrot.slane %v1057, 4
      %v1060 = vshll.u32 %v1033, 16
      %v1062 = vrot.slane %v1060, 5
      %v1063 = vor.u32 %v1059, %v1062
      %v1065 = vshrl.u32 %v1034, 16
      %v1067 = vrot.slane %v1065, 4
      %v1068 = vshll.u32 %v1034, 16
      %v1070 = vrot.slane %v1068, 5
      %v1071 = vor.u32 %v1067, %v1070
      %v1073 = vshrl.u32 %v1035, 16
      %v1075 = vrot.slane %v1073, 4
      %v1076 = vshll.u32 %v1035, 16
      %v1078 = vrot.slane %v1076, 5
      %v1079 = vor.u32 %v1075, %v1078
      %v1081 = vshrl.u32 %v1036, 16
      %v1083 = vrot.slane %v1081, 4
      %v1084 = vshll.u32 %v1036, 16
      %v1086 = vrot.slane %v1084, 5
      %v1087 = vor.u32 %v1083, %v1086
      %v1089 = vshrl.u32 %v1037, 16
      %v1091 = vrot.slane %v1089, 4
      %v1092 = vshll.u32 %v1037, 16
      %v1094 = vrot.slane %v1092, 5
      %v1095 = vor.u32 %v1091, %v1094
      %v1097 = vshrl.u32 %v1038, 16
      %v1099 = vrot.slane %v1097, 4
      %v1100 = vshll.u32 %v1038, 16
      %v1102 = vrot.slane %v1100, 5
      %v1103 = vor.u32 %v1099, %v1102
      %v1105 = vshrl.u32 %v1039, 16
      %v1107 = vrot.slane %v1105, 4
      %v1108 = vshll.u32 %v1039, 16
      %v1110 = vrot.slane %v1108, 5
      %v1111 = vor.u32 %v1107, %v1110
      %v1113 = vshrl.u32 %v1040, 16
      %v1115 = vrot.slane %v1113, 4
      %v1116 = vshll.u32 %v1040, 16
      %v1118 = vrot.slane %v1116, 5
      %v1119 = vor.u32 %v1115, %v1118
      %v1121 = vshrl.u32 %v1041, 16
      %v1123 = vrot.slane %v1121, 4
      %v1124 = vshll.u32 %v1041, 16
      %v1126 = vrot.slane %v1124, 5
      %v1127 = vor.u32 %v1123, %v1126
      %v1129 = vshrl.u32 %v1042, 16
      %v1131 = vrot.slane %v1129, 4
      %v1132 = vshll.u32 %v1042, 16
      %v1134 = vrot.slane %v1132, 5
      %v1135 = vor.u32 %v1131, %v1134
      %v1137 = vshrl.u32 %v1043, 16
      %v1139 = vrot.slane %v1137, 4
      %v1140 = vshll.u32 %v1043, 16
      %v1142 = vrot.slane %v1140, 5
      %v1143 = vor.u32 %v1139, %v1142
      %v1145 = vshrl.u32 %v1044, 16
      %v1147 = vrot.slane %v1145, 4
      %v1148 = vshll.u32 %v1044, 16
      %v1150 = vrot.slane %v1148, 5
      %v1151 = vor.u32 %v1147, %v1150
      %v1153 = vshrl.u32 %v1045, 16
      %v1155 = vrot.slane %v1153, 4
      %v1156 = vshll.u32 %v1045, 16
      %v1158 = vrot.slane %v1156, 5
      %v1159 = vor.u32 %v1155, %v1158
      %v1161 = vshrl.u32 %v1046, 16
      %v1163 = vrot.slane %v1161, 4
      %v1164 = vshll.u32 %v1046, 16
      %v1166 = vrot.slane %v1164, 5
      %v1167 = vor.u32 %v1163, %v1166
      %v1169 = vshrl.u32 %v1047, 16
      %v1171 = vrot.slane %v1169, 4
      %v1172 = vshll.u32 %v1047, 16
      %v1174 = vrot.slane %v1172, 5
      %v1175 = vor.u32 %v1171, %v1174
      %1176 = vrot.lane.b32.xlu0 %v1055, 4
      %v1177 = vpop.permute.xlu0 %1176
      %1178 = vrot.lane.b32.xlu0 %v1063, 4
      %v1179 = vpop.permute.xlu0 %1178
      %1180 = vrot.lane.b32.xlu0 %v1071, 4
      %v1181 = vpop.permute.xlu0 %1180
      %1182 = vrot.lane.b32.xlu0 %v1079, 4
      %v1183 = vpop.permute.xlu0 %1182
      %1184 = vrot.lane.b32.xlu0 %v1087, 4
      %v1185 = vpop.permute.xlu0 %1184
      %1186 = vrot.lane.b32.xlu0 %v1095, 4
      %v1187 = vpop.permute.xlu0 %1186
      %1188 = vrot.lane.b32.xlu0 %v1103, 4
      %v1189 = vpop.permute.xlu0 %1188
      %1190 = vrot.lane.b32.xlu0 %v1111, 4
      %v1191 = vpop.permute.xlu0 %1190
      %1192 = vrot.lane.b32.xlu0 %v1119, 4
      %v1193 = vpop.permute.xlu0 %1192
      %1194 = vrot.lane.b32.xlu0 %v1127, 4
      %v1195 = vpop.permute.xlu0 %1194
      %1196 = vrot.lane.b32.xlu0 %v1135, 4
      %v1197 = vpop.permute.xlu0 %1196
      %1198 = vrot.lane.b32.xlu0 %v1143, 4
      %v1199 = vpop.permute.xlu0 %1198
      %1200 = vrot.lane.b32.xlu0 %v1151, 4
      %v1201 = vpop.permute.xlu0 %1200
      %1202 = vrot.lane.b32.xlu0 %v1159, 4
      %v1203 = vpop.permute.xlu0 %1202
      %1204 = vrot.lane.b32.xlu0 %v1167, 4
      %v1205 = vpop.permute.xlu0 %1204
      %1206 = vrot.lane.b32.xlu0 %v1175, 4
      %v1207 = vpop.permute.xlu0 %1206
      %v1224 = vunpack.c.l.b16 %v759
      %v1225 = vunpack.c.l.b16 %v760
      %v1226 = vunpack.c.l.b16 %v761
      %v1227 = vunpack.c.l.b16 %v762
      %v1228 = vunpack.c.l.b16 %v763
      %v1229 = vunpack.c.l.b16 %v764
      %v1230 = vunpack.c.l.b16 %v765
      %v1231 = vunpack.c.l.b16 %v766
      %v1232 = vunpack.c.l.b16 %v767
      %v1233 = vunpack.c.l.b16 %v768
      %v1234 = vunpack.c.l.b16 %v769
      %v1235 = vunpack.c.l.b16 %v770
      %v1236 = vunpack.c.l.b16 %v771
      %v1237 = vunpack.c.l.b16 %v772
      %v1238 = vunpack.c.l.b16 %v773
      %v1239 = vunpack.c.l.b16 %v774
      %v1240 = vpack.c.b16 %v1224, %v1224
      %v1241 = vpack.c.b16 %v1225, %v1225
      %v1242 = vpack.c.b16 %v1226, %v1226
      %v1243 = vpack.c.b16 %v1227, %v1227
      %v1244 = vpack.c.b16 %v1228, %v1228
      %v1245 = vpack.c.b16 %v1229, %v1229
      %v1246 = vpack.c.b16 %v1230, %v1230
      %v1247 = vpack.c.b16 %v1231, %v1231
      %v1248 = vpack.c.b16 %v1232, %v1232
      %v1249 = vpack.c.b16 %v1233, %v1233
      %v1250 = vpack.c.b16 %v1234, %v1234
      %v1251 = vpack.c.b16 %v1235, %v1235
      %v1252 = vpack.c.b16 %v1236, %v1236
      %v1253 = vpack.c.b16 %v1237, %v1237
      %v1254 = vpack.c.b16 %v1238, %v1238
      %v1255 = vpack.c.b16 %v1239, %v1239
      %vm1256 = vcmask 1042432
      %v1257 = vrot.slane %v1032, 5
      %v1258 = vrot.slane %v1240, 5
      %v1259 = vsel %vm1256, %v1257, %v1258
      %v1260 = vrot.slane %v1033, 5
      %v1261 = vrot.slane %v1241, 5
      %v1262 = vsel %vm1256, %v1260, %v1261
      %v1263 = vrot.slane %v1034, 5
      %v1264 = vrot.slane %v1242, 5
      %v1265 = vsel %vm1256, %v1263, %v1264
      %v1266 = vrot.slane %v1035, 5
      %v1267 = vrot.slane %v1243, 5
      %v1268 = vsel %vm1256, %v1266, %v1267
      %v1269 = vrot.slane %v1036, 5
      %v1270 = vrot.slane %v1244, 5
      %v1271 = vsel %vm1256, %v1269, %v1270
      %v1272 = vrot.slane %v1037, 5
      %v1273 = vrot.slane %v1245, 5
      %v1274 = vsel %vm1256, %v1272, %v1273
      %v1275 = vrot.slane %v1038, 5
      %v1276 = vrot.slane %v1246, 5
      %v1277 = vsel %vm1256, %v1275, %v1276
      %v1278 = vrot.slane %v1039, 5
      %v1279 = vrot.slane %v1247, 5
      %v1280 = vsel %vm1256, %v1278, %v1279
      %v1281 = vrot.slane %v1040, 5
      %v1282 = vrot.slane %v1248, 5
      %v1283 = vsel %vm1256, %v1281, %v1282
      %v1284 = vrot.slane %v1041, 5
      %v1285 = vrot.slane %v1249, 5
      %v1286 = vsel %vm1256, %v1284, %v1285
      %v1287 = vrot.slane %v1042, 5
      %v1288 = vrot.slane %v1250, 5
      %v1289 = vsel %vm1256, %v1287, %v1288
      %v1290 = vrot.slane %v1043, 5
      %v1291 = vrot.slane %v1251, 5
      %v1292 = vsel %vm1256, %v1290, %v1291
      %v1293 = vrot.slane %v1044, 5
      %v1294 = vrot.slane %v1252, 5
      %v1295 = vsel %vm1256, %v1293, %v1294
      %v1296 = vrot.slane %v1045, 5
      %v1297 = vrot.slane %v1253, 5
      %v1298 = vsel %vm1256, %v1296, %v1297
      %v1299 = vrot.slane %v1046, 5
      %v1300 = vrot.slane %v1254, 5
      %v1301 = vsel %vm1256, %v1299, %v1300
      %v1302 = vrot.slane %v1047, 5
      %v1303 = vrot.slane %v1255, 5
      %v1304 = vsel %vm1256, %v1302, %v1303
      %1305 = vrot.lane.b32.xlu0 %v1257, 8
      %v1306 = vpop.permute.xlu0 %1305
      %1307 = vrot.lane.b32.xlu0 %v1259, 8
      %v1308 = vpop.permute.xlu0 %1307
      %1309 = vrot.lane.b32.xlu0 %v1260, 8
      %v1310 = vpop.permute.xlu0 %1309
      %1311 = vrot.lane.b32.xlu0 %v1262, 8
      %v1312 = vpop.permute.xlu0 %1311
      %1313 = vrot.lane.b32.xlu0 %v1263, 8
      %v1314 = vpop.permute.xlu0 %1313
      %1315 = vrot.lane.b32.xlu0 %v1265, 8
      %v1316 = vpop.permute.xlu0 %1315
      %1317 = vrot.lane.b32.xlu0 %v1266, 8
      %v1318 = vpop.permute.xlu0 %1317
      %1319 = vrot.lane.b32.xlu0 %v1268, 8
      %v1320 = vpop.permute.xlu0 %1319
      %1321 = vrot.lane.b32.xlu0 %v1269, 8
      %v1322 = vpop.permute.xlu0 %1321
      %1323 = vrot.lane.b32.xlu0 %v1271, 8
      %v1324 = vpop.permute.xlu0 %1323
      %1325 = vrot.lane.b32.xlu0 %v1272, 8
      %v1326 = vpop.permute.xlu0 %1325
      %1327 = vrot.lane.b32.xlu0 %v1274, 8
      %v1328 = vpop.permute.xlu0 %1327
      %1329 = vrot.lane.b32.xlu0 %v1275, 8
      %v1330 = vpop.permute.xlu0 %1329
      %1331 = vrot.lane.b32.xlu0 %v1277, 8
      %v1332 = vpop.permute.xlu0 %1331
      %1333 = vrot.lane.b32.xlu0 %v1278, 8
      %v1334 = vpop.permute.xlu0 %1333
      %1335 = vrot.lane.b32.xlu0 %v1280, 8
      %v1336 = vpop.permute.xlu0 %1335
      %1337 = vrot.lane.b32.xlu0 %v1281, 8
      %v1338 = vpop.permute.xlu0 %1337
      %1339 = vrot.lane.b32.xlu0 %v1283, 8
      %v1340 = vpop.permute.xlu0 %1339
      %1341 = vrot.lane.b32.xlu0 %v1284, 8
      %v1342 = vpop.permute.xlu0 %1341
      %1343 = vrot.lane.b32.xlu0 %v1286, 8
      %v1344 = vpop.permute.xlu0 %1343
      %1345 = vrot.lane.b32.xlu0 %v1287, 8
      %v1346 = vpop.permute.xlu0 %1345
      %1347 = vrot.lane.b32.xlu0 %v1289, 8
      %v1348 = vpop.permute.xlu0 %1347
      %1349 = vrot.lane.b32.xlu0 %v1290, 8
      %v1350 = vpop.permute.xlu0 %1349
      %1351 = vrot.lane.b32.xlu0 %v1292, 8
      %v1352 = vpop.permute.xlu0 %1351
      %1353 = vrot.lane.b32.xlu0 %v1293, 8
      %v1354 = vpop.permute.xlu0 %1353
      %1355 = vrot.lane.b32.xlu0 %v1295, 8
      %v1356 = vpop.permute.xlu0 %1355
      %1357 = vrot.lane.b32.xlu0 %v1296, 8
      %v1358 = vpop.permute.xlu0 %1357
      %1359 = vrot.lane.b32.xlu0 %v1298, 8
      %v1360 = vpop.permute.xlu0 %1359
      %1361 = vrot.lane.b32.xlu0 %v1299, 8
      %v1362 = vpop.permute.xlu0 %1361
      %1363 = vrot.lane.b32.xlu0 %v1301, 8
      %v1364 = vpop.permute.xlu0 %1363
      %1365 = vrot.lane.b32.xlu0 %v1302, 8
      %v1366 = vpop.permute.xlu0 %1365
      %1367 = vrot.lane.b32.xlu0 %v1304, 8
      %v1368 = vpop.permute.xlu0 %1367
      %v1417 = vunpack.c.l.b16 %v775
      %v1418 = vunpack.c.l.b16 %v776
      %v1419 = vunpack.c.l.b16 %v777
      %v1420 = vunpack.c.l.b16 %v778
      %v1421 = vunpack.c.l.b16 %v779
      %v1422 = vunpack.c.l.b16 %v780
      %v1423 = vunpack.c.l.b16 %v781
      %v1424 = vunpack.c.l.b16 %v782
      %v1425 = vunpack.c.l.b16 %v783
      %v1426 = vunpack.c.l.b16 %v784
      %v1427 = vunpack.c.l.b16 %v785
      %v1428 = vunpack.c.l.b16 %v786
      %v1429 = vunpack.c.l.b16 %v787
      %v1430 = vunpack.c.l.b16 %v788
      %v1431 = vunpack.c.l.b16 %v789
      %v1432 = vunpack.c.l.b16 %v790
      %v1433 = vunpack.c.l.b16 %v791
      %v1434 = vunpack.c.l.b16 %v792
      %v1435 = vunpack.c.l.b16 %v793
      %v1436 = vunpack.c.l.b16 %v794
      %v1437 = vunpack.c.l.b16 %v795
      %v1438 = vunpack.c.l.b16 %v796
      %v1439 = vunpack.c.l.b16 %v797
      %v1440 = vunpack.c.l.b16 %v798
      %v1441 = vunpack.c.l.b16 %v799
      %v1442 = vunpack.c.l.b16 %v800
      %v1443 = vunpack.c.l.b16 %v801
      %v1444 = vunpack.c.l.b16 %v802
      %v1445 = vunpack.c.l.b16 %v803
      %v1446 = vunpack.c.l.b16 %v804
      %v1447 = vunpack.c.l.b16 %v805
      %v1448 = vunpack.c.l.b16 %v806
      %v1449 = vunpack.c.l.b16 %v807
      %v1450 = vunpack.c.l.b16 %v808
      %v1451 = vunpack.c.l.b16 %v809
      %v1452 = vunpack.c.l.b16 %v810
      %v1453 = vunpack.c.l.b16 %v811
      %v1454 = vunpack.c.l.b16 %v812
      %v1455 = vunpack.c.l.b16 %v813
      %v1456 = vunpack.c.l.b16 %v814
      %v1457 = vunpack.c.l.b16 %v815
      %v1458 = vunpack.c.l.b16 %v816
      %v1459 = vunpack.c.l.b16 %v817
      %v1460 = vunpack.c.l.b16 %v818
      %v1461 = vunpack.c.l.b16 %v819
      %v1462 = vunpack.c.l.b16 %v820
      %v1463 = vunpack.c.l.b16 %v821
      %v1464 = vunpack.c.l.b16 %v822
      %v1465 = vpack.c.b16 %v1418, %v1417
      %v1466 = vpack.c.b16 %v1419, %v1419
      %v1467 = vpack.c.b16 %v1421, %v1420
      %v1468 = vpack.c.b16 %v1422, %v1422
      %v1469 = vpack.c.b16 %v1424, %v1423
      %v1470 = vpack.c.b16 %v1425, %v1425
      %v1471 = vpack.c.b16 %v1427, %v1426
      %v1472 = vpack.c.b16 %v1428, %v1428
      %v1473 = vpack.c.b16 %v1430, %v1429
      %v1474 = vpack.c.b16 %v1431, %v1431
      %v1475 = vpack.c.b16 %v1433, %v1432
      %v1476 = vpack.c.b16 %v1434, %v1434
      %v1477 = vpack.c.b16 %v1436, %v1435
      %v1478 = vpack.c.b16 %v1437, %v1437
      %v1479 = vpack.c.b16 %v1439, %v1438
      %v1480 = vpack.c.b16 %v1440, %v1440
      %v1481 = vpack.c.b16 %v1442, %v1441
      %v1482 = vpack.c.b16 %v1443, %v1443
      %v1483 = vpack.c.b16 %v1445, %v1444
      %v1484 = vpack.c.b16 %v1446, %v1446
      %v1485 = vpack.c.b16 %v1448, %v1447
      %v1486 = vpack.c.b16 %v1449, %v1449
      %v1487 = vpack.c.b16 %v1451, %v1450
      %v1488 = vpack.c.b16 %v1452, %v1452
      %v1489 = vpack.c.b16 %v1454, %v1453
      %v1490 = vpack.c.b16 %v1455, %v1455
      %v1491 = vpack.c.b16 %v1457, %v1456
      %v1492 = vpack.c.b16 %v1458, %v1458
      %v1493 = vpack.c.b16 %v1460, %v1459
      %v1494 = vpack.c.b16 %v1461, %v1461
      %v1495 = vpack.c.b16 %v1463, %v1462
      %v1496 = vpack.c.b16 %v1464, %v1464
      %1497 = vrot.lane.b32.xlu0 %v1465, 12
      %v1498 = vpop.permute.xlu0 %1497
      %1499 = vrot.lane.b32.xlu0 %v1466, 12
      %v1500 = vpop.permute.xlu0 %1499
      %1501 = vrot.lane.b32.xlu0 %v1467, 12
      %v1502 = vpop.permute.xlu0 %1501
      %1503 = vrot.lane.b32.xlu0 %v1468, 12
      %v1504 = vpop.permute.xlu0 %1503
      %1505 = vrot.lane.b32.xlu0 %v1469, 12
      %v1506 = vpop.permute.xlu0 %1505
      %1507 = vrot.lane.b32.xlu0 %v1470, 12
      %v1508 = vpop.permute.xlu0 %1507
      %1509 = vrot.lane.b32.xlu0 %v1471, 12
      %v1510 = vpop.permute.xlu0 %1509
      %1511 = vrot.lane.b32.xlu0 %v1472, 12
      %v1512 = vpop.permute.xlu0 %1511
      %1513 = vrot.lane.b32.xlu0 %v1473, 12
      %v1514 = vpop.permute.xlu0 %1513
      %1515 = vrot.lane.b32.xlu0 %v1474, 12
      %v1516 = vpop.permute.xlu0 %1515
      %1517 = vrot.lane.b32.xlu0 %v1475, 12
      %v1518 = vpop.permute.xlu0 %1517
      %1519 = vrot.lane.b32.xlu0 %v1476, 12
      %v1520 = vpop.permute.xlu0 %1519
      %1521 = vrot.lane.b32.xlu0 %v1477, 12
      %v1522 = vpop.permute.xlu0 %1521
      %1523 = vrot.lane.b32.xlu0 %v1478, 12
      %v1524 = vpop.permute.xlu0 %1523
      %1525 = vrot.lane.b32.xlu0 %v1479, 12
      %v1526 = vpop.permute.xlu0 %1525
      %1527 = vrot.lane.b32.xlu0 %v1480, 12
      %v1528 = vpop.permute.xlu0 %1527
      %1529 = vrot.lane.b32.xlu0 %v1481, 12
      %v1530 = vpop.permute.xlu0 %1529
      %1531 = vrot.lane.b32.xlu0 %v1482, 12
      %v1532 = vpop.permute.xlu0 %1531
      %1533 = vrot.lane.b32.xlu0 %v1483, 12
      %v1534 = vpop.permute.xlu0 %1533
      %1535 = vrot.lane.b32.xlu0 %v1484, 12
      %v1536 = vpop.permute.xlu0 %1535
      %1537 = vrot.lane.b32.xlu0 %v1485, 12
      %v1538 = vpop.permute.xlu0 %1537
      %1539 = vrot.lane.b32.xlu0 %v1486, 12
      %v1540 = vpop.permute.xlu0 %1539
      %1541 = vrot.lane.b32.xlu0 %v1487, 12
      %v1542 = vpop.permute.xlu0 %1541
      %1543 = vrot.lane.b32.xlu0 %v1488, 12
      %v1544 = vpop.permute.xlu0 %1543
      %1545 = vrot.lane.b32.xlu0 %v1489, 12
      %v1546 = vpop.permute.xlu0 %1545
      %1547 = vrot.lane.b32.xlu0 %v1490, 12
      %v1548 = vpop.permute.xlu0 %1547
      %1549 = vrot.lane.b32.xlu0 %v1491, 12
      %v1550 = vpop.permute.xlu0 %1549
      %1551 = vrot.lane.b32.xlu0 %v1492, 12
      %v1552 = vpop.permute.xlu0 %1551
      %1553 = vrot.lane.b32.xlu0 %v1493, 12
      %v1554 = vpop.permute.xlu0 %1553
      %1555 = vrot.lane.b32.xlu0 %v1494, 12
      %v1556 = vpop.permute.xlu0 %1555
      %1557 = vrot.lane.b32.xlu0 %v1495, 12
      %v1558 = vpop.permute.xlu0 %1557
      %1559 = vrot.lane.b32.xlu0 %v1496, 12
      %v1560 = vpop.permute.xlu0 %1559
      %v1561 = vpack.c.b16 %v1419, %v1418
      %v1562 = vpack.c.b16 %v1422, %v1421
      %v1563 = vpack.c.b16 %v1425, %v1424
      %v1564 = vpack.c.b16 %v1428, %v1427
      %v1565 = vpack.c.b16 %v1431, %v1430
      %v1566 = vpack.c.b16 %v1434, %v1433
      %v1567 = vpack.c.b16 %v1437, %v1436
      %v1568 = vpack.c.b16 %v1440, %v1439
      %v1569 = vpack.c.b16 %v1443, %v1442
      %v1570 = vpack.c.b16 %v1446, %v1445
      %v1571 = vpack.c.b16 %v1449, %v1448
      %v1572 = vpack.c.b16 %v1452, %v1451
      %v1573 = vpack.c.b16 %v1455, %v1454
      %v1574 = vpack.c.b16 %v1458, %v1457
      %v1575 = vpack.c.b16 %v1461, %v1460
      %v1576 = vpack.c.b16 %v1464, %v1463
      %v1578 = vshrl.u32 %v1561, 16
      %v1580 = vrot.slane %v1578, 4
      %v1581 = vshll.u32 %v1561, 16
      %v1583 = vrot.slane %v1581, 5
      %v1584 = vor.u32 %v1580, %v1583
      %v1586 = vshrl.u32 %v1562, 16
      %v1588 = vrot.slane %v1586, 4
      %v1589 = vshll.u32 %v1562, 16
      %v1591 = vrot.slane %v1589, 5
      %v1592 = vor.u32 %v1588, %v1591
      %v1594 = vshrl.u32 %v1563, 16
      %v1596 = vrot.slane %v1594, 4
      %v1597 = vshll.u32 %v1563, 16
      %v1599 = vrot.slane %v1597, 5
      %v1600 = vor.u32 %v1596, %v1599
      %v1602 = vshrl.u32 %v1564, 16
      %v1604 = vrot.slane %v1602, 4
      %v1605 = vshll.u32 %v1564, 16
      %v1607 = vrot.slane %v1605, 5
      %v1608 = vor.u32 %v1604, %v1607
      %v1610 = vshrl.u32 %v1565, 16
      %v1612 = vrot.slane %v1610, 4
      %v1613 = vshll.u32 %v1565, 16
      %v1615 = vrot.slane %v1613, 5
      %v1616 = vor.u32 %v1612, %v1615
      %v1618 = vshrl.u32 %v1566, 16
      %v1620 = vrot.slane %v1618, 4
      %v1621 = vshll.u32 %v1566, 16
      %v1623 = vrot.slane %v1621, 5
      %v1624 = vor.u32 %v1620, %v1623
      %v1626 = vshrl.u32 %v1567, 16
      %v1628 = vrot.slane %v1626, 4
      %v1629 = vshll.u32 %v1567, 16
      %v1631 = vrot.slane %v1629, 5
      %v1632 = vor.u32 %v1628, %v1631
      %v1634 = vshrl.u32 %v1568, 16
      %v1636 = vrot.slane %v1634, 4
      %v1637 = vshll.u32 %v1568, 16
      %v1639 = vrot.slane %v1637, 5
      %v1640 = vor.u32 %v1636, %v1639
      %v1642 = vshrl.u32 %v1569, 16
      %v1644 = vrot.slane %v1642, 4
      %v1645 = vshll.u32 %v1569, 16
      %v1647 = vrot.slane %v1645, 5
      %v1648 = vor.u32 %v1644, %v1647
      %v1650 = vshrl.u32 %v1570, 16
      %v1652 = vrot.slane %v1650, 4
      %v1653 = vshll.u32 %v1570, 16
      %v1655 = vrot.slane %v1653, 5
      %v1656 = vor.u32 %v1652, %v1655
      %v1658 = vshrl.u32 %v1571, 16
      %v1660 = vrot.slane %v1658, 4
      %v1661 = vshll.u32 %v1571, 16
      %v1663 = vrot.slane %v1661, 5
      %v1664 = vor.u32 %v1660, %v1663
      %v1666 = vshrl.u32 %v1572, 16
      %v1668 = vrot.slane %v1666, 4
      %v1669 = vshll.u32 %v1572, 16
      %v1671 = vrot.slane %v1669, 5
      %v1672 = vor.u32 %v1668, %v1671
      %v1674 = vshrl.u32 %v1573, 16
      %v1676 = vrot.slane %v1674, 4
      %v1677 = vshll.u32 %v1573, 16
      %v1679 = vrot.slane %v1677, 5
      %v1680 = vor.u32 %v1676, %v1679
      %v1682 = vshrl.u32 %v1574, 16
      %v1684 = vrot.slane %v1682, 4
      %v1685 = vshll.u32 %v1574, 16
      %v1687 = vrot.slane %v1685, 5
      %v1688 = vor.u32 %v1684, %v1687
      %v1690 = vshrl.u32 %v1575, 16
      %v1692 = vrot.slane %v1690, 4
      %v1693 = vshll.u32 %v1575, 16
      %v1695 = vrot.slane %v1693, 5
      %v1696 = vor.u32 %v1692, %v1695
      %v1698 = vshrl.u32 %v1576, 16
      %v1700 = vrot.slane %v1698, 4
      %v1701 = vshll.u32 %v1576, 16
      %v1703 = vrot.slane %v1701, 5
      %v1704 = vor.u32 %v1700, %v1703
      %1705 = vrot.lane.b32.xlu0 %v1584, 16
      %v1706 = vpop.permute.xlu0 %1705
      %1707 = vrot.lane.b32.xlu0 %v1592, 16
      %v1708 = vpop.permute.xlu0 %1707
      %1709 = vrot.lane.b32.xlu0 %v1600, 16
      %v1710 = vpop.permute.xlu0 %1709
      %1711 = vrot.lane.b32.xlu0 %v1608, 16
      %v1712 = vpop.permute.xlu0 %1711
      %1713 = vrot.lane.b32.xlu0 %v1616, 16
      %v1714 = vpop.permute.xlu0 %1713
      %1715 = vrot.lane.b32.xlu0 %v1624, 16
      %v1716 = vpop.permute.xlu0 %1715
      %1717 = vrot.lane.b32.xlu0 %v1632, 16
      %v1718 = vpop.permute.xlu0 %1717
      %1719 = vrot.lane.b32.xlu0 %v1640, 16
      %v1720 = vpop.permute.xlu0 %1719
      %1721 = vrot.lane.b32.xlu0 %v1648, 16
      %v1722 = vpop.permute.xlu0 %1721
      %1723 = vrot.lane.b32.xlu0 %v1656, 16
      %v1724 = vpop.permute.xlu0 %1723
      %1725 = vrot.lane.b32.xlu0 %v1664, 16
      %v1726 = vpop.permute.xlu0 %1725
      %1727 = vrot.lane.b32.xlu0 %v1672, 16
      %v1728 = vpop.permute.xlu0 %1727
      %1729 = vrot.lane.b32.xlu0 %v1680, 16
      %v1730 = vpop.permute.xlu0 %1729
      %1731 = vrot.lane.b32.xlu0 %v1688, 16
      %v1732 = vpop.permute.xlu0 %1731
      %1733 = vrot.lane.b32.xlu0 %v1696, 16
      %v1734 = vpop.permute.xlu0 %1733
      %1735 = vrot.lane.b32.xlu0 %v1704, 16
      %v1736 = vpop.permute.xlu0 %1735
      %v1753 = vunpack.c.l.b16 %v823
      %v1754 = vunpack.c.l.b16 %v824
      %v1755 = vunpack.c.l.b16 %v825
      %v1756 = vunpack.c.l.b16 %v826
      %v1757 = vunpack.c.l.b16 %v827
      %v1758 = vunpack.c.l.b16 %v828
      %v1759 = vunpack.c.l.b16 %v829
      %v1760 = vunpack.c.l.b16 %v830
      %v1761 = vunpack.c.l.b16 %v831
      %v1762 = vunpack.c.l.b16 %v832
      %v1763 = vunpack.c.l.b16 %v833
      %v1764 = vunpack.c.l.b16 %v834
      %v1765 = vunpack.c.l.b16 %v835
      %v1766 = vunpack.c.l.b16 %v836
      %v1767 = vunpack.c.l.b16 %v837
      %v1768 = vunpack.c.l.b16 %v838
      %v1769 = vpack.c.b16 %v1753, %v1753
      %v1770 = vpack.c.b16 %v1754, %v1754
      %v1771 = vpack.c.b16 %v1755, %v1755
      %v1772 = vpack.c.b16 %v1756, %v1756
      %v1773 = vpack.c.b16 %v1757, %v1757
      %v1774 = vpack.c.b16 %v1758, %v1758
      %v1775 = vpack.c.b16 %v1759, %v1759
      %v1776 = vpack.c.b16 %v1760, %v1760
      %v1777 = vpack.c.b16 %v1761, %v1761
      %v1778 = vpack.c.b16 %v1762, %v1762
      %v1779 = vpack.c.b16 %v1763, %v1763
      %v1780 = vpack.c.b16 %v1764, %v1764
      %v1781 = vpack.c.b16 %v1765, %v1765
      %v1782 = vpack.c.b16 %v1766, %v1766
      %v1783 = vpack.c.b16 %v1767, %v1767
      %v1784 = vpack.c.b16 %v1768, %v1768
      %v1785 = vrot.slane %v1561, 5
      %v1786 = vrot.slane %v1769, 5
      %v1787 = vsel %vm1256, %v1785, %v1786
      %v1788 = vrot.slane %v1562, 5
      %v1789 = vrot.slane %v1770, 5
      %v1790 = vsel %vm1256, %v1788, %v1789
      %v1791 = vrot.slane %v1563, 5
      %v1792 = vrot.slane %v1771, 5
      %v1793 = vsel %vm1256, %v1791, %v1792
      %v1794 = vrot.slane %v1564, 5
      %v1795 = vrot.slane %v1772, 5
      %v1796 = vsel %vm1256, %v1794, %v1795
      %v1797 = vrot.slane %v1565, 5
      %v1798 = vrot.slane %v1773, 5
      %v1799 = vsel %vm1256, %v1797, %v1798
      %v1800 = vrot.slane %v1566, 5
      %v1801 = vrot.slane %v1774, 5
      %v1802 = vsel %vm1256, %v1800, %v1801
      %v1803 = vrot.slane %v1567, 5
      %v1804 = vrot.slane %v1775, 5
      %v1805 = vsel %vm1256, %v1803, %v1804
      %v1806 = vrot.slane %v1568, 5
      %v1807 = vrot.slane %v1776, 5
      %v1808 = vsel %vm1256, %v1806, %v1807
      %v1809 = vrot.slane %v1569, 5
      %v1810 = vrot.slane %v1777, 5
      %v1811 = vsel %vm1256, %v1809, %v1810
      %v1812 = vrot.slane %v1570, 5
      %v1813 = vrot.slane %v1778, 5
      %v1814 = vsel %vm1256, %v1812, %v1813
      %v1815 = vrot.slane %v1571, 5
      %v1816 = vrot.slane %v1779, 5
      %v1817 = vsel %vm1256, %v1815, %v1816
      %v1818 = vrot.slane %v1572, 5
      %v1819 = vrot.slane %v1780, 5
      %v1820 = vsel %vm1256, %v1818, %v1819
      %v1821 = vrot.slane %v1573, 5
      %v1822 = vrot.slane %v1781, 5
      %v1823 = vsel %vm1256, %v1821, %v1822
      %v1824 = vrot.slane %v1574, 5
      %v1825 = vrot.slane %v1782, 5
      %v1826 = vsel %vm1256, %v1824, %v1825
      %v1827 = vrot.slane %v1575, 5
      %v1828 = vrot.slane %v1783, 5
      %v1829 = vsel %vm1256, %v1827, %v1828
      %v1830 = vrot.slane %v1576, 5
      %v1831 = vrot.slane %v1784, 5
      %v1832 = vsel %vm1256, %v1830, %v1831
      %1833 = vrot.lane.b32.xlu0 %v1785, 20
      %v1834 = vpop.permute.xlu0 %1833
      %1835 = vrot.lane.b32.xlu0 %v1787, 20
      %v1836 = vpop.permute.xlu0 %1835
      %1837 = vrot.lane.b32.xlu0 %v1788, 20
      %v1838 = vpop.permute.xlu0 %1837
      %1839 = vrot.lane.b32.xlu0 %v1790, 20
      %v1840 = vpop.permute.xlu0 %1839
      %1841 = vrot.lane.b32.xlu0 %v1791, 20
      %v1842 = vpop.permute.xlu0 %1841
      %1843 = vrot.lane.b32.xlu0 %v1793, 20
      %v1844 = vpop.permute.xlu0 %1843
      %1845 = vrot.lane.b32.xlu0 %v1794, 20
      %v1846 = vpop.permute.xlu0 %1845
      %1847 = vrot.lane.b32.xlu0 %v1796, 20
      %v1848 = vpop.permute.xlu0 %1847
      %1849 = vrot.lane.b32.xlu0 %v1797, 20
      %v1850 = vpop.permute.xlu0 %1849
      %1851 = vrot.lane.b32.xlu0 %v1799, 20
      %v1852 = vpop.permute.xlu0 %1851
      %1853 = vrot.lane.b32.xlu0 %v1800, 20
      %v1854 = vpop.permute.xlu0 %1853
      %1855 = vrot.lane.b32.xlu0 %v1802, 20
      %v1856 = vpop.permute.xlu0 %1855
      %1857 = vrot.lane.b32.xlu0 %v1803, 20
      %v1858 = vpop.permute.xlu0 %1857
      %1859 = vrot.lane.b32.xlu0 %v1805, 20
      %v1860 = vpop.permute.xlu0 %1859
      %1861 = vrot.lane.b32.xlu0 %v1806, 20
      %v1862 = vpop.permute.xlu0 %1861
      %1863 = vrot.lane.b32.xlu0 %v1808, 20
      %v1864 = vpop.permute.xlu0 %1863
      %1865 = vrot.lane.b32.xlu0 %v1809, 20
      %v1866 = vpop.permute.xlu0 %1865
      %1867 = vrot.lane.b32.xlu0 %v1811, 20
      %v1868 = vpop.permute.xlu0 %1867
      %1869 = vrot.lane.b32.xlu0 %v1812, 20
      %v1870 = vpop.permute.xlu0 %1869
      %1871 = vrot.lane.b32.xlu0 %v1814, 20
      %v1872 = vpop.permute.xlu0 %1871
      %1873 = vrot.lane.b32.xlu0 %v1815, 20
      %v1874 = vpop.permute.xlu0 %1873
      %1875 = vrot.lane.b32.xlu0 %v1817, 20
      %v1876 = vpop.permute.xlu0 %1875
      %1877 = vrot.lane.b32.xlu0 %v1818, 20
      %v1878 = vpop.permute.xlu0 %1877
      %1879 = vrot.lane.b32.xlu0 %v1820, 20
      %v1880 = vpop.permute.xlu0 %1879
      %1881 = vrot.lane.b32.xlu0 %v1821, 20
      %v1882 = vpop.permute.xlu0 %1881
      %1883 = vrot.lane.b32.xlu0 %v1823, 20
      %v1884 = vpop.permute.xlu0 %1883
      %1885 = vrot.lane.b32.xlu0 %v1824, 20
      %v1886 = vpop.permute.xlu0 %1885
      %1887 = vrot.lane.b32.xlu0 %v1826, 20
      %v1888 = vpop.permute.xlu0 %1887
      %1889 = vrot.lane.b32.xlu0 %v1827, 20
      %v1890 = vpop.permute.xlu0 %1889
      %1891 = vrot.lane.b32.xlu0 %v1829, 20
      %v1892 = vpop.permute.xlu0 %1891
      %1893 = vrot.lane.b32.xlu0 %v1830, 20
      %v1894 = vpop.permute.xlu0 %1893
      %1895 = vrot.lane.b32.xlu0 %v1832, 20
      %v1896 = vpop.permute.xlu0 %1895
      %v1945 = vunpack.c.l.b16 %v840
      %v1946 = vunpack.c.l.b16 %v841
      %v1947 = vunpack.c.l.b16 %v842
      %v1948 = vunpack.c.l.b16 %v843
      %v1949 = vunpack.c.l.b16 %v844
      %v1950 = vunpack.c.l.b16 %v845
      %v1951 = vunpack.c.l.b16 %v846
      %v1952 = vunpack.c.l.b16 %v847
      %v1953 = vunpack.c.l.b16 %v848
      %v1954 = vunpack.c.l.b16 %v849
      %v1955 = vunpack.c.l.b16 %v850
      %v1956 = vunpack.c.l.b16 %v851
      %v1957 = vunpack.c.l.b16 %v852
      %v1958 = vunpack.c.l.b16 %v853
      %v1959 = vunpack.c.l.b16 %v854
      %v1960 = vunpack.c.l.b16 %v855
      %v1961 = vunpack.c.l.b16 %v856
      %v1962 = vunpack.c.l.b16 %v857
      %v1963 = vunpack.c.l.b16 %v858
      %v1964 = vunpack.c.l.b16 %v859
      %v1965 = vunpack.c.l.b16 %v860
      %v1966 = vunpack.c.l.b16 %v861
      %v1967 = vunpack.c.l.b16 %v862
      %v1968 = vunpack.c.l.b16 %v863
      %v1969 = vunpack.c.l.b16 %v864
      %v1970 = vunpack.c.l.b16 %v865
      %v1971 = vunpack.c.l.b16 %v866
      %v1972 = vunpack.c.l.b16 %v867
      %v1973 = vunpack.c.l.b16 %v868
      %v1974 = vunpack.c.l.b16 %v869
      %v1975 = vunpack.c.l.b16 %v870
      %v1976 = vunpack.c.l.b16 %v871
      %v1977 = vunpack.c.l.b16 %v872
      %v1978 = vunpack.c.l.b16 %v873
      %v1979 = vunpack.c.l.b16 %v874
      %v1980 = vunpack.c.l.b16 %v875
      %v1981 = vunpack.c.l.b16 %v876
      %v1982 = vunpack.c.l.b16 %v877
      %v1983 = vunpack.c.l.b16 %v878
      %v1984 = vunpack.c.l.b16 %v879
      %v1985 = vunpack.c.l.b16 %v880
      %v1986 = vunpack.c.l.b16 %v881
      %v1987 = vunpack.c.l.b16 %v882
      %v1988 = vunpack.c.l.b16 %v883
      %v1989 = vunpack.c.l.b16 %v884
      %v1990 = vunpack.c.l.b16 %v885
      %v1991 = vunpack.c.l.b16 %v886
      %v1992 = vunpack.c.l.b16 %v887
      %v1993 = vpack.c.b16 %v1946, %v1945
      %v1994 = vpack.c.b16 %v1947, %v1947
      %v1995 = vpack.c.b16 %v1949, %v1948
      %v1996 = vpack.c.b16 %v1950, %v1950
      %v1997 = vpack.c.b16 %v1952, %v1951
      %v1998 = vpack.c.b16 %v1953, %v1953
      %v1999 = vpack.c.b16 %v1955, %v1954
      %v2000 = vpack.c.b16 %v1956, %v1956
      %v2001 = vpack.c.b16 %v1958, %v1957
      %v2002 = vpack.c.b16 %v1959, %v1959
      %v2003 = vpack.c.b16 %v1961, %v1960
      %v2004 = vpack.c.b16 %v1962, %v1962
      %v2005 = vpack.c.b16 %v1964, %v1963
      %v2006 = vpack.c.b16 %v1965, %v1965
      %v2007 = vpack.c.b16 %v1967, %v1966
      %v2008 = vpack.c.b16 %v1968, %v1968
      %v2009 = vpack.c.b16 %v1970, %v1969
      %v2010 = vpack.c.b16 %v1971, %v1971
      %v2011 = vpack.c.b16 %v1973, %v1972
      %v2012 = vpack.c.b16 %v1974, %v1974
      %v2013 = vpack.c.b16 %v1976, %v1975
      %v2014 = vpack.c.b16 %v1977, %v1977
      %v2015 = vpack.c.b16 %v1979, %v1978
      %v2016 = vpack.c.b16 %v1980, %v1980
      %v2017 = vpack.c.b16 %v1982, %v1981
      %v2018 = vpack.c.b16 %v1983, %v1983
      %v2019 = vpack.c.b16 %v1985, %v1984
      %v2020 = vpack.c.b16 %v1986, %v1986
      %v2021 = vpack.c.b16 %v1988, %v1987
      %v2022 = vpack.c.b16 %v1989, %v1989
      %v2023 = vpack.c.b16 %v1991, %v1990
      %v2024 = vpack.c.b16 %v1992, %v1992
      %2025 = vrot.lane.b32.xlu0 %v1993, 24
      %v2026 = vpop.permute.xlu0 %2025
      %2027 = vrot.lane.b32.xlu0 %v1994, 24
      %v2028 = vpop.permute.xlu0 %2027
      %2029 = vrot.lane.b32.xlu0 %v1995, 24
      %v2030 = vpop.permute.xlu0 %2029
      %2031 = vrot.lane.b32.xlu0 %v1996, 24
      %v2032 = vpop.permute.xlu0 %2031
      %2033 = vrot.lane.b32.xlu0 %v1997, 24
      %v2034 = vpop.permute.xlu0 %2033
      %2035 = vrot.lane.b32.xlu0 %v1998, 24
      %v2036 = vpop.permute.xlu0 %2035
      %2037 = vrot.lane.b32.xlu0 %v1999, 24
      %v2038 = vpop.permute.xlu0 %2037
      %2039 = vrot.lane.b32.xlu0 %v2000, 24
      %v2040 = vpop.permute.xlu0 %2039
      %2041 = vrot.lane.b32.xlu0 %v2001, 24
      %v2042 = vpop.permute.xlu0 %2041
      %2043 = vrot.lane.b32.xlu0 %v2002, 24
      %v2044 = vpop.permute.xlu0 %2043
      %2045 = vrot.lane.b32.xlu0 %v2003, 24
      %v2046 = vpop.permute.xlu0 %2045
      %2047 = vrot.lane.b32.xlu0 %v2004, 24
      %v2048 = vpop.permute.xlu0 %2047
      %2049 = vrot.lane.b32.xlu0 %v2005, 24
      %v2050 = vpop.permute.xlu0 %2049
      %2051 = vrot.lane.b32.xlu0 %v2006, 24
      %v2052 = vpop.permute.xlu0 %2051
      %2053 = vrot.lane.b32.xlu0 %v2007, 24
      %v2054 = vpop.permute.xlu0 %2053
      %2055 = vrot.lane.b32.xlu0 %v2008, 24
      %v2056 = vpop.permute.xlu0 %2055
      %2057 = vrot.lane.b32.xlu0 %v2009, 24
      %v2058 = vpop.permute.xlu0 %2057
      %2059 = vrot.lane.b32.xlu0 %v2010, 24
      %v2060 = vpop.permute.xlu0 %2059
      %2061 = vrot.lane.b32.xlu0 %v2011, 24
      %v2062 = vpop.permute.xlu0 %2061
      %2063 = vrot.lane.b32.xlu0 %v2012, 24
      %v2064 = vpop.permute.xlu0 %2063
      %2065 = vrot.lane.b32.xlu0 %v2013, 24
      %v2066 = vpop.permute.xlu0 %2065
      %2067 = vrot.lane.b32.xlu0 %v2014, 24
      %v2068 = vpop.permute.xlu0 %2067
      %2069 = vrot.lane.b32.xlu0 %v2015, 24
      %v2070 = vpop.permute.xlu0 %2069
      %2071 = vrot.lane.b32.xlu0 %v2016, 24
      %v2072 = vpop.permute.xlu0 %2071
      %2073 = vrot.lane.b32.xlu0 %v2017, 24
      %v2074 = vpop.permute.xlu0 %2073
      %2075 = vrot.lane.b32.xlu0 %v2018, 24
      %v2076 = vpop.permute.xlu0 %2075
      %2077 = vrot.lane.b32.xlu0 %v2019, 24
      %v2078 = vpop.permute.xlu0 %2077
      %2079 = vrot.lane.b32.xlu0 %v2020, 24
      %v2080 = vpop.permute.xlu0 %2079
      %2081 = vrot.lane.b32.xlu0 %v2021, 24
      %v2082 = vpop.permute.xlu0 %2081
      %2083 = vrot.lane.b32.xlu0 %v2022, 24
      %v2084 = vpop.permute.xlu0 %2083
      %2085 = vrot.lane.b32.xlu0 %v2023, 24
      %v2086 = vpop.permute.xlu0 %2085
      %2087 = vrot.lane.b32.xlu0 %v2024, 24
      %v2088 = vpop.permute.xlu0 %2087
      %v2089 = vpack.c.b16 %v1947, %v1946
      %v2090 = vpack.c.b16 %v1950, %v1949
      %v2091 = vpack.c.b16 %v1953, %v1952
      %v2092 = vpack.c.b16 %v1956, %v1955
      %v2093 = vpack.c.b16 %v1959, %v1958
      %v2094 = vpack.c.b16 %v1962, %v1961
      %v2095 = vpack.c.b16 %v1965, %v1964
      %v2096 = vpack.c.b16 %v1968, %v1967
      %v2097 = vpack.c.b16 %v1971, %v1970
      %v2098 = vpack.c.b16 %v1974, %v1973
      %v2099 = vpack.c.b16 %v1977, %v1976
      %v2100 = vpack.c.b16 %v1980, %v1979
      %v2101 = vpack.c.b16 %v1983, %v1982
      %v2102 = vpack.c.b16 %v1986, %v1985
      %v2103 = vpack.c.b16 %v1989, %v1988
      %v2104 = vpack.c.b16 %v1992, %v1991
      %v2106 = vshrl.u32 %v2089, 16
      %v2108 = vrot.slane %v2106, 4
      %v2109 = vshll.u32 %v2089, 16
      %v2111 = vrot.slane %v2109, 5
      %v2112 = vor.u32 %v2108, %v2111
      %v2114 = vshrl.u32 %v2090, 16
      %v2116 = vrot.slane %v2114, 4
      %v2117 = vshll.u32 %v2090, 16
      %v2119 = vrot.slane %v2117, 5
      %v2120 = vor.u32 %v2116, %v2119
      %v2122 = vshrl.u32 %v2091, 16
      %v2124 = vrot.slane %v2122, 4
      %v2125 = vshll.u32 %v2091, 16
      %v2127 = vrot.slane %v2125, 5
      %v2128 = vor.u32 %v2124, %v2127
      %v2130 = vshrl.u32 %v2092, 16
      %v2132 = vrot.slane %v2130, 4
      %v2133 = vshll.u32 %v2092, 16
      %v2135 = vrot.slane %v2133, 5
      %v2136 = vor.u32 %v2132, %v2135
      %v2138 = vshrl.u32 %v2093, 16
      %v2140 = vrot.slane %v2138, 4
      %v2141 = vshll.u32 %v2093, 16
      %v2143 = vrot.slane %v2141, 5
      %v2144 = vor.u32 %v2140, %v2143
      %v2146 = vshrl.u32 %v2094, 16
      %v2148 = vrot.slane %v2146, 4
      %v2149 = vshll.u32 %v2094, 16
      %v2151 = vrot.slane %v2149, 5
      %v2152 = vor.u32 %v2148, %v2151
      %v2154 = vshrl.u32 %v2095, 16
      %v2156 = vrot.slane %v2154, 4
      %v2157 = vshll.u32 %v2095, 16
      %v2159 = vrot.slane %v2157, 5
      %v2160 = vor.u32 %v2156, %v2159
      %v2162 = vshrl.u32 %v2096, 16
      %v2164 = vrot.slane %v2162, 4
      %v2165 = vshll.u32 %v2096, 16
      %v2167 = vrot.slane %v2165, 5
      %v2168 = vor.u32 %v2164, %v2167
      %v2170 = vshrl.u32 %v2097, 16
      %v2172 = vrot.slane %v2170, 4
      %v2173 = vshll.u32 %v2097, 16
      %v2175 = vrot.slane %v2173, 5
      %v2176 = vor.u32 %v2172, %v2175
      %v2178 = vshrl.u32 %v2098, 16
      %v2180 = vrot.slane %v2178, 4
      %v2181 = vshll.u32 %v2098, 16
      %v2183 = vrot.slane %v2181, 5
      %v2184 = vor.u32 %v2180, %v2183
      %v2186 = vshrl.u32 %v2099, 16
      %v2188 = vrot.slane %v2186, 4
      %v2189 = vshll.u32 %v2099, 16
      %v2191 = vrot.slane %v2189, 5
      %v2192 = vor.u32 %v2188, %v2191
      %v2194 = vshrl.u32 %v2100, 16
      %v2196 = vrot.slane %v2194, 4
      %v2197 = vshll.u32 %v2100, 16
      %v2199 = vrot.slane %v2197, 5
      %v2200 = vor.u32 %v2196, %v2199
      %v2202 = vshrl.u32 %v2101, 16
      %v2204 = vrot.slane %v2202, 4
      %v2205 = vshll.u32 %v2101, 16
      %v2207 = vrot.slane %v2205, 5
      %v2208 = vor.u32 %v2204, %v2207
      %v2210 = vshrl.u32 %v2102, 16
      %v2212 = vrot.slane %v2210, 4
      %v2213 = vshll.u32 %v2102, 16
      %v2215 = vrot.slane %v2213, 5
      %v2216 = vor.u32 %v2212, %v2215
      %v2218 = vshrl.u32 %v2103, 16
      %v2220 = vrot.slane %v2218, 4
      %v2221 = vshll.u32 %v2103, 16
      %v2223 = vrot.slane %v2221, 5
      %v2224 = vor.u32 %v2220, %v2223
      %v2226 = vshrl.u32 %v2104, 16
      %v2228 = vrot.slane %v2226, 4
      %v2229 = vshll.u32 %v2104, 16
      %v2231 = vrot.slane %v2229, 5
      %v2232 = vor.u32 %v2228, %v2231
      %2233 = vrot.lane.b32.xlu0 %v2112, 28
      %v2234 = vpop.permute.xlu0 %2233
      %2235 = vrot.lane.b32.xlu0 %v2120, 28
      %v2236 = vpop.permute.xlu0 %2235
      %2237 = vrot.lane.b32.xlu0 %v2128, 28
      %v2238 = vpop.permute.xlu0 %2237
      %2239 = vrot.lane.b32.xlu0 %v2136, 28
      %v2240 = vpop.permute.xlu0 %2239
      %2241 = vrot.lane.b32.xlu0 %v2144, 28
      %v2242 = vpop.permute.xlu0 %2241
      %2243 = vrot.lane.b32.xlu0 %v2152, 28
      %v2244 = vpop.permute.xlu0 %2243
      %2245 = vrot.lane.b32.xlu0 %v2160, 28
      %v2246 = vpop.permute.xlu0 %2245
      %2247 = vrot.lane.b32.xlu0 %v2168, 28
      %v2248 = vpop.permute.xlu0 %2247
      %2249 = vrot.lane.b32.xlu0 %v2176, 28
      %v2250 = vpop.permute.xlu0 %2249
      %2251 = vrot.lane.b32.xlu0 %v2184, 28
      %v2252 = vpop.permute.xlu0 %2251
      %2253 = vrot.lane.b32.xlu0 %v2192, 28
      %v2254 = vpop.permute.xlu0 %2253
      %2255 = vrot.lane.b32.xlu0 %v2200, 28
      %v2256 = vpop.permute.xlu0 %2255
      %2257 = vrot.lane.b32.xlu0 %v2208, 28
      %v2258 = vpop.permute.xlu0 %2257
      %2259 = vrot.lane.b32.xlu0 %v2216, 28
      %v2260 = vpop.permute.xlu0 %2259
      %2261 = vrot.lane.b32.xlu0 %v2224, 28
      %v2262 = vpop.permute.xlu0 %2261
      %2263 = vrot.lane.b32.xlu0 %v2232, 28
      %v2264 = vpop.permute.xlu0 %2263
      %v2281 = vunpack.c.l.b16 %v888
      %v2282 = vunpack.c.l.b16 %v889
      %v2283 = vunpack.c.l.b16 %v890
      %v2284 = vunpack.c.l.b16 %v891
      %v2285 = vunpack.c.l.b16 %v892
      %v2286 = vunpack.c.l.b16 %v893
      %v2287 = vunpack.c.l.b16 %v894
      %v2288 = vunpack.c.l.b16 %v895
      %v2289 = vunpack.c.l.b16 %v896
      %v2290 = vunpack.c.l.b16 %v897
      %v2291 = vunpack.c.l.b16 %v898
      %v2292 = vunpack.c.l.b16 %v899
      %v2293 = vunpack.c.l.b16 %v900
      %v2294 = vunpack.c.l.b16 %v901
      %v2295 = vunpack.c.l.b16 %v902
      %v2296 = vunpack.c.l.b16 %v903
      %v2297 = vpack.c.b16 %v2281, %v2281
      %v2298 = vpack.c.b16 %v2282, %v2282
      %v2299 = vpack.c.b16 %v2283, %v2283
      %v2300 = vpack.c.b16 %v2284, %v2284
      %v2301 = vpack.c.b16 %v2285, %v2285
      %v2302 = vpack.c.b16 %v2286, %v2286
      %v2303 = vpack.c.b16 %v2287, %v2287
      %v2304 = vpack.c.b16 %v2288, %v2288
      %v2305 = vpack.c.b16 %v2289, %v2289
      %v2306 = vpack.c.b16 %v2290, %v2290
      %v2307 = vpack.c.b16 %v2291, %v2291
      %v2308 = vpack.c.b16 %v2292, %v2292
      %v2309 = vpack.c.b16 %v2293, %v2293
      %v2310 = vpack.c.b16 %v2294, %v2294
      %v2311 = vpack.c.b16 %v2295, %v2295
      %v2312 = vpack.c.b16 %v2296, %v2296
      %v2313 = vrot.slane %v2089, 5
      %v2314 = vrot.slane %v2297, 5
      %v2315 = vsel %vm1256, %v2313, %v2314
      %v2316 = vrot.slane %v2090, 5
      %v2317 = vrot.slane %v2298, 5
      %v2318 = vsel %vm1256, %v2316, %v2317
      %v2319 = vrot.slane %v2091, 5
      %v2320 = vrot.slane %v2299, 5
      %v2321 = vsel %vm1256, %v2319, %v2320
      %v2322 = vrot.slane %v2092, 5
      %v2323 = vrot.slane %v2300, 5
      %v2324 = vsel %vm1256, %v2322, %v2323
      %v2325 = vrot.slane %v2093, 5
      %v2326 = vrot.slane %v2301, 5
      %v2327 = vsel %vm1256, %v2325, %v2326
      %v2328 = vrot.slane %v2094, 5
      %v2329 = vrot.slane %v2302, 5
      %v2330 = vsel %vm1256, %v2328, %v2329
      %v2331 = vrot.slane %v2095, 5
      %v2332 = vrot.slane %v2303, 5
      %v2333 = vsel %vm1256, %v2331, %v2332
      %v2334 = vrot.slane %v2096, 5
      %v2335 = vrot.slane %v2304, 5
      %v2336 = vsel %vm1256, %v2334, %v2335
      %v2337 = vrot.slane %v2097, 5
      %v2338 = vrot.slane %v2305, 5
      %v2339 = vsel %vm1256, %v2337, %v2338
      %v2340 = vrot.slane %v2098, 5
      %v2341 = vrot.slane %v2306, 5
      %v2342 = vsel %vm1256, %v2340, %v2341
      %v2343 = vrot.slane %v2099, 5
      %v2344 = vrot.slane %v2307, 5
      %v2345 = vsel %vm1256, %v2343, %v2344
      %v2346 = vrot.slane %v2100, 5
      %v2347 = vrot.slane %v2308, 5
      %v2348 = vsel %vm1256, %v2346, %v2347
      %v2349 = vrot.slane %v2101, 5
      %v2350 = vrot.slane %v2309, 5
      %v2351 = vsel %vm1256, %v2349, %v2350
      %v2352 = vrot.slane %v2102, 5
      %v2353 = vrot.slane %v2310, 5
      %v2354 = vsel %vm1256, %v2352, %v2353
      %v2355 = vrot.slane %v2103, 5
      %v2356 = vrot.slane %v2311, 5
      %v2357 = vsel %vm1256, %v2355, %v2356
      %v2358 = vrot.slane %v2104, 5
      %v2359 = vrot.slane %v2312, 5
      %v2360 = vsel %vm1256, %v2358, %v2359
      %2361 = vrot.lane.b32.xlu0 %v2313, 32
      %v2362 = vpop.permute.xlu0 %2361
      %2363 = vrot.lane.b32.xlu0 %v2315, 32
      %v2364 = vpop.permute.xlu0 %2363
      %2365 = vrot.lane.b32.xlu0 %v2316, 32
      %v2366 = vpop.permute.xlu0 %2365
      %2367 = vrot.lane.b32.xlu0 %v2318, 32
      %v2368 = vpop.permute.xlu0 %2367
      %2369 = vrot.lane.b32.xlu0 %v2319, 32
      %v2370 = vpop.permute.xlu0 %2369
      %2371 = vrot.lane.b32.xlu0 %v2321, 32
      %v2372 = vpop.permute.xlu0 %2371
      %2373 = vrot.lane.b32.xlu0 %v2322, 32
      %v2374 = vpop.permute.xlu0 %2373
      %2375 = vrot.lane.b32.xlu0 %v2324, 32
      %v2376 = vpop.permute.xlu0 %2375
      %2377 = vrot.lane.b32.xlu0 %v2325, 32
      %v2378 = vpop.permute.xlu0 %2377
      %2379 = vrot.lane.b32.xlu0 %v2327, 32
      %v2380 = vpop.permute.xlu0 %2379
      %2381 = vrot.lane.b32.xlu0 %v2328, 32
      %v2382 = vpop.permute.xlu0 %2381
      %2383 = vrot.lane.b32.xlu0 %v2330, 32
      %v2384 = vpop.permute.xlu0 %2383
      %2385 = vrot.lane.b32.xlu0 %v2331, 32
      %v2386 = vpop.permute.xlu0 %2385
      %2387 = vrot.lane.b32.xlu0 %v2333, 32
      %v2388 = vpop.permute.xlu0 %2387
      %2389 = vrot.lane.b32.xlu0 %v2334, 32
      %v2390 = vpop.permute.xlu0 %2389
      %2391 = vrot.lane.b32.xlu0 %v2336, 32
      %v2392 = vpop.permute.xlu0 %2391
      %2393 = vrot.lane.b32.xlu0 %v2337, 32
      %v2394 = vpop.permute.xlu0 %2393
      %2395 = vrot.lane.b32.xlu0 %v2339, 32
      %v2396 = vpop.permute.xlu0 %2395
      %2397 = vrot.lane.b32.xlu0 %v2340, 32
      %v2398 = vpop.permute.xlu0 %2397
      %2399 = vrot.lane.b32.xlu0 %v2342, 32
      %v2400 = vpop.permute.xlu0 %2399
      %2401 = vrot.lane.b32.xlu0 %v2343, 32
      %v2402 = vpop.permute.xlu0 %2401
      %2403 = vrot.lane.b32.xlu0 %v2345, 32
      %v2404 = vpop.permute.xlu0 %2403
      %2405 = vrot.lane.b32.xlu0 %v2346, 32
      %v2406 = vpop.permute.xlu0 %2405
      %2407 = vrot.lane.b32.xlu0 %v2348, 32
      %v2408 = vpop.permute.xlu0 %2407
      %2409 = vrot.lane.b32.xlu0 %v2349, 32
      %v2410 = vpop.permute.xlu0 %2409
      %2411 = vrot.lane.b32.xlu0 %v2351, 32
      %v2412 = vpop.permute.xlu0 %2411
      %2413 = vrot.lane.b32.xlu0 %v2352, 32
      %v2414 = vpop.permute.xlu0 %2413
      %2415 = vrot.lane.b32.xlu0 %v2354, 32
      %v2416 = vpop.permute.xlu0 %2415
      %2417 = vrot.lane.b32.xlu0 %v2355, 32
      %v2418 = vpop.permute.xlu0 %2417
      %2419 = vrot.lane.b32.xlu0 %v2357, 32
      %v2420 = vpop.permute.xlu0 %2419
      %2421 = vrot.lane.b32.xlu0 %v2358, 32
      %v2422 = vpop.permute.xlu0 %2421
      %2423 = vrot.lane.b32.xlu0 %v2360, 32
      %v2424 = vpop.permute.xlu0 %2423
      %vm2425 = vcmask 31744
      %v2428 = vsel %vm2425, %v1000, %v1177
      %v2430 = vsel %vm2425, %v1001, %v1177
      %v2433 = vsel %vm2425, %v1002, %v1179
      %v2435 = vsel %vm2425, %v1003, %v1179
      %v2438 = vsel %vm2425, %v1004, %v1181
      %v2440 = vsel %vm2425, %v1005, %v1181
      %v2443 = vsel %vm2425, %v1006, %v1183
      %v2445 = vsel %vm2425, %v1007, %v1183
      %v2448 = vsel %vm2425, %v1008, %v1185
      %v2450 = vsel %vm2425, %v1009, %v1185
      %v2453 = vsel %vm2425, %v1010, %v1187
      %v2455 = vsel %vm2425, %v1011, %v1187
      %v2458 = vsel %vm2425, %v1012, %v1189
      %v2460 = vsel %vm2425, %v1013, %v1189
      %v2463 = vsel %vm2425, %v1014, %v1191
      %v2465 = vsel %vm2425, %v1015, %v1191
      %v2468 = vsel %vm2425, %v1016, %v1193
      %v2470 = vsel %vm2425, %v1017, %v1193
      %v2473 = vsel %vm2425, %v1018, %v1195
      %v2475 = vsel %vm2425, %v1019, %v1195
      %v2478 = vsel %vm2425, %v1020, %v1197
      %v2480 = vsel %vm2425, %v1021, %v1197
      %v2483 = vsel %vm2425, %v1022, %v1199
      %v2485 = vsel %vm2425, %v1023, %v1199
      %v2488 = vsel %vm2425, %v1024, %v1201
      %v2490 = vsel %vm2425, %v1025, %v1201
      %v2493 = vsel %vm2425, %v1026, %v1203
      %v2495 = vsel %vm2425, %v1027, %v1203
      %v2498 = vsel %vm2425, %v1028, %v1205
      %v2500 = vsel %vm2425, %v1029, %v1205
      %v2503 = vsel %vm2425, %v1030, %v1207
      %v2505 = vsel %vm2425, %v1031, %v1207
      %vm2506 = vcmask 64512
      %v2508 = vsel %vm2506, %v2428, %v1306
      %v2510 = vsel %vm2506, %v2430, %v1308
      %v2512 = vsel %vm2506, %v2433, %v1310
      %v2514 = vsel %vm2506, %v2435, %v1312
      %v2516 = vsel %vm2506, %v2438, %v1314
      %v2518 = vsel %vm2506, %v2440, %v1316
      %v2520 = vsel %vm2506, %v2443, %v1318
      %v2522 = vsel %vm2506, %v2445, %v1320
      %v2524 = vsel %vm2506, %v2448, %v1322
      %v2526 = vsel %vm2506, %v2450, %v1324
      %v2528 = vsel %vm2506, %v2453, %v1326
      %v2530 = vsel %vm2506, %v2455, %v1328
      %v2532 = vsel %vm2506, %v2458, %v1330
      %v2534 = vsel %vm2506, %v2460, %v1332
      %v2536 = vsel %vm2506, %v2463, %v1334
      %v2538 = vsel %vm2506, %v2465, %v1336
      %v2540 = vsel %vm2506, %v2468, %v1338
      %v2542 = vsel %vm2506, %v2470, %v1340
      %v2544 = vsel %vm2506, %v2473, %v1342
      %v2546 = vsel %vm2506, %v2475, %v1344
      %v2548 = vsel %vm2506, %v2478, %v1346
      %v2550 = vsel %vm2506, %v2480, %v1348
      %v2552 = vsel %vm2506, %v2483, %v1350
      %v2554 = vsel %vm2506, %v2485, %v1352
      %v2556 = vsel %vm2506, %v2488, %v1354
      %v2558 = vsel %vm2506, %v2490, %v1356
      %v2560 = vsel %vm2506, %v2493, %v1358
      %v2562 = vsel %vm2506, %v2495, %v1360
      %v2564 = vsel %vm2506, %v2498, %v1362
      %v2566 = vsel %vm2506, %v2500, %v1364
      %v2568 = vsel %vm2506, %v2503, %v1366
      %v2570 = vsel %vm2506, %v2505, %v1368
      %vm2571 = vcmask 97280
      %v2573 = vsel %vm2571, %v2508, %v1498
      %v2575 = vsel %vm2571, %v2510, %v1500
      %v2577 = vsel %vm2571, %v2512, %v1502
      %v2579 = vsel %vm2571, %v2514, %v1504
      %v2581 = vsel %vm2571, %v2516, %v1506
      %v2583 = vsel %vm2571, %v2518, %v1508
      %v2585 = vsel %vm2571, %v2520, %v1510
      %v2587 = vsel %vm2571, %v2522, %v1512
      %v2589 = vsel %vm2571, %v2524, %v1514
      %v2591 = vsel %vm2571, %v2526, %v1516
      %v2593 = vsel %vm2571, %v2528, %v1518
      %v2595 = vsel %vm2571, %v2530, %v1520
      %v2597 = vsel %vm2571, %v2532, %v1522
      %v2599 = vsel %vm2571, %v2534, %v1524
      %v2601 = vsel %vm2571, %v2536, %v1526
      %v2603 = vsel %vm2571, %v2538, %v1528
      %v2605 = vsel %vm2571, %v2540, %v1530
      %v2607 = vsel %vm2571, %v2542, %v1532
      %v2609 = vsel %vm2571, %v2544, %v1534
      %v2611 = vsel %vm2571, %v2546, %v1536
      %v2613 = vsel %vm2571, %v2548, %v1538
      %v2615 = vsel %vm2571, %v2550, %v1540
      %v2617 = vsel %vm2571, %v2552, %v1542
      %v2619 = vsel %vm2571, %v2554, %v1544
      %v2621 = vsel %vm2571, %v2556, %v1546
      %v2623 = vsel %vm2571, %v2558, %v1548
      %v2625 = vsel %vm2571, %v2560, %v1550
      %v2627 = vsel %vm2571, %v2562, %v1552
      %v2629 = vsel %vm2571, %v2564, %v1554
      %v2631 = vsel %vm2571, %v2566, %v1556
      %v2633 = vsel %vm2571, %v2568, %v1558
      %v2635 = vsel %vm2571, %v2570, %v1560
      %vm2636 = vcmask 130048
      %v2638 = vsel %vm2636, %v2573, %v1706
      %v2639 = vsel %vm2636, %v2575, %v1706
      %v2641 = vsel %vm2636, %v2577, %v1708
      %v2642 = vsel %vm2636, %v2579, %v1708
      %v2644 = vsel %vm2636, %v2581, %v1710
      %v2645 = vsel %vm2636, %v2583, %v1710
      %v2647 = vsel %vm2636, %v2585, %v1712
      %v2648 = vsel %vm2636, %v2587, %v1712
      %v2650 = vsel %vm2636, %v2589, %v1714
      %v2651 = vsel %vm2636, %v2591, %v1714
      %v2653 = vsel %vm2636, %v2593, %v1716
      %v2654 = vsel %vm2636, %v2595, %v1716
      %v2656 = vsel %vm2636, %v2597, %v1718
      %v2657 = vsel %vm2636, %v2599, %v1718
      %v2659 = vsel %vm2636, %v2601, %v1720
      %v2660 = vsel %vm2636, %v2603, %v1720
      %v2662 = vsel %vm2636, %v2605, %v1722
      %v2663 = vsel %vm2636, %v2607, %v1722
      %v2665 = vsel %vm2636, %v2609, %v1724
      %v2666 = vsel %vm2636, %v2611, %v1724
      %v2668 = vsel %vm2636, %v2613, %v1726
      %v2669 = vsel %vm2636, %v2615, %v1726
      %v2671 = vsel %vm2636, %v2617, %v1728
      %v2672 = vsel %vm2636, %v2619, %v1728
      %v2674 = vsel %vm2636, %v2621, %v1730
      %v2675 = vsel %vm2636, %v2623, %v1730
      %v2677 = vsel %vm2636, %v2625, %v1732
      %v2678 = vsel %vm2636, %v2627, %v1732
      %v2680 = vsel %vm2636, %v2629, %v1734
      %v2681 = vsel %vm2636, %v2631, %v1734
      %v2683 = vsel %vm2636, %v2633, %v1736
      %v2684 = vsel %vm2636, %v2635, %v1736
      %vm2685 = vcmask 162816
      %v2687 = vsel %vm2685, %v2638, %v1834
      %v2689 = vsel %vm2685, %v2639, %v1836
      %v2691 = vsel %vm2685, %v2641, %v1838
      %v2693 = vsel %vm2685, %v2642, %v1840
      %v2695 = vsel %vm2685, %v2644, %v1842
      %v2697 = vsel %vm2685, %v2645, %v1844
      %v2699 = vsel %vm2685, %v2647, %v1846
      %v2701 = vsel %vm2685, %v2648, %v1848
      %v2703 = vsel %vm2685, %v2650, %v1850
      %v2705 = vsel %vm2685, %v2651, %v1852
      %v2707 = vsel %vm2685, %v2653, %v1854
      %v2709 = vsel %vm2685, %v2654, %v1856
      %v2711 = vsel %vm2685, %v2656, %v1858
      %v2713 = vsel %vm2685, %v2657, %v1860
      %v2715 = vsel %vm2685, %v2659, %v1862
      %v2717 = vsel %vm2685, %v2660, %v1864
      %v2719 = vsel %vm2685, %v2662, %v1866
      %v2721 = vsel %vm2685, %v2663, %v1868
      %v2723 = vsel %vm2685, %v2665, %v1870
      %v2725 = vsel %vm2685, %v2666, %v1872
      %v2727 = vsel %vm2685, %v2668, %v1874
      %v2729 = vsel %vm2685, %v2669, %v1876
      %v2731 = vsel %vm2685, %v2671, %v1878
      %v2733 = vsel %vm2685, %v2672, %v1880
      %v2735 = vsel %vm2685, %v2674, %v1882
      %v2737 = vsel %vm2685, %v2675, %v1884
      %v2739 = vsel %vm2685, %v2677, %v1886
      %v2741 = vsel %vm2685, %v2678, %v1888
      %v2743 = vsel %vm2685, %v2680, %v1890
      %v2745 = vsel %vm2685, %v2681, %v1892
      %v2747 = vsel %vm2685, %v2683, %v1894
      %v2749 = vsel %vm2685, %v2684, %v1896
      %vm2750 = vcmask 195584
      %v2752 = vsel %vm2750, %v2687, %v2026
      %v2754 = vsel %vm2750, %v2689, %v2028
      %v2756 = vsel %vm2750, %v2691, %v2030
      %v2758 = vsel %vm2750, %v2693, %v2032
      %v2760 = vsel %vm2750, %v2695, %v2034
      %v2762 = vsel %vm2750, %v2697, %v2036
      %v2764 = vsel %vm2750, %v2699, %v2038
      %v2766 = vsel %vm2750, %v2701, %v2040
      %v2768 = vsel %vm2750, %v2703, %v2042
      %v2770 = vsel %vm2750, %v2705, %v2044
      %v2772 = vsel %vm2750, %v2707, %v2046
      %v2774 = vsel %vm2750, %v2709, %v2048
      %v2776 = vsel %vm2750, %v2711, %v2050
      %v2778 = vsel %vm2750, %v2713, %v2052
      %v2780 = vsel %vm2750, %v2715, %v2054
      %v2782 = vsel %vm2750, %v2717, %v2056
      %v2784 = vsel %vm2750, %v2719, %v2058
      %v2786 = vsel %vm2750, %v2721, %v2060
      %v2788 = vsel %vm2750, %v2723, %v2062
      %v2790 = vsel %vm2750, %v2725, %v2064
      %v2792 = vsel %vm2750, %v2727, %v2066
      %v2794 = vsel %vm2750, %v2729, %v2068
      %v2796 = vsel %vm2750, %v2731, %v2070
      %v2798 = vsel %vm2750, %v2733, %v2072
      %v2800 = vsel %vm2750, %v2735, %v2074
      %v2802 = vsel %vm2750, %v2737, %v2076
      %v2804 = vsel %vm2750, %v2739, %v2078
      %v2806 = vsel %vm2750, %v2741, %v2080
      %v2808 = vsel %vm2750, %v2743, %v2082
      %v2810 = vsel %vm2750, %v2745, %v2084
      %v2812 = vsel %vm2750, %v2747, %v2086
      %v2814 = vsel %vm2750, %v2749, %v2088
      %vm2815 = vcmask 228352
      %v2817 = vsel %vm2815, %v2752, %v2234
      %v2818 = vsel %vm2815, %v2754, %v2234
      %v2820 = vsel %vm2815, %v2756, %v2236
      %v2821 = vsel %vm2815, %v2758, %v2236
      %v2823 = vsel %vm2815, %v2760, %v2238
      %v2824 = vsel %vm2815, %v2762, %v2238
      %v2826 = vsel %vm2815, %v2764, %v2240
      %v2827 = vsel %vm2815, %v2766, %v2240
      %v2829 = vsel %vm2815, %v2768, %v2242
      %v2830 = vsel %vm2815, %v2770, %v2242
      %v2832 = vsel %vm2815, %v2772, %v2244
      %v2833 = vsel %vm2815, %v2774, %v2244
      %v2835 = vsel %vm2815, %v2776, %v2246
      %v2836 = vsel %vm2815, %v2778, %v2246
      %v2838 = vsel %vm2815, %v2780, %v2248
      %v2839 = vsel %vm2815, %v2782, %v2248
      %v2841 = vsel %vm2815, %v2784, %v2250
      %v2842 = vsel %vm2815, %v2786, %v2250
      %v2844 = vsel %vm2815, %v2788, %v2252
      %v2845 = vsel %vm2815, %v2790, %v2252
      %v2847 = vsel %vm2815, %v2792, %v2254
      %v2848 = vsel %vm2815, %v2794, %v2254
      %v2850 = vsel %vm2815, %v2796, %v2256
      %v2851 = vsel %vm2815, %v2798, %v2256
      %v2853 = vsel %vm2815, %v2800, %v2258
      %v2854 = vsel %vm2815, %v2802, %v2258
      %v2856 = vsel %vm2815, %v2804, %v2260
      %v2857 = vsel %vm2815, %v2806, %v2260
      %v2859 = vsel %vm2815, %v2808, %v2262
      %v2860 = vsel %vm2815, %v2810, %v2262
      %v2862 = vsel %vm2815, %v2812, %v2264
      %v2863 = vsel %vm2815, %v2814, %v2264
      %vm2864 = vcmask 261120
      %v2866 = vsel %vm2864, %v2817, %v2362
      %v2868 = vsel %vm2864, %v2818, %v2364
      %v2870 = vsel %vm2864, %v2820, %v2366
      %v2872 = vsel %vm2864, %v2821, %v2368
      %v2874 = vsel %vm2864, %v2823, %v2370
      %v2876 = vsel %vm2864, %v2824, %v2372
      %v2878 = vsel %vm2864, %v2826, %v2374
      %v2880 = vsel %vm2864, %v2827, %v2376
      %v2882 = vsel %vm2864, %v2829, %v2378
      %v2884 = vsel %vm2864, %v2830, %v2380
      %v2886 = vsel %vm2864, %v2832, %v2382
      %v2888 = vsel %vm2864, %v2833, %v2384
      %v2890 = vsel %vm2864, %v2835, %v2386
      %v2892 = vsel %vm2864, %v2836, %v2388
      %v2894 = vsel %vm2864, %v2838, %v2390
      %v2896 = vsel %vm2864, %v2839, %v2392
      %v2898 = vsel %vm2864, %v2841, %v2394
      %v2900 = vsel %vm2864, %v2842, %v2396
      %v2902 = vsel %vm2864, %v2844, %v2398
      %v2904 = vsel %vm2864, %v2845, %v2400
      %v2906 = vsel %vm2864, %v2847, %v2402
      %v2908 = vsel %vm2864, %v2848, %v2404
      %v2910 = vsel %vm2864, %v2850, %v2406
      %v2912 = vsel %vm2864, %v2851, %v2408
      %v2914 = vsel %vm2864, %v2853, %v2410
      %v2916 = vsel %vm2864, %v2854, %v2412
      %v2918 = vsel %vm2864, %v2856, %v2414
      %v2920 = vsel %vm2864, %v2857, %v2416
      %v2922 = vsel %vm2864, %v2859, %v2418
      %v2924 = vsel %vm2864, %v2860, %v2420
      %v2926 = vsel %vm2864, %v2862, %v2422
      %v2928 = vsel %vm2864, %v2863, %v2424
      %vm2929 = vsmask.f32 4352
      %v2930 = vshrl.u32 %v2866, 16
      %v2932 = vrot.slane %v2930, 3
      %v2933 = vshll.u32 %v2866, 16
      %v2935 = vrot.slane %v2933, 4
      %v2936 = vor.u32 %v2932, %v2935
      %v2937 = vshrl.u32 %v2868, 16
      %v2939 = vrot.slane %v2937, 3
      %v2940 = vshll.u32 %v2868, 16
      %v2942 = vrot.slane %v2940, 4
      %v2943 = vor.u32 %v2939, %v2942
      %v2944 = vsel %vm2929, %v2936, %v2943
      %v2945 = vshrl.u32 %v2870, 16
      %v2947 = vrot.slane %v2945, 3
      %v2948 = vshll.u32 %v2870, 16
      %v2950 = vrot.slane %v2948, 4
      %v2951 = vor.u32 %v2947, %v2950
      %v2952 = vshrl.u32 %v2872, 16
      %v2954 = vrot.slane %v2952, 3
      %v2955 = vshll.u32 %v2872, 16
      %v2957 = vrot.slane %v2955, 4
      %v2958 = vor.u32 %v2954, %v2957
      %v2959 = vsel %vm2929, %v2951, %v2958
      %v2960 = vshrl.u32 %v2874, 16
      %v2962 = vrot.slane %v2960, 3
      %v2963 = vshll.u32 %v2874, 16
      %v2965 = vrot.slane %v2963, 4
      %v2966 = vor.u32 %v2962, %v2965
      %v2967 = vshrl.u32 %v2876, 16
      %v2969 = vrot.slane %v2967, 3
      %v2970 = vshll.u32 %v2876, 16
      %v2972 = vrot.slane %v2970, 4
      %v2973 = vor.u32 %v2969, %v2972
      %v2974 = vsel %vm2929, %v2966, %v2973
      %v2975 = vshrl.u32 %v2878, 16
      %v2977 = vrot.slane %v2975, 3
      %v2978 = vshll.u32 %v2878, 16
      %v2980 = vrot.slane %v2978, 4
      %v2981 = vor.u32 %v2977, %v2980
      %v2982 = vshrl.u32 %v2880, 16
      %v2984 = vrot.slane %v2982, 3
      %v2985 = vshll.u32 %v2880, 16
      %v2987 = vrot.slane %v2985, 4
      %v2988 = vor.u32 %v2984, %v2987
      %v2989 = vsel %vm2929, %v2981, %v2988
      %v2990 = vshrl.u32 %v2882, 16
      %v2992 = vrot.slane %v2990, 3
      %v2993 = vshll.u32 %v2882, 16
      %v2995 = vrot.slane %v2993, 4
      %v2996 = vor.u32 %v2992, %v2995
      %v2997 = vshrl.u32 %v2884, 16
      %v2999 = vrot.slane %v2997, 3
      %v3000 = vshll.u32 %v2884, 16
      %v3002 = vrot.slane %v3000, 4
      %v3003 = vor.u32 %v2999, %v3002
      %v3004 = vsel %vm2929, %v2996, %v3003
      %v3005 = vshrl.u32 %v2886, 16
      %v3007 = vrot.slane %v3005, 3
      %v3008 = vshll.u32 %v2886, 16
      %v3010 = vrot.slane %v3008, 4
      %v3011 = vor.u32 %v3007, %v3010
      %v3012 = vshrl.u32 %v2888, 16
      %v3014 = vrot.slane %v3012, 3
      %v3015 = vshll.u32 %v2888, 16
      %v3017 = vrot.slane %v3015, 4
      %v3018 = vor.u32 %v3014, %v3017
      %v3019 = vsel %vm2929, %v3011, %v3018
      %v3020 = vshrl.u32 %v2890, 16
      %v3022 = vrot.slane %v3020, 3
      %v3023 = vshll.u32 %v2890, 16
      %v3025 = vrot.slane %v3023, 4
      %v3026 = vor.u32 %v3022, %v3025
      %v3027 = vshrl.u32 %v2892, 16
      %v3029 = vrot.slane %v3027, 3
      %v3030 = vshll.u32 %v2892, 16
      %v3032 = vrot.slane %v3030, 4
      %v3033 = vor.u32 %v3029, %v3032
      %v3034 = vsel %vm2929, %v3026, %v3033
      %v3035 = vshrl.u32 %v2894, 16
      %v3037 = vrot.slane %v3035, 3
      %v3038 = vshll.u32 %v2894, 16
      %v3040 = vrot.slane %v3038, 4
      %v3041 = vor.u32 %v3037, %v3040
      %v3042 = vshrl.u32 %v2896, 16
      %v3044 = vrot.slane %v3042, 3
      %v3045 = vshll.u32 %v2896, 16
      %v3047 = vrot.slane %v3045, 4
      %v3048 = vor.u32 %v3044, %v3047
      %v3049 = vsel %vm2929, %v3041, %v3048
      %v3050 = vshrl.u32 %v2898, 16
      %v3052 = vrot.slane %v3050, 3
      %v3053 = vshll.u32 %v2898, 16
      %v3055 = vrot.slane %v3053, 4
      %v3056 = vor.u32 %v3052, %v3055
      %v3057 = vshrl.u32 %v2900, 16
      %v3059 = vrot.slane %v3057, 3
      %v3060 = vshll.u32 %v2900, 16
      %v3062 = vrot.slane %v3060, 4
      %v3063 = vor.u32 %v3059, %v3062
      %v3064 = vsel %vm2929, %v3056, %v3063
      %v3065 = vshrl.u32 %v2902, 16
      %v3067 = vrot.slane %v3065, 3
      %v3068 = vshll.u32 %v2902, 16
      %v3070 = vrot.slane %v3068, 4
      %v3071 = vor.u32 %v3067, %v3070
      %v3072 = vshrl.u32 %v2904, 16
      %v3074 = vrot.slane %v3072, 3
      %v3075 = vshll.u32 %v2904, 16
      %v3077 = vrot.slane %v3075, 4
      %v3078 = vor.u32 %v3074, %v3077
      %v3079 = vsel %vm2929, %v3071, %v3078
      %v3080 = vshrl.u32 %v2906, 16
      %v3082 = vrot.slane %v3080, 3
      %v3083 = vshll.u32 %v2906, 16
      %v3085 = vrot.slane %v3083, 4
      %v3086 = vor.u32 %v3082, %v3085
      %v3087 = vshrl.u32 %v2908, 16
      %v3089 = vrot.slane %v3087, 3
      %v3090 = vshll.u32 %v2908, 16
      %v3092 = vrot.slane %v3090, 4
      %v3093 = vor.u32 %v3089, %v3092
      %v3094 = vsel %vm2929, %v3086, %v3093
      %v3095 = vshrl.u32 %v2910, 16
      %v3097 = vrot.slane %v3095, 3
      %v3098 = vshll.u32 %v2910, 16
      %v3100 = vrot.slane %v3098, 4
      %v3101 = vor.u32 %v3097, %v3100
      %v3102 = vshrl.u32 %v2912, 16
      %v3104 = vrot.slane %v3102, 3
      %v3105 = vshll.u32 %v2912, 16
      %v3107 = vrot.slane %v3105, 4
      %v3108 = vor.u32 %v3104, %v3107
      %v3109 = vsel %vm2929, %v3101, %v3108
      %v3110 = vshrl.u32 %v2914, 16
      %v3112 = vrot.slane %v3110, 3
      %v3113 = vshll.u32 %v2914, 16
      %v3115 = vrot.slane %v3113, 4
      %v3116 = vor.u32 %v3112, %v3115
      %v3117 = vshrl.u32 %v2916, 16
      %v3119 = vrot.slane %v3117, 3
      %v3120 = vshll.u32 %v2916, 16
      %v3122 = vrot.slane %v3120, 4
      %v3123 = vor.u32 %v3119, %v3122
      %v3124 = vsel %vm2929, %v3116, %v3123
      %v3125 = vshrl.u32 %v2918, 16
      %v3127 = vrot.slane %v3125, 3
      %v3128 = vshll.u32 %v2918, 16
      %v3130 = vrot.slane %v3128, 4
      %v3131 = vor.u32 %v3127, %v3130
      %v3132 = vshrl.u32 %v2920, 16
      %v3134 = vrot.slane %v3132, 3
      %v3135 = vshll.u32 %v2920, 16
      %v3137 = vrot.slane %v3135, 4
      %v3138 = vor.u32 %v3134, %v3137
      %v3139 = vsel %vm2929, %v3131, %v3138
      %v3140 = vshrl.u32 %v2922, 16
      %v3142 = vrot.slane %v3140, 3
      %v3143 = vshll.u32 %v2922, 16
      %v3145 = vrot.slane %v3143, 4
      %v3146 = vor.u32 %v3142, %v3145
      %v3147 = vshrl.u32 %v2924, 16
      %v3149 = vrot.slane %v3147, 3
      %v3150 = vshll.u32 %v2924, 16
      %v3152 = vrot.slane %v3150, 4
      %v3153 = vor.u32 %v3149, %v3152
      %v3154 = vsel %vm2929, %v3146, %v3153
      %v3155 = vshrl.u32 %v2926, 16
      %v3157 = vrot.slane %v3155, 3
      %v3158 = vshll.u32 %v2926, 16
      %v3160 = vrot.slane %v3158, 4
      %v3161 = vor.u32 %v3157, %v3160
      %v3162 = vshrl.u32 %v2928, 16
      %v3164 = vrot.slane %v3162, 3
      %v3165 = vshll.u32 %v2928, 16
      %v3167 = vrot.slane %v3165, 4
      %v3168 = vor.u32 %v3164, %v3167
      %v3169 = vsel %vm2929, %v3161, %v3168
      %v3170 = vld [vmem:[%s3] sm:$0xf]
      %v3171 = vld [vmem:[%s3 + $0x4] sm:$0xf]
      %v3172 = vld [vmem:[%s3 + $0x8] sm:$0xf]
      %v3173 = vld [vmem:[%s3 + $0xc] sm:$0xf]
      %v3174 = vld [vmem:[%s3 + $0x10] sm:$0x3]
      %v3180 = vunpack.c.l.b16 %v3170
      %v3181 = vunpack.c.l.b16 %v3171
      %v3182 = vunpack.c.l.b16 %v3172
      %v3183 = vunpack.c.l.b16 %v3173
      %v3184 = vunpack.c.l.b16 %v3174
      %v3185 = vpack.c.b16 %v3181, %v3180
      %v3186 = vpack.c.b16 %v3183, %v3182
      %v3187 = vpack.c.b16 %v3184, %v3184
      %vm3190 = vcmask 293888
      %v3192 = vsel %vm3190, %v2944, 0
      %v3195 = vsel %vm3190, %v2959, 0
      %v3198 = vsel %vm3190, %v2974, 0
      %v3201 = vsel %vm3190, %v2989, 0
      %v3204 = vsel %vm3190, %v3004, 0
      %v3207 = vsel %vm3190, %v3019, 0
      %v3210 = vsel %vm3190, %v3034, 0
      %v3213 = vsel %vm3190, %v3049, 0
      %v3216 = vsel %vm3190, %v3064, 0
      %v3219 = vsel %vm3190, %v3079, 0
      %v3222 = vsel %vm3190, %v3094, 0
      %v3225 = vsel %vm3190, %v3109, 0
      %v3228 = vsel %vm3190, %v3124, 0
      %v3231 = vsel %vm3190, %v3139, 0
      %v3234 = vsel %vm3190, %v3154, 0
      %v3237 = vsel %vm3190, %v3169, 0
      %vm3239 = vcmask 1041408
      %v3241 = vsel %vm3239, %v3187, 0
      %3243 = vmatprep.subr.bf16.mxu0 0
      %3244 = vmatpush1.bf16.msra.mxu0 0
      %3245 = vmatprep.subr.bf16.mxu0 0
      %3246 = vmatpush1.bf16.msra.mxu0 0
      %3247 = vmatprep.subr.bf16.mxu0 0
      %3248 = vmatpush1.bf16.msra.mxu0 0
      %3249 = vmatprep.subr.bf16.mxu0 0
      %3250 = vmatpush1.bf16.msra.mxu0 0
      %3251 = vmatprep.subr.bf16.mxu0 0
      %3252 = vmatpush1.bf16.msra.mxu0 0
      %3253 = vmatprep.subr.bf16.mxu0 0
      %3254 = vmatpush1.bf16.msra.mxu0 %v3241
      %3255 = vmatprep.subr.bf16.mxu0 0
      %3256 = vmatpush1.bf16.msra.mxu0 %v3186
      %3257 = vmatprep.subr.bf16.mxu0 0
      %3258 = vmatpush1.bf16.msra.mxu0 %v3185
      %3259 = vmatprep.subr.bf16.mxu0 0
      %3260 = vmatpush2.bf16.msra.mxu0 0
      %3261 = vmatprep.subr.bf16.mxu0 0
      %3262 = vmatpush2.bf16.msra.mxu0 0
      %3263 = vmatprep.subr.bf16.mxu0 0
      %3264 = vmatpush2.bf16.msra.mxu0 0
      %3265 = vmatprep.subr.bf16.mxu0 0
      %3266 = vmatpush2.bf16.msra.mxu0 0
      %3267 = vmatprep.subr.bf16.mxu0 0
      %3268 = vmatpush2.bf16.msra.mxu0 0
      %3269 = vmatprep.subr.bf16.mxu0 0
      %3270 = vmatpush2.bf16.msra.mxu0 0
      %3271 = vmatprep.subr.bf16.mxu0 0
      %3272 = vmatpush2.bf16.msra.mxu0 0
      %3273 = vmatprep.subr.bf16.mxu0 0
      %3274 = vmatpush2.bf16.msra.mxu0 0
      %3275 = vmatprep.mubr.bf16.mxu0 0
      %3276 = vmatmul.mubr.bf16.gmra.mxu0 %v3192
      %v3277 = vpop.f32.mrf.mxu0
      %v3278 = vadd.f32 0.0, %v3277
      %v3279 = vpop.f32.mrf.mxu0
      %v3280 = vpop.f32.mrf.mxu0
      %v3281 = vadd.f32 0.0, %v3280
      %v3282 = vpop.f32.mrf.mxu0
      %3283 = vmatprep.mubr.bf16.mxu0 0
      %3284 = vmatmul.mubr.bf16.gmra.mxu0 %v3195
      %v3285 = vpop.f32.mrf.mxu0
      %v3286 = vadd.f32 0.0, %v3285
      %v3287 = vpop.f32.mrf.mxu0
      %v3288 = vpop.f32.mrf.mxu0
      %v3289 = vadd.f32 0.0, %v3288
      %v3290 = vpop.f32.mrf.mxu0
      %3291 = vmatprep.mubr.bf16.mxu0 0
      %3292 = vmatmul.mubr.bf16.gmra.mxu0 %v3198
      %v3293 = vpop.f32.mrf.mxu0
      %v3294 = vadd.f32 0.0, %v3293
      %v3295 = vpop.f32.mrf.mxu0
      %v3296 = vpop.f32.mrf.mxu0
      %v3297 = vadd.f32 0.0, %v3296
      %v3298 = vpop.f32.mrf.mxu0
      %3299 = vmatprep.mubr.bf16.mxu0 0
      %3300 = vmatmul.mubr.bf16.gmra.mxu0 %v3201
      %v3301 = vpop.f32.mrf.mxu0
      %v3302 = vadd.f32 0.0, %v3301
      %v3303 = vpop.f32.mrf.mxu0
      %v3304 = vpop.f32.mrf.mxu0
      %v3305 = vadd.f32 0.0, %v3304
      %v3306 = vpop.f32.mrf.mxu0
      %3307 = vmatprep.mubr.bf16.mxu0 0
      %3308 = vmatmul.mubr.bf16.gmra.mxu0 %v3204
      %v3309 = vpop.f32.mrf.mxu0
      %v3310 = vadd.f32 0.0, %v3309
      %v3311 = vpop.f32.mrf.mxu0
      %v3312 = vpop.f32.mrf.mxu0
      %v3313 = vadd.f32 0.0, %v3312
      %v3314 = vpop.f32.mrf.mxu0
      %3315 = vmatprep.mubr.bf16.mxu0 0
      %3316 = vmatmul.mubr.bf16.gmra.mxu0 %v3207
      %v3317 = vpop.f32.mrf.mxu0
      %v3318 = vadd.f32 0.0, %v3317
      %v3319 = vpop.f32.mrf.mxu0
      %v3320 = vpop.f32.mrf.mxu0
      %v3321 = vadd.f32 0.0, %v3320
      %v3322 = vpop.f32.mrf.mxu0
      %3323 = vmatprep.mubr.bf16.mxu0 0
      %3324 = vmatmul.mubr.bf16.gmra.mxu0 %v3210
      %v3325 = vpop.f32.mrf.mxu0
      %v3326 = vadd.f32 0.0, %v3325
      %v3327 = vpop.f32.mrf.mxu0
      %v3328 = vpop.f32.mrf.mxu0
      %v3329 = vadd.f32 0.0, %v3328
      %v3330 = vpop.f32.mrf.mxu0
      %3331 = vmatprep.mubr.bf16.mxu0 0
      %3332 = vmatmul.mubr.bf16.gmra.mxu0 %v3213
      %v3333 = vpop.f32.mrf.mxu0
      %v3334 = vadd.f32 0.0, %v3333
      %v3335 = vpop.f32.mrf.mxu0
      %v3336 = vpop.f32.mrf.mxu0
      %v3337 = vadd.f32 0.0, %v3336
      %v3338 = vpop.f32.mrf.mxu0
      %3339 = vmatprep.mubr.bf16.mxu0 0
      %3340 = vmatmul.mubr.bf16.gmra.mxu0 %v3216
      %v3341 = vpop.f32.mrf.mxu0
      %v3342 = vadd.f32 0.0, %v3341
      %v3343 = vpop.f32.mrf.mxu0
      %v3344 = vpop.f32.mrf.mxu0
      %v3345 = vadd.f32 0.0, %v3344
      %v3346 = vpop.f32.mrf.mxu0
      %3347 = vmatprep.mubr.bf16.mxu0 0
      %3348 = vmatmul.mubr.bf16.gmra.mxu0 %v3219
      %v3349 = vpop.f32.mrf.mxu0
      %v3350 = vadd.f32 0.0, %v3349
      %v3351 = vpop.f32.mrf.mxu0
      %v3352 = vpop.f32.mrf.mxu0
      %v3353 = vadd.f32 0.0, %v3352
      %v3354 = vpop.f32.mrf.mxu0
      %3355 = vmatprep.mubr.bf16.mxu0 0
      %3356 = vmatmul.mubr.bf16.gmra.mxu0 %v3222
      %v3357 = vpop.f32.mrf.mxu0
      %v3358 = vadd.f32 0.0, %v3357
      %v3359 = vpop.f32.mrf.mxu0
      %v3360 = vpop.f32.mrf.mxu0
      %v3361 = vadd.f32 0.0, %v3360
      %v3362 = vpop.f32.mrf.mxu0
      %3363 = vmatprep.mubr.bf16.mxu0 0
      %3364 = vmatmul.mubr.bf16.gmra.mxu0 %v3225
      %v3365 = vpop.f32.mrf.mxu0
      %v3366 = vadd.f32 0.0, %v3365
      %v3367 = vpop.f32.mrf.mxu0
      %v3368 = vpop.f32.mrf.mxu0
      %v3369 = vadd.f32 0.0, %v3368
      %v3370 = vpop.f32.mrf.mxu0
      %3371 = vmatprep.mubr.bf16.mxu0 0
      %3372 = vmatmul.mubr.bf16.gmra.mxu0 %v3228
      %v3373 = vpop.f32.mrf.mxu0
      %v3374 = vadd.f32 0.0, %v3373
      %v3375 = vpop.f32.mrf.mxu0
      %v3376 = vpop.f32.mrf.mxu0
      %v3377 = vadd.f32 0.0, %v3376
      %v3378 = vpop.f32.mrf.mxu0
      %3379 = vmatprep.mubr.bf16.mxu0 0
      %3380 = vmatmul.mubr.bf16.gmra.mxu0 %v3231
      %v3381 = vpop.f32.mrf.mxu0
      %v3382 = vadd.f32 0.0, %v3381
      %v3383 = vpop.f32.mrf.mxu0
      %v3384 = vpop.f32.mrf.mxu0
      %v3385 = vadd.f32 0.0, %v3384
      %v3386 = vpop.f32.mrf.mxu0
      %3387 = vmatprep.mubr.bf16.mxu0 0
      %3388 = vmatmul.mubr.bf16.gmra.mxu0 %v3234
      %v3389 = vpop.f32.mrf.mxu0
      %v3390 = vadd.f32 0.0, %v3389
      %v3391 = vpop.f32.mrf.mxu0
      %v3392 = vpop.f32.mrf.mxu0
      %v3393 = vadd.f32 0.0, %v3392
      %v3394 = vpop.f32.mrf.mxu0
      %3395 = vmatprep.mubr.bf16.mxu0 0
      %3396 = vmatmul.mubr.bf16.gmra.mxu0 %v3237
      %v3397 = vpop.f32.mrf.mxu0
      %v3398 = vadd.f32 0.0, %v3397
      %v3399 = vpop.f32.mrf.mxu0
      %v3400 = vpop.f32.mrf.mxu0
      %v3401 = vadd.f32 0.0, %v3400
      %v3402 = vpop.f32.mrf.mxu0
      %3403 = vdwg.mxu0
      %v3404 = vsel %vm2425, %v3278, 0.0
      %v3405 = vsel %vm2425, %v3281, 0.0
      %v3406 = vadd.f32 %v3404, %v3405
      %v3407 = vsel %vm2425, %v3286, 0.0
      %v3408 = vadd.f32 %v3406, %v3407
      %v3409 = vsel %vm2425, %v3289, 0.0
      %v3410 = vadd.f32 %v3408, %v3409
      %v3411 = vsel %vm2425, %v3294, 0.0
      %v3412 = vadd.f32 %v3410, %v3411
      %v3413 = vsel %vm2425, %v3297, 0.0
      %v3414 = vadd.f32 %v3412, %v3413
      %v3415 = vsel %vm2425, %v3302, 0.0
      %v3416 = vadd.f32 %v3414, %v3415
      %v3417 = vsel %vm2425, %v3305, 0.0
      %v3418 = vadd.f32 %v3416, %v3417
      %v3419 = vsel %vm2425, %v3310, 0.0
      %v3420 = vadd.f32 %v3418, %v3419
      %v3421 = vsel %vm2425, %v3313, 0.0
      %v3422 = vadd.f32 %v3420, %v3421
      %v3423 = vsel %vm2425, %v3318, 0.0
      %v3424 = vadd.f32 %v3422, %v3423
      %v3425 = vsel %vm2425, %v3321, 0.0
      %v3426 = vadd.f32 %v3424, %v3425
      %v3427 = vsel %vm2425, %v3326, 0.0
      %v3428 = vadd.f32 %v3426, %v3427
      %v3429 = vsel %vm2425, %v3329, 0.0
      %v3430 = vadd.f32 %v3428, %v3429
      %v3431 = vsel %vm2425, %v3334, 0.0
      %v3432 = vadd.f32 %v3430, %v3431
      %v3433 = vsel %vm2425, %v3337, 0.0
      %v3434 = vadd.f32 %v3432, %v3433
      %v3435 = vsel %vm2425, %v3342, 0.0
      %v3436 = vadd.f32 %v3434, %v3435
      %v3437 = vsel %vm2425, %v3345, 0.0
      %v3438 = vadd.f32 %v3436, %v3437
      %v3439 = vsel %vm2425, %v3350, 0.0
      %v3440 = vadd.f32 %v3438, %v3439
      %v3441 = vsel %vm2425, %v3353, 0.0
      %v3442 = vadd.f32 %v3440, %v3441
      %v3443 = vsel %vm2425, %v3358, 0.0
      %v3444 = vadd.f32 %v3442, %v3443
      %v3445 = vsel %vm2425, %v3361, 0.0
      %v3446 = vadd.f32 %v3444, %v3445
      %v3447 = vsel %vm2425, %v3366, 0.0
      %v3448 = vadd.f32 %v3446, %v3447
      %v3449 = vsel %vm2425, %v3369, 0.0
      %v3450 = vadd.f32 %v3448, %v3449
      %v3451 = vsel %vm2425, %v3374, 0.0
      %v3452 = vadd.f32 %v3450, %v3451
      %v3453 = vsel %vm2425, %v3377, 0.0
      %v3454 = vadd.f32 %v3452, %v3453
      %v3455 = vsel %vm2425, %v3382, 0.0
      %v3456 = vadd.f32 %v3454, %v3455
      %v3457 = vsel %vm2425, %v3385, 0.0
      %v3458 = vadd.f32 %v3456, %v3457
      %v3459 = vsel %vm2425, %v3390, 0.0
      %v3460 = vadd.f32 %v3458, %v3459
      %v3461 = vsel %vm2425, %v3393, 0.0
      %v3462 = vadd.f32 %v3460, %v3461
      %v3463 = vsel %vm2425, %v3398, 0.0
      %v3464 = vadd.f32 %v3462, %v3463
      %v3465 = vsel %vm2425, %v3401, 0.0
      %v3466 = vadd.f32 %v3464, %v3465
      %v3467 = vrot.slane %v3466, 4
      %v3468 = vadd.f32 %v3466, %v3467
      %v3469 = vrot.slane %v3468, 2
      %v3470 = vadd.f32 %v3468, %v3469
      %v3471 = vrot.slane %v3470, 1
      %v3472 = vadd.f32 %v3470, %v3471
      %v3473 = vmul.f32 %v3278, %v3278
      %v3474 = vmul.f32 %v3281, %v3281
      %v3475 = vmul.f32 %v3286, %v3286
      %v3476 = vmul.f32 %v3289, %v3289
      %v3477 = vmul.f32 %v3294, %v3294
      %v3478 = vmul.f32 %v3297, %v3297
      %v3479 = vmul.f32 %v3302, %v3302
      %v3480 = vmul.f32 %v3305, %v3305
      %v3481 = vmul.f32 %v3310, %v3310
      %v3482 = vmul.f32 %v3313, %v3313
      %v3483 = vmul.f32 %v3318, %v3318
      %v3484 = vmul.f32 %v3321, %v3321
      %v3485 = vmul.f32 %v3326, %v3326
      %v3486 = vmul.f32 %v3329, %v3329
      %v3487 = vmul.f32 %v3334, %v3334
      %v3488 = vmul.f32 %v3337, %v3337
      %v3489 = vmul.f32 %v3342, %v3342
      %v3490 = vmul.f32 %v3345, %v3345
      %v3491 = vmul.f32 %v3350, %v3350
      %v3492 = vmul.f32 %v3353, %v3353
      %v3493 = vmul.f32 %v3358, %v3358
      %v3494 = vmul.f32 %v3361, %v3361
      %v3495 = vmul.f32 %v3366, %v3366
      %v3496 = vmul.f32 %v3369, %v3369
      %v3497 = vmul.f32 %v3374, %v3374
      %v3498 = vmul.f32 %v3377, %v3377
      %v3499 = vmul.f32 %v3382, %v3382
      %v3500 = vmul.f32 %v3385, %v3385
      %v3501 = vmul.f32 %v3390, %v3390
      %v3502 = vmul.f32 %v3393, %v3393
      %v3503 = vmul.f32 %v3398, %v3398
      %v3504 = vmul.f32 %v3401, %v3401
      %v3505 = vsel %vm2425, %v3473, 0.0
      %v3506 = vsel %vm2425, %v3474, 0.0
      %v3507 = vadd.f32 %v3505, %v3506
      %v3508 = vsel %vm2425, %v3475, 0.0
      %v3509 = vadd.f32 %v3507, %v3508
      %v3510 = vsel %vm2425, %v3476, 0.0
      %v3511 = vadd.f32 %v3509, %v3510
      %v3512 = vsel %vm2425, %v3477, 0.0
      %v3513 = vadd.f32 %v3511, %v3512
      %v3514 = vsel %vm2425, %v3478, 0.0
      %v3515 = vadd.f32 %v3513, %v3514
      %v3516 = vsel %vm2425, %v3479, 0.0
      %v3517 = vadd.f32 %v3515, %v3516
      %v3518 = vsel %vm2425, %v3480, 0.0
      %v3519 = vadd.f32 %v3517, %v3518
      %v3520 = vsel %vm2425, %v3481, 0.0
      %v3521 = vadd.f32 %v3519, %v3520
      %v3522 = vsel %vm2425, %v3482, 0.0
      %v3523 = vadd.f32 %v3521, %v3522
      %v3524 = vsel %vm2425, %v3483, 0.0
      %v3525 = vadd.f32 %v3523, %v3524
      %v3526 = vsel %vm2425, %v3484, 0.0
      %v3527 = vadd.f32 %v3525, %v3526
      %v3528 = vsel %vm2425, %v3485, 0.0
      %v3529 = vadd.f32 %v3527, %v3528
      %v3530 = vsel %vm2425, %v3486, 0.0
      %v3531 = vadd.f32 %v3529, %v3530
      %v3532 = vsel %vm2425, %v3487, 0.0
      %v3533 = vadd.f32 %v3531, %v3532
      %v3534 = vsel %vm2425, %v3488, 0.0
      %v3535 = vadd.f32 %v3533, %v3534
      %v3536 = vsel %vm2425, %v3489, 0.0
      %v3537 = vadd.f32 %v3535, %v3536
      %v3538 = vsel %vm2425, %v3490, 0.0
      %v3539 = vadd.f32 %v3537, %v3538
      %v3540 = vsel %vm2425, %v3491, 0.0
      %v3541 = vadd.f32 %v3539, %v3540
      %v3542 = vsel %vm2425, %v3492, 0.0
      %v3543 = vadd.f32 %v3541, %v3542
      %v3544 = vsel %vm2425, %v3493, 0.0
      %v3545 = vadd.f32 %v3543, %v3544
      %v3546 = vsel %vm2425, %v3494, 0.0
      %v3547 = vadd.f32 %v3545, %v3546
      %v3548 = vsel %vm2425, %v3495, 0.0
      %v3549 = vadd.f32 %v3547, %v3548
      %v3550 = vsel %vm2425, %v3496, 0.0
      %v3551 = vadd.f32 %v3549, %v3550
      %v3552 = vsel %vm2425, %v3497, 0.0
      %v3553 = vadd.f32 %v3551, %v3552
      %v3554 = vsel %vm2425, %v3498, 0.0
      %v3555 = vadd.f32 %v3553, %v3554
      %v3556 = vsel %vm2425, %v3499, 0.0
      %v3557 = vadd.f32 %v3555, %v3556
      %v3558 = vsel %vm2425, %v3500, 0.0
      %v3559 = vadd.f32 %v3557, %v3558
      %v3560 = vsel %vm2425, %v3501, 0.0
      %v3561 = vadd.f32 %v3559, %v3560
      %v3562 = vsel %vm2425, %v3502, 0.0
      %v3563 = vadd.f32 %v3561, %v3562
      %v3564 = vsel %vm2425, %v3503, 0.0
      %v3565 = vadd.f32 %v3563, %v3564
      %v3566 = vsel %vm2425, %v3504, 0.0
      %v3567 = vadd.f32 %v3565, %v3566
      %v3568 = vrot.slane %v3567, 4
      %v3569 = vadd.f32 %v3567, %v3568
      %v3570 = vrot.slane %v3569, 2
      %v3571 = vadd.f32 %v3569, %v3570
      %v3572 = vrot.slane %v3571, 1
      %v3573 = vadd.f32 %v3571, %v3572
      %vm3574 = vcmask 1040384
      %v3575 = vsel %vm3574, %v3472, %v3573
      %vm3576 = vcmask 25600
      %3577 = vst.msk [vmem:[%s268] sm:$0x3] %vm3576, %v3575
      %v3578 = vpack.c.bf16 %v3281, %v3278
      %v3579 = vpack.c.bf16 %v3289, %v3286
      %v3580 = vpack.c.bf16 %v3297, %v3294
      %v3581 = vpack.c.bf16 %v3305, %v3302
      %v3582 = vpack.c.bf16 %v3313, %v3310
      %v3583 = vpack.c.bf16 %v3321, %v3318
      %v3584 = vpack.c.bf16 %v3329, %v3326
      %v3585 = vpack.c.bf16 %v3337, %v3334
      %v3586 = vpack.c.bf16 %v3345, %v3342
      %v3587 = vpack.c.bf16 %v3353, %v3350
      %v3588 = vpack.c.bf16 %v3361, %v3358
      %v3589 = vpack.c.bf16 %v3369, %v3366
      %v3590 = vpack.c.bf16 %v3377, %v3374
      %v3591 = vpack.c.bf16 %v3385, %v3382
      %v3592 = vpack.c.bf16 %v3393, %v3390
      %v3593 = vpack.c.bf16 %v3401, %v3398
      %v3610 = vunpack.c.l.b16 %v3578
      %v3611 = vunpack.c.h.b16 %v3578
      %v3612 = vunpack.c.l.b16 %v3579
      %v3613 = vunpack.c.h.b16 %v3579
      %v3614 = vunpack.c.l.b16 %v3580
      %v3615 = vunpack.c.h.b16 %v3580
      %v3616 = vunpack.c.l.b16 %v3581
      %v3617 = vunpack.c.h.b16 %v3581
      %v3618 = vunpack.c.l.b16 %v3582
      %v3619 = vunpack.c.h.b16 %v3582
      %v3620 = vunpack.c.l.b16 %v3583
      %v3621 = vunpack.c.h.b16 %v3583
      %v3622 = vunpack.c.l.b16 %v3584
      %v3623 = vunpack.c.h.b16 %v3584
      %v3624 = vunpack.c.l.b16 %v3585
      %v3625 = vunpack.c.h.b16 %v3585
      %v3626 = vunpack.c.l.b16 %v3586
      %v3627 = vunpack.c.h.b16 %v3586
      %v3628 = vunpack.c.l.b16 %v3587
      %v3629 = vunpack.c.h.b16 %v3587
      %v3630 = vunpack.c.l.b16 %v3588
      %v3631 = vunpack.c.h.b16 %v3588
      %v3632 = vunpack.c.l.b16 %v3589
      %v3633 = vunpack.c.h.b16 %v3589
      %v3634 = vunpack.c.l.b16 %v3590
      %v3635 = vunpack.c.h.b16 %v3590
      %v3636 = vunpack.c.l.b16 %v3591
      %v3637 = vunpack.c.h.b16 %v3591
      %v3638 = vunpack.c.l.b16 %v3592
      %v3639 = vunpack.c.h.b16 %v3592
      %v3640 = vunpack.c.l.b16 %v3593
      %v3641 = vunpack.c.h.b16 %v3593
      %v3642 = vpack.c.b16 %v3610, %v3610
      %v3643 = vpack.c.b16 %v3611, %v3611
      %v3644 = vpack.c.b16 %v3612, %v3612
      %v3645 = vpack.c.b16 %v3613, %v3613
      %v3646 = vpack.c.b16 %v3614, %v3614
      %v3647 = vpack.c.b16 %v3615, %v3615
      %v3648 = vpack.c.b16 %v3616, %v3616
      %v3649 = vpack.c.b16 %v3617, %v3617
      %v3650 = vpack.c.b16 %v3618, %v3618
      %v3651 = vpack.c.b16 %v3619, %v3619
      %v3652 = vpack.c.b16 %v3620, %v3620
      %v3653 = vpack.c.b16 %v3621, %v3621
      %v3654 = vpack.c.b16 %v3622, %v3622
      %v3655 = vpack.c.b16 %v3623, %v3623
      %v3656 = vpack.c.b16 %v3624, %v3624
      %v3657 = vpack.c.b16 %v3625, %v3625
      %v3658 = vpack.c.b16 %v3626, %v3626
      %v3659 = vpack.c.b16 %v3627, %v3627
      %v3660 = vpack.c.b16 %v3628, %v3628
      %v3661 = vpack.c.b16 %v3629, %v3629
      %v3662 = vpack.c.b16 %v3630, %v3630
      %v3663 = vpack.c.b16 %v3631, %v3631
      %v3664 = vpack.c.b16 %v3632, %v3632
      %v3665 = vpack.c.b16 %v3633, %v3633
      %v3666 = vpack.c.b16 %v3634, %v3634
      %v3667 = vpack.c.b16 %v3635, %v3635
      %v3668 = vpack.c.b16 %v3636, %v3636
      %v3669 = vpack.c.b16 %v3637, %v3637
      %v3670 = vpack.c.b16 %v3638, %v3638
      %v3671 = vpack.c.b16 %v3639, %v3639
      %v3672 = vpack.c.b16 %v3640, %v3640
      %v3673 = vpack.c.b16 %v3641, %v3641
      %3706 = vst.msk [vmem:[%s260] sm:$0xf] %vm271, %v3642
      %3707 = vst.msk [vmem:[%s260 + $0x4] sm:$0xf] %vm271, %v3643
      %3708 = vst.msk [vmem:[%s260 + $0x8] sm:$0xf] %vm271, %v3644
      %3709 = vst.msk [vmem:[%s260 + $0xc] sm:$0xf] %vm271, %v3645
      %3710 = vst.msk [vmem:[%s260 + $0x10] sm:$0xf] %vm271, %v3646
      %3711 = vst.msk [vmem:[%s260 + $0x14] sm:$0xf] %vm271, %v3647
      %3712 = vst.msk [vmem:[%s260 + $0x18] sm:$0xf] %vm271, %v3648
      %3713 = vst.msk [vmem:[%s260 + $0x1c] sm:$0xf] %vm271, %v3649
      %3714 = vst.msk [vmem:[%s260 + $0x20] sm:$0xf] %vm271, %v3650
      %3715 = vst.msk [vmem:[%s260 + $0x24] sm:$0xf] %vm271, %v3651
      %3716 = vst.msk [vmem:[%s260 + $0x28] sm:$0xf] %vm271, %v3652
      %3717 = vst.msk [vmem:[%s260 + $0x2c] sm:$0xf] %vm271, %v3653
      %3718 = vst.msk [vmem:[%s260 + $0x30] sm:$0xf] %vm271, %v3654
      %3719 = vst.msk [vmem:[%s260 + $0x34] sm:$0xf] %vm271, %v3655
      %3720 = vst.msk [vmem:[%s260 + $0x38] sm:$0xf] %vm271, %v3656
      %3721 = vst.msk [vmem:[%s260 + $0x3c] sm:$0xf] %vm271, %v3657
      %3722 = vst.msk [vmem:[%s260 + $0x40] sm:$0xf] %vm271, %v3658
      %3723 = vst.msk [vmem:[%s260 + $0x44] sm:$0xf] %vm271, %v3659
      %3724 = vst.msk [vmem:[%s260 + $0x48] sm:$0xf] %vm271, %v3660
      %3725 = vst.msk [vmem:[%s260 + $0x4c] sm:$0xf] %vm271, %v3661
      %3726 = vst.msk [vmem:[%s260 + $0x50] sm:$0xf] %vm271, %v3662
      %3727 = vst.msk [vmem:[%s260 + $0x54] sm:$0xf] %vm271, %v3663
      %3728 = vst.msk [vmem:[%s260 + $0x58] sm:$0xf] %vm271, %v3664
      %3729 = vst.msk [vmem:[%s260 + $0x5c] sm:$0xf] %vm271, %v3665
      %3730 = vst.msk [vmem:[%s260 + $0x60] sm:$0xf] %vm271, %v3666
      %3731 = vst.msk [vmem:[%s260 + $0x64] sm:$0xf] %vm271, %v3667
      %3732 = vst.msk [vmem:[%s260 + $0x68] sm:$0xf] %vm271, %v3668
      %3733 = vst.msk [vmem:[%s260 + $0x6c] sm:$0xf] %vm271, %v3669
      %3734 = vst.msk [vmem:[%s260 + $0x70] sm:$0xf] %vm271, %v3670
      %3735 = vst.msk [vmem:[%s260 + $0x74] sm:$0xf] %vm271, %v3671
      %3736 = vst.msk [vmem:[%s260 + $0x78] sm:$0xf] %vm271, %v3672
      %3737 = vst.msk [vmem:[%s260 + $0x7c] sm:$0xf] %vm271, %v3673
      %s3738 = smul.u32 16, %s22
      %p3739 = scmp.lt.s32.totalorder %s21, 1
      %s3740 = scalar_select %p3739, %s21, 1
      %p3741 = scmp.lt.s32.totalorder %s3738, 15
      %s3742 = scalar_select %p3741, %s3738, 15
      %s3743 = smul.addr %s3742, 2
      %s3744 = smul.addr %s3740, 32
      %s3745 = sadd.s32 %s3743, %s3744
      %s3746 = smul.addr %s3745, 4
      %s3747 = scalar_lea.vmem %s4, %s3746
      %p3748 = scmp.lt.s32.totalorder %s21, 1
      %s3749 = scalar_select %p3748, %s21, 1
      %p3750 = scmp.lt.s32.totalorder %s22, 0
      %s3751 = scalar_select %p3750, %s22, 0
      %s3752 = sadd.s32 %s3751, %s3749
      %s3753 = smul.addr %s3752, 2
      %s3754 = scalar_lea.vmem %s5, %s3753
      // Predicated region
      $region37: #{up_forward.4} parent=35 // pred_check
        %p3755 = pneg %p138
      $region38: #{up_forward.4} parent=35 // pred_check_branch
        %3757 = sbr.rel (%p3755) target = $region40
      $region39: #{up_forward.4} parent=35 // pred_region
        %s3758 = smul.u32 16, %s22
      $region40: #{up_forward.4} parent=35 // pred_fallthru
        _
      // Predicated region
      $region41: #{up_forward.4} parent=35 // pred_check
        %p3759 = pneg %p166
      $region42: #{up_forward.4} parent=35 // pred_check_branch
        %3761 = sbr.rel (%p3759) target = $region44
      $region43: #{up_forward.4} parent=35 // pred_region
        _
      $region44: #{up_forward.4} parent=35 // pred_fallthru
        _
    $region36: #{up_forward.4} parent=5 // pred_fallthru
      _
    %p3762 = scmp.le.s32.totalorder 2, %s12
    // Predicated region
    $region45: #{up_forward.4} parent=5 // pred_check
      %p3763 = pneg %p3762
    $region46: #{up_forward.4} parent=5 // pred_check_branch
      %3765 = sbr.rel (%p3763) target = $region48
    $region47: #{up_forward.4} parent=5 // pred_region
      %s3766 = ssub.s32 %s12, 2
      // Predicated region
      $region49: #{up_forward.4} parent=47 // pred_check
        %p3767 = pneg %p144
      $region50: #{up_forward.4} parent=47 // pred_check_branch
        %3769 = sbr.rel (%p3767) target = $region52
      $region51: #{up_forward.4} parent=47 // pred_region
        %s3770 = smul.u32 16, %s24
        %p3771 = scmp.lt.s32.totalorder %s23, 1
        %s3772 = scalar_select %p3771, %s23, 1
        %p3773 = scmp.lt.s32.totalorder %s3770, 15
        %s3774 = scalar_select %p3773, %s3770, 15
        %s3775 = smul.addr %s3774, 2
        %s3776 = smul.addr %s3772, 32
        %s3777 = sadd.s32 %s3775, %s3776
        %s3778 = smul.addr %s3777, 4
        %s3779 = scalar_lea.vmem %s4, %s3778
      $region52: #{up_forward.4} parent=47 // pred_fallthru
        _
      // Predicated region
      $region53: #{up_forward.4} parent=47 // pred_check
        %p3780 = pneg %p172
      $region54: #{up_forward.4} parent=47 // pred_check_branch
        %3782 = sbr.rel (%p3780) target = $region56
      $region55: #{up_forward.4} parent=47 // pred_region
        %p3783 = scmp.lt.s32.totalorder %s23, 1
        %s3784 = scalar_select %p3783, %s23, 1
        %p3785 = scmp.lt.s32.totalorder %s24, 0
        %s3786 = scalar_select %p3785, %s24, 0
        %s3787 = sadd.s32 %s3786, %s3784
        %s3788 = smul.addr %s3787, 2
        %s3789 = scalar_lea.vmem %s5, %s3788
      $region56: #{up_forward.4} parent=47 // pred_fallthru
        _
    $region48: #{up_forward.4} parent=5 // pred_fallthru
      _
  $region6: #{up_forward.4} parent=0 // loop_footer
    %s16 = sadd.s32 1, %s12
  $region7: #{up_forward.4} parent=0 // loop_footer_branch
    %11 = sbr.rel target = $region3
  $region8: #{up_forward.4} parent=0 // loop_exit
    _

// kernel: up_forward.3
$region0: #{up_forward.3}
  #allocation0 [shape = 'u32[]', space=smem, size = 0x4, offset = 0x4, fixed_abs, tag = 'smem constant byte address 0x4 - core index']
  #allocation1 [shape = 'u32[144,128]{1,0:T(1,128)}', space=vmem, size = 0x12000, scoped, tag = 'internal scratch']
  #allocation2 [shape = 'bf16[18,32,8]{2,1,0:T(8,128)(2,1)}', space=vmem, size = 0x24000, scoped, tag = 'scratch operand']
  %s0 = inlined_call_operand.vmem [shape: bf16[2,8,32], index: 0, kind: input, shape index: {}]
  %s1 = inlined_call_operand.vmem [shape: bf16[2,16,16,4], index: 1, kind: input, shape index: {}]
  %s2 = inlined_call_operand.vmem [shape: f32[18,8], index: 2, kind: input, shape index: {}]
  %s3 = inlined_call_operand.vmem [shape: f32[8,16], index: 3, kind: input, shape index: {}]
  %s4 = inlined_call_operand.vmem [shape: bf16[72,4], index: 4, kind: input, shape index: {}]
  %s5 = inlined_call_operand.vmem [shape: bf16[2,16,16,4], index: 5, kind: output, shape index: {0}]
  %s6 = inlined_call_operand.vmem [shape: f32[2,1,2,4], index: 6, kind: output, shape index: {1}]
  %7 = xla_tuple %s5, %s6
  %s8 = sld [smem:[#allocation0]]
  $region61: #{up_forward.3} parent=0
    _
  %s10 = ssub.s32 1, %s8
  %s11 = scalar_select 0, %s10, %s8
  loop: start=0, step=1, limit=4
  $region2: #{up_forward.3} parent=0 // loop_pre_header
    _
  $region3: #{up_forward.3} parent=0 // loop_header
    %s13 = sphi 0, %s17
    %p14 = scmp.ge.s32.totalorder %s13, 4
    %s20 = sphi 0, %s32
    %s21 = sphi 0, %s28
    %s22 = sphi 0, %s20
    %s23 = sphi 0, %s21
    %s24 = sphi 0, %s22
    %s25 = sphi 0, %s23
    %s35 = sphi 0, %s37
    %s38 = sphi 0, %s35
    %s39 = sphi 0, %s38
    %s55 = sphi 0, %s39
    %s61 = sphi 0, %s63
    %s64 = sphi 0, %s61
    %s65 = sphi 0, %s64
    %s81 = sphi 0, %s65
    %s85 = sphi 0, %s85
    %s87 = sphi 0, %s85
    %s88 = sphi 0, %s87
    %s102 = sphi 0, %s88
    %s106 = sphi 0, %s106
    %s108 = sphi 0, %s106
    %s109 = sphi 0, %s108
    %s123 = sphi 0, %s109
    %s127 = sphi 0, %s127
    %s129 = sphi 0, %s127
    %s130 = sphi 0, %s129
    %s144 = sphi 0, %s130
    %s152 = sphi 0, %s154
    %s155 = sphi 0, %s152
    %s156 = sphi 0, %s155
    %s172 = sphi 0, %s156
    %s180 = sphi 0, %s182
    %s183 = sphi 0, %s180
    %s184 = sphi 0, %s183
    %s200 = sphi 0, %s184
  $region4: #{up_forward.3} parent=0 // loop_header_branch
    %16 = sbr.rel (%p14) target = $region8
  $region5: #{up_forward.3} parent=0 // loop_body
    %s18 = ssub.s32 %s13, 1
    %s19 = ssub.s32 %s13, 2
    %s26 = sadd.s32 1, %s21
    %p27 = scmp.ge.s32.totalorder %s26, 1
    %s28 = scalar_select %p27, 0, %s26
    %s29 = sadd.s32 1, %s20
    %s30 = scalar_select %p27, %s29, %s20
    %p31 = scmp.ge.s32.totalorder %s30, 2
    %s32 = scalar_select %p31, 0, %s30
    %s33 = ssub.s32 %s20, %s32
    %p34 = scmp.eq.s32.totalorder %s33, 0
    %s36 = sadd.s32 %s35, 1
    %s37 = scalar_select %p34, %s35, %s36
    %p40 = pneg %p34
    %p41 = scmp.eq.s32.totalorder %s13, 1
    %p42 = por %p40, %p41
    %p43 = scmp.ne.s32.totalorder %s35, %s38
    %p44 = scmp.eq.s32.totalorder %s13, 0
    %p45 = por %p43, %p44
    %p46 = scmp.ne.s32.totalorder %s35, %s38
    %p47 = scmp.eq.s32.totalorder %s18, 1
    %p48 = por %p46, %p47
    %p49 = scmp.ne.s32.totalorder %s38, %s39
    %p50 = scmp.eq.s32.totalorder %s18, 0
    %p51 = por %p49, %p50
    %p52 = scmp.ne.s32.totalorder %s38, %s39
    %p53 = scmp.eq.s32.totalorder %s19, 1
    %p54 = por %p52, %p53
    %p56 = scmp.ne.s32.totalorder %s39, %s55
    %p57 = scmp.eq.s32.totalorder %s19, 0
    %p58 = por %p56, %p57
    %s59 = ssub.s32 %s20, %s32
    %p60 = scmp.eq.s32.totalorder %s59, 0
    %s62 = sadd.s32 %s61, 1
    %s63 = scalar_select %p60, %s61, %s62
    %p66 = pneg %p60
    %p67 = scmp.eq.s32.totalorder %s13, 1
    %p68 = por %p66, %p67
    %p69 = scmp.ne.s32.totalorder %s61, %s64
    %p70 = scmp.eq.s32.totalorder %s13, 0
    %p71 = por %p69, %p70
    %p72 = scmp.ne.s32.totalorder %s61, %s64
    %p73 = scmp.eq.s32.totalorder %s18, 1
    %p74 = por %p72, %p73
    %p75 = scmp.ne.s32.totalorder %s64, %s65
    %p76 = scmp.eq.s32.totalorder %s18, 0
    %p77 = por %p75, %p76
    %p78 = scmp.ne.s32.totalorder %s64, %s65
    %p79 = scmp.eq.s32.totalorder %s19, 1
    %p80 = por %p78, %p79
    %p82 = scmp.ne.s32.totalorder %s65, %s81
    %p83 = scmp.eq.s32.totalorder %s19, 0
    %p84 = por %p82, %p83
    %s86 = sadd.s32 %s85, 1
    %p89 = scmp.eq.s32.totalorder %s13, 1
    %p90 = scmp.ne.s32.totalorder %s85, %s87
    %p91 = scmp.eq.s32.totalorder %s13, 0
    %p92 = por %p90, %p91
    %p93 = scmp.ne.s32.totalorder %s85, %s87
    %p94 = scmp.eq.s32.totalorder %s18, 1
    %p95 = por %p93, %p94
    %p96 = scmp.ne.s32.totalorder %s87, %s88
    %p97 = scmp.eq.s32.totalorder %s18, 0
    %p98 = por %p96, %p97
    %p99 = scmp.ne.s32.totalorder %s87, %s88
    %p100 = scmp.eq.s32.totalorder %s19, 1
    %p101 = por %p99, %p100
    %p103 = scmp.ne.s32.totalorder %s88, %s102
    %p104 = scmp.eq.s32.totalorder %s19, 0
    %p105 = por %p103, %p104
    %s107 = sadd.s32 %s106, 1
    %p110 = scmp.eq.s32.totalorder %s13, 1
    %p111 = scmp.ne.s32.totalorder %s106, %s108
    %p112 = scmp.eq.s32.totalorder %s13, 0
    %p113 = por %p111, %p112
    %p114 = scmp.ne.s32.totalorder %s106, %s108
    %p115 = scmp.eq.s32.totalorder %s18, 1
    %p116 = por %p114, %p115
    %p117 = scmp.ne.s32.totalorder %s108, %s109
    %p118 = scmp.eq.s32.totalorder %s18, 0
    %p119 = por %p117, %p118
    %p120 = scmp.ne.s32.totalorder %s108, %s109
    %p121 = scmp.eq.s32.totalorder %s19, 1
    %p122 = por %p120, %p121
    %p124 = scmp.ne.s32.totalorder %s109, %s123
    %p125 = scmp.eq.s32.totalorder %s19, 0
    %p126 = por %p124, %p125
    %s128 = sadd.s32 %s127, 1
    %p131 = scmp.eq.s32.totalorder %s13, 1
    %p132 = scmp.ne.s32.totalorder %s127, %s129
    %p133 = scmp.eq.s32.totalorder %s13, 0
    %p134 = por %p132, %p133
    %p135 = scmp.ne.s32.totalorder %s127, %s129
    %p136 = scmp.eq.s32.totalorder %s18, 1
    %p137 = por %p135, %p136
    %p138 = scmp.ne.s32.totalorder %s129, %s130
    %p139 = scmp.eq.s32.totalorder %s18, 0
    %p140 = por %p138, %p139
    %p141 = scmp.ne.s32.totalorder %s129, %s130
    %p142 = scmp.eq.s32.totalorder %s19, 1
    %p143 = por %p141, %p142
    %p145 = scmp.ne.s32.totalorder %s130, %s144
    %p146 = scmp.eq.s32.totalorder %s19, 0
    %p147 = por %p145, %p146
    %s148 = ssub.s32 %s20, %s32
    %s149 = ssub.s32 %s21, %s28
    %s150 = sor.u32 %s148, %s149
    %p151 = scmp.eq.s32.totalorder %s150, 0
    %s153 = sadd.s32 %s152, 1
    %s154 = scalar_select %p151, %s152, %s153
    %p157 = pneg %p151
    %p158 = scmp.eq.s32.totalorder %s13, 1
    %p159 = por %p157, %p158
    %p160 = scmp.ne.s32.totalorder %s152, %s155
    %p161 = scmp.eq.s32.totalorder %s13, 0
    %p162 = por %p160, %p161
    %p163 = scmp.ne.s32.totalorder %s152, %s155
    %p164 = scmp.eq.s32.totalorder %s18, 1
    %p165 = por %p163, %p164
    %p166 = scmp.ne.s32.totalorder %s155, %s156
    %p167 = scmp.eq.s32.totalorder %s18, 0
    %p168 = por %p166, %p167
    %p169 = scmp.ne.s32.totalorder %s155, %s156
    %p170 = scmp.eq.s32.totalorder %s19, 1
    %p171 = por %p169, %p170
    %p173 = scmp.ne.s32.totalorder %s156, %s172
    %p174 = scmp.eq.s32.totalorder %s19, 0
    %p175 = por %p173, %p174
    %s176 = ssub.s32 %s20, %s32
    %s177 = ssub.s32 %s21, %s28
    %s178 = sor.u32 %s176, %s177
    %p179 = scmp.eq.s32.totalorder %s178, 0
    %s181 = sadd.s32 %s180, 1
    %s182 = scalar_select %p179, %s180, %s181
    %p185 = pneg %p179
    %p186 = scmp.eq.s32.totalorder %s13, 1
    %p187 = por %p185, %p186
    %p188 = scmp.ne.s32.totalorder %s180, %s183
    %p189 = scmp.eq.s32.totalorder %s13, 0
    %p190 = por %p188, %p189
    %p191 = scmp.ne.s32.totalorder %s180, %s183
    %p192 = scmp.eq.s32.totalorder %s18, 1
    %p193 = por %p191, %p192
    %p194 = scmp.ne.s32.totalorder %s183, %s184
    %p195 = scmp.eq.s32.totalorder %s18, 0
    %p196 = por %p194, %p195
    %p197 = scmp.ne.s32.totalorder %s183, %s184
    %p198 = scmp.eq.s32.totalorder %s19, 1
    %p199 = por %p197, %p198
    %p201 = scmp.ne.s32.totalorder %s184, %s200
    %p202 = scmp.eq.s32.totalorder %s19, 0
    %p203 = por %p201, %p202
    %p204 = scmp.le.s32.totalorder 1, %s13
    %p205 = scmp.lt.s32.totalorder %s13, 3
    %p206 = pnand %p204, %p205
    %p207 = pneg %p206
    // Predicated region
    $region9: #{up_forward.3} parent=5 // pred_check
      _
    $region10: #{up_forward.3} parent=5 // pred_check_branch
      %209 = sbr.rel (%p206) target = $region12
    $region11: #{up_forward.3} parent=5 // pred_region
      %s210 = ssub.s32 %s13, 1
      // Predicated region
      $region13: #{up_forward.3} parent=11 // pred_check
        %p211 = pneg %p98
      $region14: #{up_forward.3} parent=11 // pred_check_branch
        %213 = sbr.rel (%p211) target = $region16
      $region15: #{up_forward.3} parent=11 // pred_region
        _
      $region16: #{up_forward.3} parent=11 // pred_fallthru
        _
      // Predicated region
      $region17: #{up_forward.3} parent=11 // pred_check
        %p214 = pneg %p119
      $region18: #{up_forward.3} parent=11 // pred_check_branch
        %216 = sbr.rel (%p214) target = $region20
      $region19: #{up_forward.3} parent=11 // pred_region
        _
      $region20: #{up_forward.3} parent=11 // pred_fallthru
        _
      // Predicated region
      $region21: #{up_forward.3} parent=11 // pred_check
        %p217 = pneg %p140
      $region22: #{up_forward.3} parent=11 // pred_check_branch
        %219 = sbr.rel (%p217) target = $region24
      $region23: #{up_forward.3} parent=11 // pred_region
        _
      $region24: #{up_forward.3} parent=11 // pred_fallthru
        _
    $region12: #{up_forward.3} parent=5 // pred_fallthru
      _
    %p220 = scmp.lt.s32.totalorder %s13, 2
    // Predicated region
    $region25: #{up_forward.3} parent=5 // pred_check
      %p221 = pneg %p220
    $region26: #{up_forward.3} parent=5 // pred_check_branch
      %223 = sbr.rel (%p221) target = $region28
    $region27: #{up_forward.3} parent=5 // pred_region
      // Predicated region
      $region29: #{up_forward.3} parent=27 // pred_check
        %p224 = pneg %p45
      $region30: #{up_forward.3} parent=27 // pred_check_branch
        %226 = sbr.rel (%p224) target = $region32
      $region31: #{up_forward.3} parent=27 // pred_region
        %p227 = scmp.lt.s32.totalorder %s20, 1
        %s228 = scalar_select %p227, %s20, 1
        %s229 = smul.addr %s228, 4
        %s230 = scalar_lea.vmem %s0, %s229
      $region32: #{up_forward.3} parent=27 // pred_fallthru
        _
      // Predicated region
      $region33: #{up_forward.3} parent=27 // pred_check
        %p231 = pneg %p71
      $region34: #{up_forward.3} parent=27 // pred_check_branch
        %233 = sbr.rel (%p231) target = $region36
      $region35: #{up_forward.3} parent=27 // pred_region
        %p234 = scmp.lt.s32.totalorder %s20, 1
        %s235 = scalar_select %p234, %s20, 1
        %s236 = smul.addr %s235, 32
        %s237 = smul.addr %s236, 4
        %s238 = scalar_lea.vmem %s1, %s237
      $region36: #{up_forward.3} parent=27 // pred_fallthru
        _
    $region28: #{up_forward.3} parent=5 // pred_fallthru
      _
    %p239 = scmp.le.s32.totalorder 1, %s13
    %p240 = scmp.lt.s32.totalorder %s13, 3
    %p241 = pnand %p239, %p240
    %p242 = pneg %p241
    // Predicated region
    $region37: #{up_forward.3} parent=5 // pred_check
      _
    $region38: #{up_forward.3} parent=5 // pred_check_branch
      %244 = sbr.rel (%p241) target = $region40
    $region39: #{up_forward.3} parent=5 // pred_region
      %s245 = ssub.s32 %s13, 1
      %p246 = scmp.lt.s32.totalorder %s22, 1
      %s247 = scalar_select %p246, %s22, 1
      %s248 = smul.addr %s247, 4
      %s249 = scalar_lea.vmem %s0, %s248
      %p250 = pneg %p51
      %p251 = pneg %p48
      %p252 = scmp.lt.s32.totalorder %s22, 1
      %s253 = scalar_select %p252, %s22, 1
      %s254 = smul.addr %s253, 32
      %s255 = smul.addr %s254, 4
      %s256 = scalar_lea.vmem %s1, %s255
      %p257 = pneg %p77
      %p258 = pneg %p74
      %p259 = pneg %p98
      %p260 = pneg %p95
      %p261 = pneg %p119
      %p262 = pneg %p116
      %p263 = pneg %p140
      %p264 = pneg %p137
      %p265 = pneg %p168
      %p266 = pneg %p165
      %s267 = smul.u32 16, %s23
      %p268 = scmp.lt.s32.totalorder %s22, 1
      %s269 = scalar_select %p268, %s22, 1
      %p270 = scmp.lt.s32.totalorder %s267, 15
      %s271 = scalar_select %p270, %s267, 15
      %s272 = smul.addr %s271, 2
      %s273 = smul.addr %s269, 32
      %s274 = sadd.s32 %s272, %s273
      %s275 = smul.addr %s274, 4
      %s276 = scalar_lea.vmem %s5, %s275
      %p277 = pneg %p196
      %p278 = pneg %p193
      %p279 = scmp.lt.s32.totalorder %s22, 1
      %s280 = scalar_select %p279, %s22, 1
      %p281 = scmp.lt.s32.totalorder %s23, 0
      %s282 = scalar_select %p281, %s23, 0
      %s283 = sadd.s32 %s282, %s280
      %s284 = smul.addr %s283, 2
      %s285 = scalar_lea.vmem %s6, %s284
      %p286 = scmp.lt.s32.totalorder %s22, 1
      %s287 = scalar_select %p286, %s22, 1
      %s288 = smul.addr %s287, 4
      %s289 = scalar_lea.vmem %s0, %s288
      %p290 = scmp.lt.s32.totalorder %s22, 1
      %s291 = scalar_select %p290, %s22, 1
      %s292 = smul.addr %s291, 32
      %s293 = smul.addr %s292, 4
      %s294 = scalar_lea.vmem %s1, %s293
      %s295 = smul.u32 16, %s23
      %p296 = scmp.lt.s32.totalorder %s22, 1
      %s297 = scalar_select %p296, %s22, 1
      %p298 = scmp.lt.s32.totalorder %s295, 15
      %s299 = scalar_select %p298, %s295, 15
      %s300 = smul.addr %s299, 2
      %s301 = smul.addr %s297, 32
      %s302 = sadd.s32 %s300, %s301
      %s303 = smul.addr %s302, 4
      %s304 = scalar_lea.vmem %s5, %s303
      %s305 = smul.u32 16, %s23
      %p306 = scmp.lt.s32.totalorder %s22, 1
      %s307 = scalar_select %p306, %s22, 1
      %p308 = scmp.lt.s32.totalorder %s23, 0
      %s309 = scalar_select %p308, %s23, 0
      %s310 = sadd.s32 %s309, %s307
      %s311 = smul.addr %s310, 2
      %s312 = scalar_lea.vmem %s6, %s311
      %s314 = smul.u32 %s23, 16
      %vm315 = vcmask 60416
      %316 = vst.msk [vmem:[#allocation2] sm:$0xf] %vm315, 0
      %317 = vst.msk [vmem:[#allocation2 + $0x10] sm:$0xf] %vm315, 0
      %318 = vst.msk [vmem:[#allocation2 + $0x20] sm:$0xf] %vm315, 0
      %319 = vst.msk [vmem:[#allocation2 + $0x30] sm:$0xf] %vm315, 0
      %320 = vst.msk [vmem:[#allocation2 + $0x40] sm:$0xf] %vm315, 0
      %321 = vst.msk [vmem:[#allocation2 + $0x50] sm:$0xf] %vm315, 0
      %322 = vst.msk [vmem:[#allocation2 + $0x60] sm:$0xf] %vm315, 0
      %323 = vst.msk [vmem:[#allocation2 + $0x70] sm:$0xf] %vm315, 0
      %324 = vst.msk [vmem:[#allocation2 + $0x80] sm:$0xf] %vm315, 0
      %325 = vst.msk [vmem:[#allocation2 + $0x90] sm:$0xf] %vm315, 0
      %326 = vst.msk [vmem:[#allocation2 + $0xa0] sm:$0xf] %vm315, 0
      %327 = vst.msk [vmem:[#allocation2 + $0xb0] sm:$0xf] %vm315, 0
      %328 = vst.msk [vmem:[#allocation2 + $0xc0] sm:$0xf] %vm315, 0
      %329 = vst.msk [vmem:[#allocation2 + $0xd0] sm:$0xf] %vm315, 0
      %330 = vst.msk [vmem:[#allocation2 + $0xe0] sm:$0xf] %vm315, 0
      %331 = vst.msk [vmem:[#allocation2 + $0xf0] sm:$0xf] %vm315, 0
      %332 = vst.msk [vmem:[#allocation2 + $0x100] sm:$0xf] %vm315, 0
      %333 = vst.msk [vmem:[#allocation2 + $0x110] sm:$0xf] %vm315, 0
      %334 = vst.msk [vmem:[#allocation2 + $0xc] sm:$0xf] %vm315, 0
      %335 = vst.msk [vmem:[#allocation2 + $0x1c] sm:$0xf] %vm315, 0
      %336 = vst.msk [vmem:[#allocation2 + $0x2c] sm:$0xf] %vm315, 0
      %337 = vst.msk [vmem:[#allocation2 + $0x3c] sm:$0xf] %vm315, 0
      %338 = vst.msk [vmem:[#allocation2 + $0x4c] sm:$0xf] %vm315, 0
      %339 = vst.msk [vmem:[#allocation2 + $0x5c] sm:$0xf] %vm315, 0
      %340 = vst.msk [vmem:[#allocation2 + $0x6c] sm:$0xf] %vm315, 0
      %341 = vst.msk [vmem:[#allocation2 + $0x7c] sm:$0xf] %vm315, 0
      %342 = vst.msk [vmem:[#allocation2 + $0x8c] sm:$0xf] %vm315, 0
      %343 = vst.msk [vmem:[#allocation2 + $0x9c] sm:$0xf] %vm315, 0
      %344 = vst.msk [vmem:[#allocation2 + $0xac] sm:$0xf] %vm315, 0
      %345 = vst.msk [vmem:[#allocation2 + $0xbc] sm:$0xf] %vm315, 0
      %346 = vst.msk [vmem:[#allocation2 + $0xcc] sm:$0xf] %vm315, 0
      %347 = vst.msk [vmem:[#allocation2 + $0xdc] sm:$0xf] %vm315, 0
      %348 = vst.msk [vmem:[#allocation2 + $0xec] sm:$0xf] %vm315, 0
      %349 = vst.msk [vmem:[#allocation2 + $0xfc] sm:$0xf] %vm315, 0
      %350 = vst.msk [vmem:[#allocation2 + $0x10c] sm:$0xf] %vm315, 0
      %351 = vst.msk [vmem:[#allocation2 + $0x11c] sm:$0xf] %vm315, 0
      %s352 = scalar_lea.vmem %s2, %s314
      %v353 = vld [vmem:[%s352] sm:$0xff]
      %v354 = vld [vmem:[%s352 + $0x8] sm:$0xff]
      %v355 = vld [vmem:[%s352 + $0x10] sm:$0x3]
      %v356 = vld [vmem:[%s289] sm:$0xf]
      %v357 = vunpack.c.l.bf16 %v356
      %vm358 = vcmask 64512
      %v360 = vsel %vm358, %v353, 0
      %v363 = vsel %vm358, %v354, 0
      %v366 = vsel %vm358, %v355, 0
      %368 = vmatprep.subr.mxu0 0.0
      %369 = vmatpush1.msra.mxu0 0.0
      %370 = vmatprep.subr.mxu0 0.0
      %371 = vmatpush1.msra.mxu0 0.0
      %372 = vmatprep.subr.mxu0 0.0
      %373 = vmatpush1.msra.mxu0 0.0
      %374 = vmatprep.subr.mxu0 0.0
      %375 = vmatpush1.msra.mxu0 0.0
      %376 = vmatprep.subr.mxu0 0.0
      %377 = vmatpush1.msra.mxu0 0.0
      %378 = vmatprep.subr.mxu0 0.0
      %379 = vmatpush1.msra.mxu0 0.0
      %380 = vmatprep.subr.mxu0 0.0
      %381 = vmatpush1.msra.mxu0 0.0
      %382 = vmatprep.subr.mxu0 0.0
      %383 = vmatpush1.msra.mxu0 0.0
      %384 = vmatprep.subr.mxu0 0.0
      %385 = vmatpush1.msra.mxu0 0.0
      %386 = vmatprep.subr.mxu0 0.0
      %387 = vmatpush1.msra.mxu0 0.0
      %388 = vmatprep.subr.mxu0 0.0
      %389 = vmatpush1.msra.mxu0 0.0
      %390 = vmatprep.subr.mxu0 0.0
      %391 = vmatpush1.msra.mxu0 0.0
      %392 = vmatprep.subr.mxu0 0.0
      %393 = vmatpush1.msra.mxu0 0.0
      %394 = vmatprep.subr.mxu0 0.0
      %395 = vmatpush1.msra.mxu0 0.0
      %396 = vmatprep.subr.mxu0 0.0
      %397 = vmatpush1.msra.mxu0 0.0
      %398 = vmatprep.subr.mxu0 0.0
      %399 = vmatpush1.msra.mxu0 %v357
      %400 = vmatprep.subr.mxu0 0.0
      %401 = vmatpush2.msra.mxu0 0.0
      %402 = vmatprep.subr.mxu0 0.0
      %403 = vmatpush2.msra.mxu0 0.0
      %404 = vmatprep.subr.mxu0 0.0
      %405 = vmatpush2.msra.mxu0 0.0
      %406 = vmatprep.subr.mxu0 0.0
      %407 = vmatpush2.msra.mxu0 0.0
      %408 = vmatprep.subr.mxu0 0.0
      %409 = vmatpush2.msra.mxu0 0.0
      %410 = vmatprep.subr.mxu0 0.0
      %411 = vmatpush2.msra.mxu0 0.0
      %412 = vmatprep.subr.mxu0 0.0
      %413 = vmatpush2.msra.mxu0 0.0
      %414 = vmatprep.subr.mxu0 0.0
      %415 = vmatpush2.msra.mxu0 0.0
      %416 = vmatprep.subr.mxu0 0.0
      %417 = vmatpush2.msra.mxu0 0.0
      %418 = vmatprep.subr.mxu0 0.0
      %419 = vmatpush2.msra.mxu0 0.0
      %420 = vmatprep.subr.mxu0 0.0
      %421 = vmatpush2.msra.mxu0 0.0
      %422 = vmatprep.subr.mxu0 0.0
      %423 = vmatpush2.msra.mxu0 0.0
      %424 = vmatprep.subr.mxu0 0.0
      %425 = vmatpush2.msra.mxu0 0.0
      %426 = vmatprep.subr.mxu0 0.0
      %427 = vmatpush2.msra.mxu0 0.0
      %428 = vmatprep.subr.mxu0 0.0
      %429 = vmatpush2.msra.mxu0 0.0
      %430 = vmatprep.subr.mxu0 0.0
      %431 = vmatpush2.msra.mxu0 0.0
      %432 = vmatprep.mubr.f32.mxu0 0.0
      %433 = vmatmul.mubr.f32.gmra.mxu0 %v360
      %v434 = vpop.f32.mrf.mxu0
      %v435 = vadd.f32 0.0, %v434
      %v436 = vpop.f32.mrf.mxu0
      %437 = vmatprep.mubr.f32.mxu0 0.0
      %438 = vmatmul.mubr.f32.gmra.mxu0 %v363
      %v439 = vpop.f32.mrf.mxu0
      %v440 = vadd.f32 0.0, %v439
      %v441 = vpop.f32.mrf.mxu0
      %442 = vmatprep.mubr.f32.mxu0 0.0
      %443 = vmatmul.mubr.f32.gmra.mxu0 %v366
      %v444 = vpop.f32.mrf.mxu0
      %v445 = vadd.f32 0.0, %v444
      %v446 = vpop.f32.mrf.mxu0
      %447 = vdwg.mxu0
      %451 = vrot.lane.b32.xlu0 %v435, 124
      %v452 = vpop.permute.xlu0 %451
      %453 = vrot.lane.b32.xlu0 %v440, 124
      %v454 = vpop.permute.xlu0 %453
      %455 = vrot.lane.b32.xlu0 %v445, 124
      %v456 = vpop.permute.xlu0 %455
      %460 = vrot.lane.b32.xlu0 %v435, 120
      %v461 = vpop.permute.xlu0 %460
      %462 = vrot.lane.b32.xlu0 %v440, 120
      %v463 = vpop.permute.xlu0 %462
      %464 = vrot.lane.b32.xlu0 %v445, 120
      %v465 = vpop.permute.xlu0 %464
      %469 = vrot.lane.b32.xlu0 %v435, 116
      %v470 = vpop.permute.xlu0 %469
      %471 = vrot.lane.b32.xlu0 %v440, 116
      %v472 = vpop.permute.xlu0 %471
      %473 = vrot.lane.b32.xlu0 %v445, 116
      %v474 = vpop.permute.xlu0 %473
      %478 = vrot.lane.b32.xlu0 %v435, 112
      %v479 = vpop.permute.xlu0 %478
      %480 = vrot.lane.b32.xlu0 %v440, 112
      %v481 = vpop.permute.xlu0 %480
      %482 = vrot.lane.b32.xlu0 %v445, 112
      %v483 = vpop.permute.xlu0 %482
      %487 = vrot.lane.b32.xlu0 %v435, 108
      %v488 = vpop.permute.xlu0 %487
      %489 = vrot.lane.b32.xlu0 %v440, 108
      %v490 = vpop.permute.xlu0 %489
      %491 = vrot.lane.b32.xlu0 %v445, 108
      %v492 = vpop.permute.xlu0 %491
      %496 = vrot.lane.b32.xlu0 %v435, 104
      %v497 = vpop.permute.xlu0 %496
      %498 = vrot.lane.b32.xlu0 %v440, 104
      %v499 = vpop.permute.xlu0 %498
      %500 = vrot.lane.b32.xlu0 %v445, 104
      %v501 = vpop.permute.xlu0 %500
      %505 = vrot.lane.b32.xlu0 %v435, 100
      %v506 = vpop.permute.xlu0 %505
      %507 = vrot.lane.b32.xlu0 %v440, 100
      %v508 = vpop.permute.xlu0 %507
      %509 = vrot.lane.b32.xlu0 %v445, 100
      %v510 = vpop.permute.xlu0 %509
      %v514 = vcombine.low %v435, %v461
      %v515 = vcombine.high %v435, %v461
      %v517 = vunpack.c.l.s4 1983009808
      %v518 = vunpack.c.0.s8 %v517
      %v519 = vlaneseq
      %v520 = vshrl.u32 %v519, 7
      %v521 = vsub.s32 %v518, %v520
      %v522 = vrot.slane %v514, %v521
      %v524 = vunpack.c.l.s4 1983009808
      %v525 = vunpack.c.0.s8 %v524
      %v526 = vlaneseq
      %v527 = vshrl.u32 %v526, 7
      %v528 = vsub.s32 %v525, %v527
      %v529 = vrot.slane %v515, %v528
      %v530 = vcombine.low %v452, %v470
      %v531 = vcombine.high %v452, %v470
      %v533 = vunpack.c.l.s4 1983009808
      %v534 = vunpack.c.0.s8 %v533
      %v535 = vlaneseq
      %v536 = vshrl.u32 %v535, 7
      %v537 = vsub.s32 %v534, %v536
      %v538 = vrot.slane %v530, %v537
      %v540 = vunpack.c.l.s4 1983009808
      %v541 = vunpack.c.0.s8 %v540
      %v542 = vlaneseq
      %v543 = vshrl.u32 %v542, 7
      %v544 = vsub.s32 %v541, %v543
      %v545 = vrot.slane %v531, %v544
      %v546 = vcombine.low %v479, %v497
      %v547 = vcombine.high %v479, %v497
      %v549 = vunpack.c.l.s4 1983009808
      %v550 = vunpack.c.0.s8 %v549
      %v551 = vlaneseq
      %v552 = vshrl.u32 %v551, 7
      %v553 = vsub.s32 %v550, %v552
      %v554 = vrot.slane %v546, %v553
      %v556 = vunpack.c.l.s4 1983009808
      %v557 = vunpack.c.0.s8 %v556
      %v558 = vlaneseq
      %v559 = vshrl.u32 %v558, 7
      %v560 = vsub.s32 %v557, %v559
      %v561 = vrot.slane %v547, %v560
      %v562 = vcombine.low %v488, %v506
      %v563 = vcombine.high %v488, %v506
      %v565 = vunpack.c.l.s4 1983009808
      %v566 = vunpack.c.0.s8 %v565
      %v567 = vlaneseq
      %v568 = vshrl.u32 %v567, 7
      %v569 = vsub.s32 %v566, %v568
      %v570 = vrot.slane %v562, %v569
      %v572 = vunpack.c.l.s4 1983009808
      %v573 = vunpack.c.0.s8 %v572
      %v574 = vlaneseq
      %v575 = vshrl.u32 %v574, 7
      %v576 = vsub.s32 %v573, %v575
      %v577 = vrot.slane %v563, %v576
      %v578 = vcombine.low %v522, %v538
      %v579 = vcombine.high %v522, %v538
      %v581 = vunpack.c.l.s4 1934713408
      %v582 = vunpack.c.0.s8 %v581
      %v583 = vlaneseq
      %v584 = vshrl.u32 %v583, 7
      %v585 = vsub.s32 %v582, %v584
      %v586 = vrot.slane %v578, %v585
      %v588 = vunpack.c.l.s4 1934713408
      %v589 = vunpack.c.0.s8 %v588
      %v590 = vlaneseq
      %v591 = vshrl.u32 %v590, 7
      %v592 = vsub.s32 %v589, %v591
      %v593 = vrot.slane %v579, %v592
      %v594 = vcombine.low %v529, %v545
      %v595 = vcombine.high %v529, %v545
      %v597 = vunpack.c.l.s4 1934713408
      %v598 = vunpack.c.0.s8 %v597
      %v599 = vlaneseq
      %v600 = vshrl.u32 %v599, 7
      %v601 = vsub.s32 %v598, %v600
      %v602 = vrot.slane %v594, %v601
      %v604 = vunpack.c.l.s4 1934713408
      %v605 = vunpack.c.0.s8 %v604
      %v606 = vlaneseq
      %v607 = vshrl.u32 %v606, 7
      %v608 = vsub.s32 %v605, %v607
      %v609 = vrot.slane %v595, %v608
      %v610 = vcombine.low %v554, %v570
      %v611 = vcombine.high %v554, %v570
      %v613 = vunpack.c.l.s4 1934713408
      %v614 = vunpack.c.0.s8 %v613
      %v615 = vlaneseq
      %v616 = vshrl.u32 %v615, 7
      %v617 = vsub.s32 %v614, %v616
      %v618 = vrot.slane %v610, %v617
      %v620 = vunpack.c.l.s4 1934713408
      %v621 = vunpack.c.0.s8 %v620
      %v622 = vlaneseq
      %v623 = vshrl.u32 %v622, 7
      %v624 = vsub.s32 %v621, %v623
      %v625 = vrot.slane %v611, %v624
      %v626 = vcombine.low %v561, %v577
      %v627 = vcombine.high %v561, %v577
      %v629 = vunpack.c.l.s4 1934713408
      %v630 = vunpack.c.0.s8 %v629
      %v631 = vlaneseq
      %v632 = vshrl.u32 %v631, 7
      %v633 = vsub.s32 %v630, %v632
      %v634 = vrot.slane %v626, %v633
      %v636 = vunpack.c.l.s4 1934713408
      %v637 = vunpack.c.0.s8 %v636
      %v638 = vlaneseq
      %v639 = vshrl.u32 %v638, 7
      %v640 = vsub.s32 %v637, %v639
      %v641 = vrot.slane %v627, %v640
      %v642 = vcombine.low %v586, %v618
      %v643 = vcombine.high %v586, %v618
      %v644 = vcombine.low %v593, %v625
      %v645 = vcombine.high %v593, %v625
      %v646 = vcombine.low %v602, %v634
      %v647 = vcombine.high %v602, %v634
      %v648 = vcombine.low %v609, %v641
      %v649 = vcombine.high %v609, %v641
      %v650 = vcombine.low %v440, %v463
      %v651 = vcombine.high %v440, %v463
      %v653 = vunpack.c.l.s4 1983009808
      %v654 = vunpack.c.0.s8 %v653
      %v655 = vlaneseq
      %v656 = vshrl.u32 %v655, 7
      %v657 = vsub.s32 %v654, %v656
      %v658 = vrot.slane %v650, %v657
      %v660 = vunpack.c.l.s4 1983009808
      %v661 = vunpack.c.0.s8 %v660
      %v662 = vlaneseq
      %v663 = vshrl.u32 %v662, 7
      %v664 = vsub.s32 %v661, %v663
      %v665 = vrot.slane %v651, %v664
      %v666 = vcombine.low %v454, %v472
      %v667 = vcombine.high %v454, %v472
      %v669 = vunpack.c.l.s4 1983009808
      %v670 = vunpack.c.0.s8 %v669
      %v671 = vlaneseq
      %v672 = vshrl.u32 %v671, 7
      %v673 = vsub.s32 %v670, %v672
      %v674 = vrot.slane %v666, %v673
      %v676 = vunpack.c.l.s4 1983009808
      %v677 = vunpack.c.0.s8 %v676
      %v678 = vlaneseq
      %v679 = vshrl.u32 %v678, 7
      %v680 = vsub.s32 %v677, %v679
      %v681 = vrot.slane %v667, %v680
      %v682 = vcombine.low %v481, %v499
      %v683 = vcombine.high %v481, %v499
      %v685 = vunpack.c.l.s4 1983009808
      %v686 = vunpack.c.0.s8 %v685
      %v687 = vlaneseq
      %v688 = vshrl.u32 %v687, 7
      %v689 = vsub.s32 %v686, %v688
      %v690 = vrot.slane %v682, %v689
      %v692 = vunpack.c.l.s4 1983009808
      %v693 = vunpack.c.0.s8 %v692
      %v694 = vlaneseq
      %v695 = vshrl.u32 %v694, 7
      %v696 = vsub.s32 %v693, %v695
      %v697 = vrot.slane %v683, %v696
      %v698 = vcombine.low %v490, %v508
      %v699 = vcombine.high %v490, %v508
      %v701 = vunpack.c.l.s4 1983009808
      %v702 = vunpack.c.0.s8 %v701
      %v703 = vlaneseq
      %v704 = vshrl.u32 %v703, 7
      %v705 = vsub.s32 %v702, %v704
      %v706 = vrot.slane %v698, %v705
      %v708 = vunpack.c.l.s4 1983009808
      %v709 = vunpack.c.0.s8 %v708
      %v710 = vlaneseq
      %v711 = vshrl.u32 %v710, 7
      %v712 = vsub.s32 %v709, %v711
      %v713 = vrot.slane %v699, %v712
      %v714 = vcombine.low %v658, %v674
      %v715 = vcombine.high %v658, %v674
      %v717 = vunpack.c.l.s4 1934713408
      %v718 = vunpack.c.0.s8 %v717
      %v719 = vlaneseq
      %v720 = vshrl.u32 %v719, 7
      %v721 = vsub.s32 %v718, %v720
      %v722 = vrot.slane %v714, %v721
      %v724 = vunpack.c.l.s4 1934713408
      %v725 = vunpack.c.0.s8 %v724
      %v726 = vlaneseq
      %v727 = vshrl.u32 %v726, 7
      %v728 = vsub.s32 %v725, %v727
      %v729 = vrot.slane %v715, %v728
      %v730 = vcombine.low %v665, %v681
      %v731 = vcombine.high %v665, %v681
      %v733 = vunpack.c.l.s4 1934713408
      %v734 = vunpack.c.0.s8 %v733
      %v735 = vlaneseq
      %v736 = vshrl.u32 %v735, 7
      %v737 = vsub.s32 %v734, %v736
      %v738 = vrot.slane %v730, %v737
      %v740 = vunpack.c.l.s4 1934713408
      %v741 = vunpack.c.0.s8 %v740
      %v742 = vlaneseq
      %v743 = vshrl.u32 %v742, 7
      %v744 = vsub.s32 %v741, %v743
      %v745 = vrot.slane %v731, %v744
      %v746 = vcombine.low %v690, %v706
      %v747 = vcombine.high %v690, %v706
      %v749 = vunpack.c.l.s4 1934713408
      %v750 = vunpack.c.0.s8 %v749
      %v751 = vlaneseq
      %v752 = vshrl.u32 %v751, 7
      %v753 = vsub.s32 %v750, %v752
      %v754 = vrot.slane %v746, %v753
      %v756 = vunpack.c.l.s4 1934713408
      %v757 = vunpack.c.0.s8 %v756
      %v758 = vlaneseq
      %v759 = vshrl.u32 %v758, 7
      %v760 = vsub.s32 %v757, %v759
      %v761 = vrot.slane %v747, %v760
      %v762 = vcombine.low %v697, %v713
      %v763 = vcombine.high %v697, %v713
      %v765 = vunpack.c.l.s4 1934713408
      %v766 = vunpack.c.0.s8 %v765
      %v767 = vlaneseq
      %v768 = vshrl.u32 %v767, 7
      %v769 = vsub.s32 %v766, %v768
      %v770 = vrot.slane %v762, %v769
      %v772 = vunpack.c.l.s4 1934713408
      %v773 = vunpack.c.0.s8 %v772
      %v774 = vlaneseq
      %v775 = vshrl.u32 %v774, 7
      %v776 = vsub.s32 %v773, %v775
      %v777 = vrot.slane %v763, %v776
      %v778 = vcombine.low %v722, %v754
      %v779 = vcombine.high %v722, %v754
      %v780 = vcombine.low %v729, %v761
      %v781 = vcombine.high %v729, %v761
      %v782 = vcombine.low %v738, %v770
      %v783 = vcombine.high %v738, %v770
      %v784 = vcombine.low %v745, %v777
      %v785 = vcombine.high %v745, %v777
      %v786 = vcombine.low %v445, %v465
      %v788 = vunpack.c.l.s4 1983009808
      %v789 = vunpack.c.0.s8 %v788
      %v790 = vlaneseq
      %v791 = vshrl.u32 %v790, 7
      %v792 = vsub.s32 %v789, %v791
      %v793 = vrot.slane %v786, %v792
      %v794 = vcombine.low %v456, %v474
      %v796 = vunpack.c.l.s4 1983009808
      %v797 = vunpack.c.0.s8 %v796
      %v798 = vlaneseq
      %v799 = vshrl.u32 %v798, 7
      %v800 = vsub.s32 %v797, %v799
      %v801 = vrot.slane %v794, %v800
      %v802 = vcombine.low %v483, %v501
      %v804 = vunpack.c.l.s4 1983009808
      %v805 = vunpack.c.0.s8 %v804
      %v806 = vlaneseq
      %v807 = vshrl.u32 %v806, 7
      %v808 = vsub.s32 %v805, %v807
      %v809 = vrot.slane %v802, %v808
      %v810 = vcombine.low %v492, %v510
      %v812 = vunpack.c.l.s4 1983009808
      %v813 = vunpack.c.0.s8 %v812
      %v814 = vlaneseq
      %v815 = vshrl.u32 %v814, 7
      %v816 = vsub.s32 %v813, %v815
      %v817 = vrot.slane %v810, %v816
      %v818 = vcombine.low %v793, %v801
      %v820 = vunpack.c.l.s4 1934713408
      %v821 = vunpack.c.0.s8 %v820
      %v822 = vlaneseq
      %v823 = vshrl.u32 %v822, 7
      %v824 = vsub.s32 %v821, %v823
      %v825 = vrot.slane %v818, %v824
      %v826 = vcombine.low %v809, %v817
      %v828 = vunpack.c.l.s4 1934713408
      %v829 = vunpack.c.0.s8 %v828
      %v830 = vlaneseq
      %v831 = vshrl.u32 %v830, 7
      %v832 = vsub.s32 %v829, %v831
      %v833 = vrot.slane %v826, %v832
      %v834 = vcombine.low %v825, %v833
      %v835 = vcombine.high %v825, %v833
      %836 = vxpose.xlu0.b32.start [1/16] %v642, 128
      %837 = vxpose.xlu0.b32.cont [2/16] 0.0, 128
      %838 = vxpose.xlu0.b32.cont [3/16] 0.0, 128
      %839 = vxpose.xlu0.b32.cont [4/16] 0.0, 128
      %840 = vxpose.xlu0.b32.cont [5/16] 0.0, 128
      %841 = vxpose.xlu0.b32.cont [6/16] 0.0, 128
      %842 = vxpose.xlu0.b32.cont [7/16] 0.0, 128
      %843 = vxpose.xlu0.b32.cont [8/16] 0.0, 128
      %844 = vxpose.xlu0.b32.cont [9/16] 0.0, 128
      %845 = vxpose.xlu0.b32.cont [10/16] 0.0, 128
      %846 = vxpose.xlu0.b32.cont [11/16] 0.0, 128
      %847 = vxpose.xlu0.b32.cont [12/16] 0.0, 128
      %848 = vxpose.xlu0.b32.cont [13/16] 0.0, 128
      %849 = vxpose.xlu0.b32.cont [14/16] 0.0, 128
      %850 = vxpose.xlu0.b32.cont [15/16] 0.0, 128
      %851 = vxpose.xlu0.b32.end [16/16] 0.0, 128
      %v852 = vpop.trf.xlu0
      %v853 = vpop.trf.xlu0
      %v854 = vpop.trf.xlu0
      %v855 = vpop.trf.xlu0
      %v856 = vpop.trf.xlu0
      %v857 = vpop.trf.xlu0
      %v858 = vpop.trf.xlu0
      %v859 = vpop.trf.xlu0
      %v860 = vpop.trf.xlu0
      %v861 = vpop.trf.xlu0
      %v862 = vpop.trf.xlu0
      %v863 = vpop.trf.xlu0
      %v864 = vpop.trf.xlu0
      %v865 = vpop.trf.xlu0
      %v866 = vpop.trf.xlu0
      %v867 = vpop.trf.xlu0
      %868 = vxpose.xlu0.b32.start [1/16] %v643, 128
      %869 = vxpose.xlu0.b32.cont [2/16] 0.0, 128
      %870 = vxpose.xlu0.b32.cont [3/16] 0.0, 128
      %871 = vxpose.xlu0.b32.cont [4/16] 0.0, 128
      %872 = vxpose.xlu0.b32.cont [5/16] 0.0, 128
      %873 = vxpose.xlu0.b32.cont [6/16] 0.0, 128
      %874 = vxpose.xlu0.b32.cont [7/16] 0.0, 128
      %875 = vxpose.xlu0.b32.cont [8/16] 0.0, 128
      %876 = vxpose.xlu0.b32.cont [9/16] 0.0, 128
      %877 = vxpose.xlu0.b32.cont [10/16] 0.0, 128
      %878 = vxpose.xlu0.b32.cont [11/16] 0.0, 128
      %879 = vxpose.xlu0.b32.cont [12/16] 0.0, 128
      %880 = vxpose.xlu0.b32.cont [13/16] 0.0, 128
      %881 = vxpose.xlu0.b32.cont [14/16] 0.0, 128
      %882 = vxpose.xlu0.b32.cont [15/16] 0.0, 128
      %883 = vxpose.xlu0.b32.end [16/16] 0.0, 128
      %v884 = vpop.trf.xlu0
      %v885 = vpop.trf.xlu0
      %v886 = vpop.trf.xlu0
      %v887 = vpop.trf.xlu0
      %v888 = vpop.trf.xlu0
      %v889 = vpop.trf.xlu0
      %v890 = vpop.trf.xlu0
      %v891 = vpop.trf.xlu0
      %v892 = vpop.trf.xlu0
      %v893 = vpop.trf.xlu0
      %v894 = vpop.trf.xlu0
      %v895 = vpop.trf.xlu0
      %v896 = vpop.trf.xlu0
      %v897 = vpop.trf.xlu0
      %v898 = vpop.trf.xlu0
      %v899 = vpop.trf.xlu0
      %900 = vxpose.xlu0.b32.start [1/16] %v644, 128
      %901 = vxpose.xlu0.b32.cont [2/16] 0.0, 128
      %902 = vxpose.xlu0.b32.cont [3/16] 0.0, 128
      %903 = vxpose.xlu0.b32.cont [4/16] 0.0, 128
      %904 = vxpose.xlu0.b32.cont [5/16] 0.0, 128
      %905 = vxpose.xlu0.b32.cont [6/16] 0.0, 128
      %906 = vxpose.xlu0.b32.cont [7/16] 0.0, 128
      %907 = vxpose.xlu0.b32.cont [8/16] 0.0, 128
      %908 = vxpose.xlu0.b32.cont [9/16] 0.0, 128
      %909 = vxpose.xlu0.b32.cont [10/16] 0.0, 128
      %910 = vxpose.xlu0.b32.cont [11/16] 0.0, 128
      %911 = vxpose.xlu0.b32.cont [12/16] 0.0, 128
      %912 = vxpose.xlu0.b32.cont [13/16] 0.0, 128
      %913 = vxpose.xlu0.b32.cont [14/16] 0.0, 128
      %914 = vxpose.xlu0.b32.cont [15/16] 0.0, 128
      %915 = vxpose.xlu0.b32.end [16/16] 0.0, 128
      %v916 = vpop.trf.xlu0
      %v917 = vpop.trf.xlu0
      %v918 = vpop.trf.xlu0
      %v919 = vpop.trf.xlu0
      %v920 = vpop.trf.xlu0
      %v921 = vpop.trf.xlu0
      %v922 = vpop.trf.xlu0
      %v923 = vpop.trf.xlu0
      %v924 = vpop.trf.xlu0
      %v925 = vpop.trf.xlu0
      %v926 = vpop.trf.xlu0
      %v927 = vpop.trf.xlu0
      %v928 = vpop.trf.xlu0
      %v929 = vpop.trf.xlu0
      %v930 = vpop.trf.xlu0
      %v931 = vpop.trf.xlu0
      %932 = vxpose.xlu0.b32.start [1/16] %v645, 128
      %933 = vxpose.xlu0.b32.cont [2/16] 0.0, 128
      %934 = vxpose.xlu0.b32.cont [3/16] 0.0, 128
      %935 = vxpose.xlu0.b32.cont [4/16] 0.0, 128
      %936 = vxpose.xlu0.b32.cont [5/16] 0.0, 128
      %937 = vxpose.xlu0.b32.cont [6/16] 0.0, 128
      %938 = vxpose.xlu0.b32.cont [7/16] 0.0, 128
      %939 = vxpose.xlu0.b32.cont [8/16] 0.0, 128
      %940 = vxpose.xlu0.b32.cont [9/16] 0.0, 128
      %941 = vxpose.xlu0.b32.cont [10/16] 0.0, 128
      %942 = vxpose.xlu0.b32.cont [11/16] 0.0, 128
      %943 = vxpose.xlu0.b32.cont [12/16] 0.0, 128
      %944 = vxpose.xlu0.b32.cont [13/16] 0.0, 128
      %945 = vxpose.xlu0.b32.cont [14/16] 0.0, 128
      %946 = vxpose.xlu0.b32.cont [15/16] 0.0, 128
      %947 = vxpose.xlu0.b32.end [16/16] 0.0, 128
      %v948 = vpop.trf.xlu0
      %v949 = vpop.trf.xlu0
      %v950 = vpop.trf.xlu0
      %v951 = vpop.trf.xlu0
      %v952 = vpop.trf.xlu0
      %v953 = vpop.trf.xlu0
      %v954 = vpop.trf.xlu0
      %v955 = vpop.trf.xlu0
      %v956 = vpop.trf.xlu0
      %v957 = vpop.trf.xlu0
      %v958 = vpop.trf.xlu0
      %v959 = vpop.trf.xlu0
      %v960 = vpop.trf.xlu0
      %v961 = vpop.trf.xlu0
      %v962 = vpop.trf.xlu0
      %v963 = vpop.trf.xlu0
      %964 = vxpose.xlu0.b32.start [1/16] %v646, 128
      %965 = vxpose.xlu0.b32.cont [2/16] 0.0, 128
      %966 = vxpose.xlu0.b32.cont [3/16] 0.0, 128
      %967 = vxpose.xlu0.b32.cont [4/16] 0.0, 128
      %968 = vxpose.xlu0.b32.cont [5/16] 0.0, 128
      %969 = vxpose.xlu0.b32.cont [6/16] 0.0, 128
      %970 = vxpose.xlu0.b32.cont [7/16] 0.0, 128
      %971 = vxpose.xlu0.b32.cont [8/16] 0.0, 128
      %972 = vxpose.xlu0.b32.cont [9/16] 0.0, 128
      %973 = vxpose.xlu0.b32.cont [10/16] 0.0, 128
      %974 = vxpose.xlu0.b32.cont [11/16] 0.0, 128
      %975 = vxpose.xlu0.b32.cont [12/16] 0.0, 128
      %976 = vxpose.xlu0.b32.cont [13/16] 0.0, 128
      %977 = vxpose.xlu0.b32.cont [14/16] 0.0, 128
      %978 = vxpose.xlu0.b32.cont [15/16] 0.0, 128
      %979 = vxpose.xlu0.b32.end [16/16] 0.0, 128
      %v980 = vpop.trf.xlu0
      %v981 = vpop.trf.xlu0
      %v982 = vpop.trf.xlu0
      %v983 = vpop.trf.xlu0
      %v984 = vpop.trf.xlu0
      %v985 = vpop.trf.xlu0
      %v986 = vpop.trf.xlu0
      %v987 = vpop.trf.xlu0
      %v988 = vpop.trf.xlu0
      %v989 = vpop.trf.xlu0
      %v990 = vpop.trf.xlu0
      %v991 = vpop.trf.xlu0
      %v992 = vpop.trf.xlu0
      %v993 = vpop.trf.xlu0
      %v994 = vpop.trf.xlu0
      %v995 = vpop.trf.xlu0
      %996 = vxpose.xlu0.b32.start [1/16] %v647, 128
      %997 = vxpose.xlu0.b32.cont [2/16] 0.0, 128
      %998 = vxpose.xlu0.b32.cont [3/16] 0.0, 128
      %999 = vxpose.xlu0.b32.cont [4/16] 0.0, 128
      %1000 = vxpose.xlu0.b32.cont [5/16] 0.0, 128
      %1001 = vxpose.xlu0.b32.cont [6/16] 0.0, 128
      %1002 = vxpose.xlu0.b32.cont [7/16] 0.0, 128
      %1003 = vxpose.xlu0.b32.cont [8/16] 0.0, 128
      %1004 = vxpose.xlu0.b32.cont [9/16] 0.0, 128
      %1005 = vxpose.xlu0.b32.cont [10/16] 0.0, 128
      %1006 = vxpose.xlu0.b32.cont [11/16] 0.0, 128
      %1007 = vxpose.xlu0.b32.cont [12/16] 0.0, 128
      %1008 = vxpose.xlu0.b32.cont [13/16] 0.0, 128
      %1009 = vxpose.xlu0.b32.cont [14/16] 0.0, 128
      %1010 = vxpose.xlu0.b32.cont [15/16] 0.0, 128
      %1011 = vxpose.xlu0.b32.end [16/16] 0.0, 128
      %v1012 = vpop.trf.xlu0
      %v1013 = vpop.trf.xlu0
      %v1014 = vpop.trf.xlu0
      %v1015 = vpop.trf.xlu0
      %v1016 = vpop.trf.xlu0
      %v1017 = vpop.trf.xlu0
      %v1018 = vpop.trf.xlu0
      %v1019 = vpop.trf.xlu0
      %v1020 = vpop.trf.xlu0
      %v1021 = vpop.trf.xlu0
      %v1022 = vpop.trf.xlu0
      %v1023 = vpop.trf.xlu0
      %v1024 = vpop.trf.xlu0
      %v1025 = vpop.trf.xlu0
      %v1026 = vpop.trf.xlu0
      %v1027 = vpop.trf.xlu0
      %1028 = vxpose.xlu0.b32.start [1/16] %v648, 128
      %1029 = vxpose.xlu0.b32.cont [2/16] 0.0, 128
      %1030 = vxpose.xlu0.b32.cont [3/16] 0.0, 128
      %1031 = vxpose.xlu0.b32.cont [4/16] 0.0, 128
      %1032 = vxpose.xlu0.b32.cont [5/16] 0.0, 128
      %1033 = vxpose.xlu0.b32.cont [6/16] 0.0, 128
      %1034 = vxpose.xlu0.b32.cont [7/16] 0.0, 128
      %1035 = vxpose.xlu0.b32.cont [8/16] 0.0, 128
      %1036 = vxpose.xlu0.b32.cont [9/16] 0.0, 128
      %1037 = vxpose.xlu0.b32.cont [10/16] 0.0, 128
      %1038 = vxpose.xlu0.b32.cont [11/16] 0.0, 128
      %1039 = vxpose.xlu0.b32.cont [12/16] 0.0, 128
      %1040 = vxpose.xlu0.b32.cont [13/16] 0.0, 128
      %1041 = vxpose.xlu0.b32.cont [14/16] 0.0, 128
      %1042 = vxpose.xlu0.b32.cont [15/16] 0.0, 128
      %1043 = vxpose.xlu0.b32.end [16/16] 0.0, 128
      %v1044 = vpop.trf.xlu0
      %v1045 = vpop.trf.xlu0
      %v1046 = vpop.trf.xlu0
      %v1047 = vpop.trf.xlu0
      %v1048 = vpop.trf.xlu0
      %v1049 = vpop.trf.xlu0
      %v1050 = vpop.trf.xlu0
      %v1051 = vpop.trf.xlu0
      %v1052 = vpop.trf.xlu0
      %v1053 = vpop.trf.xlu0
      %v1054 = vpop.trf.xlu0
      %v1055 = vpop.trf.xlu0
      %v1056 = vpop.trf.xlu0
      %v1057 = vpop.trf.xlu0
      %v1058 = vpop.trf.xlu0
      %v1059 = vpop.trf.xlu0
      %1060 = vxpose.xlu0.b32.start [1/16] %v649, 128
      %1061 = vxpose.xlu0.b32.cont [2/16] 0.0, 128
      %1062 = vxpose.xlu0.b32.cont [3/16] 0.0, 128
      %1063 = vxpose.xlu0.b32.cont [4/16] 0.0, 128
      %1064 = vxpose.xlu0.b32.cont [5/16] 0.0, 128
      %1065 = vxpose.xlu0.b32.cont [6/16] 0.0, 128
      %1066 = vxpose.xlu0.b32.cont [7/16] 0.0, 128
      %1067 = vxpose.xlu0.b32.cont [8/16] 0.0, 128
      %1068 = vxpose.xlu0.b32.cont [9/16] 0.0, 128
      %1069 = vxpose.xlu0.b32.cont [10/16] 0.0, 128
      %1070 = vxpose.xlu0.b32.cont [11/16] 0.0, 128
      %1071 = vxpose.xlu0.b32.cont [12/16] 0.0, 128
      %1072 = vxpose.xlu0.b32.cont [13/16] 0.0, 128
      %1073 = vxpose.xlu0.b32.cont [14/16] 0.0, 128
      %1074 = vxpose.xlu0.b32.cont [15/16] 0.0, 128
      %1075 = vxpose.xlu0.b32.end [16/16] 0.0, 128
      %v1076 = vpop.trf.xlu0
      %v1077 = vpop.trf.xlu0
      %v1078 = vpop.trf.xlu0
      %v1079 = vpop.trf.xlu0
      %v1080 = vpop.trf.xlu0
      %v1081 = vpop.trf.xlu0
      %v1082 = vpop.trf.xlu0
      %v1083 = vpop.trf.xlu0
      %v1084 = vpop.trf.xlu0
      %v1085 = vpop.trf.xlu0
      %v1086 = vpop.trf.xlu0
      %v1087 = vpop.trf.xlu0
      %v1088 = vpop.trf.xlu0
      %v1089 = vpop.trf.xlu0
      %v1090 = vpop.trf.xlu0
      %v1091 = vpop.trf.xlu0
      %1092 = vxpose.xlu0.b32.start [1/16] %v778, 128
      %1093 = vxpose.xlu0.b32.cont [2/16] 0.0, 128
      %1094 = vxpose.xlu0.b32.cont [3/16] 0.0, 128
      %1095 = vxpose.xlu0.b32.cont [4/16] 0.0, 128
      %1096 = vxpose.xlu0.b32.cont [5/16] 0.0, 128
      %1097 = vxpose.xlu0.b32.cont [6/16] 0.0, 128
      %1098 = vxpose.xlu0.b32.cont [7/16] 0.0, 128
      %1099 = vxpose.xlu0.b32.cont [8/16] 0.0, 128
      %1100 = vxpose.xlu0.b32.cont [9/16] 0.0, 128
      %1101 = vxpose.xlu0.b32.cont [10/16] 0.0, 128
      %1102 = vxpose.xlu0.b32.cont [11/16] 0.0, 128
      %1103 = vxpose.xlu0.b32.cont [12/16] 0.0, 128
      %1104 = vxpose.xlu0.b32.cont [13/16] 0.0, 128
      %1105 = vxpose.xlu0.b32.cont [14/16] 0.0, 128
      %1106 = vxpose.xlu0.b32.cont [15/16] 0.0, 128
      %1107 = vxpose.xlu0.b32.end [16/16] 0.0, 128
      %v1108 = vpop.trf.xlu0
      %v1109 = vpop.trf.xlu0
      %v1110 = vpop.trf.xlu0
      %v1111 = vpop.trf.xlu0
      %v1112 = vpop.trf.xlu0
      %v1113 = vpop.trf.xlu0
      %v1114 = vpop.trf.xlu0
      %v1115 = vpop.trf.xlu0
      %v1116 = vpop.trf.xlu0
      %v1117 = vpop.trf.xlu0
      %v1118 = vpop.trf.xlu0
      %v1119 = vpop.trf.xlu0
      %v1120 = vpop.trf.xlu0
      %v1121 = vpop.trf.xlu0
      %v1122 = vpop.trf.xlu0
      %v1123 = vpop.trf.xlu0
      %1124 = vxpose.xlu0.b32.start [1/16] %v779, 128
      %1125 = vxpose.xlu0.b32.cont [2/16] 0.0, 128
      %1126 = vxpose.xlu0.b32.cont [3/16] 0.0, 128
      %1127 = vxpose.xlu0.b32.cont [4/16] 0.0, 128
      %1128 = vxpose.xlu0.b32.cont [5/16] 0.0, 128
      %1129 = vxpose.xlu0.b32.cont [6/16] 0.0, 128
      %1130 = vxpose.xlu0.b32.cont [7/16] 0.0, 128
      %1131 = vxpose.xlu0.b32.cont [8/16] 0.0, 128
      %1132 = vxpose.xlu0.b32.cont [9/16] 0.0, 128
      %1133 = vxpose.xlu0.b32.cont [10/16] 0.0, 128
      %1134 = vxpose.xlu0.b32.cont [11/16] 0.0, 128
      %1135 = vxpose.xlu0.b32.cont [12/16] 0.0, 128
      %1136 = vxpose.xlu0.b32.cont [13/16] 0.0, 128
      %1137 = vxpose.xlu0.b32.cont [14/16] 0.0, 128
      %1138 = vxpose.xlu0.b32.cont [15/16] 0.0, 128
      %1139 = vxpose.xlu0.b32.end [16/16] 0.0, 128
      %v1140 = vpop.trf.xlu0
      %v1141 = vpop.trf.xlu0
      %v1142 = vpop.trf.xlu0
      %v1143 = vpop.trf.xlu0
      %v1144 = vpop.trf.xlu0
      %v1145 = vpop.trf.xlu0
      %v1146 = vpop.trf.xlu0
      %v1147 = vpop.trf.xlu0
      %v1148 = vpop.trf.xlu0
      %v1149 = vpop.trf.xlu0
      %v1150 = vpop.trf.xlu0
      %v1151 = vpop.trf.xlu0
      %v1152 = vpop.trf.xlu0
      %v1153 = vpop.trf.xlu0
      %v1154 = vpop.trf.xlu0
      %v1155 = vpop.trf.xlu0
      %1156 = vxpose.xlu0.b32.start [1/16] %v780, 128
      %1157 = vxpose.xlu0.b32.cont [2/16] 0.0, 128
      %1158 = vxpose.xlu0.b32.cont [3/16] 0.0, 128
      %1159 = vxpose.xlu0.b32.cont [4/16] 0.0, 128
      %1160 = vxpose.xlu0.b32.cont [5/16] 0.0, 128
      %1161 = vxpose.xlu0.b32.cont [6/16] 0.0, 128
      %1162 = vxpose.xlu0.b32.cont [7/16] 0.0, 128
      %1163 = vxpose.xlu0.b32.cont [8/16] 0.0, 128
      %1164 = vxpose.xlu0.b32.cont [9/16] 0.0, 128
      %1165 = vxpose.xlu0.b32.cont [10/16] 0.0, 128
      %1166 = vxpose.xlu0.b32.cont [11/16] 0.0, 128
      %1167 = vxpose.xlu0.b32.cont [12/16] 0.0, 128
      %1168 = vxpose.xlu0.b32.cont [13/16] 0.0, 128
      %1169 = vxpose.xlu0.b32.cont [14/16] 0.0, 128
      %1170 = vxpose.xlu0.b32.cont [15/16] 0.0, 128
      %1171 = vxpose.xlu0.b32.end [16/16] 0.0, 128
      %v1172 = vpop.trf.xlu0
      %v1173 = vpop.trf.xlu0
      %v1174 = vpop.trf.xlu0
      %v1175 = vpop.trf.xlu0
      %v1176 = vpop.trf.xlu0
      %v1177 = vpop.trf.xlu0
      %v1178 = vpop.trf.xlu0
      %v1179 = vpop.trf.xlu0
      %v1180 = vpop.trf.xlu0
      %v1181 = vpop.trf.xlu0
      %v1182 = vpop.trf.xlu0
      %v1183 = vpop.trf.xlu0
      %v1184 = vpop.trf.xlu0
      %v1185 = vpop.trf.xlu0
      %v1186 = vpop.trf.xlu0
      %v1187 = vpop.trf.xlu0
      %1188 = vxpose.xlu0.b32.start [1/16] %v781, 128
      %1189 = vxpose.xlu0.b32.cont [2/16] 0.0, 128
      %1190 = vxpose.xlu0.b32.cont [3/16] 0.0, 128
      %1191 = vxpose.xlu0.b32.cont [4/16] 0.0, 128
      %1192 = vxpose.xlu0.b32.cont [5/16] 0.0, 128
      %1193 = vxpose.xlu0.b32.cont [6/16] 0.0, 128
      %1194 = vxpose.xlu0.b32.cont [7/16] 0.0, 128
      %1195 = vxpose.xlu0.b32.cont [8/16] 0.0, 128
      %1196 = vxpose.xlu0.b32.cont [9/16] 0.0, 128
      %1197 = vxpose.xlu0.b32.cont [10/16] 0.0, 128
      %1198 = vxpose.xlu0.b32.cont [11/16] 0.0, 128
      %1199 = vxpose.xlu0.b32.cont [12/16] 0.0, 128
      %1200 = vxpose.xlu0.b32.cont [13/16] 0.0, 128
      %1201 = vxpose.xlu0.b32.cont [14/16] 0.0, 128
      %1202 = vxpose.xlu0.b32.cont [15/16] 0.0, 128
      %1203 = vxpose.xlu0.b32.end [16/16] 0.0, 128
      %v1204 = vpop.trf.xlu0
      %v1205 = vpop.trf.xlu0
      %v1206 = vpop.trf.xlu0
      %v1207 = vpop.trf.xlu0
      %v1208 = vpop.trf.xlu0
      %v1209 = vpop.trf.xlu0
      %v1210 = vpop.trf.xlu0
      %v1211 = vpop.trf.xlu0
      %v1212 = vpop.trf.xlu0
      %v1213 = vpop.trf.xlu0
      %v1214 = vpop.trf.xlu0
      %v1215 = vpop.trf.xlu0
      %v1216 = vpop.trf.xlu0
      %v1217 = vpop.trf.xlu0
      %v1218 = vpop.trf.xlu0
      %v1219 = vpop.trf.xlu0
      %1220 = vxpose.xlu0.b32.start [1/16] %v782, 128
      %1221 = vxpose.xlu0.b32.cont [2/16] 0.0, 128
      %1222 = vxpose.xlu0.b32.cont [3/16] 0.0, 128
      %1223 = vxpose.xlu0.b32.cont [4/16] 0.0, 128
      %1224 = vxpose.xlu0.b32.cont [5/16] 0.0, 128
      %1225 = vxpose.xlu0.b32.cont [6/16] 0.0, 128
      %1226 = vxpose.xlu0.b32.cont [7/16] 0.0, 128
      %1227 = vxpose.xlu0.b32.cont [8/16] 0.0, 128
      %1228 = vxpose.xlu0.b32.cont [9/16] 0.0, 128
      %1229 = vxpose.xlu0.b32.cont [10/16] 0.0, 128
      %1230 = vxpose.xlu0.b32.cont [11/16] 0.0, 128
      %1231 = vxpose.xlu0.b32.cont [12/16] 0.0, 128
      %1232 = vxpose.xlu0.b32.cont [13/16] 0.0, 128
      %1233 = vxpose.xlu0.b32.cont [14/16] 0.0, 128
      %1234 = vxpose.xlu0.b32.cont [15/16] 0.0, 128
      %1235 = vxpose.xlu0.b32.end [16/16] 0.0, 128
      %v1236 = vpop.trf.xlu0
      %v1237 = vpop.trf.xlu0
      %v1238 = vpop.trf.xlu0
      %v1239 = vpop.trf.xlu0
      %v1240 = vpop.trf.xlu0
      %v1241 = vpop.trf.xlu0
      %v1242 = vpop.trf.xlu0
      %v1243 = vpop.trf.xlu0
      %v1244 = vpop.trf.xlu0
      %v1245 = vpop.trf.xlu0
      %v1246 = vpop.trf.xlu0
      %v1247 = vpop.trf.xlu0
      %v1248 = vpop.trf.xlu0
      %v1249 = vpop.trf.xlu0
      %v1250 = vpop.trf.xlu0
      %v1251 = vpop.trf.xlu0
      %1252 = vxpose.xlu0.b32.start [1/16] %v783, 128
      %1253 = vxpose.xlu0.b32.cont [2/16] 0.0, 128
      %1254 = vxpose.xlu0.b32.cont [3/16] 0.0, 128
      %1255 = vxpose.xlu0.b32.cont [4/16] 0.0, 128
      %1256 = vxpose.xlu0.b32.cont [5/16] 0.0, 128
      %1257 = vxpose.xlu0.b32.cont [6/16] 0.0, 128
      %1258 = vxpose.xlu0.b32.cont [7/16] 0.0, 128
      %1259 = vxpose.xlu0.b32.cont [8/16] 0.0, 128
      %1260 = vxpose.xlu0.b32.cont [9/16] 0.0, 128
      %1261 = vxpose.xlu0.b32.cont [10/16] 0.0, 128
      %1262 = vxpose.xlu0.b32.cont [11/16] 0.0, 128
      %1263 = vxpose.xlu0.b32.cont [12/16] 0.0, 128
      %1264 = vxpose.xlu0.b32.cont [13/16] 0.0, 128
      %1265 = vxpose.xlu0.b32.cont [14/16] 0.0, 128
      %1266 = vxpose.xlu0.b32.cont [15/16] 0.0, 128
      %1267 = vxpose.xlu0.b32.end [16/16] 0.0, 128
      %v1268 = vpop.trf.xlu0
      %v1269 = vpop.trf.xlu0
      %v1270 = vpop.trf.xlu0
      %v1271 = vpop.trf.xlu0
      %v1272 = vpop.trf.xlu0
      %v1273 = vpop.trf.xlu0
      %v1274 = vpop.trf.xlu0
      %v1275 = vpop.trf.xlu0
      %v1276 = vpop.trf.xlu0
      %v1277 = vpop.trf.xlu0
      %v1278 = vpop.trf.xlu0
      %v1279 = vpop.trf.xlu0
      %v1280 = vpop.trf.xlu0
      %v1281 = vpop.trf.xlu0
      %v1282 = vpop.trf.xlu0
      %v1283 = vpop.trf.xlu0
      %1284 = vxpose.xlu0.b32.start [1/16] %v784, 128
      %1285 = vxpose.xlu0.b32.cont [2/16] 0.0, 128
      %1286 = vxpose.xlu0.b32.cont [3/16] 0.0, 128
      %1287 = vxpose.xlu0.b32.cont [4/16] 0.0, 128
      %1288 = vxpose.xlu0.b32.cont [5/16] 0.0, 128
      %1289 = vxpose.xlu0.b32.cont [6/16] 0.0, 128
      %1290 = vxpose.xlu0.b32.cont [7/16] 0.0, 128
      %1291 = vxpose.xlu0.b32.cont [8/16] 0.0, 128
      %1292 = vxpose.xlu0.b32.cont [9/16] 0.0, 128
      %1293 = vxpose.xlu0.b32.cont [10/16] 0.0, 128
      %1294 = vxpose.xlu0.b32.cont [11/16] 0.0, 128
      %1295 = vxpose.xlu0.b32.cont [12/16] 0.0, 128
      %1296 = vxpose.xlu0.b32.cont [13/16] 0.0, 128
      %1297 = vxpose.xlu0.b32.cont [14/16] 0.0, 128
      %1298 = vxpose.xlu0.b32.cont [15/16] 0.0, 128
      %1299 = vxpose.xlu0.b32.end [16/16] 0.0, 128
      %v1300 = vpop.trf.xlu0
      %v1301 = vpop.trf.xlu0
      %v1302 = vpop.trf.xlu0
      %v1303 = vpop.trf.xlu0
      %v1304 = vpop.trf.xlu0
      %v1305 = vpop.trf.xlu0
      %v1306 = vpop.trf.xlu0
      %v1307 = vpop.trf.xlu0
      %v1308 = vpop.trf.xlu0
      %v1309 = vpop.trf.xlu0
      %v1310 = vpop.trf.xlu0
      %v1311 = vpop.trf.xlu0
      %v1312 = vpop.trf.xlu0
      %v1313 = vpop.trf.xlu0
      %v1314 = vpop.trf.xlu0
      %v1315 = vpop.trf.xlu0
      %1316 = vxpose.xlu0.b32.start [1/16] %v785, 128
      %1317 = vxpose.xlu0.b32.cont [2/16] 0.0, 128
      %1318 = vxpose.xlu0.b32.cont [3/16] 0.0, 128
      %1319 = vxpose.xlu0.b32.cont [4/16] 0.0, 128
      %1320 = vxpose.xlu0.b32.cont [5/16] 0.0, 128
      %1321 = vxpose.xlu0.b32.cont [6/16] 0.0, 128
      %1322 = vxpose.xlu0.b32.cont [7/16] 0.0, 128
      %1323 = vxpose.xlu0.b32.cont [8/16] 0.0, 128
      %1324 = vxpose.xlu0.b32.cont [9/16] 0.0, 128
      %1325 = vxpose.xlu0.b32.cont [10/16] 0.0, 128
      %1326 = vxpose.xlu0.b32.cont [11/16] 0.0, 128
      %1327 = vxpose.xlu0.b32.cont [12/16] 0.0, 128
      %1328 = vxpose.xlu0.b32.cont [13/16] 0.0, 128
      %1329 = vxpose.xlu0.b32.cont [14/16] 0.0, 128
      %1330 = vxpose.xlu0.b32.cont [15/16] 0.0, 128
      %1331 = vxpose.xlu0.b32.end [16/16] 0.0, 128
      %v1332 = vpop.trf.xlu0
      %v1333 = vpop.trf.xlu0
      %v1334 = vpop.trf.xlu0
      %v1335 = vpop.trf.xlu0
      %v1336 = vpop.trf.xlu0
      %v1337 = vpop.trf.xlu0
      %v1338 = vpop.trf.xlu0
      %v1339 = vpop.trf.xlu0
      %v1340 = vpop.trf.xlu0
      %v1341 = vpop.trf.xlu0
      %v1342 = vpop.trf.xlu0
      %v1343 = vpop.trf.xlu0
      %v1344 = vpop.trf.xlu0
      %v1345 = vpop.trf.xlu0
      %v1346 = vpop.trf.xlu0
      %v1347 = vpop.trf.xlu0
      %1348 = vxpose.xlu0.b32.start [1/16] %v834, 128
      %1349 = vxpose.xlu0.b32.cont [2/16] 0.0, 128
      %1350 = vxpose.xlu0.b32.cont [3/16] 0.0, 128
      %1351 = vxpose.xlu0.b32.cont [4/16] 0.0, 128
      %1352 = vxpose.xlu0.b32.cont [5/16] 0.0, 128
      %1353 = vxpose.xlu0.b32.cont [6/16] 0.0, 128
      %1354 = vxpose.xlu0.b32.cont [7/16] 0.0, 128
      %1355 = vxpose.xlu0.b32.cont [8/16] 0.0, 128
      %1356 = vxpose.xlu0.b32.cont [9/16] 0.0, 128
      %1357 = vxpose.xlu0.b32.cont [10/16] 0.0, 128
      %1358 = vxpose.xlu0.b32.cont [11/16] 0.0, 128
      %1359 = vxpose.xlu0.b32.cont [12/16] 0.0, 128
      %1360 = vxpose.xlu0.b32.cont [13/16] 0.0, 128
      %1361 = vxpose.xlu0.b32.cont [14/16] 0.0, 128
      %1362 = vxpose.xlu0.b32.cont [15/16] 0.0, 128
      %1363 = vxpose.xlu0.b32.end [16/16] 0.0, 128
      %v1364 = vpop.trf.xlu0
      %v1365 = vpop.trf.xlu0
      %v1366 = vpop.trf.xlu0
      %v1367 = vpop.trf.xlu0
      %v1368 = vpop.trf.xlu0
      %v1369 = vpop.trf.xlu0
      %v1370 = vpop.trf.xlu0
      %v1371 = vpop.trf.xlu0
      %v1372 = vpop.trf.xlu0
      %v1373 = vpop.trf.xlu0
      %v1374 = vpop.trf.xlu0
      %v1375 = vpop.trf.xlu0
      %v1376 = vpop.trf.xlu0
      %v1377 = vpop.trf.xlu0
      %v1378 = vpop.trf.xlu0
      %v1379 = vpop.trf.xlu0
      %1380 = vxpose.xlu0.b32.start [1/16] %v835, 128
      %1381 = vxpose.xlu0.b32.cont [2/16] 0.0, 128
      %1382 = vxpose.xlu0.b32.cont [3/16] 0.0, 128
      %1383 = vxpose.xlu0.b32.cont [4/16] 0.0, 128
      %1384 = vxpose.xlu0.b32.cont [5/16] 0.0, 128
      %1385 = vxpose.xlu0.b32.cont [6/16] 0.0, 128
      %1386 = vxpose.xlu0.b32.cont [7/16] 0.0, 128
      %1387 = vxpose.xlu0.b32.cont [8/16] 0.0, 128
      %1388 = vxpose.xlu0.b32.cont [9/16] 0.0, 128
      %1389 = vxpose.xlu0.b32.cont [10/16] 0.0, 128
      %1390 = vxpose.xlu0.b32.cont [11/16] 0.0, 128
      %1391 = vxpose.xlu0.b32.cont [12/16] 0.0, 128
      %1392 = vxpose.xlu0.b32.cont [13/16] 0.0, 128
      %1393 = vxpose.xlu0.b32.cont [14/16] 0.0, 128
      %1394 = vxpose.xlu0.b32.cont [15/16] 0.0, 128
      %1395 = vxpose.xlu0.b32.end [16/16] 0.0, 128
      %v1396 = vpop.trf.xlu0
      %v1397 = vpop.trf.xlu0
      %v1398 = vpop.trf.xlu0
      %v1399 = vpop.trf.xlu0
      %v1400 = vpop.trf.xlu0
      %v1401 = vpop.trf.xlu0
      %v1402 = vpop.trf.xlu0
      %v1403 = vpop.trf.xlu0
      %v1404 = vpop.trf.xlu0
      %v1405 = vpop.trf.xlu0
      %v1406 = vpop.trf.xlu0
      %v1407 = vpop.trf.xlu0
      %v1408 = vpop.trf.xlu0
      %v1409 = vpop.trf.xlu0
      %v1410 = vpop.trf.xlu0
      %v1411 = vpop.trf.xlu0
      %v1412 = vld [vmem:[%s3] sm:$0xff]
      %v1431 = vcombine.low %v852, %v884
      %v1432 = vcombine.low %v916, %v948
      %v1433 = vcombine.low %v980, %v1012
      %v1434 = vcombine.low %v1044, %v1076
      %v1435 = vcombine.low %v1108, %v1140
      %v1436 = vcombine.low %v1172, %v1204
      %v1437 = vcombine.low %v1236, %v1268
      %v1438 = vcombine.low %v1300, %v1332
      %v1439 = vcombine.low %v1364, %v1396
      %v1440 = vsel %vm358, %v1431, 0
      %v1442 = vsel %vm358, %v1432, 0
      %v1444 = vsel %vm358, %v1433, 0
      %v1446 = vsel %vm358, %v1434, 0
      %v1448 = vsel %vm358, %v1435, 0
      %v1450 = vsel %vm358, %v1436, 0
      %v1452 = vsel %vm358, %v1437, 0
      %v1454 = vsel %vm358, %v1438, 0
      %v1456 = vsel %vm358, %v1439, 0
      %1458 = vmatprep.subr.mxu0 0.0
      %1459 = vmatpush1.msra.mxu0 0.0
      %1460 = vmatprep.subr.mxu0 0.0
      %1461 = vmatpush1.msra.mxu0 0.0
      %1462 = vmatprep.subr.mxu0 0.0
      %1463 = vmatpush1.msra.mxu0 0.0
      %1464 = vmatprep.subr.mxu0 0.0
      %1465 = vmatpush1.msra.mxu0 0.0
      %1466 = vmatprep.subr.mxu0 0.0
      %1467 = vmatpush1.msra.mxu0 0.0
      %1468 = vmatprep.subr.mxu0 0.0
      %1469 = vmatpush1.msra.mxu0 0.0
      %1470 = vmatprep.subr.mxu0 0.0
      %1471 = vmatpush1.msra.mxu0 0.0
      %1472 = vmatprep.subr.mxu0 0.0
      %1473 = vmatpush1.msra.mxu0 0.0
      %1474 = vmatprep.subr.mxu0 0.0
      %1475 = vmatpush1.msra.mxu0 0.0
      %1476 = vmatprep.subr.mxu0 0.0
      %1477 = vmatpush1.msra.mxu0 0.0
      %1478 = vmatprep.subr.mxu0 0.0
      %1479 = vmatpush1.msra.mxu0 0.0
      %1480 = vmatprep.subr.mxu0 0.0
      %1481 = vmatpush1.msra.mxu0 0.0
      %1482 = vmatprep.subr.mxu0 0.0
      %1483 = vmatpush1.msra.mxu0 0.0
      %1484 = vmatprep.subr.mxu0 0.0
      %1485 = vmatpush1.msra.mxu0 0.0
      %1486 = vmatprep.subr.mxu0 0.0
      %1487 = vmatpush1.msra.mxu0 0.0
      %1488 = vmatprep.subr.mxu0 0.0
      %1489 = vmatpush1.msra.mxu0 %v1412
      %1490 = vmatprep.subr.mxu0 0.0
      %1491 = vmatpush2.msra.mxu0 0.0
      %1492 = vmatprep.subr.mxu0 0.0
      %1493 = vmatpush2.msra.mxu0 0.0
      %1494 = vmatprep.subr.mxu0 0.0
      %1495 = vmatpush2.msra.mxu0 0.0
      %1496 = vmatprep.subr.mxu0 0.0
      %1497 = vmatpush2.msra.mxu0 0.0
      %1498 = vmatprep.subr.mxu0 0.0
      %1499 = vmatpush2.msra.mxu0 0.0
      %1500 = vmatprep.subr.mxu0 0.0
      %1501 = vmatpush2.msra.mxu0 0.0
      %1502 = vmatprep.subr.mxu0 0.0
      %1503 = vmatpush2.msra.mxu0 0.0
      %1504 = vmatprep.subr.mxu0 0.0
      %1505 = vmatpush2.msra.mxu0 0.0
      %1506 = vmatprep.subr.mxu0 0.0
      %1507 = vmatpush2.msra.mxu0 0.0
      %1508 = vmatprep.subr.mxu0 0.0
      %1509 = vmatpush2.msra.mxu0 0.0
      %1510 = vmatprep.subr.mxu0 0.0
      %1511 = vmatpush2.msra.mxu0 0.0
      %1512 = vmatprep.subr.mxu0 0.0
      %1513 = vmatpush2.msra.mxu0 0.0
      %1514 = vmatprep.subr.mxu0 0.0
      %1515 = vmatpush2.msra.mxu0 0.0
      %1516 = vmatprep.subr.mxu0 0.0
      %1517 = vmatpush2.msra.mxu0 0.0
      %1518 = vmatprep.subr.mxu0 0.0
      %1519 = vmatpush2.msra.mxu0 0.0
      %1520 = vmatprep.subr.mxu0 0.0
      %1521 = vmatpush2.msra.mxu0 0.0
      %1522 = vmatprep.mubr.f32.mxu0 0.0
      %1523 = vmatmul.mubr.f32.gmra.mxu0 %v1440
      %v1524 = vpop.f32.mrf.mxu0
      %v1525 = vadd.f32 0.0, %v1524
      %v1526 = vpop.f32.mrf.mxu0
      %1527 = vmatprep.mubr.f32.mxu0 0.0
      %1528 = vmatmul.mubr.f32.gmra.mxu0 %v1442
      %v1529 = vpop.f32.mrf.mxu0
      %v1530 = vadd.f32 0.0, %v1529
      %v1531 = vpop.f32.mrf.mxu0
      %1532 = vmatprep.mubr.f32.mxu0 0.0
      %1533 = vmatmul.mubr.f32.gmra.mxu0 %v1444
      %v1534 = vpop.f32.mrf.mxu0
      %v1535 = vadd.f32 0.0, %v1534
      %v1536 = vpop.f32.mrf.mxu0
      %1537 = vmatprep.mubr.f32.mxu0 0.0
      %1538 = vmatmul.mubr.f32.gmra.mxu0 %v1446
      %v1539 = vpop.f32.mrf.mxu0
      %v1540 = vadd.f32 0.0, %v1539
      %v1541 = vpop.f32.mrf.mxu0
      %1542 = vmatprep.mubr.f32.mxu0 0.0
      %1543 = vmatmul.mubr.f32.gmra.mxu0 %v1448
      %v1544 = vpop.f32.mrf.mxu0
      %v1545 = vadd.f32 0.0, %v1544
      %v1546 = vpop.f32.mrf.mxu0
      %1547 = vmatprep.mubr.f32.mxu0 0.0
      %1548 = vmatmul.mubr.f32.gmra.mxu0 %v1450
      %v1549 = vpop.f32.mrf.mxu0
      %v1550 = vadd.f32 0.0, %v1549
      %v1551 = vpop.f32.mrf.mxu0
      %1552 = vmatprep.mubr.f32.mxu0 0.0
      %1553 = vmatmul.mubr.f32.gmra.mxu0 %v1452
      %v1554 = vpop.f32.mrf.mxu0
      %v1555 = vadd.f32 0.0, %v1554
      %v1556 = vpop.f32.mrf.mxu0
      %1557 = vmatprep.mubr.f32.mxu0 0.0
      %1558 = vmatmul.mubr.f32.gmra.mxu0 %v1454
      %v1559 = vpop.f32.mrf.mxu0
      %v1560 = vadd.f32 0.0, %v1559
      %v1561 = vpop.f32.mrf.mxu0
      %1562 = vmatprep.mubr.f32.mxu0 0.0
      %1563 = vmatmul.mubr.f32.gmra.mxu0 %v1456
      %v1564 = vpop.f32.mrf.mxu0
      %v1565 = vadd.f32 0.0, %v1564
      %v1566 = vpop.f32.mrf.mxu0
      %1567 = vdwg.mxu0
      %v1577 = vcombine.high %v1525, %v1525
      %v1578 = vcombine.high %v1530, %v1530
      %v1579 = vcombine.high %v1535, %v1535
      %v1580 = vcombine.high %v1540, %v1540
      %v1581 = vcombine.high %v1545, %v1545
      %v1582 = vcombine.high %v1550, %v1550
      %v1583 = vcombine.high %v1555, %v1555
      %v1584 = vcombine.high %v1560, %v1560
      %v1585 = vcombine.high %v1565, %v1565
      %1595 = vxpose.xlu0.b32.start [1/16] %v1525, 128
      %1596 = vxpose.xlu0.b32.cont [2/16] 0.0, 128
      %1597 = vxpose.xlu0.b32.cont [3/16] 0.0, 128
      %1598 = vxpose.xlu0.b32.cont [4/16] 0.0, 128
      %1599 = vxpose.xlu0.b32.cont [5/16] 0.0, 128
      %1600 = vxpose.xlu0.b32.cont [6/16] 0.0, 128
      %1601 = vxpose.xlu0.b32.cont [7/16] 0.0, 128
      %1602 = vxpose.xlu0.b32.cont [8/16] 0.0, 128
      %1603 = vxpose.xlu0.b32.cont [9/16] 0.0, 128
      %1604 = vxpose.xlu0.b32.cont [10/16] 0.0, 128
      %1605 = vxpose.xlu0.b32.cont [11/16] 0.0, 128
      %1606 = vxpose.xlu0.b32.cont [12/16] 0.0, 128
      %1607 = vxpose.xlu0.b32.cont [13/16] 0.0, 128
      %1608 = vxpose.xlu0.b32.cont [14/16] 0.0, 128
      %1609 = vxpose.xlu0.b32.cont [15/16] 0.0, 128
      %1610 = vxpose.xlu0.b32.end [16/16] 0.0, 128
      %v1611 = vpop.trf.xlu0
      %v1612 = vpop.trf.xlu0
      %v1613 = vpop.trf.xlu0
      %v1614 = vpop.trf.xlu0
      %v1615 = vpop.trf.xlu0
      %v1616 = vpop.trf.xlu0
      %v1617 = vpop.trf.xlu0
      %v1618 = vpop.trf.xlu0
      %v1619 = vpop.trf.xlu0
      %v1620 = vpop.trf.xlu0
      %v1621 = vpop.trf.xlu0
      %v1622 = vpop.trf.xlu0
      %v1623 = vpop.trf.xlu0
      %v1624 = vpop.trf.xlu0
      %v1625 = vpop.trf.xlu0
      %v1626 = vpop.trf.xlu0
      %1627 = vxpose.xlu0.b32.start [1/16] %v1577, 128
      %1628 = vxpose.xlu0.b32.cont [2/16] 0.0, 128
      %1629 = vxpose.xlu0.b32.cont [3/16] 0.0, 128
      %1630 = vxpose.xlu0.b32.cont [4/16] 0.0, 128
      %1631 = vxpose.xlu0.b32.cont [5/16] 0.0, 128
      %1632 = vxpose.xlu0.b32.cont [6/16] 0.0, 128
      %1633 = vxpose.xlu0.b32.cont [7/16] 0.0, 128
      %1634 = vxpose.xlu0.b32.cont [8/16] 0.0, 128
      %1635 = vxpose.xlu0.b32.cont [9/16] 0.0, 128
      %1636 = vxpose.xlu0.b32.cont [10/16] 0.0, 128
      %1637 = vxpose.xlu0.b32.cont [11/16] 0.0, 128
      %1638 = vxpose.xlu0.b32.cont [12/16] 0.0, 128
      %1639 = vxpose.xlu0.b32.cont [13/16] 0.0, 128
      %1640 = vxpose.xlu0.b32.cont [14/16] 0.0, 128
      %1641 = vxpose.xlu0.b32.cont [15/16] 0.0, 128
      %1642 = vxpose.xlu0.b32.end [16/16] 0.0, 128
      %v1643 = vpop.trf.xlu0
      %v1644 = vpop.trf.xlu0
      %v1645 = vpop.trf.xlu0
      %v1646 = vpop.trf.xlu0
      %v1647 = vpop.trf.xlu0
      %v1648 = vpop.trf.xlu0
      %v1649 = vpop.trf.xlu0
      %v1650 = vpop.trf.xlu0
      %v1651 = vpop.trf.xlu0
      %v1652 = vpop.trf.xlu0
      %v1653 = vpop.trf.xlu0
      %v1654 = vpop.trf.xlu0
      %v1655 = vpop.trf.xlu0
      %v1656 = vpop.trf.xlu0
      %v1657 = vpop.trf.xlu0
      %v1658 = vpop.trf.xlu0
      %1659 = vxpose.xlu0.b32.start [1/16] %v1530, 128
      %1660 = vxpose.xlu0.b32.cont [2/16] 0.0, 128
      %1661 = vxpose.xlu0.b32.cont [3/16] 0.0, 128
      %1662 = vxpose.xlu0.b32.cont [4/16] 0.0, 128
      %1663 = vxpose.xlu0.b32.cont [5/16] 0.0, 128
      %1664 = vxpose.xlu0.b32.cont [6/16] 0.0, 128
      %1665 = vxpose.xlu0.b32.cont [7/16] 0.0, 128
      %1666 = vxpose.xlu0.b32.cont [8/16] 0.0, 128
      %1667 = vxpose.xlu0.b32.cont [9/16] 0.0, 128
      %1668 = vxpose.xlu0.b32.cont [10/16] 0.0, 128
      %1669 = vxpose.xlu0.b32.cont [11/16] 0.0, 128
      %1670 = vxpose.xlu0.b32.cont [12/16] 0.0, 128
      %1671 = vxpose.xlu0.b32.cont [13/16] 0.0, 128
      %1672 = vxpose.xlu0.b32.cont [14/16] 0.0, 128
      %1673 = vxpose.xlu0.b32.cont [15/16] 0.0, 128
      %1674 = vxpose.xlu0.b32.end [16/16] 0.0, 128
      %v1675 = vpop.trf.xlu0
      %v1676 = vpop.trf.xlu0
      %v1677 = vpop.trf.xlu0
      %v1678 = vpop.trf.xlu0
      %v1679 = vpop.trf.xlu0
      %v1680 = vpop.trf.xlu0
      %v1681 = vpop.trf.xlu0
      %v1682 = vpop.trf.xlu0
      %v1683 = vpop.trf.xlu0
      %v1684 = vpop.trf.xlu0
      %v1685 = vpop.trf.xlu0
      %v1686 = vpop.trf.xlu0
      %v1687 = vpop.trf.xlu0
      %v1688 = vpop.trf.xlu0
      %v1689 = vpop.trf.xlu0
      %v1690 = vpop.trf.xlu0
      %1691 = vxpose.xlu0.b32.start [1/16] %v1578, 128
      %1692 = vxpose.xlu0.b32.cont [2/16] 0.0, 128
      %1693 = vxpose.xlu0.b32.cont [3/16] 0.0, 128
      %1694 = vxpose.xlu0.b32.cont [4/16] 0.0, 128
      %1695 = vxpose.xlu0.b32.cont [5/16] 0.0, 128
      %1696 = vxpose.xlu0.b32.cont [6/16] 0.0, 128
      %1697 = vxpose.xlu0.b32.cont [7/16] 0.0, 128
      %1698 = vxpose.xlu0.b32.cont [8/16] 0.0, 128
      %1699 = vxpose.xlu0.b32.cont [9/16] 0.0, 128
      %1700 = vxpose.xlu0.b32.cont [10/16] 0.0, 128
      %1701 = vxpose.xlu0.b32.cont [11/16] 0.0, 128
      %1702 = vxpose.xlu0.b32.cont [12/16] 0.0, 128
      %1703 = vxpose.xlu0.b32.cont [13/16] 0.0, 128
      %1704 = vxpose.xlu0.b32.cont [14/16] 0.0, 128
      %1705 = vxpose.xlu0.b32.cont [15/16] 0.0, 128
      %1706 = vxpose.xlu0.b32.end [16/16] 0.0, 128
      %v1707 = vpop.trf.xlu0
      %v1708 = vpop.trf.xlu0
      %v1709 = vpop.trf.xlu0
      %v1710 = vpop.trf.xlu0
      %v1711 = vpop.trf.xlu0
      %v1712 = vpop.trf.xlu0
      %v1713 = vpop.trf.xlu0
      %v1714 = vpop.trf.xlu0
      %v1715 = vpop.trf.xlu0
      %v1716 = vpop.trf.xlu0
      %v1717 = vpop.trf.xlu0
      %v1718 = vpop.trf.xlu0
      %v1719 = vpop.trf.xlu0
      %v1720 = vpop.trf.xlu0
      %v1721 = vpop.trf.xlu0
      %v1722 = vpop.trf.xlu0
      %1723 = vxpose.xlu0.b32.start [1/16] %v1535, 128
      %1724 = vxpose.xlu0.b32.cont [2/16] 0.0, 128
      %1725 = vxpose.xlu0.b32.cont [3/16] 0.0, 128
      %1726 = vxpose.xlu0.b32.cont [4/16] 0.0, 128
      %1727 = vxpose.xlu0.b32.cont [5/16] 0.0, 128
      %1728 = vxpose.xlu0.b32.cont [6/16] 0.0, 128
      %1729 = vxpose.xlu0.b32.cont [7/16] 0.0, 128
      %1730 = vxpose.xlu0.b32.cont [8/16] 0.0, 128
      %1731 = vxpose.xlu0.b32.cont [9/16] 0.0, 128
      %1732 = vxpose.xlu0.b32.cont [10/16] 0.0, 128
      %1733 = vxpose.xlu0.b32.cont [11/16] 0.0, 128
      %1734 = vxpose.xlu0.b32.cont [12/16] 0.0, 128
      %1735 = vxpose.xlu0.b32.cont [13/16] 0.0, 128
      %1736 = vxpose.xlu0.b32.cont [14/16] 0.0, 128
      %1737 = vxpose.xlu0.b32.cont [15/16] 0.0, 128
      %1738 = vxpose.xlu0.b32.end [16/16] 0.0, 128
      %v1739 = vpop.trf.xlu0
      %v1740 = vpop.trf.xlu0
      %v1741 = vpop.trf.xlu0
      %v1742 = vpop.trf.xlu0
      %v1743 = vpop.trf.xlu0
      %v1744 = vpop.trf.xlu0
      %v1745 = vpop.trf.xlu0
      %v1746 = vpop.trf.xlu0
      %v1747 = vpop.trf.xlu0
      %v1748 = vpop.trf.xlu0
      %v1749 = vpop.trf.xlu0
      %v1750 = vpop.trf.xlu0
      %v1751 = vpop.trf.xlu0
      %v1752 = vpop.trf.xlu0
      %v1753 = vpop.trf.xlu0
      %v1754 = vpop.trf.xlu0
      %1755 = vxpose.xlu0.b32.start [1/16] %v1579, 128
      %1756 = vxpose.xlu0.b32.cont [2/16] 0.0, 128
      %1757 = vxpose.xlu0.b32.cont [3/16] 0.0, 128
      %1758 = vxpose.xlu0.b32.cont [4/16] 0.0, 128
      %1759 = vxpose.xlu0.b32.cont [5/16] 0.0, 128
      %1760 = vxpose.xlu0.b32.cont [6/16] 0.0, 128
      %1761 = vxpose.xlu0.b32.cont [7/16] 0.0, 128
      %1762 = vxpose.xlu0.b32.cont [8/16] 0.0, 128
      %1763 = vxpose.xlu0.b32.cont [9/16] 0.0, 128
      %1764 = vxpose.xlu0.b32.cont [10/16] 0.0, 128
      %1765 = vxpose.xlu0.b32.cont [11/16] 0.0, 128
      %1766 = vxpose.xlu0.b32.cont [12/16] 0.0, 128
      %1767 = vxpose.xlu0.b32.cont [13/16] 0.0, 128
      %1768 = vxpose.xlu0.b32.cont [14/16] 0.0, 128
      %1769 = vxpose.xlu0.b32.cont [15/16] 0.0, 128
      %1770 = vxpose.xlu0.b32.end [16/16] 0.0, 128
      %v1771 = vpop.trf.xlu0
      %v1772 = vpop.trf.xlu0
      %v1773 = vpop.trf.xlu0
      %v1774 = vpop.trf.xlu0
      %v1775 = vpop.trf.xlu0
      %v1776 = vpop.trf.xlu0
      %v1777 = vpop.trf.xlu0
      %v1778 = vpop.trf.xlu0
      %v1779 = vpop.trf.xlu0
      %v1780 = vpop.trf.xlu0
      %v1781 = vpop.trf.xlu0
      %v1782 = vpop.trf.xlu0
      %v1783 = vpop.trf.xlu0
      %v1784 = vpop.trf.xlu0
      %v1785 = vpop.trf.xlu0
      %v1786 = vpop.trf.xlu0
      %1787 = vxpose.xlu0.b32.start [1/16] %v1540, 128
      %1788 = vxpose.xlu0.b32.cont [2/16] 0.0, 128
      %1789 = vxpose.xlu0.b32.cont [3/16] 0.0, 128
      %1790 = vxpose.xlu0.b32.cont [4/16] 0.0, 128
      %1791 = vxpose.xlu0.b32.cont [5/16] 0.0, 128
      %1792 = vxpose.xlu0.b32.cont [6/16] 0.0, 128
      %1793 = vxpose.xlu0.b32.cont [7/16] 0.0, 128
      %1794 = vxpose.xlu0.b32.cont [8/16] 0.0, 128
      %1795 = vxpose.xlu0.b32.cont [9/16] 0.0, 128
      %1796 = vxpose.xlu0.b32.cont [10/16] 0.0, 128
      %1797 = vxpose.xlu0.b32.cont [11/16] 0.0, 128
      %1798 = vxpose.xlu0.b32.cont [12/16] 0.0, 128
      %1799 = vxpose.xlu0.b32.cont [13/16] 0.0, 128
      %1800 = vxpose.xlu0.b32.cont [14/16] 0.0, 128
      %1801 = vxpose.xlu0.b32.cont [15/16] 0.0, 128
      %1802 = vxpose.xlu0.b32.end [16/16] 0.0, 128
      %v1803 = vpop.trf.xlu0
      %v1804 = vpop.trf.xlu0
      %v1805 = vpop.trf.xlu0
      %v1806 = vpop.trf.xlu0
      %v1807 = vpop.trf.xlu0
      %v1808 = vpop.trf.xlu0
      %v1809 = vpop.trf.xlu0
      %v1810 = vpop.trf.xlu0
      %v1811 = vpop.trf.xlu0
      %v1812 = vpop.trf.xlu0
      %v1813 = vpop.trf.xlu0
      %v1814 = vpop.trf.xlu0
      %v1815 = vpop.trf.xlu0
      %v1816 = vpop.trf.xlu0
      %v1817 = vpop.trf.xlu0
      %v1818 = vpop.trf.xlu0
      %1819 = vxpose.xlu0.b32.start [1/16] %v1580, 128
      %1820 = vxpose.xlu0.b32.cont [2/16] 0.0, 128
      %1821 = vxpose.xlu0.b32.cont [3/16] 0.0, 128
      %1822 = vxpose.xlu0.b32.cont [4/16] 0.0, 128
      %1823 = vxpose.xlu0.b32.cont [5/16] 0.0, 128
      %1824 = vxpose.xlu0.b32.cont [6/16] 0.0, 128
      %1825 = vxpose.xlu0.b32.cont [7/16] 0.0, 128
      %1826 = vxpose.xlu0.b32.cont [8/16] 0.0, 128
      %1827 = vxpose.xlu0.b32.cont [9/16] 0.0, 128
      %1828 = vxpose.xlu0.b32.cont [10/16] 0.0, 128
      %1829 = vxpose.xlu0.b32.cont [11/16] 0.0, 128
      %1830 = vxpose.xlu0.b32.cont [12/16] 0.0, 128
      %1831 = vxpose.xlu0.b32.cont [13/16] 0.0, 128
      %1832 = vxpose.xlu0.b32.cont [14/16] 0.0, 128
      %1833 = vxpose.xlu0.b32.cont [15/16] 0.0, 128
      %1834 = vxpose.xlu0.b32.end [16/16] 0.0, 128
      %v1835 = vpop.trf.xlu0
      %v1836 = vpop.trf.xlu0
      %v1837 = vpop.trf.xlu0
      %v1838 = vpop.trf.xlu0
      %v1839 = vpop.trf.xlu0
      %v1840 = vpop.trf.xlu0
      %v1841 = vpop.trf.xlu0
      %v1842 = vpop.trf.xlu0
      %v1843 = vpop.trf.xlu0
      %v1844 = vpop.trf.xlu0
      %v1845 = vpop.trf.xlu0
      %v1846 = vpop.trf.xlu0
      %v1847 = vpop.trf.xlu0
      %v1848 = vpop.trf.xlu0
      %v1849 = vpop.trf.xlu0
      %v1850 = vpop.trf.xlu0
      %1851 = vxpose.xlu0.b32.start [1/16] %v1545, 128
      %1852 = vxpose.xlu0.b32.cont [2/16] 0.0, 128
      %1853 = vxpose.xlu0.b32.cont [3/16] 0.0, 128
      %1854 = vxpose.xlu0.b32.cont [4/16] 0.0, 128
      %1855 = vxpose.xlu0.b32.cont [5/16] 0.0, 128
      %1856 = vxpose.xlu0.b32.cont [6/16] 0.0, 128
      %1857 = vxpose.xlu0.b32.cont [7/16] 0.0, 128
      %1858 = vxpose.xlu0.b32.cont [8/16] 0.0, 128
      %1859 = vxpose.xlu0.b32.cont [9/16] 0.0, 128
      %1860 = vxpose.xlu0.b32.cont [10/16] 0.0, 128
      %1861 = vxpose.xlu0.b32.cont [11/16] 0.0, 128
      %1862 = vxpose.xlu0.b32.cont [12/16] 0.0, 128
      %1863 = vxpose.xlu0.b32.cont [13/16] 0.0, 128
      %1864 = vxpose.xlu0.b32.cont [14/16] 0.0, 128
      %1865 = vxpose.xlu0.b32.cont [15/16] 0.0, 128
      %1866 = vxpose.xlu0.b32.end [16/16] 0.0, 128
      %v1867 = vpop.trf.xlu0
      %v1868 = vpop.trf.xlu0
      %v1869 = vpop.trf.xlu0
      %v1870 = vpop.trf.xlu0
      %v1871 = vpop.trf.xlu0
      %v1872 = vpop.trf.xlu0
      %v1873 = vpop.trf.xlu0
      %v1874 = vpop.trf.xlu0
      %v1875 = vpop.trf.xlu0
      %v1876 = vpop.trf.xlu0
      %v1877 = vpop.trf.xlu0
      %v1878 = vpop.trf.xlu0
      %v1879 = vpop.trf.xlu0
      %v1880 = vpop.trf.xlu0
      %v1881 = vpop.trf.xlu0
      %v1882 = vpop.trf.xlu0
      %1883 = vxpose.xlu0.b32.start [1/16] %v1581, 128
      %1884 = vxpose.xlu0.b32.cont [2/16] 0.0, 128
      %1885 = vxpose.xlu0.b32.cont [3/16] 0.0, 128
      %1886 = vxpose.xlu0.b32.cont [4/16] 0.0, 128
      %1887 = vxpose.xlu0.b32.cont [5/16] 0.0, 128
      %1888 = vxpose.xlu0.b32.cont [6/16] 0.0, 128
      %1889 = vxpose.xlu0.b32.cont [7/16] 0.0, 128
      %1890 = vxpose.xlu0.b32.cont [8/16] 0.0, 128
      %1891 = vxpose.xlu0.b32.cont [9/16] 0.0, 128
      %1892 = vxpose.xlu0.b32.cont [10/16] 0.0, 128
      %1893 = vxpose.xlu0.b32.cont [11/16] 0.0, 128
      %1894 = vxpose.xlu0.b32.cont [12/16] 0.0, 128
      %1895 = vxpose.xlu0.b32.cont [13/16] 0.0, 128
      %1896 = vxpose.xlu0.b32.cont [14/16] 0.0, 128
      %1897 = vxpose.xlu0.b32.cont [15/16] 0.0, 128
      %1898 = vxpose.xlu0.b32.end [16/16] 0.0, 128
      %v1899 = vpop.trf.xlu0
      %v1900 = vpop.trf.xlu0
      %v1901 = vpop.trf.xlu0
      %v1902 = vpop.trf.xlu0
      %v1903 = vpop.trf.xlu0
      %v1904 = vpop.trf.xlu0
      %v1905 = vpop.trf.xlu0
      %v1906 = vpop.trf.xlu0
      %v1907 = vpop.trf.xlu0
      %v1908 = vpop.trf.xlu0
      %v1909 = vpop.trf.xlu0
      %v1910 = vpop.trf.xlu0
      %v1911 = vpop.trf.xlu0
      %v1912 = vpop.trf.xlu0
      %v1913 = vpop.trf.xlu0
      %v1914 = vpop.trf.xlu0
      %1915 = vxpose.xlu0.b32.start [1/16] %v1550, 128
      %1916 = vxpose.xlu0.b32.cont [2/16] 0.0, 128
      %1917 = vxpose.xlu0.b32.cont [3/16] 0.0, 128
      %1918 = vxpose.xlu0.b32.cont [4/16] 0.0, 128
      %1919 = vxpose.xlu0.b32.cont [5/16] 0.0, 128
      %1920 = vxpose.xlu0.b32.cont [6/16] 0.0, 128
      %1921 = vxpose.xlu0.b32.cont [7/16] 0.0, 128
      %1922 = vxpose.xlu0.b32.cont [8/16] 0.0, 128
      %1923 = vxpose.xlu0.b32.cont [9/16] 0.0, 128
      %1924 = vxpose.xlu0.b32.cont [10/16] 0.0, 128
      %1925 = vxpose.xlu0.b32.cont [11/16] 0.0, 128
      %1926 = vxpose.xlu0.b32.cont [12/16] 0.0, 128
      %1927 = vxpose.xlu0.b32.cont [13/16] 0.0, 128
      %1928 = vxpose.xlu0.b32.cont [14/16] 0.0, 128
      %1929 = vxpose.xlu0.b32.cont [15/16] 0.0, 128
      %1930 = vxpose.xlu0.b32.end [16/16] 0.0, 128
      %v1931 = vpop.trf.xlu0
      %v1932 = vpop.trf.xlu0
      %v1933 = vpop.trf.xlu0
      %v1934 = vpop.trf.xlu0
      %v1935 = vpop.trf.xlu0
      %v1936 = vpop.trf.xlu0
      %v1937 = vpop.trf.xlu0
      %v1938 = vpop.trf.xlu0
      %v1939 = vpop.trf.xlu0
      %v1940 = vpop.trf.xlu0
      %v1941 = vpop.trf.xlu0
      %v1942 = vpop.trf.xlu0
      %v1943 = vpop.trf.xlu0
      %v1944 = vpop.trf.xlu0
      %v1945 = vpop.trf.xlu0
      %v1946 = vpop.trf.xlu0
      %1947 = vxpose.xlu0.b32.start [1/16] %v1582, 128
      %1948 = vxpose.xlu0.b32.cont [2/16] 0.0, 128
      %1949 = vxpose.xlu0.b32.cont [3/16] 0.0, 128
      %1950 = vxpose.xlu0.b32.cont [4/16] 0.0, 128
      %1951 = vxpose.xlu0.b32.cont [5/16] 0.0, 128
      %1952 = vxpose.xlu0.b32.cont [6/16] 0.0, 128
      %1953 = vxpose.xlu0.b32.cont [7/16] 0.0, 128
      %1954 = vxpose.xlu0.b32.cont [8/16] 0.0, 128
      %1955 = vxpose.xlu0.b32.cont [9/16] 0.0, 128
      %1956 = vxpose.xlu0.b32.cont [10/16] 0.0, 128
      %1957 = vxpose.xlu0.b32.cont [11/16] 0.0, 128
      %1958 = vxpose.xlu0.b32.cont [12/16] 0.0, 128
      %1959 = vxpose.xlu0.b32.cont [13/16] 0.0, 128
      %1960 = vxpose.xlu0.b32.cont [14/16] 0.0, 128
      %1961 = vxpose.xlu0.b32.cont [15/16] 0.0, 128
      %1962 = vxpose.xlu0.b32.end [16/16] 0.0, 128
      %v1963 = vpop.trf.xlu0
      %v1964 = vpop.trf.xlu0
      %v1965 = vpop.trf.xlu0
      %v1966 = vpop.trf.xlu0
      %v1967 = vpop.trf.xlu0
      %v1968 = vpop.trf.xlu0
      %v1969 = vpop.trf.xlu0
      %v1970 = vpop.trf.xlu0
      %v1971 = vpop.trf.xlu0
      %v1972 = vpop.trf.xlu0
      %v1973 = vpop.trf.xlu0
      %v1974 = vpop.trf.xlu0
      %v1975 = vpop.trf.xlu0
      %v1976 = vpop.trf.xlu0
      %v1977 = vpop.trf.xlu0
      %v1978 = vpop.trf.xlu0
      %1979 = vxpose.xlu0.b32.start [1/16] %v1555, 128
      %1980 = vxpose.xlu0.b32.cont [2/16] 0.0, 128
      %1981 = vxpose.xlu0.b32.cont [3/16] 0.0, 128
      %1982 = vxpose.xlu0.b32.cont [4/16] 0.0, 128
      %1983 = vxpose.xlu0.b32.cont [5/16] 0.0, 128
      %1984 = vxpose.xlu0.b32.cont [6/16] 0.0, 128
      %1985 = vxpose.xlu0.b32.cont [7/16] 0.0, 128
      %1986 = vxpose.xlu0.b32.cont [8/16] 0.0, 128
      %1987 = vxpose.xlu0.b32.cont [9/16] 0.0, 128
      %1988 = vxpose.xlu0.b32.cont [10/16] 0.0, 128
      %1989 = vxpose.xlu0.b32.cont [11/16] 0.0, 128
      %1990 = vxpose.xlu0.b32.cont [12/16] 0.0, 128
      %1991 = vxpose.xlu0.b32.cont [13/16] 0.0, 128
      %1992 = vxpose.xlu0.b32.cont [14/16] 0.0, 128
      %1993 = vxpose.xlu0.b32.cont [15/16] 0.0, 128
      %1994 = vxpose.xlu0.b32.end [16/16] 0.0, 128
      %v1995 = vpop.trf.xlu0
      %v1996 = vpop.trf.xlu0
      %v1997 = vpop.trf.xlu0
      %v1998 = vpop.trf.xlu0
      %v1999 = vpop.trf.xlu0
      %v2000 = vpop.trf.xlu0
      %v2001 = vpop.trf.xlu0
      %v2002 = vpop.trf.xlu0
      %v2003 = vpop.trf.xlu0
      %v2004 = vpop.trf.xlu0
      %v2005 = vpop.trf.xlu0
      %v2006 = vpop.trf.xlu0
      %v2007 = vpop.trf.xlu0
      %v2008 = vpop.trf.xlu0
      %v2009 = vpop.trf.xlu0
      %v2010 = vpop.trf.xlu0
      %2011 = vxpose.xlu0.b32.start [1/16] %v1583, 128
      %2012 = vxpose.xlu0.b32.cont [2/16] 0.0, 128
      %2013 = vxpose.xlu0.b32.cont [3/16] 0.0, 128
      %2014 = vxpose.xlu0.b32.cont [4/16] 0.0, 128
      %2015 = vxpose.xlu0.b32.cont [5/16] 0.0, 128
      %2016 = vxpose.xlu0.b32.cont [6/16] 0.0, 128
      %2017 = vxpose.xlu0.b32.cont [7/16] 0.0, 128
      %2018 = vxpose.xlu0.b32.cont [8/16] 0.0, 128
      %2019 = vxpose.xlu0.b32.cont [9/16] 0.0, 128
      %2020 = vxpose.xlu0.b32.cont [10/16] 0.0, 128
      %2021 = vxpose.xlu0.b32.cont [11/16] 0.0, 128
      %2022 = vxpose.xlu0.b32.cont [12/16] 0.0, 128
      %2023 = vxpose.xlu0.b32.cont [13/16] 0.0, 128
      %2024 = vxpose.xlu0.b32.cont [14/16] 0.0, 128
      %2025 = vxpose.xlu0.b32.cont [15/16] 0.0, 128
      %2026 = vxpose.xlu0.b32.end [16/16] 0.0, 128
      %v2027 = vpop.trf.xlu0
      %v2028 = vpop.trf.xlu0
      %v2029 = vpop.trf.xlu0
      %v2030 = vpop.trf.xlu0
      %v2031 = vpop.trf.xlu0
      %v2032 = vpop.trf.xlu0
      %v2033 = vpop.trf.xlu0
      %v2034 = vpop.trf.xlu0
      %v2035 = vpop.trf.xlu0
      %v2036 = vpop.trf.xlu0
      %v2037 = vpop.trf.xlu0
      %v2038 = vpop.trf.xlu0
      %v2039 = vpop.trf.xlu0
      %v2040 = vpop.trf.xlu0
      %v2041 = vpop.trf.xlu0
      %v2042 = vpop.trf.xlu0
      %2043 = vxpose.xlu0.b32.start [1/16] %v1560, 128
      %2044 = vxpose.xlu0.b32.cont [2/16] 0.0, 128
      %2045 = vxpose.xlu0.b32.cont [3/16] 0.0, 128
      %2046 = vxpose.xlu0.b32.cont [4/16] 0.0, 128
      %2047 = vxpose.xlu0.b32.cont [5/16] 0.0, 128
      %2048 = vxpose.xlu0.b32.cont [6/16] 0.0, 128
      %2049 = vxpose.xlu0.b32.cont [7/16] 0.0, 128
      %2050 = vxpose.xlu0.b32.cont [8/16] 0.0, 128
      %2051 = vxpose.xlu0.b32.cont [9/16] 0.0, 128
      %2052 = vxpose.xlu0.b32.cont [10/16] 0.0, 128
      %2053 = vxpose.xlu0.b32.cont [11/16] 0.0, 128
      %2054 = vxpose.xlu0.b32.cont [12/16] 0.0, 128
      %2055 = vxpose.xlu0.b32.cont [13/16] 0.0, 128
      %2056 = vxpose.xlu0.b32.cont [14/16] 0.0, 128
      %2057 = vxpose.xlu0.b32.cont [15/16] 0.0, 128
      %2058 = vxpose.xlu0.b32.end [16/16] 0.0, 128
      %v2059 = vpop.trf.xlu0
      %v2060 = vpop.trf.xlu0
      %v2061 = vpop.trf.xlu0
      %v2062 = vpop.trf.xlu0
      %v2063 = vpop.trf.xlu0
      %v2064 = vpop.trf.xlu0
      %v2065 = vpop.trf.xlu0
      %v2066 = vpop.trf.xlu0
      %v2067 = vpop.trf.xlu0
      %v2068 = vpop.trf.xlu0
      %v2069 = vpop.trf.xlu0
      %v2070 = vpop.trf.xlu0
      %v2071 = vpop.trf.xlu0
      %v2072 = vpop.trf.xlu0
      %v2073 = vpop.trf.xlu0
      %v2074 = vpop.trf.xlu0
      %2075 = vxpose.xlu0.b32.start [1/16] %v1584, 128
      %2076 = vxpose.xlu0.b32.cont [2/16] 0.0, 128
      %2077 = vxpose.xlu0.b32.cont [3/16] 0.0, 128
      %2078 = vxpose.xlu0.b32.cont [4/16] 0.0, 128
      %2079 = vxpose.xlu0.b32.cont [5/16] 0.0, 128
      %2080 = vxpose.xlu0.b32.cont [6/16] 0.0, 128
      %2081 = vxpose.xlu0.b32.cont [7/16] 0.0, 128
      %2082 = vxpose.xlu0.b32.cont [8/16] 0.0, 128
      %2083 = vxpose.xlu0.b32.cont [9/16] 0.0, 128
      %2084 = vxpose.xlu0.b32.cont [10/16] 0.0, 128
      %2085 = vxpose.xlu0.b32.cont [11/16] 0.0, 128
      %2086 = vxpose.xlu0.b32.cont [12/16] 0.0, 128
      %2087 = vxpose.xlu0.b32.cont [13/16] 0.0, 128
      %2088 = vxpose.xlu0.b32.cont [14/16] 0.0, 128
      %2089 = vxpose.xlu0.b32.cont [15/16] 0.0, 128
      %2090 = vxpose.xlu0.b32.end [16/16] 0.0, 128
      %v2091 = vpop.trf.xlu0
      %v2092 = vpop.trf.xlu0
      %v2093 = vpop.trf.xlu0
      %v2094 = vpop.trf.xlu0
      %v2095 = vpop.trf.xlu0
      %v2096 = vpop.trf.xlu0
      %v2097 = vpop.trf.xlu0
      %v2098 = vpop.trf.xlu0
      %v2099 = vpop.trf.xlu0
      %v2100 = vpop.trf.xlu0
      %v2101 = vpop.trf.xlu0
      %v2102 = vpop.trf.xlu0
      %v2103 = vpop.trf.xlu0
      %v2104 = vpop.trf.xlu0
      %v2105 = vpop.trf.xlu0
      %v2106 = vpop.trf.xlu0
      %2107 = vxpose.xlu0.b32.start [1/16] %v1565, 128
      %2108 = vxpose.xlu0.b32.cont [2/16] 0.0, 128
      %2109 = vxpose.xlu0.b32.cont [3/16] 0.0, 128
      %2110 = vxpose.xlu0.b32.cont [4/16] 0.0, 128
      %2111 = vxpose.xlu0.b32.cont [5/16] 0.0, 128
      %2112 = vxpose.xlu0.b32.cont [6/16] 0.0, 128
      %2113 = vxpose.xlu0.b32.cont [7/16] 0.0, 128
      %2114 = vxpose.xlu0.b32.cont [8/16] 0.0, 128
      %2115 = vxpose.xlu0.b32.cont [9/16] 0.0, 128
      %2116 = vxpose.xlu0.b32.cont [10/16] 0.0, 128
      %2117 = vxpose.xlu0.b32.cont [11/16] 0.0, 128
      %2118 = vxpose.xlu0.b32.cont [12/16] 0.0, 128
      %2119 = vxpose.xlu0.b32.cont [13/16] 0.0, 128
      %2120 = vxpose.xlu0.b32.cont [14/16] 0.0, 128
      %2121 = vxpose.xlu0.b32.cont [15/16] 0.0, 128
      %2122 = vxpose.xlu0.b32.end [16/16] 0.0, 128
      %v2123 = vpop.trf.xlu0
      %v2124 = vpop.trf.xlu0
      %v2125 = vpop.trf.xlu0
      %v2126 = vpop.trf.xlu0
      %v2127 = vpop.trf.xlu0
      %v2128 = vpop.trf.xlu0
      %v2129 = vpop.trf.xlu0
      %v2130 = vpop.trf.xlu0
      %v2131 = vpop.trf.xlu0
      %v2132 = vpop.trf.xlu0
      %v2133 = vpop.trf.xlu0
      %v2134 = vpop.trf.xlu0
      %v2135 = vpop.trf.xlu0
      %v2136 = vpop.trf.xlu0
      %v2137 = vpop.trf.xlu0
      %v2138 = vpop.trf.xlu0
      %2139 = vxpose.xlu0.b32.start [1/16] %v1585, 128
      %2140 = vxpose.xlu0.b32.cont [2/16] 0.0, 128
      %2141 = vxpose.xlu0.b32.cont [3/16] 0.0, 128
      %2142 = vxpose.xlu0.b32.cont [4/16] 0.0, 128
      %2143 = vxpose.xlu0.b32.cont [5/16] 0.0, 128
      %2144 = vxpose.xlu0.b32.cont [6/16] 0.0, 128
      %2145 = vxpose.xlu0.b32.cont [7/16] 0.0, 128
      %2146 = vxpose.xlu0.b32.cont [8/16] 0.0, 128
      %2147 = vxpose.xlu0.b32.cont [9/16] 0.0, 128
      %2148 = vxpose.xlu0.b32.cont [10/16] 0.0, 128
      %2149 = vxpose.xlu0.b32.cont [11/16] 0.0, 128
      %2150 = vxpose.xlu0.b32.cont [12/16] 0.0, 128
      %2151 = vxpose.xlu0.b32.cont [13/16] 0.0, 128
      %2152 = vxpose.xlu0.b32.cont [14/16] 0.0, 128
      %2153 = vxpose.xlu0.b32.cont [15/16] 0.0, 128
      %2154 = vxpose.xlu0.b32.end [16/16] 0.0, 128
      %v2155 = vpop.trf.xlu0
      %v2156 = vpop.trf.xlu0
      %v2157 = vpop.trf.xlu0
      %v2158 = vpop.trf.xlu0
      %v2159 = vpop.trf.xlu0
      %v2160 = vpop.trf.xlu0
      %v2161 = vpop.trf.xlu0
      %v2162 = vpop.trf.xlu0
      %v2163 = vpop.trf.xlu0
      %v2164 = vpop.trf.xlu0
      %v2165 = vpop.trf.xlu0
      %v2166 = vpop.trf.xlu0
      %v2167 = vpop.trf.xlu0
      %v2168 = vpop.trf.xlu0
      %v2169 = vpop.trf.xlu0
      %v2170 = vpop.trf.xlu0
      %v2171 = vpack.c.bf16 %v1612, %v1611
      %v2172 = vpack.c.bf16 %v1644, %v1643
      %v2173 = vpack.c.bf16 %v1676, %v1675
      %v2174 = vpack.c.bf16 %v1708, %v1707
      %v2175 = vpack.c.bf16 %v1740, %v1739
      %v2176 = vpack.c.bf16 %v1772, %v1771
      %v2177 = vpack.c.bf16 %v1804, %v1803
      %v2178 = vpack.c.bf16 %v1836, %v1835
      %v2179 = vpack.c.bf16 %v1868, %v1867
      %v2180 = vpack.c.bf16 %v1900, %v1899
      %v2181 = vpack.c.bf16 %v1932, %v1931
      %v2182 = vpack.c.bf16 %v1964, %v1963
      %v2183 = vpack.c.bf16 %v1996, %v1995
      %v2184 = vpack.c.bf16 %v2028, %v2027
      %v2185 = vpack.c.bf16 %v2060, %v2059
      %v2186 = vpack.c.bf16 %v2092, %v2091
      %v2187 = vpack.c.bf16 %v2124, %v2123
      %v2188 = vpack.c.bf16 %v2156, %v2155
      %v2207 = vunpack.c.l.b16 %v2171
      %v2208 = vunpack.c.h.b16 %v2171
      %v2209 = vunpack.c.l.b16 %v2172
      %v2210 = vunpack.c.h.b16 %v2172
      %v2211 = vunpack.c.l.b16 %v2173
      %v2212 = vunpack.c.h.b16 %v2173
      %v2213 = vunpack.c.l.b16 %v2174
      %v2214 = vunpack.c.h.b16 %v2174
      %v2215 = vunpack.c.l.b16 %v2175
      %v2216 = vunpack.c.h.b16 %v2175
      %v2217 = vunpack.c.l.b16 %v2176
      %v2218 = vunpack.c.h.b16 %v2176
      %v2219 = vunpack.c.l.b16 %v2177
      %v2220 = vunpack.c.h.b16 %v2177
      %v2221 = vunpack.c.l.b16 %v2178
      %v2222 = vunpack.c.h.b16 %v2178
      %v2223 = vunpack.c.l.b16 %v2179
      %v2224 = vunpack.c.h.b16 %v2179
      %v2225 = vunpack.c.l.b16 %v2180
      %v2226 = vunpack.c.h.b16 %v2180
      %v2227 = vunpack.c.l.b16 %v2181
      %v2228 = vunpack.c.h.b16 %v2181
      %v2229 = vunpack.c.l.b16 %v2182
      %v2230 = vunpack.c.h.b16 %v2182
      %v2231 = vunpack.c.l.b16 %v2183
      %v2232 = vunpack.c.h.b16 %v2183
      %v2233 = vunpack.c.l.b16 %v2184
      %v2234 = vunpack.c.h.b16 %v2184
      %v2235 = vunpack.c.l.b16 %v2185
      %v2236 = vunpack.c.h.b16 %v2185
      %v2237 = vunpack.c.l.b16 %v2186
      %v2238 = vunpack.c.h.b16 %v2186
      %v2239 = vunpack.c.l.b16 %v2187
      %v2240 = vunpack.c.h.b16 %v2187
      %v2241 = vunpack.c.l.b16 %v2188
      %v2242 = vunpack.c.h.b16 %v2188
      %v2243 = vpack.c.b16 %v2207, %v2207
      %v2244 = vpack.c.b16 %v2208, %v2208
      %v2245 = vpack.c.b16 %v2209, %v2209
      %v2246 = vpack.c.b16 %v2210, %v2210
      %v2247 = vpack.c.b16 %v2211, %v2211
      %v2248 = vpack.c.b16 %v2212, %v2212
      %v2249 = vpack.c.b16 %v2213, %v2213
      %v2250 = vpack.c.b16 %v2214, %v2214
      %v2251 = vpack.c.b16 %v2215, %v2215
      %v2252 = vpack.c.b16 %v2216, %v2216
      %v2253 = vpack.c.b16 %v2217, %v2217
      %v2254 = vpack.c.b16 %v2218, %v2218
      %v2255 = vpack.c.b16 %v2219, %v2219
      %v2256 = vpack.c.b16 %v2220, %v2220
      %v2257 = vpack.c.b16 %v2221, %v2221
      %v2258 = vpack.c.b16 %v2222, %v2222
      %v2259 = vpack.c.b16 %v2223, %v2223
      %v2260 = vpack.c.b16 %v2224, %v2224
      %v2261 = vpack.c.b16 %v2225, %v2225
      %v2262 = vpack.c.b16 %v2226, %v2226
      %v2263 = vpack.c.b16 %v2227, %v2227
      %v2264 = vpack.c.b16 %v2228, %v2228
      %v2265 = vpack.c.b16 %v2229, %v2229
      %v2266 = vpack.c.b16 %v2230, %v2230
      %v2267 = vpack.c.b16 %v2231, %v2231
      %v2268 = vpack.c.b16 %v2232, %v2232
      %v2269 = vpack.c.b16 %v2233, %v2233
      %v2270 = vpack.c.b16 %v2234, %v2234
      %v2271 = vpack.c.b16 %v2235, %v2235
      %v2272 = vpack.c.b16 %v2236, %v2236
      %v2273 = vpack.c.b16 %v2237, %v2237
      %v2274 = vpack.c.b16 %v2238, %v2238
      %v2275 = vpack.c.b16 %v2239, %v2239
      %v2276 = vpack.c.b16 %v2240, %v2240
      %v2277 = vpack.c.b16 %v2241, %v2241
      %v2278 = vpack.c.b16 %v2242, %v2242
      %2279 = vrot.lane.b32.xlu0 %v2243, 4
      %v2280 = vpop.permute.xlu0 %2279
      %2281 = vrot.lane.b32.xlu0 %v2244, 4
      %v2282 = vpop.permute.xlu0 %2281
      %2283 = vrot.lane.b32.xlu0 %v2245, 4
      %v2284 = vpop.permute.xlu0 %2283
      %2285 = vrot.lane.b32.xlu0 %v2246, 4
      %v2286 = vpop.permute.xlu0 %2285
      %2287 = vrot.lane.b32.xlu0 %v2247, 4
      %v2288 = vpop.permute.xlu0 %2287
      %2289 = vrot.lane.b32.xlu0 %v2248, 4
      %v2290 = vpop.permute.xlu0 %2289
      %2291 = vrot.lane.b32.xlu0 %v2249, 4
      %v2292 = vpop.permute.xlu0 %2291
      %2293 = vrot.lane.b32.xlu0 %v2250, 4
      %v2294 = vpop.permute.xlu0 %2293
      %2295 = vrot.lane.b32.xlu0 %v2251, 4
      %v2296 = vpop.permute.xlu0 %2295
      %2297 = vrot.lane.b32.xlu0 %v2252, 4
      %v2298 = vpop.permute.xlu0 %2297
      %2299 = vrot.lane.b32.xlu0 %v2253, 4
      %v2300 = vpop.permute.xlu0 %2299
      %2301 = vrot.lane.b32.xlu0 %v2254, 4
      %v2302 = vpop.permute.xlu0 %2301
      %2303 = vrot.lane.b32.xlu0 %v2255, 4
      %v2304 = vpop.permute.xlu0 %2303
      %2305 = vrot.lane.b32.xlu0 %v2256, 4
      %v2306 = vpop.permute.xlu0 %2305
      %2307 = vrot.lane.b32.xlu0 %v2257, 4
      %v2308 = vpop.permute.xlu0 %2307
      %2309 = vrot.lane.b32.xlu0 %v2258, 4
      %v2310 = vpop.permute.xlu0 %2309
      %2311 = vrot.lane.b32.xlu0 %v2259, 4
      %v2312 = vpop.permute.xlu0 %2311
      %2313 = vrot.lane.b32.xlu0 %v2260, 4
      %v2314 = vpop.permute.xlu0 %2313
      %2315 = vrot.lane.b32.xlu0 %v2261, 4
      %v2316 = vpop.permute.xlu0 %2315
      %2317 = vrot.lane.b32.xlu0 %v2262, 4
      %v2318 = vpop.permute.xlu0 %2317
      %2319 = vrot.lane.b32.xlu0 %v2263, 4
      %v2320 = vpop.permute.xlu0 %2319
      %2321 = vrot.lane.b32.xlu0 %v2264, 4
      %v2322 = vpop.permute.xlu0 %2321
      %2323 = vrot.lane.b32.xlu0 %v2265, 4
      %v2324 = vpop.permute.xlu0 %2323
      %2325 = vrot.lane.b32.xlu0 %v2266, 4
      %v2326 = vpop.permute.xlu0 %2325
      %2327 = vrot.lane.b32.xlu0 %v2267, 4
      %v2328 = vpop.permute.xlu0 %2327
      %2329 = vrot.lane.b32.xlu0 %v2268, 4
      %v2330 = vpop.permute.xlu0 %2329
      %2331 = vrot.lane.b32.xlu0 %v2269, 4
      %v2332 = vpop.permute.xlu0 %2331
      %2333 = vrot.lane.b32.xlu0 %v2270, 4
      %v2334 = vpop.permute.xlu0 %2333
      %2335 = vrot.lane.b32.xlu0 %v2271, 4
      %v2336 = vpop.permute.xlu0 %2335
      %2337 = vrot.lane.b32.xlu0 %v2272, 4
      %v2338 = vpop.permute.xlu0 %2337
      %2339 = vrot.lane.b32.xlu0 %v2273, 4
      %v2340 = vpop.permute.xlu0 %2339
      %2341 = vrot.lane.b32.xlu0 %v2274, 4
      %v2342 = vpop.permute.xlu0 %2341
      %2343 = vrot.lane.b32.xlu0 %v2275, 4
      %v2344 = vpop.permute.xlu0 %2343
      %2345 = vrot.lane.b32.xlu0 %v2276, 4
      %v2346 = vpop.permute.xlu0 %2345
      %2347 = vrot.lane.b32.xlu0 %v2277, 4
      %v2348 = vpop.permute.xlu0 %2347
      %2349 = vrot.lane.b32.xlu0 %v2278, 4
      %v2350 = vpop.permute.xlu0 %2349
      %vm2387 = vcmask 60448
      %2388 = vst.msk [vmem:[#allocation2 + $0x4] sm:$0xf] %vm2387, %v2280
      %2389 = vst.msk [vmem:[#allocation2 + $0x8] sm:$0xf] %vm2387, %v2282
      %2390 = vst.msk [vmem:[#allocation2 + $0x14] sm:$0xf] %vm2387, %v2284
      %2391 = vst.msk [vmem:[#allocation2 + $0x18] sm:$0xf] %vm2387, %v2286
      %2392 = vst.msk [vmem:[#allocation2 + $0x24] sm:$0xf] %vm2387, %v2288
      %2393 = vst.msk [vmem:[#allocation2 + $0x28] sm:$0xf] %vm2387, %v2290
      %2394 = vst.msk [vmem:[#allocation2 + $0x34] sm:$0xf] %vm2387, %v2292
      %2395 = vst.msk [vmem:[#allocation2 + $0x38] sm:$0xf] %vm2387, %v2294
      %2396 = vst.msk [vmem:[#allocation2 + $0x44] sm:$0xf] %vm2387, %v2296
      %2397 = vst.msk [vmem:[#allocation2 + $0x48] sm:$0xf] %vm2387, %v2298
      %2398 = vst.msk [vmem:[#allocation2 + $0x54] sm:$0xf] %vm2387, %v2300
      %2399 = vst.msk [vmem:[#allocation2 + $0x58] sm:$0xf] %vm2387, %v2302
      %2400 = vst.msk [vmem:[#allocation2 + $0x64] sm:$0xf] %vm2387, %v2304
      %2401 = vst.msk [vmem:[#allocation2 + $0x68] sm:$0xf] %vm2387, %v2306
      %2402 = vst.msk [vmem:[#allocation2 + $0x74] sm:$0xf] %vm2387, %v2308
      %2403 = vst.msk [vmem:[#allocation2 + $0x78] sm:$0xf] %vm2387, %v2310
      %2404 = vst.msk [vmem:[#allocation2 + $0x84] sm:$0xf] %vm2387, %v2312
      %2405 = vst.msk [vmem:[#allocation2 + $0x88] sm:$0xf] %vm2387, %v2314
      %2406 = vst.msk [vmem:[#allocation2 + $0x94] sm:$0xf] %vm2387, %v2316
      %2407 = vst.msk [vmem:[#allocation2 + $0x98] sm:$0xf] %vm2387, %v2318
      %2408 = vst.msk [vmem:[#allocation2 + $0xa4] sm:$0xf] %vm2387, %v2320
      %2409 = vst.msk [vmem:[#allocation2 + $0xa8] sm:$0xf] %vm2387, %v2322
      %2410 = vst.msk [vmem:[#allocation2 + $0xb4] sm:$0xf] %vm2387, %v2324
      %2411 = vst.msk [vmem:[#allocation2 + $0xb8] sm:$0xf] %vm2387, %v2326
      %2412 = vst.msk [vmem:[#allocation2 + $0xc4] sm:$0xf] %vm2387, %v2328
      %2413 = vst.msk [vmem:[#allocation2 + $0xc8] sm:$0xf] %vm2387, %v2330
      %2414 = vst.msk [vmem:[#allocation2 + $0xd4] sm:$0xf] %vm2387, %v2332
      %2415 = vst.msk [vmem:[#allocation2 + $0xd8] sm:$0xf] %vm2387, %v2334
      %2416 = vst.msk [vmem:[#allocation2 + $0xe4] sm:$0xf] %vm2387, %v2336
      %2417 = vst.msk [vmem:[#allocation2 + $0xe8] sm:$0xf] %vm2387, %v2338
      %2418 = vst.msk [vmem:[#allocation2 + $0xf4] sm:$0xf] %vm2387, %v2340
      %2419 = vst.msk [vmem:[#allocation2 + $0xf8] sm:$0xf] %vm2387, %v2342
      %2420 = vst.msk [vmem:[#allocation2 + $0x104] sm:$0xf] %vm2387, %v2344
      %2421 = vst.msk [vmem:[#allocation2 + $0x108] sm:$0xf] %vm2387, %v2346
      %2422 = vst.msk [vmem:[#allocation2 + $0x114] sm:$0xf] %vm2387, %v2348
      %2423 = vst.msk [vmem:[#allocation2 + $0x118] sm:$0xf] %vm2387, %v2350
      %s2424 = smul.u32 %s314, 2
      %s2425 = smul.addr %s2424, 4
      %s2426 = scalar_lea.vmem %s294, %s2425
      %v2427 = vld [vmem:[%s2426] sm:$0xf]
      %v2428 = vld [vmem:[%s2426 + $0x4] sm:$0xf]
      %v2429 = vld [vmem:[%s2426 + $0x8] sm:$0xf]
      %v2430 = vld [vmem:[%s2426 + $0xc] sm:$0xf]
      %v2431 = vld [vmem:[%s2426 + $0x10] sm:$0xf]
      %v2432 = vld [vmem:[%s2426 + $0x14] sm:$0xf]
      %v2433 = vld [vmem:[%s2426 + $0x18] sm:$0xf]
      %v2434 = vld [vmem:[%s2426 + $0x1c] sm:$0xf]
      %v2435 = vld [vmem:[%s2426 + $0x20] sm:$0xf]
      %v2436 = vld [vmem:[%s2426 + $0x24] sm:$0xf]
      %v2437 = vld [vmem:[%s2426 + $0x28] sm:$0xf]
      %v2438 = vld [vmem:[%s2426 + $0x2c] sm:$0xf]
      %v2439 = vld [vmem:[%s2426 + $0x30] sm:$0xf]
      %v2440 = vld [vmem:[%s2426 + $0x34] sm:$0xf]
      %v2441 = vld [vmem:[%s2426 + $0x38] sm:$0xf]
      %v2442 = vld [vmem:[%s2426 + $0x3c] sm:$0xf]
      %v2443 = vld [vmem:[%s2426 + $0x40] sm:$0xf]
      %v2444 = vld [vmem:[%s2426 + $0x44] sm:$0xf]
      %v2445 = vld [vmem:[%s2426 + $0x48] sm:$0xf]
      %v2446 = vld [vmem:[%s2426 + $0x4c] sm:$0xf]
      %v2447 = vld [vmem:[%s2426 + $0x50] sm:$0xf]
      %v2448 = vld [vmem:[%s2426 + $0x54] sm:$0xf]
      %v2449 = vld [vmem:[%s2426 + $0x58] sm:$0xf]
      %v2450 = vld [vmem:[%s2426 + $0x5c] sm:$0xf]
      %v2451 = vld [vmem:[%s2426 + $0x60] sm:$0xf]
      %v2452 = vld [vmem:[%s2426 + $0x64] sm:$0xf]
      %v2453 = vld [vmem:[%s2426 + $0x68] sm:$0xf]
      %v2454 = vld [vmem:[%s2426 + $0x6c] sm:$0xf]
      %v2455 = vld [vmem:[%s2426 + $0x70] sm:$0xf]
      %v2456 = vld [vmem:[%s2426 + $0x74] sm:$0xf]
      %v2457 = vld [vmem:[%s2426 + $0x78] sm:$0xf]
      %v2458 = vld [vmem:[%s2426 + $0x7c] sm:$0xf]
      %s2459 = scalar_lea.vmem [#allocation2], 16
      %vm2460 = vcmask 27648
      %2461 = vst.msk [vmem:[%s2459 + $0x4] sm:$0xf] %vm2460, %v2427
      %2462 = vst.msk [vmem:[%s2459 + $0x8] sm:$0xf] %vm2460, %v2428
      %2463 = vst.msk [vmem:[%s2459 + $0x14] sm:$0xf] %vm2460, %v2429
      %2464 = vst.msk [vmem:[%s2459 + $0x18] sm:$0xf] %vm2460, %v2430
      %2465 = vst.msk [vmem:[%s2459 + $0x24] sm:$0xf] %vm2460, %v2431
      %2466 = vst.msk [vmem:[%s2459 + $0x28] sm:$0xf] %vm2460, %v2432
      %2467 = vst.msk [vmem:[%s2459 + $0x34] sm:$0xf] %vm2460, %v2433
      %2468 = vst.msk [vmem:[%s2459 + $0x38] sm:$0xf] %vm2460, %v2434
      %2469 = vst.msk [vmem:[%s2459 + $0x44] sm:$0xf] %vm2460, %v2435
      %2470 = vst.msk [vmem:[%s2459 + $0x48] sm:$0xf] %vm2460, %v2436
      %2471 = vst.msk [vmem:[%s2459 + $0x54] sm:$0xf] %vm2460, %v2437
      %2472 = vst.msk [vmem:[%s2459 + $0x58] sm:$0xf] %vm2460, %v2438
      %2473 = vst.msk [vmem:[%s2459 + $0x64] sm:$0xf] %vm2460, %v2439
      %2474 = vst.msk [vmem:[%s2459 + $0x68] sm:$0xf] %vm2460, %v2440
      %2475 = vst.msk [vmem:[%s2459 + $0x74] sm:$0xf] %vm2460, %v2441
      %2476 = vst.msk [vmem:[%s2459 + $0x78] sm:$0xf] %vm2460, %v2442
      %2477 = vst.msk [vmem:[%s2459 + $0x84] sm:$0xf] %vm2460, %v2443
      %2478 = vst.msk [vmem:[%s2459 + $0x88] sm:$0xf] %vm2460, %v2444
      %2479 = vst.msk [vmem:[%s2459 + $0x94] sm:$0xf] %vm2460, %v2445
      %2480 = vst.msk [vmem:[%s2459 + $0x98] sm:$0xf] %vm2460, %v2446
      %2481 = vst.msk [vmem:[%s2459 + $0xa4] sm:$0xf] %vm2460, %v2447
      %2482 = vst.msk [vmem:[%s2459 + $0xa8] sm:$0xf] %vm2460, %v2448
      %2483 = vst.msk [vmem:[%s2459 + $0xb4] sm:$0xf] %vm2460, %v2449
      %2484 = vst.msk [vmem:[%s2459 + $0xb8] sm:$0xf] %vm2460, %v2450
      %2485 = vst.msk [vmem:[%s2459 + $0xc4] sm:$0xf] %vm2460, %v2451
      %2486 = vst.msk [vmem:[%s2459 + $0xc8] sm:$0xf] %vm2460, %v2452
      %2487 = vst.msk [vmem:[%s2459 + $0xd4] sm:$0xf] %vm2460, %v2453
      %2488 = vst.msk [vmem:[%s2459 + $0xd8] sm:$0xf] %vm2460, %v2454
      %2489 = vst.msk [vmem:[%s2459 + $0xe4] sm:$0xf] %vm2460, %v2455
      %2490 = vst.msk [vmem:[%s2459 + $0xe8] sm:$0xf] %vm2460, %v2456
      %2491 = vst.msk [vmem:[%s2459 + $0xf4] sm:$0xf] %vm2460, %v2457
      %2492 = vst.msk [vmem:[%s2459 + $0xf8] sm:$0xf] %vm2460, %v2458
      %s2493 = ssub.s32 %s314, 1
      %p2494 = scmp.gt.s32.totalorder %s2493, 0
      %s2495 = scalar_select %p2494, %s2493, 0
      %s2496 = smul.u32 %s2495, 2
      %s2497 = smul.addr %s2496, 4
      %s2498 = scalar_lea.vmem %s294, %s2497
      %v2499 = vld [vmem:[%s2498] sm:$0xf]
      %v2500 = vld [vmem:[%s2498 + $0x4] sm:$0xf]
      %p2501 = scmp.gt.s32.totalorder %s314, 0
      %s2502 = scalar_select %p2501, 1, 0
      %v2503 = vstv %s2502
      %vm2504 = vcmp.eq.s32.totalorder %v2503, 1
      %v2505 = vsel %vm2504, %v2499, 0
      %v2506 = vsel %vm2504, %v2500, 0
      %2507 = vst.msk [vmem:[#allocation2 + $0x4] sm:$0xf] %vm2460, %v2505
      %2508 = vst.msk [vmem:[#allocation2 + $0x8] sm:$0xf] %vm2460, %v2506
      %s2509 = sadd.s32 %s314, 16
      %p2510 = scmp.lt.s32.totalorder %s2509, 15
      %s2511 = scalar_select %p2510, %s2509, 15
      %s2512 = smul.u32 %s2511, 2
      %s2513 = smul.addr %s2512, 4
      %s2514 = scalar_lea.vmem %s294, %s2513
      %v2515 = vld [vmem:[%s2514] sm:$0xf]
      %v2516 = vld [vmem:[%s2514 + $0x4] sm:$0xf]
      %p2517 = scmp.lt.s32.totalorder %s2509, 16
      %s2518 = scalar_select %p2517, 1, 0
      %v2519 = vstv %s2518
      %vm2520 = vcmp.eq.s32.totalorder %v2519, 1
      %v2521 = vsel %vm2520, %v2515, 0
      %v2522 = vsel %vm2520, %v2516, 0
      %s2523 = scalar_lea.vmem [#allocation2], 272
      %2524 = vst.msk [vmem:[%s2523 + $0x4] sm:$0xf] %vm2460, %v2521
      %2525 = vst.msk [vmem:[%s2523 + $0x8] sm:$0xf] %vm2460, %v2522
      %v2526 = vld [vmem:[#allocation2] sm:$0x8]
      %v2527 = vld [vmem:[#allocation2 + $0x4] sm:$0xf]
      %v2528 = vld [vmem:[#allocation2 + $0x8] sm:$0xf]
      %v2529 = vld [vmem:[#allocation2 + $0x10] sm:$0x8]
      %v2530 = vld [vmem:[#allocation2 + $0x14] sm:$0xf]
      %v2531 = vld [vmem:[#allocation2 + $0x18] sm:$0xf]
      %v2532 = vld [vmem:[#allocation2 + $0x20] sm:$0x8]
      %v2533 = vld [vmem:[#allocation2 + $0x24] sm:$0xf]
      %v2534 = vld [vmem:[#allocation2 + $0x28] sm:$0xf]
      %v2535 = vld [vmem:[#allocation2 + $0x30] sm:$0x8]
      %v2536 = vld [vmem:[#allocation2 + $0x34] sm:$0xf]
      %v2537 = vld [vmem:[#allocation2 + $0x38] sm:$0xf]
      %v2538 = vld [vmem:[#allocation2 + $0x40] sm:$0x8]
      %v2539 = vld [vmem:[#allocation2 + $0x44] sm:$0xf]
      %v2540 = vld [vmem:[#allocation2 + $0x48] sm:$0xf]
      %v2541 = vld [vmem:[#allocation2 + $0x50] sm:$0x8]
      %v2542 = vld [vmem:[#allocation2 + $0x54] sm:$0xf]
      %v2543 = vld [vmem:[#allocation2 + $0x58] sm:$0xf]
      %v2544 = vld [vmem:[#allocation2 + $0x60] sm:$0x8]
      %v2545 = vld [vmem:[#allocation2 + $0x64] sm:$0xf]
      %v2546 = vld [vmem:[#allocation2 + $0x68] sm:$0xf]
      %v2547 = vld [vmem:[#allocation2 + $0x70] sm:$0x8]
      %v2548 = vld [vmem:[#allocation2 + $0x74] sm:$0xf]
      %v2549 = vld [vmem:[#allocation2 + $0x78] sm:$0xf]
      %v2550 = vld [vmem:[#allocation2 + $0x80] sm:$0x8]
      %v2551 = vld [vmem:[#allocation2 + $0x84] sm:$0xf]
      %v2552 = vld [vmem:[#allocation2 + $0x88] sm:$0xf]
      %v2553 = vld [vmem:[#allocation2 + $0x90] sm:$0x8]
      %v2554 = vld [vmem:[#allocation2 + $0x94] sm:$0xf]
      %v2555 = vld [vmem:[#allocation2 + $0x98] sm:$0xf]
      %v2556 = vld [vmem:[#allocation2 + $0xa0] sm:$0x8]
      %v2557 = vld [vmem:[#allocation2 + $0xa4] sm:$0xf]
      %v2558 = vld [vmem:[#allocation2 + $0xa8] sm:$0xf]
      %v2559 = vld [vmem:[#allocation2 + $0xb0] sm:$0x8]
      %v2560 = vld [vmem:[#allocation2 + $0xb4] sm:$0xf]
      %v2561 = vld [vmem:[#allocation2 + $0xb8] sm:$0xf]
      %v2562 = vld [vmem:[#allocation2 + $0xc0] sm:$0x8]
      %v2563 = vld [vmem:[#allocation2 + $0xc4] sm:$0xf]
      %v2564 = vld [vmem:[#allocation2 + $0xc8] sm:$0xf]
      %v2565 = vld [vmem:[#allocation2 + $0xd0] sm:$0x8]
      %v2566 = vld [vmem:[#allocation2 + $0xd4] sm:$0xf]
      %v2567 = vld [vmem:[#allocation2 + $0xd8] sm:$0xf]
      %v2568 = vld [vmem:[#allocation2 + $0xe0] sm:$0x8]
      %v2569 = vld [vmem:[#allocation2 + $0xe4] sm:$0xf]
      %v2570 = vld [vmem:[#allocation2 + $0xe8] sm:$0xf]
      %v2571 = vld [vmem:[#allocation2 + $0xf0] sm:$0x8]
      %v2572 = vld [vmem:[#allocation2 + $0xf4] sm:$0xf]
      %v2573 = vld [vmem:[#allocation2 + $0xf8] sm:$0xf]
      %v2574 = vld [vmem:[#allocation2 + $0xc] sm:$0x1]
      %v2575 = vld [vmem:[#allocation2 + $0x1c] sm:$0x1]
      %v2576 = vld [vmem:[#allocation2 + $0x2c] sm:$0x1]
      %v2577 = vld [vmem:[#allocation2 + $0x3c] sm:$0x1]
      %v2578 = vld [vmem:[#allocation2 + $0x4c] sm:$0x1]
      %v2579 = vld [vmem:[#allocation2 + $0x5c] sm:$0x1]
      %v2580 = vld [vmem:[#allocation2 + $0x6c] sm:$0x1]
      %v2581 = vld [vmem:[#allocation2 + $0x7c] sm:$0x1]
      %v2582 = vld [vmem:[#allocation2 + $0x8c] sm:$0x1]
      %v2583 = vld [vmem:[#allocation2 + $0x9c] sm:$0x1]
      %v2584 = vld [vmem:[#allocation2 + $0xac] sm:$0x1]
      %v2585 = vld [vmem:[#allocation2 + $0xbc] sm:$0x1]
      %v2586 = vld [vmem:[#allocation2 + $0xcc] sm:$0x1]
      %v2587 = vld [vmem:[#allocation2 + $0xdc] sm:$0x1]
      %v2588 = vld [vmem:[#allocation2 + $0xec] sm:$0x1]
      %v2589 = vld [vmem:[#allocation2 + $0xfc] sm:$0x1]
      %v2590 = vld [vmem:[%s2459] sm:$0x8]
      %v2591 = vld [vmem:[%s2459 + $0x4] sm:$0xf]
      %v2592 = vld [vmem:[%s2459 + $0x8] sm:$0xf]
      %v2593 = vld [vmem:[%s2459 + $0x10] sm:$0x8]
      %v2594 = vld [vmem:[%s2459 + $0x14] sm:$0xf]
      %v2595 = vld [vmem:[%s2459 + $0x18] sm:$0xf]
      %v2596 = vld [vmem:[%s2459 + $0x20] sm:$0x8]
      %v2597 = vld [vmem:[%s2459 + $0x24] sm:$0xf]
      %v2598 = vld [vmem:[%s2459 + $0x28] sm:$0xf]
      %v2599 = vld [vmem:[%s2459 + $0x30] sm:$0x8]
      %v2600 = vld [vmem:[%s2459 + $0x34] sm:$0xf]
      %v2601 = vld [vmem:[%s2459 + $0x38] sm:$0xf]
      %v2602 = vld [vmem:[%s2459 + $0x40] sm:$0x8]
      %v2603 = vld [vmem:[%s2459 + $0x44] sm:$0xf]
      %v2604 = vld [vmem:[%s2459 + $0x48] sm:$0xf]
      %v2605 = vld [vmem:[%s2459 + $0x50] sm:$0x8]
      %v2606 = vld [vmem:[%s2459 + $0x54] sm:$0xf]
      %v2607 = vld [vmem:[%s2459 + $0x58] sm:$0xf]
      %v2608 = vld [vmem:[%s2459 + $0x60] sm:$0x8]
      %v2609 = vld [vmem:[%s2459 + $0x64] sm:$0xf]
      %v2610 = vld [vmem:[%s2459 + $0x68] sm:$0xf]
      %v2611 = vld [vmem:[%s2459 + $0x70] sm:$0x8]
      %v2612 = vld [vmem:[%s2459 + $0x74] sm:$0xf]
      %v2613 = vld [vmem:[%s2459 + $0x78] sm:$0xf]
      %v2614 = vld [vmem:[%s2459 + $0x80] sm:$0x8]
      %v2615 = vld [vmem:[%s2459 + $0x84] sm:$0xf]
      %v2616 = vld [vmem:[%s2459 + $0x88] sm:$0xf]
      %v2617 = vld [vmem:[%s2459 + $0x90] sm:$0x8]
      %v2618 = vld [vmem:[%s2459 + $0x94] sm:$0xf]
      %v2619 = vld [vmem:[%s2459 + $0x98] sm:$0xf]
      %v2620 = vld [vmem:[%s2459 + $0xa0] sm:$0x8]
      %v2621 = vld [vmem:[%s2459 + $0xa4] sm:$0xf]
      %v2622 = vld [vmem:[%s2459 + $0xa8] sm:$0xf]
      %v2623 = vld [vmem:[%s2459 + $0xb0] sm:$0x8]
      %v2624 = vld [vmem:[%s2459 + $0xb4] sm:$0xf]
      %v2625 = vld [vmem:[%s2459 + $0xb8] sm:$0xf]
      %v2626 = vld [vmem:[%s2459 + $0xc0] sm:$0x8]
      %v2627 = vld [vmem:[%s2459 + $0xc4] sm:$0xf]
      %v2628 = vld [vmem:[%s2459 + $0xc8] sm:$0xf]
      %v2629 = vld [vmem:[%s2459 + $0xd0] sm:$0x8]
      %v2630 = vld [vmem:[%s2459 + $0xd4] sm:$0xf]
      %v2631 = vld [vmem:[%s2459 + $0xd8] sm:$0xf]
      %v2632 = vld [vmem:[%s2459 + $0xe0] sm:$0x8]
      %v2633 = vld [vmem:[%s2459 + $0xe4] sm:$0xf]
      %v2634 = vld [vmem:[%s2459 + $0xe8] sm:$0xf]
      %v2635 = vld [vmem:[%s2459 + $0xf0] sm:$0x8]
      %v2636 = vld [vmem:[%s2459 + $0xf4] sm:$0xf]
      %v2637 = vld [vmem:[%s2459 + $0xf8] sm:$0xf]
      %v2638 = vld [vmem:[%s2459 + $0xc] sm:$0x1]
      %v2639 = vld [vmem:[%s2459 + $0x1c] sm:$0x1]
      %v2640 = vld [vmem:[%s2459 + $0x2c] sm:$0x1]
      %v2641 = vld [vmem:[%s2459 + $0x3c] sm:$0x1]
      %v2642 = vld [vmem:[%s2459 + $0x4c] sm:$0x1]
      %v2643 = vld [vmem:[%s2459 + $0x5c] sm:$0x1]
      %v2644 = vld [vmem:[%s2459 + $0x6c] sm:$0x1]
      %v2645 = vld [vmem:[%s2459 + $0x7c] sm:$0x1]
      %v2646 = vld [vmem:[%s2459 + $0x8c] sm:$0x1]
      %v2647 = vld [vmem:[%s2459 + $0x9c] sm:$0x1]
      %v2648 = vld [vmem:[%s2459 + $0xac] sm:$0x1]
      %v2649 = vld [vmem:[%s2459 + $0xbc] sm:$0x1]
      %v2650 = vld [vmem:[%s2459 + $0xcc] sm:$0x1]
      %v2651 = vld [vmem:[%s2459 + $0xdc] sm:$0x1]
      %v2652 = vld [vmem:[%s2459 + $0xec] sm:$0x1]
      %v2653 = vld [vmem:[%s2459 + $0xfc] sm:$0x1]
      %s2654 = scalar_lea.vmem [#allocation2], 32
      %v2655 = vld [vmem:[%s2654] sm:$0x8]
      %v2656 = vld [vmem:[%s2654 + $0x4] sm:$0xf]
      %v2657 = vld [vmem:[%s2654 + $0x8] sm:$0xf]
      %v2658 = vld [vmem:[%s2654 + $0x10] sm:$0x8]
      %v2659 = vld [vmem:[%s2654 + $0x14] sm:$0xf]
      %v2660 = vld [vmem:[%s2654 + $0x18] sm:$0xf]
      %v2661 = vld [vmem:[%s2654 + $0x20] sm:$0x8]
      %v2662 = vld [vmem:[%s2654 + $0x24] sm:$0xf]
      %v2663 = vld [vmem:[%s2654 + $0x28] sm:$0xf]
      %v2664 = vld [vmem:[%s2654 + $0x30] sm:$0x8]
      %v2665 = vld [vmem:[%s2654 + $0x34] sm:$0xf]
      %v2666 = vld [vmem:[%s2654 + $0x38] sm:$0xf]
      %v2667 = vld [vmem:[%s2654 + $0x40] sm:$0x8]
      %v2668 = vld [vmem:[%s2654 + $0x44] sm:$0xf]
      %v2669 = vld [vmem:[%s2654 + $0x48] sm:$0xf]
      %v2670 = vld [vmem:[%s2654 + $0x50] sm:$0x8]
      %v2671 = vld [vmem:[%s2654 + $0x54] sm:$0xf]
      %v2672 = vld [vmem:[%s2654 + $0x58] sm:$0xf]
      %v2673 = vld [vmem:[%s2654 + $0x60] sm:$0x8]
      %v2674 = vld [vmem:[%s2654 + $0x64] sm:$0xf]
      %v2675 = vld [vmem:[%s2654 + $0x68] sm:$0xf]
      %v2676 = vld [vmem:[%s2654 + $0x70] sm:$0x8]
      %v2677 = vld [vmem:[%s2654 + $0x74] sm:$0xf]
      %v2678 = vld [vmem:[%s2654 + $0x78] sm:$0xf]
      %v2679 = vld [vmem:[%s2654 + $0x80] sm:$0x8]
      %v2680 = vld [vmem:[%s2654 + $0x84] sm:$0xf]
      %v2681 = vld [vmem:[%s2654 + $0x88] sm:$0xf]
      %v2682 = vld [vmem:[%s2654 + $0x90] sm:$0x8]
      %v2683 = vld [vmem:[%s2654 + $0x94] sm:$0xf]
      %v2684 = vld [vmem:[%s2654 + $0x98] sm:$0xf]
      %v2685 = vld [vmem:[%s2654 + $0xa0] sm:$0x8]
      %v2686 = vld [vmem:[%s2654 + $0xa4] sm:$0xf]
      %v2687 = vld [vmem:[%s2654 + $0xa8] sm:$0xf]
      %v2688 = vld [vmem:[%s2654 + $0xb0] sm:$0x8]
      %v2689 = vld [vmem:[%s2654 + $0xb4] sm:$0xf]
      %v2690 = vld [vmem:[%s2654 + $0xb8] sm:$0xf]
      %v2691 = vld [vmem:[%s2654 + $0xc0] sm:$0x8]
      %v2692 = vld [vmem:[%s2654 + $0xc4] sm:$0xf]
      %v2693 = vld [vmem:[%s2654 + $0xc8] sm:$0xf]
      %v2694 = vld [vmem:[%s2654 + $0xd0] sm:$0x8]
      %v2695 = vld [vmem:[%s2654 + $0xd4] sm:$0xf]
      %v2696 = vld [vmem:[%s2654 + $0xd8] sm:$0xf]
      %v2697 = vld [vmem:[%s2654 + $0xe0] sm:$0x8]
      %v2698 = vld [vmem:[%s2654 + $0xe4] sm:$0xf]
      %v2699 = vld [vmem:[%s2654 + $0xe8] sm:$0xf]
      %v2700 = vld [vmem:[%s2654 + $0xf0] sm:$0x8]
      %v2701 = vld [vmem:[%s2654 + $0xf4] sm:$0xf]
      %v2702 = vld [vmem:[%s2654 + $0xf8] sm:$0xf]
      %v2703 = vld [vmem:[%s2654 + $0xc] sm:$0x1]
      %v2704 = vld [vmem:[%s2654 + $0x1c] sm:$0x1]
      %v2705 = vld [vmem:[%s2654 + $0x2c] sm:$0x1]
      %v2706 = vld [vmem:[%s2654 + $0x3c] sm:$0x1]
      %v2707 = vld [vmem:[%s2654 + $0x4c] sm:$0x1]
      %v2708 = vld [vmem:[%s2654 + $0x5c] sm:$0x1]
      %v2709 = vld [vmem:[%s2654 + $0x6c] sm:$0x1]
      %v2710 = vld [vmem:[%s2654 + $0x7c] sm:$0x1]
      %v2711 = vld [vmem:[%s2654 + $0x8c] sm:$0x1]
      %v2712 = vld [vmem:[%s2654 + $0x9c] sm:$0x1]
      %v2713 = vld [vmem:[%s2654 + $0xac] sm:$0x1]
      %v2714 = vld [vmem:[%s2654 + $0xbc] sm:$0x1]
      %v2715 = vld [vmem:[%s2654 + $0xcc] sm:$0x1]
      %v2716 = vld [vmem:[%s2654 + $0xdc] sm:$0x1]
      %v2717 = vld [vmem:[%s2654 + $0xec] sm:$0x1]
      %v2718 = vld [vmem:[%s2654 + $0xfc] sm:$0x1]
      %v2767 = vunpack.c.l.b16 %v2526
      %v2768 = vunpack.c.l.b16 %v2527
      %v2769 = vunpack.c.l.b16 %v2528
      %v2770 = vunpack.c.l.b16 %v2529
      %v2771 = vunpack.c.l.b16 %v2530
      %v2772 = vunpack.c.l.b16 %v2531
      %v2773 = vunpack.c.l.b16 %v2532
      %v2774 = vunpack.c.l.b16 %v2533
      %v2775 = vunpack.c.l.b16 %v2534
      %v2776 = vunpack.c.l.b16 %v2535
      %v2777 = vunpack.c.l.b16 %v2536
      %v2778 = vunpack.c.l.b16 %v2537
      %v2779 = vunpack.c.l.b16 %v2538
      %v2780 = vunpack.c.l.b16 %v2539
      %v2781 = vunpack.c.l.b16 %v2540
      %v2782 = vunpack.c.l.b16 %v2541
      %v2783 = vunpack.c.l.b16 %v2542
      %v2784 = vunpack.c.l.b16 %v2543
      %v2785 = vunpack.c.l.b16 %v2544
      %v2786 = vunpack.c.l.b16 %v2545
      %v2787 = vunpack.c.l.b16 %v2546
      %v2788 = vunpack.c.l.b16 %v2547
      %v2789 = vunpack.c.l.b16 %v2548
      %v2790 = vunpack.c.l.b16 %v2549
      %v2791 = vunpack.c.l.b16 %v2550
      %v2792 = vunpack.c.l.b16 %v2551
      %v2793 = vunpack.c.l.b16 %v2552
      %v2794 = vunpack.c.l.b16 %v2553
      %v2795 = vunpack.c.l.b16 %v2554
      %v2796 = vunpack.c.l.b16 %v2555
      %v2797 = vunpack.c.l.b16 %v2556
      %v2798 = vunpack.c.l.b16 %v2557
      %v2799 = vunpack.c.l.b16 %v2558
      %v2800 = vunpack.c.l.b16 %v2559
      %v2801 = vunpack.c.l.b16 %v2560
      %v2802 = vunpack.c.l.b16 %v2561
      %v2803 = vunpack.c.l.b16 %v2562
      %v2804 = vunpack.c.l.b16 %v2563
      %v2805 = vunpack.c.l.b16 %v2564
      %v2806 = vunpack.c.l.b16 %v2565
      %v2807 = vunpack.c.l.b16 %v2566
      %v2808 = vunpack.c.l.b16 %v2567
      %v2809 = vunpack.c.l.b16 %v2568
      %v2810 = vunpack.c.l.b16 %v2569
      %v2811 = vunpack.c.l.b16 %v2570
      %v2812 = vunpack.c.l.b16 %v2571
      %v2813 = vunpack.c.l.b16 %v2572
      %v2814 = vunpack.c.l.b16 %v2573
      %v2815 = vpack.c.b16 %v2768, %v2767
      %v2816 = vpack.c.b16 %v2769, %v2769
      %v2817 = vpack.c.b16 %v2771, %v2770
      %v2818 = vpack.c.b16 %v2772, %v2772
      %v2819 = vpack.c.b16 %v2774, %v2773
      %v2820 = vpack.c.b16 %v2775, %v2775
      %v2821 = vpack.c.b16 %v2777, %v2776
      %v2822 = vpack.c.b16 %v2778, %v2778
      %v2823 = vpack.c.b16 %v2780, %v2779
      %v2824 = vpack.c.b16 %v2781, %v2781
      %v2825 = vpack.c.b16 %v2783, %v2782
      %v2826 = vpack.c.b16 %v2784, %v2784
      %v2827 = vpack.c.b16 %v2786, %v2785
      %v2828 = vpack.c.b16 %v2787, %v2787
      %v2829 = vpack.c.b16 %v2789, %v2788
      %v2830 = vpack.c.b16 %v2790, %v2790
      %v2831 = vpack.c.b16 %v2792, %v2791
      %v2832 = vpack.c.b16 %v2793, %v2793
      %v2833 = vpack.c.b16 %v2795, %v2794
      %v2834 = vpack.c.b16 %v2796, %v2796
      %v2835 = vpack.c.b16 %v2798, %v2797
      %v2836 = vpack.c.b16 %v2799, %v2799
      %v2837 = vpack.c.b16 %v2801, %v2800
      %v2838 = vpack.c.b16 %v2802, %v2802
      %v2839 = vpack.c.b16 %v2804, %v2803
      %v2840 = vpack.c.b16 %v2805, %v2805
      %v2841 = vpack.c.b16 %v2807, %v2806
      %v2842 = vpack.c.b16 %v2808, %v2808
      %v2843 = vpack.c.b16 %v2810, %v2809
      %v2844 = vpack.c.b16 %v2811, %v2811
      %v2845 = vpack.c.b16 %v2813, %v2812
      %v2846 = vpack.c.b16 %v2814, %v2814
      %v2847 = vpack.c.b16 %v2769, %v2768
      %v2848 = vpack.c.b16 %v2772, %v2771
      %v2849 = vpack.c.b16 %v2775, %v2774
      %v2850 = vpack.c.b16 %v2778, %v2777
      %v2851 = vpack.c.b16 %v2781, %v2780
      %v2852 = vpack.c.b16 %v2784, %v2783
      %v2853 = vpack.c.b16 %v2787, %v2786
      %v2854 = vpack.c.b16 %v2790, %v2789
      %v2855 = vpack.c.b16 %v2793, %v2792
      %v2856 = vpack.c.b16 %v2796, %v2795
      %v2857 = vpack.c.b16 %v2799, %v2798
      %v2858 = vpack.c.b16 %v2802, %v2801
      %v2859 = vpack.c.b16 %v2805, %v2804
      %v2860 = vpack.c.b16 %v2808, %v2807
      %v2861 = vpack.c.b16 %v2811, %v2810
      %v2862 = vpack.c.b16 %v2814, %v2813
      %v2864 = vshrl.u32 %v2847, 16
      %v2866 = vrot.slane %v2864, 4
      %v2867 = vshll.u32 %v2847, 16
      %v2869 = vrot.slane %v2867, 5
      %v2870 = vor.u32 %v2866, %v2869
      %v2872 = vshrl.u32 %v2848, 16
      %v2874 = vrot.slane %v2872, 4
      %v2875 = vshll.u32 %v2848, 16
      %v2877 = vrot.slane %v2875, 5
      %v2878 = vor.u32 %v2874, %v2877
      %v2880 = vshrl.u32 %v2849, 16
      %v2882 = vrot.slane %v2880, 4
      %v2883 = vshll.u32 %v2849, 16
      %v2885 = vrot.slane %v2883, 5
      %v2886 = vor.u32 %v2882, %v2885
      %v2888 = vshrl.u32 %v2850, 16
      %v2890 = vrot.slane %v2888, 4
      %v2891 = vshll.u32 %v2850, 16
      %v2893 = vrot.slane %v2891, 5
      %v2894 = vor.u32 %v2890, %v2893
      %v2896 = vshrl.u32 %v2851, 16
      %v2898 = vrot.slane %v2896, 4
      %v2899 = vshll.u32 %v2851, 16
      %v2901 = vrot.slane %v2899, 5
      %v2902 = vor.u32 %v2898, %v2901
      %v2904 = vshrl.u32 %v2852, 16
      %v2906 = vrot.slane %v2904, 4
      %v2907 = vshll.u32 %v2852, 16
      %v2909 = vrot.slane %v2907, 5
      %v2910 = vor.u32 %v2906, %v2909
      %v2912 = vshrl.u32 %v2853, 16
      %v2914 = vrot.slane %v2912, 4
      %v2915 = vshll.u32 %v2853, 16
      %v2917 = vrot.slane %v2915, 5
      %v2918 = vor.u32 %v2914, %v2917
      %v2920 = vshrl.u32 %v2854, 16
      %v2922 = vrot.slane %v2920, 4
      %v2923 = vshll.u32 %v2854, 16
      %v2925 = vrot.slane %v2923, 5
      %v2926 = vor.u32 %v2922, %v2925
      %v2928 = vshrl.u32 %v2855, 16
      %v2930 = vrot.slane %v2928, 4
      %v2931 = vshll.u32 %v2855, 16
      %v2933 = vrot.slane %v2931, 5
      %v2934 = vor.u32 %v2930, %v2933
      %v2936 = vshrl.u32 %v2856, 16
      %v2938 = vrot.slane %v2936, 4
      %v2939 = vshll.u32 %v2856, 16
      %v2941 = vrot.slane %v2939, 5
      %v2942 = vor.u32 %v2938, %v2941
      %v2944 = vshrl.u32 %v2857, 16
      %v2946 = vrot.slane %v2944, 4
      %v2947 = vshll.u32 %v2857, 16
      %v2949 = vrot.slane %v2947, 5
      %v2950 = vor.u32 %v2946, %v2949
      %v2952 = vshrl.u32 %v2858, 16
      %v2954 = vrot.slane %v2952, 4
      %v2955 = vshll.u32 %v2858, 16
      %v2957 = vrot.slane %v2955, 5
      %v2958 = vor.u32 %v2954, %v2957
      %v2960 = vshrl.u32 %v2859, 16
      %v2962 = vrot.slane %v2960, 4
      %v2963 = vshll.u32 %v2859, 16
      %v2965 = vrot.slane %v2963, 5
      %v2966 = vor.u32 %v2962, %v2965
      %v2968 = vshrl.u32 %v2860, 16
      %v2970 = vrot.slane %v2968, 4
      %v2971 = vshll.u32 %v2860, 16
      %v2973 = vrot.slane %v2971, 5
      %v2974 = vor.u32 %v2970, %v2973
      %v2976 = vshrl.u32 %v2861, 16
      %v2978 = vrot.slane %v2976, 4
      %v2979 = vshll.u32 %v2861, 16
      %v2981 = vrot.slane %v2979, 5
      %v2982 = vor.u32 %v2978, %v2981
      %v2984 = vshrl.u32 %v2862, 16
      %v2986 = vrot.slane %v2984, 4
      %v2987 = vshll.u32 %v2862, 16
      %v2989 = vrot.slane %v2987, 5
      %v2990 = vor.u32 %v2986, %v2989
      %2991 = vrot.lane.b32.xlu0 %v2870, 8
      %v2992 = vpop.permute.xlu0 %2991
      %2993 = vrot.lane.b32.xlu0 %v2878, 8
      %v2994 = vpop.permute.xlu0 %2993
      %2995 = vrot.lane.b32.xlu0 %v2886, 8
      %v2996 = vpop.permute.xlu0 %2995
      %2997 = vrot.lane.b32.xlu0 %v2894, 8
      %v2998 = vpop.permute.xlu0 %2997
      %2999 = vrot.lane.b32.xlu0 %v2902, 8
      %v3000 = vpop.permute.xlu0 %2999
      %3001 = vrot.lane.b32.xlu0 %v2910, 8
      %v3002 = vpop.permute.xlu0 %3001
      %3003 = vrot.lane.b32.xlu0 %v2918, 8
      %v3004 = vpop.permute.xlu0 %3003
      %3005 = vrot.lane.b32.xlu0 %v2926, 8
      %v3006 = vpop.permute.xlu0 %3005
      %3007 = vrot.lane.b32.xlu0 %v2934, 8
      %v3008 = vpop.permute.xlu0 %3007
      %3009 = vrot.lane.b32.xlu0 %v2942, 8
      %v3010 = vpop.permute.xlu0 %3009
      %3011 = vrot.lane.b32.xlu0 %v2950, 8
      %v3012 = vpop.permute.xlu0 %3011
      %3013 = vrot.lane.b32.xlu0 %v2958, 8
      %v3014 = vpop.permute.xlu0 %3013
      %3015 = vrot.lane.b32.xlu0 %v2966, 8
      %v3016 = vpop.permute.xlu0 %3015
      %3017 = vrot.lane.b32.xlu0 %v2974, 8
      %v3018 = vpop.permute.xlu0 %3017
      %3019 = vrot.lane.b32.xlu0 %v2982, 8
      %v3020 = vpop.permute.xlu0 %3019
      %3021 = vrot.lane.b32.xlu0 %v2990, 8
      %v3022 = vpop.permute.xlu0 %3021
      %v3039 = vunpack.c.l.b16 %v2574
      %v3040 = vunpack.c.l.b16 %v2575
      %v3041 = vunpack.c.l.b16 %v2576
      %v3042 = vunpack.c.l.b16 %v2577
      %v3043 = vunpack.c.l.b16 %v2578
      %v3044 = vunpack.c.l.b16 %v2579
      %v3045 = vunpack.c.l.b16 %v2580
      %v3046 = vunpack.c.l.b16 %v2581
      %v3047 = vunpack.c.l.b16 %v2582
      %v3048 = vunpack.c.l.b16 %v2583
      %v3049 = vunpack.c.l.b16 %v2584
      %v3050 = vunpack.c.l.b16 %v2585
      %v3051 = vunpack.c.l.b16 %v2586
      %v3052 = vunpack.c.l.b16 %v2587
      %v3053 = vunpack.c.l.b16 %v2588
      %v3054 = vunpack.c.l.b16 %v2589
      %v3055 = vpack.c.b16 %v3039, %v3039
      %v3056 = vpack.c.b16 %v3040, %v3040
      %v3057 = vpack.c.b16 %v3041, %v3041
      %v3058 = vpack.c.b16 %v3042, %v3042
      %v3059 = vpack.c.b16 %v3043, %v3043
      %v3060 = vpack.c.b16 %v3044, %v3044
      %v3061 = vpack.c.b16 %v3045, %v3045
      %v3062 = vpack.c.b16 %v3046, %v3046
      %v3063 = vpack.c.b16 %v3047, %v3047
      %v3064 = vpack.c.b16 %v3048, %v3048
      %v3065 = vpack.c.b16 %v3049, %v3049
      %v3066 = vpack.c.b16 %v3050, %v3050
      %v3067 = vpack.c.b16 %v3051, %v3051
      %v3068 = vpack.c.b16 %v3052, %v3052
      %v3069 = vpack.c.b16 %v3053, %v3053
      %v3070 = vpack.c.b16 %v3054, %v3054
      %vm3071 = vcmask 1042432
      %v3072 = vrot.slane %v2847, 5
      %v3073 = vrot.slane %v3055, 5
      %v3074 = vsel %vm3071, %v3072, %v3073
      %v3075 = vrot.slane %v2848, 5
      %v3076 = vrot.slane %v3056, 5
      %v3077 = vsel %vm3071, %v3075, %v3076
      %v3078 = vrot.slane %v2849, 5
      %v3079 = vrot.slane %v3057, 5
      %v3080 = vsel %vm3071, %v3078, %v3079
      %v3081 = vrot.slane %v2850, 5
      %v3082 = vrot.slane %v3058, 5
      %v3083 = vsel %vm3071, %v3081, %v3082
      %v3084 = vrot.slane %v2851, 5
      %v3085 = vrot.slane %v3059, 5
      %v3086 = vsel %vm3071, %v3084, %v3085
      %v3087 = vrot.slane %v2852, 5
      %v3088 = vrot.slane %v3060, 5
      %v3089 = vsel %vm3071, %v3087, %v3088
      %v3090 = vrot.slane %v2853, 5
      %v3091 = vrot.slane %v3061, 5
      %v3092 = vsel %vm3071, %v3090, %v3091
      %v3093 = vrot.slane %v2854, 5
      %v3094 = vrot.slane %v3062, 5
      %v3095 = vsel %vm3071, %v3093, %v3094
      %v3096 = vrot.slane %v2855, 5
      %v3097 = vrot.slane %v3063, 5
      %v3098 = vsel %vm3071, %v3096, %v3097
      %v3099 = vrot.slane %v2856, 5
      %v3100 = vrot.slane %v3064, 5
      %v3101 = vsel %vm3071, %v3099, %v3100
      %v3102 = vrot.slane %v2857, 5
      %v3103 = vrot.slane %v3065, 5
      %v3104 = vsel %vm3071, %v3102, %v3103
      %v3105 = vrot.slane %v2858, 5
      %v3106 = vrot.slane %v3066, 5
      %v3107 = vsel %vm3071, %v3105, %v3106
      %v3108 = vrot.slane %v2859, 5
      %v3109 = vrot.slane %v3067, 5
      %v3110 = vsel %vm3071, %v3108, %v3109
      %v3111 = vrot.slane %v2860, 5
      %v3112 = vrot.slane %v3068, 5
      %v3113 = vsel %vm3071, %v3111, %v3112
      %v3114 = vrot.slane %v2861, 5
      %v3115 = vrot.slane %v3069, 5
      %v3116 = vsel %vm3071, %v3114, %v3115
      %v3117 = vrot.slane %v2862, 5
      %v3118 = vrot.slane %v3070, 5
      %v3119 = vsel %vm3071, %v3117, %v3118
      %3120 = vrot.lane.b32.xlu0 %v3072, 16
      %v3121 = vpop.permute.xlu0 %3120
      %3122 = vrot.lane.b32.xlu0 %v3074, 16
      %v3123 = vpop.permute.xlu0 %3122
      %3124 = vrot.lane.b32.xlu0 %v3075, 16
      %v3125 = vpop.permute.xlu0 %3124
      %3126 = vrot.lane.b32.xlu0 %v3077, 16
      %v3127 = vpop.permute.xlu0 %3126
      %3128 = vrot.lane.b32.xlu0 %v3078, 16
      %v3129 = vpop.permute.xlu0 %3128
      %3130 = vrot.lane.b32.xlu0 %v3080, 16
      %v3131 = vpop.permute.xlu0 %3130
      %3132 = vrot.lane.b32.xlu0 %v3081, 16
      %v3133 = vpop.permute.xlu0 %3132
      %3134 = vrot.lane.b32.xlu0 %v3083, 16
      %v3135 = vpop.permute.xlu0 %3134
      %3136 = vrot.lane.b32.xlu0 %v3084, 16
      %v3137 = vpop.permute.xlu0 %3136
      %3138 = vrot.lane.b32.xlu0 %v3086, 16
      %v3139 = vpop.permute.xlu0 %3138
      %3140 = vrot.lane.b32.xlu0 %v3087, 16
      %v3141 = vpop.permute.xlu0 %3140
      %3142 = vrot.lane.b32.xlu0 %v3089, 16
      %v3143 = vpop.permute.xlu0 %3142
      %3144 = vrot.lane.b32.xlu0 %v3090, 16
      %v3145 = vpop.permute.xlu0 %3144
      %3146 = vrot.lane.b32.xlu0 %v3092, 16
      %v3147 = vpop.permute.xlu0 %3146
      %3148 = vrot.lane.b32.xlu0 %v3093, 16
      %v3149 = vpop.permute.xlu0 %3148
      %3150 = vrot.lane.b32.xlu0 %v3095, 16
      %v3151 = vpop.permute.xlu0 %3150
      %3152 = vrot.lane.b32.xlu0 %v3096, 16
      %v3153 = vpop.permute.xlu0 %3152
      %3154 = vrot.lane.b32.xlu0 %v3098, 16
      %v3155 = vpop.permute.xlu0 %3154
      %3156 = vrot.lane.b32.xlu0 %v3099, 16
      %v3157 = vpop.permute.xlu0 %3156
      %3158 = vrot.lane.b32.xlu0 %v3101, 16
      %v3159 = vpop.permute.xlu0 %3158
      %3160 = vrot.lane.b32.xlu0 %v3102, 16
      %v3161 = vpop.permute.xlu0 %3160
      %3162 = vrot.lane.b32.xlu0 %v3104, 16
      %v3163 = vpop.permute.xlu0 %3162
      %3164 = vrot.lane.b32.xlu0 %v3105, 16
      %v3165 = vpop.permute.xlu0 %3164
      %3166 = vrot.lane.b32.xlu0 %v3107, 16
      %v3167 = vpop.permute.xlu0 %3166
      %3168 = vrot.lane.b32.xlu0 %v3108, 16
      %v3169 = vpop.permute.xlu0 %3168
      %3170 = vrot.lane.b32.xlu0 %v3110, 16
      %v3171 = vpop.permute.xlu0 %3170
      %3172 = vrot.lane.b32.xlu0 %v3111, 16
      %v3173 = vpop.permute.xlu0 %3172
      %3174 = vrot.lane.b32.xlu0 %v3113, 16
      %v3175 = vpop.permute.xlu0 %3174
      %3176 = vrot.lane.b32.xlu0 %v3114, 16
      %v3177 = vpop.permute.xlu0 %3176
      %3178 = vrot.lane.b32.xlu0 %v3116, 16
      %v3179 = vpop.permute.xlu0 %3178
      %3180 = vrot.lane.b32.xlu0 %v3117, 16
      %v3181 = vpop.permute.xlu0 %3180
      %3182 = vrot.lane.b32.xlu0 %v3119, 16
      %v3183 = vpop.permute.xlu0 %3182
      %v3232 = vunpack.c.l.b16 %v2590
      %v3233 = vunpack.c.l.b16 %v2591
      %v3234 = vunpack.c.l.b16 %v2592
      %v3235 = vunpack.c.l.b16 %v2593
      %v3236 = vunpack.c.l.b16 %v2594
      %v3237 = vunpack.c.l.b16 %v2595
      %v3238 = vunpack.c.l.b16 %v2596
      %v3239 = vunpack.c.l.b16 %v2597
      %v3240 = vunpack.c.l.b16 %v2598
      %v3241 = vunpack.c.l.b16 %v2599
      %v3242 = vunpack.c.l.b16 %v2600
      %v3243 = vunpack.c.l.b16 %v2601
      %v3244 = vunpack.c.l.b16 %v2602
      %v3245 = vunpack.c.l.b16 %v2603
      %v3246 = vunpack.c.l.b16 %v2604
      %v3247 = vunpack.c.l.b16 %v2605
      %v3248 = vunpack.c.l.b16 %v2606
      %v3249 = vunpack.c.l.b16 %v2607
      %v3250 = vunpack.c.l.b16 %v2608
      %v3251 = vunpack.c.l.b16 %v2609
      %v3252 = vunpack.c.l.b16 %v2610
      %v3253 = vunpack.c.l.b16 %v2611
      %v3254 = vunpack.c.l.b16 %v2612
      %v3255 = vunpack.c.l.b16 %v2613
      %v3256 = vunpack.c.l.b16 %v2614
      %v3257 = vunpack.c.l.b16 %v2615
      %v3258 = vunpack.c.l.b16 %v2616
      %v3259 = vunpack.c.l.b16 %v2617
      %v3260 = vunpack.c.l.b16 %v2618
      %v3261 = vunpack.c.l.b16 %v2619
      %v3262 = vunpack.c.l.b16 %v2620
      %v3263 = vunpack.c.l.b16 %v2621
      %v3264 = vunpack.c.l.b16 %v2622
      %v3265 = vunpack.c.l.b16 %v2623
      %v3266 = vunpack.c.l.b16 %v2624
      %v3267 = vunpack.c.l.b16 %v2625
      %v3268 = vunpack.c.l.b16 %v2626
      %v3269 = vunpack.c.l.b16 %v2627
      %v3270 = vunpack.c.l.b16 %v2628
      %v3271 = vunpack.c.l.b16 %v2629
      %v3272 = vunpack.c.l.b16 %v2630
      %v3273 = vunpack.c.l.b16 %v2631
      %v3274 = vunpack.c.l.b16 %v2632
      %v3275 = vunpack.c.l.b16 %v2633
      %v3276 = vunpack.c.l.b16 %v2634
      %v3277 = vunpack.c.l.b16 %v2635
      %v3278 = vunpack.c.l.b16 %v2636
      %v3279 = vunpack.c.l.b16 %v2637
      %v3280 = vpack.c.b16 %v3233, %v3232
      %v3281 = vpack.c.b16 %v3234, %v3234
      %v3282 = vpack.c.b16 %v3236, %v3235
      %v3283 = vpack.c.b16 %v3237, %v3237
      %v3284 = vpack.c.b16 %v3239, %v3238
      %v3285 = vpack.c.b16 %v3240, %v3240
      %v3286 = vpack.c.b16 %v3242, %v3241
      %v3287 = vpack.c.b16 %v3243, %v3243
      %v3288 = vpack.c.b16 %v3245, %v3244
      %v3289 = vpack.c.b16 %v3246, %v3246
      %v3290 = vpack.c.b16 %v3248, %v3247
      %v3291 = vpack.c.b16 %v3249, %v3249
      %v3292 = vpack.c.b16 %v3251, %v3250
      %v3293 = vpack.c.b16 %v3252, %v3252
      %v3294 = vpack.c.b16 %v3254, %v3253
      %v3295 = vpack.c.b16 %v3255, %v3255
      %v3296 = vpack.c.b16 %v3257, %v3256
      %v3297 = vpack.c.b16 %v3258, %v3258
      %v3298 = vpack.c.b16 %v3260, %v3259
      %v3299 = vpack.c.b16 %v3261, %v3261
      %v3300 = vpack.c.b16 %v3263, %v3262
      %v3301 = vpack.c.b16 %v3264, %v3264
      %v3302 = vpack.c.b16 %v3266, %v3265
      %v3303 = vpack.c.b16 %v3267, %v3267
      %v3304 = vpack.c.b16 %v3269, %v3268
      %v3305 = vpack.c.b16 %v3270, %v3270
      %v3306 = vpack.c.b16 %v3272, %v3271
      %v3307 = vpack.c.b16 %v3273, %v3273
      %v3308 = vpack.c.b16 %v3275, %v3274
      %v3309 = vpack.c.b16 %v3276, %v3276
      %v3310 = vpack.c.b16 %v3278, %v3277
      %v3311 = vpack.c.b16 %v3279, %v3279
      %3312 = vrot.lane.b32.xlu0 %v3280, 24
      %v3313 = vpop.permute.xlu0 %3312
      %3314 = vrot.lane.b32.xlu0 %v3281, 24
      %v3315 = vpop.permute.xlu0 %3314
      %3316 = vrot.lane.b32.xlu0 %v3282, 24
      %v3317 = vpop.permute.xlu0 %3316
      %3318 = vrot.lane.b32.xlu0 %v3283, 24
      %v3319 = vpop.permute.xlu0 %3318
      %3320 = vrot.lane.b32.xlu0 %v3284, 24
      %v3321 = vpop.permute.xlu0 %3320
      %3322 = vrot.lane.b32.xlu0 %v3285, 24
      %v3323 = vpop.permute.xlu0 %3322
      %3324 = vrot.lane.b32.xlu0 %v3286, 24
      %v3325 = vpop.permute.xlu0 %3324
      %3326 = vrot.lane.b32.xlu0 %v3287, 24
      %v3327 = vpop.permute.xlu0 %3326
      %3328 = vrot.lane.b32.xlu0 %v3288, 24
      %v3329 = vpop.permute.xlu0 %3328
      %3330 = vrot.lane.b32.xlu0 %v3289, 24
      %v3331 = vpop.permute.xlu0 %3330
      %3332 = vrot.lane.b32.xlu0 %v3290, 24
      %v3333 = vpop.permute.xlu0 %3332
      %3334 = vrot.lane.b32.xlu0 %v3291, 24
      %v3335 = vpop.permute.xlu0 %3334
      %3336 = vrot.lane.b32.xlu0 %v3292, 24
      %v3337 = vpop.permute.xlu0 %3336
      %3338 = vrot.lane.b32.xlu0 %v3293, 24
      %v3339 = vpop.permute.xlu0 %3338
      %3340 = vrot.lane.b32.xlu0 %v3294, 24
      %v3341 = vpop.permute.xlu0 %3340
      %3342 = vrot.lane.b32.xlu0 %v3295, 24
      %v3343 = vpop.permute.xlu0 %3342
      %3344 = vrot.lane.b32.xlu0 %v3296, 24
      %v3345 = vpop.permute.xlu0 %3344
      %3346 = vrot.lane.b32.xlu0 %v3297, 24
      %v3347 = vpop.permute.xlu0 %3346
      %3348 = vrot.lane.b32.xlu0 %v3298, 24
      %v3349 = vpop.permute.xlu0 %3348
      %3350 = vrot.lane.b32.xlu0 %v3299, 24
      %v3351 = vpop.permute.xlu0 %3350
      %3352 = vrot.lane.b32.xlu0 %v3300, 24
      %v3353 = vpop.permute.xlu0 %3352
      %3354 = vrot.lane.b32.xlu0 %v3301, 24
      %v3355 = vpop.permute.xlu0 %3354
      %3356 = vrot.lane.b32.xlu0 %v3302, 24
      %v3357 = vpop.permute.xlu0 %3356
      %3358 = vrot.lane.b32.xlu0 %v3303, 24
      %v3359 = vpop.permute.xlu0 %3358
      %3360 = vrot.lane.b32.xlu0 %v3304, 24
      %v3361 = vpop.permute.xlu0 %3360
      %3362 = vrot.lane.b32.xlu0 %v3305, 24
      %v3363 = vpop.permute.xlu0 %3362
      %3364 = vrot.lane.b32.xlu0 %v3306, 24
      %v3365 = vpop.permute.xlu0 %3364
      %3366 = vrot.lane.b32.xlu0 %v3307, 24
      %v3367 = vpop.permute.xlu0 %3366
      %3368 = vrot.lane.b32.xlu0 %v3308, 24
      %v3369 = vpop.permute.xlu0 %3368
      %3370 = vrot.lane.b32.xlu0 %v3309, 24
      %v3371 = vpop.permute.xlu0 %3370
      %3372 = vrot.lane.b32.xlu0 %v3310, 24
      %v3373 = vpop.permute.xlu0 %3372
      %3374 = vrot.lane.b32.xlu0 %v3311, 24
      %v3375 = vpop.permute.xlu0 %3374
      %v3376 = vpack.c.b16 %v3234, %v3233
      %v3377 = vpack.c.b16 %v3237, %v3236
      %v3378 = vpack.c.b16 %v3240, %v3239
      %v3379 = vpack.c.b16 %v3243, %v3242
      %v3380 = vpack.c.b16 %v3246, %v3245
      %v3381 = vpack.c.b16 %v3249, %v3248
      %v3382 = vpack.c.b16 %v3252, %v3251
      %v3383 = vpack.c.b16 %v3255, %v3254
      %v3384 = vpack.c.b16 %v3258, %v3257
      %v3385 = vpack.c.b16 %v3261, %v3260
      %v3386 = vpack.c.b16 %v3264, %v3263
      %v3387 = vpack.c.b16 %v3267, %v3266
      %v3388 = vpack.c.b16 %v3270, %v3269
      %v3389 = vpack.c.b16 %v3273, %v3272
      %v3390 = vpack.c.b16 %v3276, %v3275
      %v3391 = vpack.c.b16 %v3279, %v3278
      %v3393 = vshrl.u32 %v3376, 16
      %v3395 = vrot.slane %v3393, 4
      %v3396 = vshll.u32 %v3376, 16
      %v3398 = vrot.slane %v3396, 5
      %v3399 = vor.u32 %v3395, %v3398
      %v3401 = vshrl.u32 %v3377, 16
      %v3403 = vrot.slane %v3401, 4
      %v3404 = vshll.u32 %v3377, 16
      %v3406 = vrot.slane %v3404, 5
      %v3407 = vor.u32 %v3403, %v3406
      %v3409 = vshrl.u32 %v3378, 16
      %v3411 = vrot.slane %v3409, 4
      %v3412 = vshll.u32 %v3378, 16
      %v3414 = vrot.slane %v3412, 5
      %v3415 = vor.u32 %v3411, %v3414
      %v3417 = vshrl.u32 %v3379, 16
      %v3419 = vrot.slane %v3417, 4
      %v3420 = vshll.u32 %v3379, 16
      %v3422 = vrot.slane %v3420, 5
      %v3423 = vor.u32 %v3419, %v3422
      %v3425 = vshrl.u32 %v3380, 16
      %v3427 = vrot.slane %v3425, 4
      %v3428 = vshll.u32 %v3380, 16
      %v3430 = vrot.slane %v3428, 5
      %v3431 = vor.u32 %v3427, %v3430
      %v3433 = vshrl.u32 %v3381, 16
      %v3435 = vrot.slane %v3433, 4
      %v3436 = vshll.u32 %v3381, 16
      %v3438 = vrot.slane %v3436, 5
      %v3439 = vor.u32 %v3435, %v3438
      %v3441 = vshrl.u32 %v3382, 16
      %v3443 = vrot.slane %v3441, 4
      %v3444 = vshll.u32 %v3382, 16
      %v3446 = vrot.slane %v3444, 5
      %v3447 = vor.u32 %v3443, %v3446
      %v3449 = vshrl.u32 %v3383, 16
      %v3451 = vrot.slane %v3449, 4
      %v3452 = vshll.u32 %v3383, 16
      %v3454 = vrot.slane %v3452, 5
      %v3455 = vor.u32 %v3451, %v3454
      %v3457 = vshrl.u32 %v3384, 16
      %v3459 = vrot.slane %v3457, 4
      %v3460 = vshll.u32 %v3384, 16
      %v3462 = vrot.slane %v3460, 5
      %v3463 = vor.u32 %v3459, %v3462
      %v3465 = vshrl.u32 %v3385, 16
      %v3467 = vrot.slane %v3465, 4
      %v3468 = vshll.u32 %v3385, 16
      %v3470 = vrot.slane %v3468, 5
      %v3471 = vor.u32 %v3467, %v3470
      %v3473 = vshrl.u32 %v3386, 16
      %v3475 = vrot.slane %v3473, 4
      %v3476 = vshll.u32 %v3386, 16
      %v3478 = vrot.slane %v3476, 5
      %v3479 = vor.u32 %v3475, %v3478
      %v3481 = vshrl.u32 %v3387, 16
      %v3483 = vrot.slane %v3481, 4
      %v3484 = vshll.u32 %v3387, 16
      %v3486 = vrot.slane %v3484, 5
      %v3487 = vor.u32 %v3483, %v3486
      %v3489 = vshrl.u32 %v3388, 16
      %v3491 = vrot.slane %v3489, 4
      %v3492 = vshll.u32 %v3388, 16
      %v3494 = vrot.slane %v3492, 5
      %v3495 = vor.u32 %v3491, %v3494
      %v3497 = vshrl.u32 %v3389, 16
      %v3499 = vrot.slane %v3497, 4
      %v3500 = vshll.u32 %v3389, 16
      %v3502 = vrot.slane %v3500, 5
      %v3503 = vor.u32 %v3499, %v3502
      %v3505 = vshrl.u32 %v3390, 16
      %v3507 = vrot.slane %v3505, 4
      %v3508 = vshll.u32 %v3390, 16
      %v3510 = vrot.slane %v3508, 5
      %v3511 = vor.u32 %v3507, %v3510
      %v3513 = vshrl.u32 %v3391, 16
      %v3515 = vrot.slane %v3513, 4
      %v3516 = vshll.u32 %v3391, 16
      %v3518 = vrot.slane %v3516, 5
      %v3519 = vor.u32 %v3515, %v3518
      %3520 = vrot.lane.b32.xlu0 %v3399, 32
      %v3521 = vpop.permute.xlu0 %3520
      %3522 = vrot.lane.b32.xlu0 %v3407, 32
      %v3523 = vpop.permute.xlu0 %3522
      %3524 = vrot.lane.b32.xlu0 %v3415, 32
      %v3525 = vpop.permute.xlu0 %3524
      %3526 = vrot.lane.b32.xlu0 %v3423, 32
      %v3527 = vpop.permute.xlu0 %3526
      %3528 = vrot.lane.b32.xlu0 %v3431, 32
      %v3529 = vpop.permute.xlu0 %3528
      %3530 = vrot.lane.b32.xlu0 %v3439, 32
      %v3531 = vpop.permute.xlu0 %3530
      %3532 = vrot.lane.b32.xlu0 %v3447, 32
      %v3533 = vpop.permute.xlu0 %3532
      %3534 = vrot.lane.b32.xlu0 %v3455, 32
      %v3535 = vpop.permute.xlu0 %3534
      %3536 = vrot.lane.b32.xlu0 %v3463, 32
      %v3537 = vpop.permute.xlu0 %3536
      %3538 = vrot.lane.b32.xlu0 %v3471, 32
      %v3539 = vpop.permute.xlu0 %3538
      %3540 = vrot.lane.b32.xlu0 %v3479, 32
      %v3541 = vpop.permute.xlu0 %3540
      %3542 = vrot.lane.b32.xlu0 %v3487, 32
      %v3543 = vpop.permute.xlu0 %3542
      %3544 = vrot.lane.b32.xlu0 %v3495, 32
      %v3545 = vpop.permute.xlu0 %3544
      %3546 = vrot.lane.b32.xlu0 %v3503, 32
      %v3547 = vpop.permute.xlu0 %3546
      %3548 = vrot.lane.b32.xlu0 %v3511, 32
      %v3549 = vpop.permute.xlu0 %3548
      %3550 = vrot.lane.b32.xlu0 %v3519, 32
      %v3551 = vpop.permute.xlu0 %3550
      %v3568 = vunpack.c.l.b16 %v2638
      %v3569 = vunpack.c.l.b16 %v2639
      %v3570 = vunpack.c.l.b16 %v2640
      %v3571 = vunpack.c.l.b16 %v2641
      %v3572 = vunpack.c.l.b16 %v2642
      %v3573 = vunpack.c.l.b16 %v2643
      %v3574 = vunpack.c.l.b16 %v2644
      %v3575 = vunpack.c.l.b16 %v2645
      %v3576 = vunpack.c.l.b16 %v2646
      %v3577 = vunpack.c.l.b16 %v2647
      %v3578 = vunpack.c.l.b16 %v2648
      %v3579 = vunpack.c.l.b16 %v2649
      %v3580 = vunpack.c.l.b16 %v2650
      %v3581 = vunpack.c.l.b16 %v2651
      %v3582 = vunpack.c.l.b16 %v2652
      %v3583 = vunpack.c.l.b16 %v2653
      %v3584 = vpack.c.b16 %v3568, %v3568
      %v3585 = vpack.c.b16 %v3569, %v3569
      %v3586 = vpack.c.b16 %v3570, %v3570
      %v3587 = vpack.c.b16 %v3571, %v3571
      %v3588 = vpack.c.b16 %v3572, %v3572
      %v3589 = vpack.c.b16 %v3573, %v3573
      %v3590 = vpack.c.b16 %v3574, %v3574
      %v3591 = vpack.c.b16 %v3575, %v3575
      %v3592 = vpack.c.b16 %v3576, %v3576
      %v3593 = vpack.c.b16 %v3577, %v3577
      %v3594 = vpack.c.b16 %v3578, %v3578
      %v3595 = vpack.c.b16 %v3579, %v3579
      %v3596 = vpack.c.b16 %v3580, %v3580
      %v3597 = vpack.c.b16 %v3581, %v3581
      %v3598 = vpack.c.b16 %v3582, %v3582
      %v3599 = vpack.c.b16 %v3583, %v3583
      %v3600 = vrot.slane %v3376, 5
      %v3601 = vrot.slane %v3584, 5
      %v3602 = vsel %vm3071, %v3600, %v3601
      %v3603 = vrot.slane %v3377, 5
      %v3604 = vrot.slane %v3585, 5
      %v3605 = vsel %vm3071, %v3603, %v3604
      %v3606 = vrot.slane %v3378, 5
      %v3607 = vrot.slane %v3586, 5
      %v3608 = vsel %vm3071, %v3606, %v3607
      %v3609 = vrot.slane %v3379, 5
      %v3610 = vrot.slane %v3587, 5
      %v3611 = vsel %vm3071, %v3609, %v3610
      %v3612 = vrot.slane %v3380, 5
      %v3613 = vrot.slane %v3588, 5
      %v3614 = vsel %vm3071, %v3612, %v3613
      %v3615 = vrot.slane %v3381, 5
      %v3616 = vrot.slane %v3589, 5
      %v3617 = vsel %vm3071, %v3615, %v3616
      %v3618 = vrot.slane %v3382, 5
      %v3619 = vrot.slane %v3590, 5
      %v3620 = vsel %vm3071, %v3618, %v3619
      %v3621 = vrot.slane %v3383, 5
      %v3622 = vrot.slane %v3591, 5
      %v3623 = vsel %vm3071, %v3621, %v3622
      %v3624 = vrot.slane %v3384, 5
      %v3625 = vrot.slane %v3592, 5
      %v3626 = vsel %vm3071, %v3624, %v3625
      %v3627 = vrot.slane %v3385, 5
      %v3628 = vrot.slane %v3593, 5
      %v3629 = vsel %vm3071, %v3627, %v3628
      %v3630 = vrot.slane %v3386, 5
      %v3631 = vrot.slane %v3594, 5
      %v3632 = vsel %vm3071, %v3630, %v3631
      %v3633 = vrot.slane %v3387, 5
      %v3634 = vrot.slane %v3595, 5
      %v3635 = vsel %vm3071, %v3633, %v3634
      %v3636 = vrot.slane %v3388, 5
      %v3637 = vrot.slane %v3596, 5
      %v3638 = vsel %vm3071, %v3636, %v3637
      %v3639 = vrot.slane %v3389, 5
      %v3640 = vrot.slane %v3597, 5
      %v3641 = vsel %vm3071, %v3639, %v3640
      %v3642 = vrot.slane %v3390, 5
      %v3643 = vrot.slane %v3598, 5
      %v3644 = vsel %vm3071, %v3642, %v3643
      %v3645 = vrot.slane %v3391, 5
      %v3646 = vrot.slane %v3599, 5
      %v3647 = vsel %vm3071, %v3645, %v3646
      %3648 = vrot.lane.b32.xlu0 %v3600, 40
      %v3649 = vpop.permute.xlu0 %3648
      %3650 = vrot.lane.b32.xlu0 %v3602, 40
      %v3651 = vpop.permute.xlu0 %3650
      %3652 = vrot.lane.b32.xlu0 %v3603, 40
      %v3653 = vpop.permute.xlu0 %3652
      %3654 = vrot.lane.b32.xlu0 %v3605, 40
      %v3655 = vpop.permute.xlu0 %3654
      %3656 = vrot.lane.b32.xlu0 %v3606, 40
      %v3657 = vpop.permute.xlu0 %3656
      %3658 = vrot.lane.b32.xlu0 %v3608, 40
      %v3659 = vpop.permute.xlu0 %3658
      %3660 = vrot.lane.b32.xlu0 %v3609, 40
      %v3661 = vpop.permute.xlu0 %3660
      %3662 = vrot.lane.b32.xlu0 %v3611, 40
      %v3663 = vpop.permute.xlu0 %3662
      %3664 = vrot.lane.b32.xlu0 %v3612, 40
      %v3665 = vpop.permute.xlu0 %3664
      %3666 = vrot.lane.b32.xlu0 %v3614, 40
      %v3667 = vpop.permute.xlu0 %3666
      %3668 = vrot.lane.b32.xlu0 %v3615, 40
      %v3669 = vpop.permute.xlu0 %3668
      %3670 = vrot.lane.b32.xlu0 %v3617, 40
      %v3671 = vpop.permute.xlu0 %3670
      %3672 = vrot.lane.b32.xlu0 %v3618, 40
      %v3673 = vpop.permute.xlu0 %3672
      %3674 = vrot.lane.b32.xlu0 %v3620, 40
      %v3675 = vpop.permute.xlu0 %3674
      %3676 = vrot.lane.b32.xlu0 %v3621, 40
      %v3677 = vpop.permute.xlu0 %3676
      %3678 = vrot.lane.b32.xlu0 %v3623, 40
      %v3679 = vpop.permute.xlu0 %3678
      %3680 = vrot.lane.b32.xlu0 %v3624, 40
      %v3681 = vpop.permute.xlu0 %3680
      %3682 = vrot.lane.b32.xlu0 %v3626, 40
      %v3683 = vpop.permute.xlu0 %3682
      %3684 = vrot.lane.b32.xlu0 %v3627, 40
      %v3685 = vpop.permute.xlu0 %3684
      %3686 = vrot.lane.b32.xlu0 %v3629, 40
      %v3687 = vpop.permute.xlu0 %3686
      %3688 = vrot.lane.b32.xlu0 %v3630, 40
      %v3689 = vpop.permute.xlu0 %3688
      %3690 = vrot.lane.b32.xlu0 %v3632, 40
      %v3691 = vpop.permute.xlu0 %3690
      %3692 = vrot.lane.b32.xlu0 %v3633, 40
      %v3693 = vpop.permute.xlu0 %3692
      %3694 = vrot.lane.b32.xlu0 %v3635, 40
      %v3695 = vpop.permute.xlu0 %3694
      %3696 = vrot.lane.b32.xlu0 %v3636, 40
      %v3697 = vpop.permute.xlu0 %3696
      %3698 = vrot.lane.b32.xlu0 %v3638, 40
      %v3699 = vpop.permute.xlu0 %3698
      %3700 = vrot.lane.b32.xlu0 %v3639, 40
      %v3701 = vpop.permute.xlu0 %3700
      %3702 = vrot.lane.b32.xlu0 %v3641, 40
      %v3703 = vpop.permute.xlu0 %3702
      %3704 = vrot.lane.b32.xlu0 %v3642, 40
      %v3705 = vpop.permute.xlu0 %3704
      %3706 = vrot.lane.b32.xlu0 %v3644, 40
      %v3707 = vpop.permute.xlu0 %3706
      %3708 = vrot.lane.b32.xlu0 %v3645, 40
      %v3709 = vpop.permute.xlu0 %3708
      %3710 = vrot.lane.b32.xlu0 %v3647, 40
      %v3711 = vpop.permute.xlu0 %3710
      %v3760 = vunpack.c.l.b16 %v2655
      %v3761 = vunpack.c.l.b16 %v2656
      %v3762 = vunpack.c.l.b16 %v2657
      %v3763 = vunpack.c.l.b16 %v2658
      %v3764 = vunpack.c.l.b16 %v2659
      %v3765 = vunpack.c.l.b16 %v2660
      %v3766 = vunpack.c.l.b16 %v2661
      %v3767 = vunpack.c.l.b16 %v2662
      %v3768 = vunpack.c.l.b16 %v2663
      %v3769 = vunpack.c.l.b16 %v2664
      %v3770 = vunpack.c.l.b16 %v2665
      %v3771 = vunpack.c.l.b16 %v2666
      %v3772 = vunpack.c.l.b16 %v2667
      %v3773 = vunpack.c.l.b16 %v2668
      %v3774 = vunpack.c.l.b16 %v2669
      %v3775 = vunpack.c.l.b16 %v2670
      %v3776 = vunpack.c.l.b16 %v2671
      %v3777 = vunpack.c.l.b16 %v2672
      %v3778 = vunpack.c.l.b16 %v2673
      %v3779 = vunpack.c.l.b16 %v2674
      %v3780 = vunpack.c.l.b16 %v2675
      %v3781 = vunpack.c.l.b16 %v2676
      %v3782 = vunpack.c.l.b16 %v2677
      %v3783 = vunpack.c.l.b16 %v2678
      %v3784 = vunpack.c.l.b16 %v2679
      %v3785 = vunpack.c.l.b16 %v2680
      %v3786 = vunpack.c.l.b16 %v2681
      %v3787 = vunpack.c.l.b16 %v2682
      %v3788 = vunpack.c.l.b16 %v2683
      %v3789 = vunpack.c.l.b16 %v2684
      %v3790 = vunpack.c.l.b16 %v2685
      %v3791 = vunpack.c.l.b16 %v2686
      %v3792 = vunpack.c.l.b16 %v2687
      %v3793 = vunpack.c.l.b16 %v2688
      %v3794 = vunpack.c.l.b16 %v2689
      %v3795 = vunpack.c.l.b16 %v2690
      %v3796 = vunpack.c.l.b16 %v2691
      %v3797 = vunpack.c.l.b16 %v2692
      %v3798 = vunpack.c.l.b16 %v2693
      %v3799 = vunpack.c.l.b16 %v2694
      %v3800 = vunpack.c.l.b16 %v2695
      %v3801 = vunpack.c.l.b16 %v2696
      %v3802 = vunpack.c.l.b16 %v2697
      %v3803 = vunpack.c.l.b16 %v2698
      %v3804 = vunpack.c.l.b16 %v2699
      %v3805 = vunpack.c.l.b16 %v2700
      %v3806 = vunpack.c.l.b16 %v2701
      %v3807 = vunpack.c.l.b16 %v2702
      %v3808 = vpack.c.b16 %v3761, %v3760
      %v3809 = vpack.c.b16 %v3762, %v3762
      %v3810 = vpack.c.b16 %v3764, %v3763
      %v3811 = vpack.c.b16 %v3765, %v3765
      %v3812 = vpack.c.b16 %v3767, %v3766
      %v3813 = vpack.c.b16 %v3768, %v3768
      %v3814 = vpack.c.b16 %v3770, %v3769
      %v3815 = vpack.c.b16 %v3771, %v3771
      %v3816 = vpack.c.b16 %v3773, %v3772
      %v3817 = vpack.c.b16 %v3774, %v3774
      %v3818 = vpack.c.b16 %v3776, %v3775
      %v3819 = vpack.c.b16 %v3777, %v3777
      %v3820 = vpack.c.b16 %v3779, %v3778
      %v3821 = vpack.c.b16 %v3780, %v3780
      %v3822 = vpack.c.b16 %v3782, %v3781
      %v3823 = vpack.c.b16 %v3783, %v3783
      %v3824 = vpack.c.b16 %v3785, %v3784
      %v3825 = vpack.c.b16 %v3786, %v3786
      %v3826 = vpack.c.b16 %v3788, %v3787
      %v3827 = vpack.c.b16 %v3789, %v3789
      %v3828 = vpack.c.b16 %v3791, %v3790
      %v3829 = vpack.c.b16 %v3792, %v3792
      %v3830 = vpack.c.b16 %v3794, %v3793
      %v3831 = vpack.c.b16 %v3795, %v3795
      %v3832 = vpack.c.b16 %v3797, %v3796
      %v3833 = vpack.c.b16 %v3798, %v3798
      %v3834 = vpack.c.b16 %v3800, %v3799
      %v3835 = vpack.c.b16 %v3801, %v3801
      %v3836 = vpack.c.b16 %v3803, %v3802
      %v3837 = vpack.c.b16 %v3804, %v3804
      %v3838 = vpack.c.b16 %v3806, %v3805
      %v3839 = vpack.c.b16 %v3807, %v3807
      %3840 = vrot.lane.b32.xlu0 %v3808, 48
      %v3841 = vpop.permute.xlu0 %3840
      %3842 = vrot.lane.b32.xlu0 %v3809, 48
      %v3843 = vpop.permute.xlu0 %3842
      %3844 = vrot.lane.b32.xlu0 %v3810, 48
      %v3845 = vpop.permute.xlu0 %3844
      %3846 = vrot.lane.b32.xlu0 %v3811, 48
      %v3847 = vpop.permute.xlu0 %3846
      %3848 = vrot.lane.b32.xlu0 %v3812, 48
      %v3849 = vpop.permute.xlu0 %3848
      %3850 = vrot.lane.b32.xlu0 %v3813, 48
      %v3851 = vpop.permute.xlu0 %3850
      %3852 = vrot.lane.b32.xlu0 %v3814, 48
      %v3853 = vpop.permute.xlu0 %3852
      %3854 = vrot.lane.b32.xlu0 %v3815, 48
      %v3855 = vpop.permute.xlu0 %3854
      %3856 = vrot.lane.b32.xlu0 %v3816, 48
      %v3857 = vpop.permute.xlu0 %3856
      %3858 = vrot.lane.b32.xlu0 %v3817, 48
      %v3859 = vpop.permute.xlu0 %3858
      %3860 = vrot.lane.b32.xlu0 %v3818, 48
      %v3861 = vpop.permute.xlu0 %3860
      %3862 = vrot.lane.b32.xlu0 %v3819, 48
      %v3863 = vpop.permute.xlu0 %3862
      %3864 = vrot.lane.b32.xlu0 %v3820, 48
      %v3865 = vpop.permute.xlu0 %3864
      %3866 = vrot.lane.b32.xlu0 %v3821, 48
      %v3867 = vpop.permute.xlu0 %3866
      %3868 = vrot.lane.b32.xlu0 %v3822, 48
      %v3869 = vpop.permute.xlu0 %3868
      %3870 = vrot.lane.b32.xlu0 %v3823, 48
      %v3871 = vpop.permute.xlu0 %3870
      %3872 = vrot.lane.b32.xlu0 %v3824, 48
      %v3873 = vpop.permute.xlu0 %3872
      %3874 = vrot.lane.b32.xlu0 %v3825, 48
      %v3875 = vpop.permute.xlu0 %3874
      %3876 = vrot.lane.b32.xlu0 %v3826, 48
      %v3877 = vpop.permute.xlu0 %3876
      %3878 = vrot.lane.b32.xlu0 %v3827, 48
      %v3879 = vpop.permute.xlu0 %3878
      %3880 = vrot.lane.b32.xlu0 %v3828, 48
      %v3881 = vpop.permute.xlu0 %3880
      %3882 = vrot.lane.b32.xlu0 %v3829, 48
      %v3883 = vpop.permute.xlu0 %3882
      %3884 = vrot.lane.b32.xlu0 %v3830, 48
      %v3885 = vpop.permute.xlu0 %3884
      %3886 = vrot.lane.b32.xlu0 %v3831, 48
      %v3887 = vpop.permute.xlu0 %3886
      %3888 = vrot.lane.b32.xlu0 %v3832, 48
      %v3889 = vpop.permute.xlu0 %3888
      %3890 = vrot.lane.b32.xlu0 %v3833, 48
      %v3891 = vpop.permute.xlu0 %3890
      %3892 = vrot.lane.b32.xlu0 %v3834, 48
      %v3893 = vpop.permute.xlu0 %3892
      %3894 = vrot.lane.b32.xlu0 %v3835, 48
      %v3895 = vpop.permute.xlu0 %3894
      %3896 = vrot.lane.b32.xlu0 %v3836, 48
      %v3897 = vpop.permute.xlu0 %3896
      %3898 = vrot.lane.b32.xlu0 %v3837, 48
      %v3899 = vpop.permute.xlu0 %3898
      %3900 = vrot.lane.b32.xlu0 %v3838, 48
      %v3901 = vpop.permute.xlu0 %3900
      %3902 = vrot.lane.b32.xlu0 %v3839, 48
      %v3903 = vpop.permute.xlu0 %3902
      %v3904 = vpack.c.b16 %v3762, %v3761
      %v3905 = vpack.c.b16 %v3765, %v3764
      %v3906 = vpack.c.b16 %v3768, %v3767
      %v3907 = vpack.c.b16 %v3771, %v3770
      %v3908 = vpack.c.b16 %v3774, %v3773
      %v3909 = vpack.c.b16 %v3777, %v3776
      %v3910 = vpack.c.b16 %v3780, %v3779
      %v3911 = vpack.c.b16 %v3783, %v3782
      %v3912 = vpack.c.b16 %v3786, %v3785
      %v3913 = vpack.c.b16 %v3789, %v3788
      %v3914 = vpack.c.b16 %v3792, %v3791
      %v3915 = vpack.c.b16 %v3795, %v3794
      %v3916 = vpack.c.b16 %v3798, %v3797
      %v3917 = vpack.c.b16 %v3801, %v3800
      %v3918 = vpack.c.b16 %v3804, %v3803
      %v3919 = vpack.c.b16 %v3807, %v3806
      %v3921 = vshrl.u32 %v3904, 16
      %v3923 = vrot.slane %v3921, 4
      %v3924 = vshll.u32 %v3904, 16
      %v3926 = vrot.slane %v3924, 5
      %v3927 = vor.u32 %v3923, %v3926
      %v3929 = vshrl.u32 %v3905, 16
      %v3931 = vrot.slane %v3929, 4
      %v3932 = vshll.u32 %v3905, 16
      %v3934 = vrot.slane %v3932, 5
      %v3935 = vor.u32 %v3931, %v3934
      %v3937 = vshrl.u32 %v3906, 16
      %v3939 = vrot.slane %v3937, 4
      %v3940 = vshll.u32 %v3906, 16
      %v3942 = vrot.slane %v3940, 5
      %v3943 = vor.u32 %v3939, %v3942
      %v3945 = vshrl.u32 %v3907, 16
      %v3947 = vrot.slane %v3945, 4
      %v3948 = vshll.u32 %v3907, 16
      %v3950 = vrot.slane %v3948, 5
      %v3951 = vor.u32 %v3947, %v3950
      %v3953 = vshrl.u32 %v3908, 16
      %v3955 = vrot.slane %v3953, 4
      %v3956 = vshll.u32 %v3908, 16
      %v3958 = vrot.slane %v3956, 5
      %v3959 = vor.u32 %v3955, %v3958
      %v3961 = vshrl.u32 %v3909, 16
      %v3963 = vrot.slane %v3961, 4
      %v3964 = vshll.u32 %v3909, 16
      %v3966 = vrot.slane %v3964, 5
      %v3967 = vor.u32 %v3963, %v3966
      %v3969 = vshrl.u32 %v3910, 16
      %v3971 = vrot.slane %v3969, 4
      %v3972 = vshll.u32 %v3910, 16
      %v3974 = vrot.slane %v3972, 5
      %v3975 = vor.u32 %v3971, %v3974
      %v3977 = vshrl.u32 %v3911, 16
      %v3979 = vrot.slane %v3977, 4
      %v3980 = vshll.u32 %v3911, 16
      %v3982 = vrot.slane %v3980, 5
      %v3983 = vor.u32 %v3979, %v3982
      %v3985 = vshrl.u32 %v3912, 16
      %v3987 = vrot.slane %v3985, 4
      %v3988 = vshll.u32 %v3912, 16
      %v3990 = vrot.slane %v3988, 5
      %v3991 = vor.u32 %v3987, %v3990
      %v3993 = vshrl.u32 %v3913, 16
      %v3995 = vrot.slane %v3993, 4
      %v3996 = vshll.u32 %v3913, 16
      %v3998 = vrot.slane %v3996, 5
      %v3999 = vor.u32 %v3995, %v3998
      %v4001 = vshrl.u32 %v3914, 16
      %v4003 = vrot.slane %v4001, 4
      %v4004 = vshll.u32 %v3914, 16
      %v4006 = vrot.slane %v4004, 5
      %v4007 = vor.u32 %v4003, %v4006
      %v4009 = vshrl.u32 %v3915, 16
      %v4011 = vrot.slane %v4009, 4
      %v4012 = vshll.u32 %v3915, 16
      %v4014 = vrot.slane %v4012, 5
      %v4015 = vor.u32 %v4011, %v4014
      %v4017 = vshrl.u32 %v3916, 16
      %v4019 = vrot.slane %v4017, 4
      %v4020 = vshll.u32 %v3916, 16
      %v4022 = vrot.slane %v4020, 5
      %v4023 = vor.u32 %v4019, %v4022
      %v4025 = vshrl.u32 %v3917, 16
      %v4027 = vrot.slane %v4025, 4
      %v4028 = vshll.u32 %v3917, 16
      %v4030 = vrot.slane %v4028, 5
      %v4031 = vor.u32 %v4027, %v4030
      %v4033 = vshrl.u32 %v3918, 16
      %v4035 = vrot.slane %v4033, 4
      %v4036 = vshll.u32 %v3918, 16
      %v4038 = vrot.slane %v4036, 5
      %v4039 = vor.u32 %v4035, %v4038
      %v4041 = vshrl.u32 %v3919, 16
      %v4043 = vrot.slane %v4041, 4
      %v4044 = vshll.u32 %v3919, 16
      %v4046 = vrot.slane %v4044, 5
      %v4047 = vor.u32 %v4043, %v4046
      %4048 = vrot.lane.b32.xlu0 %v3927, 56
      %v4049 = vpop.permute.xlu0 %4048
      %4050 = vrot.lane.b32.xlu0 %v3935, 56
      %v4051 = vpop.permute.xlu0 %4050
      %4052 = vrot.lane.b32.xlu0 %v3943, 56
      %v4053 = vpop.permute.xlu0 %4052
      %4054 = vrot.lane.b32.xlu0 %v3951, 56
      %v4055 = vpop.permute.xlu0 %4054
      %4056 = vrot.lane.b32.xlu0 %v3959, 56
      %v4057 = vpop.permute.xlu0 %4056
      %4058 = vrot.lane.b32.xlu0 %v3967, 56
      %v4059 = vpop.permute.xlu0 %4058
      %4060 = vrot.lane.b32.xlu0 %v3975, 56
      %v4061 = vpop.permute.xlu0 %4060
      %4062 = vrot.lane.b32.xlu0 %v3983, 56
      %v4063 = vpop.permute.xlu0 %4062
      %4064 = vrot.lane.b32.xlu0 %v3991, 56
      %v4065 = vpop.permute.xlu0 %4064
      %4066 = vrot.lane.b32.xlu0 %v3999, 56
      %v4067 = vpop.permute.xlu0 %4066
      %4068 = vrot.lane.b32.xlu0 %v4007, 56
      %v4069 = vpop.permute.xlu0 %4068
      %4070 = vrot.lane.b32.xlu0 %v4015, 56
      %v4071 = vpop.permute.xlu0 %4070
      %4072 = vrot.lane.b32.xlu0 %v4023, 56
      %v4073 = vpop.permute.xlu0 %4072
      %4074 = vrot.lane.b32.xlu0 %v4031, 56
      %v4075 = vpop.permute.xlu0 %4074
      %4076 = vrot.lane.b32.xlu0 %v4039, 56
      %v4077 = vpop.permute.xlu0 %4076
      %4078 = vrot.lane.b32.xlu0 %v4047, 56
      %v4079 = vpop.permute.xlu0 %4078
      %v4096 = vunpack.c.l.b16 %v2703
      %v4097 = vunpack.c.l.b16 %v2704
      %v4098 = vunpack.c.l.b16 %v2705
      %v4099 = vunpack.c.l.b16 %v2706
      %v4100 = vunpack.c.l.b16 %v2707
      %v4101 = vunpack.c.l.b16 %v2708
      %v4102 = vunpack.c.l.b16 %v2709
      %v4103 = vunpack.c.l.b16 %v2710
      %v4104 = vunpack.c.l.b16 %v2711
      %v4105 = vunpack.c.l.b16 %v2712
      %v4106 = vunpack.c.l.b16 %v2713
      %v4107 = vunpack.c.l.b16 %v2714
      %v4108 = vunpack.c.l.b16 %v2715
      %v4109 = vunpack.c.l.b16 %v2716
      %v4110 = vunpack.c.l.b16 %v2717
      %v4111 = vunpack.c.l.b16 %v2718
      %v4112 = vpack.c.b16 %v4096, %v4096
      %v4113 = vpack.c.b16 %v4097, %v4097
      %v4114 = vpack.c.b16 %v4098, %v4098
      %v4115 = vpack.c.b16 %v4099, %v4099
      %v4116 = vpack.c.b16 %v4100, %v4100
      %v4117 = vpack.c.b16 %v4101, %v4101
      %v4118 = vpack.c.b16 %v4102, %v4102
      %v4119 = vpack.c.b16 %v4103, %v4103
      %v4120 = vpack.c.b16 %v4104, %v4104
      %v4121 = vpack.c.b16 %v4105, %v4105
      %v4122 = vpack.c.b16 %v4106, %v4106
      %v4123 = vpack.c.b16 %v4107, %v4107
      %v4124 = vpack.c.b16 %v4108, %v4108
      %v4125 = vpack.c.b16 %v4109, %v4109
      %v4126 = vpack.c.b16 %v4110, %v4110
      %v4127 = vpack.c.b16 %v4111, %v4111
      %v4128 = vrot.slane %v3904, 5
      %v4129 = vrot.slane %v4112, 5
      %v4130 = vsel %vm3071, %v4128, %v4129
      %v4131 = vrot.slane %v3905, 5
      %v4132 = vrot.slane %v4113, 5
      %v4133 = vsel %vm3071, %v4131, %v4132
      %v4134 = vrot.slane %v3906, 5
      %v4135 = vrot.slane %v4114, 5
      %v4136 = vsel %vm3071, %v4134, %v4135
      %v4137 = vrot.slane %v3907, 5
      %v4138 = vrot.slane %v4115, 5
      %v4139 = vsel %vm3071, %v4137, %v4138
      %v4140 = vrot.slane %v3908, 5
      %v4141 = vrot.slane %v4116, 5
      %v4142 = vsel %vm3071, %v4140, %v4141
      %v4143 = vrot.slane %v3909, 5
      %v4144 = vrot.slane %v4117, 5
      %v4145 = vsel %vm3071, %v4143, %v4144
      %v4146 = vrot.slane %v3910, 5
      %v4147 = vrot.slane %v4118, 5
      %v4148 = vsel %vm3071, %v4146, %v4147
      %v4149 = vrot.slane %v3911, 5
      %v4150 = vrot.slane %v4119, 5
      %v4151 = vsel %vm3071, %v4149, %v4150
      %v4152 = vrot.slane %v3912, 5
      %v4153 = vrot.slane %v4120, 5
      %v4154 = vsel %vm3071, %v4152, %v4153
      %v4155 = vrot.slane %v3913, 5
      %v4156 = vrot.slane %v4121, 5
      %v4157 = vsel %vm3071, %v4155, %v4156
      %v4158 = vrot.slane %v3914, 5
      %v4159 = vrot.slane %v4122, 5
      %v4160 = vsel %vm3071, %v4158, %v4159
      %v4161 = vrot.slane %v3915, 5
      %v4162 = vrot.slane %v4123, 5
      %v4163 = vsel %vm3071, %v4161, %v4162
      %v4164 = vrot.slane %v3916, 5
      %v4165 = vrot.slane %v4124, 5
      %v4166 = vsel %vm3071, %v4164, %v4165
      %v4167 = vrot.slane %v3917, 5
      %v4168 = vrot.slane %v4125, 5
      %v4169 = vsel %vm3071, %v4167, %v4168
      %v4170 = vrot.slane %v3918, 5
      %v4171 = vrot.slane %v4126, 5
      %v4172 = vsel %vm3071, %v4170, %v4171
      %v4173 = vrot.slane %v3919, 5
      %v4174 = vrot.slane %v4127, 5
      %v4175 = vsel %vm3071, %v4173, %v4174
      %4176 = vrot.lane.b32.xlu0 %v4128, 64
      %v4177 = vpop.permute.xlu0 %4176
      %4178 = vrot.lane.b32.xlu0 %v4130, 64
      %v4179 = vpop.permute.xlu0 %4178
      %4180 = vrot.lane.b32.xlu0 %v4131, 64
      %v4181 = vpop.permute.xlu0 %4180
      %4182 = vrot.lane.b32.xlu0 %v4133, 64
      %v4183 = vpop.permute.xlu0 %4182
      %4184 = vrot.lane.b32.xlu0 %v4134, 64
      %v4185 = vpop.permute.xlu0 %4184
      %4186 = vrot.lane.b32.xlu0 %v4136, 64
      %v4187 = vpop.permute.xlu0 %4186
      %4188 = vrot.lane.b32.xlu0 %v4137, 64
      %v4189 = vpop.permute.xlu0 %4188
      %4190 = vrot.lane.b32.xlu0 %v4139, 64
      %v4191 = vpop.permute.xlu0 %4190
      %4192 = vrot.lane.b32.xlu0 %v4140, 64
      %v4193 = vpop.permute.xlu0 %4192
      %4194 = vrot.lane.b32.xlu0 %v4142, 64
      %v4195 = vpop.permute.xlu0 %4194
      %4196 = vrot.lane.b32.xlu0 %v4143, 64
      %v4197 = vpop.permute.xlu0 %4196
      %4198 = vrot.lane.b32.xlu0 %v4145, 64
      %v4199 = vpop.permute.xlu0 %4198
      %4200 = vrot.lane.b32.xlu0 %v4146, 64
      %v4201 = vpop.permute.xlu0 %4200
      %4202 = vrot.lane.b32.xlu0 %v4148, 64
      %v4203 = vpop.permute.xlu0 %4202
      %4204 = vrot.lane.b32.xlu0 %v4149, 64
      %v4205 = vpop.permute.xlu0 %4204
      %4206 = vrot.lane.b32.xlu0 %v4151, 64
      %v4207 = vpop.permute.xlu0 %4206
      %4208 = vrot.lane.b32.xlu0 %v4152, 64
      %v4209 = vpop.permute.xlu0 %4208
      %4210 = vrot.lane.b32.xlu0 %v4154, 64
      %v4211 = vpop.permute.xlu0 %4210
      %4212 = vrot.lane.b32.xlu0 %v4155, 64
      %v4213 = vpop.permute.xlu0 %4212
      %4214 = vrot.lane.b32.xlu0 %v4157, 64
      %v4215 = vpop.permute.xlu0 %4214
      %4216 = vrot.lane.b32.xlu0 %v4158, 64
      %v4217 = vpop.permute.xlu0 %4216
      %4218 = vrot.lane.b32.xlu0 %v4160, 64
      %v4219 = vpop.permute.xlu0 %4218
      %4220 = vrot.lane.b32.xlu0 %v4161, 64
      %v4221 = vpop.permute.xlu0 %4220
      %4222 = vrot.lane.b32.xlu0 %v4163, 64
      %v4223 = vpop.permute.xlu0 %4222
      %4224 = vrot.lane.b32.xlu0 %v4164, 64
      %v4225 = vpop.permute.xlu0 %4224
      %4226 = vrot.lane.b32.xlu0 %v4166, 64
      %v4227 = vpop.permute.xlu0 %4226
      %4228 = vrot.lane.b32.xlu0 %v4167, 64
      %v4229 = vpop.permute.xlu0 %4228
      %4230 = vrot.lane.b32.xlu0 %v4169, 64
      %v4231 = vpop.permute.xlu0 %4230
      %4232 = vrot.lane.b32.xlu0 %v4170, 64
      %v4233 = vpop.permute.xlu0 %4232
      %4234 = vrot.lane.b32.xlu0 %v4172, 64
      %v4235 = vpop.permute.xlu0 %4234
      %4236 = vrot.lane.b32.xlu0 %v4173, 64
      %v4237 = vpop.permute.xlu0 %4236
      %4238 = vrot.lane.b32.xlu0 %v4175, 64
      %v4239 = vpop.permute.xlu0 %4238
      %v4242 = vsel %vm358, %v2815, %v2992
      %v4244 = vsel %vm358, %v2816, %v2992
      %v4247 = vsel %vm358, %v2817, %v2994
      %v4249 = vsel %vm358, %v2818, %v2994
      %v4252 = vsel %vm358, %v2819, %v2996
      %v4254 = vsel %vm358, %v2820, %v2996
      %v4257 = vsel %vm358, %v2821, %v2998
      %v4259 = vsel %vm358, %v2822, %v2998
      %v4262 = vsel %vm358, %v2823, %v3000
      %v4264 = vsel %vm358, %v2824, %v3000
      %v4267 = vsel %vm358, %v2825, %v3002
      %v4269 = vsel %vm358, %v2826, %v3002
      %v4272 = vsel %vm358, %v2827, %v3004
      %v4274 = vsel %vm358, %v2828, %v3004
      %v4277 = vsel %vm358, %v2829, %v3006
      %v4279 = vsel %vm358, %v2830, %v3006
      %v4282 = vsel %vm358, %v2831, %v3008
      %v4284 = vsel %vm358, %v2832, %v3008
      %v4287 = vsel %vm358, %v2833, %v3010
      %v4289 = vsel %vm358, %v2834, %v3010
      %v4292 = vsel %vm358, %v2835, %v3012
      %v4294 = vsel %vm358, %v2836, %v3012
      %v4297 = vsel %vm358, %v2837, %v3014
      %v4299 = vsel %vm358, %v2838, %v3014
      %v4302 = vsel %vm358, %v2839, %v3016
      %v4304 = vsel %vm358, %v2840, %v3016
      %v4307 = vsel %vm358, %v2841, %v3018
      %v4309 = vsel %vm358, %v2842, %v3018
      %v4312 = vsel %vm358, %v2843, %v3020
      %v4314 = vsel %vm358, %v2844, %v3020
      %v4317 = vsel %vm358, %v2845, %v3022
      %v4319 = vsel %vm358, %v2846, %v3022
      %vm4320 = vcmask 130048
      %v4322 = vsel %vm4320, %v4242, %v3121
      %v4324 = vsel %vm4320, %v4244, %v3123
      %v4326 = vsel %vm4320, %v4247, %v3125
      %v4328 = vsel %vm4320, %v4249, %v3127
      %v4330 = vsel %vm4320, %v4252, %v3129
      %v4332 = vsel %vm4320, %v4254, %v3131
      %v4334 = vsel %vm4320, %v4257, %v3133
      %v4336 = vsel %vm4320, %v4259, %v3135
      %v4338 = vsel %vm4320, %v4262, %v3137
      %v4340 = vsel %vm4320, %v4264, %v3139
      %v4342 = vsel %vm4320, %v4267, %v3141
      %v4344 = vsel %vm4320, %v4269, %v3143
      %v4346 = vsel %vm4320, %v4272, %v3145
      %v4348 = vsel %vm4320, %v4274, %v3147
      %v4350 = vsel %vm4320, %v4277, %v3149
      %v4352 = vsel %vm4320, %v4279, %v3151
      %v4354 = vsel %vm4320, %v4282, %v3153
      %v4356 = vsel %vm4320, %v4284, %v3155
      %v4358 = vsel %vm4320, %v4287, %v3157
      %v4360 = vsel %vm4320, %v4289, %v3159
      %v4362 = vsel %vm4320, %v4292, %v3161
      %v4364 = vsel %vm4320, %v4294, %v3163
      %v4366 = vsel %vm4320, %v4297, %v3165
      %v4368 = vsel %vm4320, %v4299, %v3167
      %v4370 = vsel %vm4320, %v4302, %v3169
      %v4372 = vsel %vm4320, %v4304, %v3171
      %v4374 = vsel %vm4320, %v4307, %v3173
      %v4376 = vsel %vm4320, %v4309, %v3175
      %v4378 = vsel %vm4320, %v4312, %v3177
      %v4380 = vsel %vm4320, %v4314, %v3179
      %v4382 = vsel %vm4320, %v4317, %v3181
      %v4384 = vsel %vm4320, %v4319, %v3183
      %vm4385 = vcmask 195584
      %v4387 = vsel %vm4385, %v4322, %v3313
      %v4389 = vsel %vm4385, %v4324, %v3315
      %v4391 = vsel %vm4385, %v4326, %v3317
      %v4393 = vsel %vm4385, %v4328, %v3319
      %v4395 = vsel %vm4385, %v4330, %v3321
      %v4397 = vsel %vm4385, %v4332, %v3323
      %v4399 = vsel %vm4385, %v4334, %v3325
      %v4401 = vsel %vm4385, %v4336, %v3327
      %v4403 = vsel %vm4385, %v4338, %v3329
      %v4405 = vsel %vm4385, %v4340, %v3331
      %v4407 = vsel %vm4385, %v4342, %v3333
      %v4409 = vsel %vm4385, %v4344, %v3335
      %v4411 = vsel %vm4385, %v4346, %v3337
      %v4413 = vsel %vm4385, %v4348, %v3339
      %v4415 = vsel %vm4385, %v4350, %v3341
      %v4417 = vsel %vm4385, %v4352, %v3343
      %v4419 = vsel %vm4385, %v4354, %v3345
      %v4421 = vsel %vm4385, %v4356, %v3347
      %v4423 = vsel %vm4385, %v4358, %v3349
      %v4425 = vsel %vm4385, %v4360, %v3351
      %v4427 = vsel %vm4385, %v4362, %v3353
      %v4429 = vsel %vm4385, %v4364, %v3355
      %v4431 = vsel %vm4385, %v4366, %v3357
      %v4433 = vsel %vm4385, %v4368, %v3359
      %v4435 = vsel %vm4385, %v4370, %v3361
      %v4437 = vsel %vm4385, %v4372, %v3363
      %v4439 = vsel %vm4385, %v4374, %v3365
      %v4441 = vsel %vm4385, %v4376, %v3367
      %v4443 = vsel %vm4385, %v4378, %v3369
      %v4445 = vsel %vm4385, %v4380, %v3371
      %v4447 = vsel %vm4385, %v4382, %v3373
      %v4449 = vsel %vm4385, %v4384, %v3375
      %vm4450 = vcmask 261120
      %v4452 = vsel %vm4450, %v4387, %v3521
      %v4453 = vsel %vm4450, %v4389, %v3521
      %v4455 = vsel %vm4450, %v4391, %v3523
      %v4456 = vsel %vm4450, %v4393, %v3523
      %v4458 = vsel %vm4450, %v4395, %v3525
      %v4459 = vsel %vm4450, %v4397, %v3525
      %v4461 = vsel %vm4450, %v4399, %v3527
      %v4462 = vsel %vm4450, %v4401, %v3527
      %v4464 = vsel %vm4450, %v4403, %v3529
      %v4465 = vsel %vm4450, %v4405, %v3529
      %v4467 = vsel %vm4450, %v4407, %v3531
      %v4468 = vsel %vm4450, %v4409, %v3531
      %v4470 = vsel %vm4450, %v4411, %v3533
      %v4471 = vsel %vm4450, %v4413, %v3533
      %v4473 = vsel %vm4450, %v4415, %v3535
      %v4474 = vsel %vm4450, %v4417, %v3535
      %v4476 = vsel %vm4450, %v4419, %v3537
      %v4477 = vsel %vm4450, %v4421, %v3537
      %v4479 = vsel %vm4450, %v4423, %v3539
      %v4480 = vsel %vm4450, %v4425, %v3539
      %v4482 = vsel %vm4450, %v4427, %v3541
      %v4483 = vsel %vm4450, %v4429, %v3541
      %v4485 = vsel %vm4450, %v4431, %v3543
      %v4486 = vsel %vm4450, %v4433, %v3543
      %v4488 = vsel %vm4450, %v4435, %v3545
      %v4489 = vsel %vm4450, %v4437, %v3545
      %v4491 = vsel %vm4450, %v4439, %v3547
      %v4492 = vsel %vm4450, %v4441, %v3547
      %v4494 = vsel %vm4450, %v4443, %v3549
      %v4495 = vsel %vm4450, %v4445, %v3549
      %v4497 = vsel %vm4450, %v4447, %v3551
      %v4498 = vsel %vm4450, %v4449, %v3551
      %vm4499 = vcmask 326656
      %v4501 = vsel %vm4499, %v4452, %v3649
      %v4503 = vsel %vm4499, %v4453, %v3651
      %v4505 = vsel %vm4499, %v4455, %v3653
      %v4507 = vsel %vm4499, %v4456, %v3655
      %v4509 = vsel %vm4499, %v4458, %v3657
      %v4511 = vsel %vm4499, %v4459, %v3659
      %v4513 = vsel %vm4499, %v4461, %v3661
      %v4515 = vsel %vm4499, %v4462, %v3663
      %v4517 = vsel %vm4499, %v4464, %v3665
      %v4519 = vsel %vm4499, %v4465, %v3667
      %v4521 = vsel %vm4499, %v4467, %v3669
      %v4523 = vsel %vm4499, %v4468, %v3671
      %v4525 = vsel %vm4499, %v4470, %v3673
      %v4527 = vsel %vm4499, %v4471, %v3675
      %v4529 = vsel %vm4499, %v4473, %v3677
      %v4531 = vsel %vm4499, %v4474, %v3679
      %v4533 = vsel %vm4499, %v4476, %v3681
      %v4535 = vsel %vm4499, %v4477, %v3683
      %v4537 = vsel %vm4499, %v4479, %v3685
      %v4539 = vsel %vm4499, %v4480, %v3687
      %v4541 = vsel %vm4499, %v4482, %v3689
      %v4543 = vsel %vm4499, %v4483, %v3691
      %v4545 = vsel %vm4499, %v4485, %v3693
      %v4547 = vsel %vm4499, %v4486, %v3695
      %v4549 = vsel %vm4499, %v4488, %v3697
      %v4551 = vsel %vm4499, %v4489, %v3699
      %v4553 = vsel %vm4499, %v4491, %v3701
      %v4555 = vsel %vm4499, %v4492, %v3703
      %v4557 = vsel %vm4499, %v4494, %v3705
      %v4559 = vsel %vm4499, %v4495, %v3707
      %v4561 = vsel %vm4499, %v4497, %v3709
      %v4563 = vsel %vm4499, %v4498, %v3711
      %vm4564 = vcmask 392192
      %v4566 = vsel %vm4564, %v4501, %v3841
      %v4568 = vsel %vm4564, %v4503, %v3843
      %v4570 = vsel %vm4564, %v4505, %v3845
      %v4572 = vsel %vm4564, %v4507, %v3847
      %v4574 = vsel %vm4564, %v4509, %v3849
      %v4576 = vsel %vm4564, %v4511, %v3851
      %v4578 = vsel %vm4564, %v4513, %v3853
      %v4580 = vsel %vm4564, %v4515, %v3855
      %v4582 = vsel %vm4564, %v4517, %v3857
      %v4584 = vsel %vm4564, %v4519, %v3859
      %v4586 = vsel %vm4564, %v4521, %v3861
      %v4588 = vsel %vm4564, %v4523, %v3863
      %v4590 = vsel %vm4564, %v4525, %v3865
      %v4592 = vsel %vm4564, %v4527, %v3867
      %v4594 = vsel %vm4564, %v4529, %v3869
      %v4596 = vsel %vm4564, %v4531, %v3871
      %v4598 = vsel %vm4564, %v4533, %v3873
      %v4600 = vsel %vm4564, %v4535, %v3875
      %v4602 = vsel %vm4564, %v4537, %v3877
      %v4604 = vsel %vm4564, %v4539, %v3879
      %v4606 = vsel %vm4564, %v4541, %v3881
      %v4608 = vsel %vm4564, %v4543, %v3883
      %v4610 = vsel %vm4564, %v4545, %v3885
      %v4612 = vsel %vm4564, %v4547, %v3887
      %v4614 = vsel %vm4564, %v4549, %v3889
      %v4616 = vsel %vm4564, %v4551, %v3891
      %v4618 = vsel %vm4564, %v4553, %v3893
      %v4620 = vsel %vm4564, %v4555, %v3895
      %v4622 = vsel %vm4564, %v4557, %v3897
      %v4624 = vsel %vm4564, %v4559, %v3899
      %v4626 = vsel %vm4564, %v4561, %v3901
      %v4628 = vsel %vm4564, %v4563, %v3903
      %vm4629 = vcmask 457728
      %v4631 = vsel %vm4629, %v4566, %v4049
      %v4632 = vsel %vm4629, %v4568, %v4049
      %v4634 = vsel %vm4629, %v4570, %v4051
      %v4635 = vsel %vm4629, %v4572, %v4051
      %v4637 = vsel %vm4629, %v4574, %v4053
      %v4638 = vsel %vm4629, %v4576, %v4053
      %v4640 = vsel %vm4629, %v4578, %v4055
      %v4641 = vsel %vm4629, %v4580, %v4055
      %v4643 = vsel %vm4629, %v4582, %v4057
      %v4644 = vsel %vm4629, %v4584, %v4057
      %v4646 = vsel %vm4629, %v4586, %v4059
      %v4647 = vsel %vm4629, %v4588, %v4059
      %v4649 = vsel %vm4629, %v4590, %v4061
      %v4650 = vsel %vm4629, %v4592, %v4061
      %v4652 = vsel %vm4629, %v4594, %v4063
      %v4653 = vsel %vm4629, %v4596, %v4063
      %v4655 = vsel %vm4629, %v4598, %v4065
      %v4656 = vsel %vm4629, %v4600, %v4065
      %v4658 = vsel %vm4629, %v4602, %v4067
      %v4659 = vsel %vm4629, %v4604, %v4067
      %v4661 = vsel %vm4629, %v4606, %v4069
      %v4662 = vsel %vm4629, %v4608, %v4069
      %v4664 = vsel %vm4629, %v4610, %v4071
      %v4665 = vsel %vm4629, %v4612, %v4071
      %v4667 = vsel %vm4629, %v4614, %v4073
      %v4668 = vsel %vm4629, %v4616, %v4073
      %v4670 = vsel %vm4629, %v4618, %v4075
      %v4671 = vsel %vm4629, %v4620, %v4075
      %v4673 = vsel %vm4629, %v4622, %v4077
      %v4674 = vsel %vm4629, %v4624, %v4077
      %v4676 = vsel %vm4629, %v4626, %v4079
      %v4677 = vsel %vm4629, %v4628, %v4079
      %vm4678 = vcmask 523264
      %v4680 = vsel %vm4678, %v4631, %v4177
      %v4682 = vsel %vm4678, %v4632, %v4179
      %v4684 = vsel %vm4678, %v4634, %v4181
      %v4686 = vsel %vm4678, %v4635, %v4183
      %v4688 = vsel %vm4678, %v4637, %v4185
      %v4690 = vsel %vm4678, %v4638, %v4187
      %v4692 = vsel %vm4678, %v4640, %v4189
      %v4694 = vsel %vm4678, %v4641, %v4191
      %v4696 = vsel %vm4678, %v4643, %v4193
      %v4698 = vsel %vm4678, %v4644, %v4195
      %v4700 = vsel %vm4678, %v4646, %v4197
      %v4702 = vsel %vm4678, %v4647, %v4199
      %v4704 = vsel %vm4678, %v4649, %v4201
      %v4706 = vsel %vm4678, %v4650, %v4203
      %v4708 = vsel %vm4678, %v4652, %v4205
      %v4710 = vsel %vm4678, %v4653, %v4207
      %v4712 = vsel %vm4678, %v4655, %v4209
      %v4714 = vsel %vm4678, %v4656, %v4211
      %v4716 = vsel %vm4678, %v4658, %v4213
      %v4718 = vsel %vm4678, %v4659, %v4215
      %v4720 = vsel %vm4678, %v4661, %v4217
      %v4722 = vsel %vm4678, %v4662, %v4219
      %v4724 = vsel %vm4678, %v4664, %v4221
      %v4726 = vsel %vm4678, %v4665, %v4223
      %v4728 = vsel %vm4678, %v4667, %v4225
      %v4730 = vsel %vm4678, %v4668, %v4227
      %v4732 = vsel %vm4678, %v4670, %v4229
      %v4734 = vsel %vm4678, %v4671, %v4231
      %v4736 = vsel %vm4678, %v4673, %v4233
      %v4738 = vsel %vm4678, %v4674, %v4235
      %v4740 = vsel %vm4678, %v4676, %v4237
      %v4742 = vsel %vm4678, %v4677, %v4239
      %vm4743 = vsmask.f32 4352
      %v4744 = vshrl.u32 %v4680, 16
      %v4746 = vrot.slane %v4744, 3
      %v4747 = vshll.u32 %v4680, 16
      %v4749 = vrot.slane %v4747, 4
      %v4750 = vor.u32 %v4746, %v4749
      %v4751 = vshrl.u32 %v4682, 16
      %v4753 = vrot.slane %v4751, 3
      %v4754 = vshll.u32 %v4682, 16
      %v4756 = vrot.slane %v4754, 4
      %v4757 = vor.u32 %v4753, %v4756
      %v4758 = vsel %vm4743, %v4750, %v4757
      %v4759 = vshrl.u32 %v4684, 16
      %v4761 = vrot.slane %v4759, 3
      %v4762 = vshll.u32 %v4684, 16
      %v4764 = vrot.slane %v4762, 4
      %v4765 = vor.u32 %v4761, %v4764
      %v4766 = vshrl.u32 %v4686, 16
      %v4768 = vrot.slane %v4766, 3
      %v4769 = vshll.u32 %v4686, 16
      %v4771 = vrot.slane %v4769, 4
      %v4772 = vor.u32 %v4768, %v4771
      %v4773 = vsel %vm4743, %v4765, %v4772
      %v4774 = vshrl.u32 %v4688, 16
      %v4776 = vrot.slane %v4774, 3
      %v4777 = vshll.u32 %v4688, 16
      %v4779 = vrot.slane %v4777, 4
      %v4780 = vor.u32 %v4776, %v4779
      %v4781 = vshrl.u32 %v4690, 16
      %v4783 = vrot.slane %v4781, 3
      %v4784 = vshll.u32 %v4690, 16
      %v4786 = vrot.slane %v4784, 4
      %v4787 = vor.u32 %v4783, %v4786
      %v4788 = vsel %vm4743, %v4780, %v4787
      %v4789 = vshrl.u32 %v4692, 16
      %v4791 = vrot.slane %v4789, 3
      %v4792 = vshll.u32 %v4692, 16
      %v4794 = vrot.slane %v4792, 4
      %v4795 = vor.u32 %v4791, %v4794
      %v4796 = vshrl.u32 %v4694, 16
      %v4798 = vrot.slane %v4796, 3
      %v4799 = vshll.u32 %v4694, 16
      %v4801 = vrot.slane %v4799, 4
      %v4802 = vor.u32 %v4798, %v4801
      %v4803 = vsel %vm4743, %v4795, %v4802
      %v4804 = vshrl.u32 %v4696, 16
      %v4806 = vrot.slane %v4804, 3
      %v4807 = vshll.u32 %v4696, 16
      %v4809 = vrot.slane %v4807, 4
      %v4810 = vor.u32 %v4806, %v4809
      %v4811 = vshrl.u32 %v4698, 16
      %v4813 = vrot.slane %v4811, 3
      %v4814 = vshll.u32 %v4698, 16
      %v4816 = vrot.slane %v4814, 4
      %v4817 = vor.u32 %v4813, %v4816
      %v4818 = vsel %vm4743, %v4810, %v4817
      %v4819 = vshrl.u32 %v4700, 16
      %v4821 = vrot.slane %v4819, 3
      %v4822 = vshll.u32 %v4700, 16
      %v4824 = vrot.slane %v4822, 4
      %v4825 = vor.u32 %v4821, %v4824
      %v4826 = vshrl.u32 %v4702, 16
      %v4828 = vrot.slane %v4826, 3
      %v4829 = vshll.u32 %v4702, 16
      %v4831 = vrot.slane %v4829, 4
      %v4832 = vor.u32 %v4828, %v4831
      %v4833 = vsel %vm4743, %v4825, %v4832
      %v4834 = vshrl.u32 %v4704, 16
      %v4836 = vrot.slane %v4834, 3
      %v4837 = vshll.u32 %v4704, 16
      %v4839 = vrot.slane %v4837, 4
      %v4840 = vor.u32 %v4836, %v4839
      %v4841 = vshrl.u32 %v4706, 16
      %v4843 = vrot.slane %v4841, 3
      %v4844 = vshll.u32 %v4706, 16
      %v4846 = vrot.slane %v4844, 4
      %v4847 = vor.u32 %v4843, %v4846
      %v4848 = vsel %vm4743, %v4840, %v4847
      %v4849 = vshrl.u32 %v4708, 16
      %v4851 = vrot.slane %v4849, 3
      %v4852 = vshll.u32 %v4708, 16
      %v4854 = vrot.slane %v4852, 4
      %v4855 = vor.u32 %v4851, %v4854
      %v4856 = vshrl.u32 %v4710, 16
      %v4858 = vrot.slane %v4856, 3
      %v4859 = vshll.u32 %v4710, 16
      %v4861 = vrot.slane %v4859, 4
      %v4862 = vor.u32 %v4858, %v4861
      %v4863 = vsel %vm4743, %v4855, %v4862
      %v4864 = vshrl.u32 %v4712, 16
      %v4866 = vrot.slane %v4864, 3
      %v4867 = vshll.u32 %v4712, 16
      %v4869 = vrot.slane %v4867, 4
      %v4870 = vor.u32 %v4866, %v4869
      %v4871 = vshrl.u32 %v4714, 16
      %v4873 = vrot.slane %v4871, 3
      %v4874 = vshll.u32 %v4714, 16
      %v4876 = vrot.slane %v4874, 4
      %v4877 = vor.u32 %v4873, %v4876
      %v4878 = vsel %vm4743, %v4870, %v4877
      %v4879 = vshrl.u32 %v4716, 16
      %v4881 = vrot.slane %v4879, 3
      %v4882 = vshll.u32 %v4716, 16
      %v4884 = vrot.slane %v4882, 4
      %v4885 = vor.u32 %v4881, %v4884
      %v4886 = vshrl.u32 %v4718, 16
      %v4888 = vrot.slane %v4886, 3
      %v4889 = vshll.u32 %v4718, 16
      %v4891 = vrot.slane %v4889, 4
      %v4892 = vor.u32 %v4888, %v4891
      %v4893 = vsel %vm4743, %v4885, %v4892
      %v4894 = vshrl.u32 %v4720, 16
      %v4896 = vrot.slane %v4894, 3
      %v4897 = vshll.u32 %v4720, 16
      %v4899 = vrot.slane %v4897, 4
      %v4900 = vor.u32 %v4896, %v4899
      %v4901 = vshrl.u32 %v4722, 16
      %v4903 = vrot.slane %v4901, 3
      %v4904 = vshll.u32 %v4722, 16
      %v4906 = vrot.slane %v4904, 4
      %v4907 = vor.u32 %v4903, %v4906
      %v4908 = vsel %vm4743, %v4900, %v4907
      %v4909 = vshrl.u32 %v4724, 16
      %v4911 = vrot.slane %v4909, 3
      %v4912 = vshll.u32 %v4724, 16
      %v4914 = vrot.slane %v4912, 4
      %v4915 = vor.u32 %v4911, %v4914
      %v4916 = vshrl.u32 %v4726, 16
      %v4918 = vrot.slane %v4916, 3
      %v4919 = vshll.u32 %v4726, 16
      %v4921 = vrot.slane %v4919, 4
      %v4922 = vor.u32 %v4918, %v4921
      %v4923 = vsel %vm4743, %v4915, %v4922
      %v4924 = vshrl.u32 %v4728, 16
      %v4926 = vrot.slane %v4924, 3
      %v4927 = vshll.u32 %v4728, 16
      %v4929 = vrot.slane %v4927, 4
      %v4930 = vor.u32 %v4926, %v4929
      %v4931 = vshrl.u32 %v4730, 16
      %v4933 = vrot.slane %v4931, 3
      %v4934 = vshll.u32 %v4730, 16
      %v4936 = vrot.slane %v4934, 4
      %v4937 = vor.u32 %v4933, %v4936
      %v4938 = vsel %vm4743, %v4930, %v4937
      %v4939 = vshrl.u32 %v4732, 16
      %v4941 = vrot.slane %v4939, 3
      %v4942 = vshll.u32 %v4732, 16
      %v4944 = vrot.slane %v4942, 4
      %v4945 = vor.u32 %v4941, %v4944
      %v4946 = vshrl.u32 %v4734, 16
      %v4948 = vrot.slane %v4946, 3
      %v4949 = vshll.u32 %v4734, 16
      %v4951 = vrot.slane %v4949, 4
      %v4952 = vor.u32 %v4948, %v4951
      %v4953 = vsel %vm4743, %v4945, %v4952
      %v4954 = vshrl.u32 %v4736, 16
      %v4956 = vrot.slane %v4954, 3
      %v4957 = vshll.u32 %v4736, 16
      %v4959 = vrot.slane %v4957, 4
      %v4960 = vor.u32 %v4956, %v4959
      %v4961 = vshrl.u32 %v4738, 16
      %v4963 = vrot.slane %v4961, 3
      %v4964 = vshll.u32 %v4738, 16
      %v4966 = vrot.slane %v4964, 4
      %v4967 = vor.u32 %v4963, %v4966
      %v4968 = vsel %vm4743, %v4960, %v4967
      %v4969 = vshrl.u32 %v4740, 16
      %v4971 = vrot.slane %v4969, 3
      %v4972 = vshll.u32 %v4740, 16
      %v4974 = vrot.slane %v4972, 4
      %v4975 = vor.u32 %v4971, %v4974
      %v4976 = vshrl.u32 %v4742, 16
      %v4978 = vrot.slane %v4976, 3
      %v4979 = vshll.u32 %v4742, 16
      %v4981 = vrot.slane %v4979, 4
      %v4982 = vor.u32 %v4978, %v4981
      %v4983 = vsel %vm4743, %v4975, %v4982
      %v4984 = vld [vmem:[%s4] sm:$0xf]
      %v4985 = vld [vmem:[%s4 + $0x4] sm:$0xf]
      %v4986 = vld [vmem:[%s4 + $0x8] sm:$0xf]
      %v4987 = vld [vmem:[%s4 + $0xc] sm:$0xf]
      %v4988 = vld [vmem:[%s4 + $0x10] sm:$0xf]
      %v4989 = vld [vmem:[%s4 + $0x14] sm:$0xf]
      %v4990 = vld [vmem:[%s4 + $0x18] sm:$0xf]
      %v4991 = vld [vmem:[%s4 + $0x1c] sm:$0xf]
      %v4992 = vld [vmem:[%s4 + $0x20] sm:$0xf]
      %v5002 = vunpack.c.l.b16 %v4984
      %v5003 = vunpack.c.l.b16 %v4985
      %v5004 = vunpack.c.l.b16 %v4986
      %v5005 = vunpack.c.l.b16 %v4987
      %v5006 = vunpack.c.l.b16 %v4988
      %v5007 = vunpack.c.l.b16 %v4989
      %v5008 = vunpack.c.l.b16 %v4990
      %v5009 = vunpack.c.l.b16 %v4991
      %v5010 = vunpack.c.l.b16 %v4992
      %v5011 = vpack.c.b16 %v5003, %v5002
      %v5012 = vpack.c.b16 %v5005, %v5004
      %v5013 = vpack.c.b16 %v5007, %v5006
      %v5014 = vpack.c.b16 %v5009, %v5008
      %v5015 = vpack.c.b16 %v5010, %v5010
      %vm5020 = vcmask 588800
      %v5022 = vsel %vm5020, %v4758, 0
      %v5025 = vsel %vm5020, %v4773, 0
      %v5028 = vsel %vm5020, %v4788, 0
      %v5031 = vsel %vm5020, %v4803, 0
      %v5034 = vsel %vm5020, %v4818, 0
      %v5037 = vsel %vm5020, %v4833, 0
      %v5040 = vsel %vm5020, %v4848, 0
      %v5043 = vsel %vm5020, %v4863, 0
      %v5046 = vsel %vm5020, %v4878, 0
      %v5049 = vsel %vm5020, %v4893, 0
      %v5052 = vsel %vm5020, %v4908, 0
      %v5055 = vsel %vm5020, %v4923, 0
      %v5058 = vsel %vm5020, %v4938, 0
      %v5061 = vsel %vm5020, %v4953, 0
      %v5064 = vsel %vm5020, %v4968, 0
      %v5067 = vsel %vm5020, %v4983, 0
      %vm5069 = vcmask 1043456
      %v5071 = vsel %vm5069, %v5015, 0
      %5073 = vmatprep.subr.bf16.mxu0 0
      %5074 = vmatpush1.bf16.msra.mxu0 0
      %5075 = vmatprep.subr.bf16.mxu0 0
      %5076 = vmatpush1.bf16.msra.mxu0 0
      %5077 = vmatprep.subr.bf16.mxu0 0
      %5078 = vmatpush1.bf16.msra.mxu0 0
      %5079 = vmatprep.subr.bf16.mxu0 0
      %5080 = vmatpush1.bf16.msra.mxu0 %v5071
      %5081 = vmatprep.subr.bf16.mxu0 0
      %5082 = vmatpush1.bf16.msra.mxu0 %v5014
      %5083 = vmatprep.subr.bf16.mxu0 0
      %5084 = vmatpush1.bf16.msra.mxu0 %v5013
      %5085 = vmatprep.subr.bf16.mxu0 0
      %5086 = vmatpush1.bf16.msra.mxu0 %v5012
      %5087 = vmatprep.subr.bf16.mxu0 0
      %5088 = vmatpush1.bf16.msra.mxu0 %v5011
      %5089 = vmatprep.subr.bf16.mxu0 0
      %5090 = vmatpush2.bf16.msra.mxu0 0
      %5091 = vmatprep.subr.bf16.mxu0 0
      %5092 = vmatpush2.bf16.msra.mxu0 0
      %5093 = vmatprep.subr.bf16.mxu0 0
      %5094 = vmatpush2.bf16.msra.mxu0 0
      %5095 = vmatprep.subr.bf16.mxu0 0
      %5096 = vmatpush2.bf16.msra.mxu0 0
      %5097 = vmatprep.subr.bf16.mxu0 0
      %5098 = vmatpush2.bf16.msra.mxu0 0
      %5099 = vmatprep.subr.bf16.mxu0 0
      %5100 = vmatpush2.bf16.msra.mxu0 0
      %5101 = vmatprep.subr.bf16.mxu0 0
      %5102 = vmatpush2.bf16.msra.mxu0 0
      %5103 = vmatprep.subr.bf16.mxu0 0
      %5104 = vmatpush2.bf16.msra.mxu0 0
      %5105 = vmatprep.mubr.bf16.mxu0 0
      %5106 = vmatmul.mubr.bf16.gmra.mxu0 %v5022
      %v5107 = vpop.f32.mrf.mxu0
      %v5108 = vadd.f32 0.0, %v5107
      %v5109 = vpop.f32.mrf.mxu0
      %v5110 = vpop.f32.mrf.mxu0
      %v5111 = vadd.f32 0.0, %v5110
      %v5112 = vpop.f32.mrf.mxu0
      %5113 = vmatprep.mubr.bf16.mxu0 0
      %5114 = vmatmul.mubr.bf16.gmra.mxu0 %v5025
      %v5115 = vpop.f32.mrf.mxu0
      %v5116 = vadd.f32 0.0, %v5115
      %v5117 = vpop.f32.mrf.mxu0
      %v5118 = vpop.f32.mrf.mxu0
      %v5119 = vadd.f32 0.0, %v5118
      %v5120 = vpop.f32.mrf.mxu0
      %5121 = vmatprep.mubr.bf16.mxu0 0
      %5122 = vmatmul.mubr.bf16.gmra.mxu0 %v5028
      %v5123 = vpop.f32.mrf.mxu0
      %v5124 = vadd.f32 0.0, %v5123
      %v5125 = vpop.f32.mrf.mxu0
      %v5126 = vpop.f32.mrf.mxu0
      %v5127 = vadd.f32 0.0, %v5126
      %v5128 = vpop.f32.mrf.mxu0
      %5129 = vmatprep.mubr.bf16.mxu0 0
      %5130 = vmatmul.mubr.bf16.gmra.mxu0 %v5031
      %v5131 = vpop.f32.mrf.mxu0
      %v5132 = vadd.f32 0.0, %v5131
      %v5133 = vpop.f32.mrf.mxu0
      %v5134 = vpop.f32.mrf.mxu0
      %v5135 = vadd.f32 0.0, %v5134
      %v5136 = vpop.f32.mrf.mxu0
      %5137 = vmatprep.mubr.bf16.mxu0 0
      %5138 = vmatmul.mubr.bf16.gmra.mxu0 %v5034
      %v5139 = vpop.f32.mrf.mxu0
      %v5140 = vadd.f32 0.0, %v5139
      %v5141 = vpop.f32.mrf.mxu0
      %v5142 = vpop.f32.mrf.mxu0
      %v5143 = vadd.f32 0.0, %v5142
      %v5144 = vpop.f32.mrf.mxu0
      %5145 = vmatprep.mubr.bf16.mxu0 0
      %5146 = vmatmul.mubr.bf16.gmra.mxu0 %v5037
      %v5147 = vpop.f32.mrf.mxu0
      %v5148 = vadd.f32 0.0, %v5147
      %v5149 = vpop.f32.mrf.mxu0
      %v5150 = vpop.f32.mrf.mxu0
      %v5151 = vadd.f32 0.0, %v5150
      %v5152 = vpop.f32.mrf.mxu0
      %5153 = vmatprep.mubr.bf16.mxu0 0
      %5154 = vmatmul.mubr.bf16.gmra.mxu0 %v5040
      %v5155 = vpop.f32.mrf.mxu0
      %v5156 = vadd.f32 0.0, %v5155
      %v5157 = vpop.f32.mrf.mxu0
      %v5158 = vpop.f32.mrf.mxu0
      %v5159 = vadd.f32 0.0, %v5158
      %v5160 = vpop.f32.mrf.mxu0
      %5161 = vmatprep.mubr.bf16.mxu0 0
      %5162 = vmatmul.mubr.bf16.gmra.mxu0 %v5043
      %v5163 = vpop.f32.mrf.mxu0
      %v5164 = vadd.f32 0.0, %v5163
      %v5165 = vpop.f32.mrf.mxu0
      %v5166 = vpop.f32.mrf.mxu0
      %v5167 = vadd.f32 0.0, %v5166
      %v5168 = vpop.f32.mrf.mxu0
      %5169 = vmatprep.mubr.bf16.mxu0 0
      %5170 = vmatmul.mubr.bf16.gmra.mxu0 %v5046
      %v5171 = vpop.f32.mrf.mxu0
      %v5172 = vadd.f32 0.0, %v5171
      %v5173 = vpop.f32.mrf.mxu0
      %v5174 = vpop.f32.mrf.mxu0
      %v5175 = vadd.f32 0.0, %v5174
      %v5176 = vpop.f32.mrf.mxu0
      %5177 = vmatprep.mubr.bf16.mxu0 0
      %5178 = vmatmul.mubr.bf16.gmra.mxu0 %v5049
      %v5179 = vpop.f32.mrf.mxu0
      %v5180 = vadd.f32 0.0, %v5179
      %v5181 = vpop.f32.mrf.mxu0
      %v5182 = vpop.f32.mrf.mxu0
      %v5183 = vadd.f32 0.0, %v5182
      %v5184 = vpop.f32.mrf.mxu0
      %5185 = vmatprep.mubr.bf16.mxu0 0
      %5186 = vmatmul.mubr.bf16.gmra.mxu0 %v5052
      %v5187 = vpop.f32.mrf.mxu0
      %v5188 = vadd.f32 0.0, %v5187
      %v5189 = vpop.f32.mrf.mxu0
      %v5190 = vpop.f32.mrf.mxu0
      %v5191 = vadd.f32 0.0, %v5190
      %v5192 = vpop.f32.mrf.mxu0
      %5193 = vmatprep.mubr.bf16.mxu0 0
      %5194 = vmatmul.mubr.bf16.gmra.mxu0 %v5055
      %v5195 = vpop.f32.mrf.mxu0
      %v5196 = vadd.f32 0.0, %v5195
      %v5197 = vpop.f32.mrf.mxu0
      %v5198 = vpop.f32.mrf.mxu0
      %v5199 = vadd.f32 0.0, %v5198
      %v5200 = vpop.f32.mrf.mxu0
      %5201 = vmatprep.mubr.bf16.mxu0 0
      %5202 = vmatmul.mubr.bf16.gmra.mxu0 %v5058
      %v5203 = vpop.f32.mrf.mxu0
      %v5204 = vadd.f32 0.0, %v5203
      %v5205 = vpop.f32.mrf.mxu0
      %v5206 = vpop.f32.mrf.mxu0
      %v5207 = vadd.f32 0.0, %v5206
      %v5208 = vpop.f32.mrf.mxu0
      %5209 = vmatprep.mubr.bf16.mxu0 0
      %5210 = vmatmul.mubr.bf16.gmra.mxu0 %v5061
      %v5211 = vpop.f32.mrf.mxu0
      %v5212 = vadd.f32 0.0, %v5211
      %v5213 = vpop.f32.mrf.mxu0
      %v5214 = vpop.f32.mrf.mxu0
      %v5215 = vadd.f32 0.0, %v5214
      %v5216 = vpop.f32.mrf.mxu0
      %5217 = vmatprep.mubr.bf16.mxu0 0
      %5218 = vmatmul.mubr.bf16.gmra.mxu0 %v5064
      %v5219 = vpop.f32.mrf.mxu0
      %v5220 = vadd.f32 0.0, %v5219
      %v5221 = vpop.f32.mrf.mxu0
      %v5222 = vpop.f32.mrf.mxu0
      %v5223 = vadd.f32 0.0, %v5222
      %v5224 = vpop.f32.mrf.mxu0
      %5225 = vmatprep.mubr.bf16.mxu0 0
      %5226 = vmatmul.mubr.bf16.gmra.mxu0 %v5067
      %v5227 = vpop.f32.mrf.mxu0
      %v5228 = vadd.f32 0.0, %v5227
      %v5229 = vpop.f32.mrf.mxu0
      %v5230 = vpop.f32.mrf.mxu0
      %v5231 = vadd.f32 0.0, %v5230
      %v5232 = vpop.f32.mrf.mxu0
      %5233 = vdwg.mxu0
      %vm5234 = vcmask 31744
      %v5235 = vsel %vm5234, %v5108, 0.0
      %v5236 = vsel %vm5234, %v5111, 0.0
      %v5237 = vadd.f32 %v5235, %v5236
      %v5238 = vsel %vm5234, %v5116, 0.0
      %v5239 = vadd.f32 %v5237, %v5238
      %v5240 = vsel %vm5234, %v5119, 0.0
      %v5241 = vadd.f32 %v5239, %v5240
      %v5242 = vsel %vm5234, %v5124, 0.0
      %v5243 = vadd.f32 %v5241, %v5242
      %v5244 = vsel %vm5234, %v5127, 0.0
      %v5245 = vadd.f32 %v5243, %v5244
      %v5246 = vsel %vm5234, %v5132, 0.0
      %v5247 = vadd.f32 %v5245, %v5246
      %v5248 = vsel %vm5234, %v5135, 0.0
      %v5249 = vadd.f32 %v5247, %v5248
      %v5250 = vsel %vm5234, %v5140, 0.0
      %v5251 = vadd.f32 %v5249, %v5250
      %v5252 = vsel %vm5234, %v5143, 0.0
      %v5253 = vadd.f32 %v5251, %v5252
      %v5254 = vsel %vm5234, %v5148, 0.0
      %v5255 = vadd.f32 %v5253, %v5254
      %v5256 = vsel %vm5234, %v5151, 0.0
      %v5257 = vadd.f32 %v5255, %v5256
      %v5258 = vsel %vm5234, %v5156, 0.0
      %v5259 = vadd.f32 %v5257, %v5258
      %v5260 = vsel %vm5234, %v5159, 0.0
      %v5261 = vadd.f32 %v5259, %v5260
      %v5262 = vsel %vm5234, %v5164, 0.0
      %v5263 = vadd.f32 %v5261, %v5262
      %v5264 = vsel %vm5234, %v5167, 0.0
      %v5265 = vadd.f32 %v5263, %v5264
      %v5266 = vsel %vm5234, %v5172, 0.0
      %v5267 = vadd.f32 %v5265, %v5266
      %v5268 = vsel %vm5234, %v5175, 0.0
      %v5269 = vadd.f32 %v5267, %v5268
      %v5270 = vsel %vm5234, %v5180, 0.0
      %v5271 = vadd.f32 %v5269, %v5270
      %v5272 = vsel %vm5234, %v5183, 0.0
      %v5273 = vadd.f32 %v5271, %v5272
      %v5274 = vsel %vm5234, %v5188, 0.0
      %v5275 = vadd.f32 %v5273, %v5274
      %v5276 = vsel %vm5234, %v5191, 0.0
      %v5277 = vadd.f32 %v5275, %v5276
      %v5278 = vsel %vm5234, %v5196, 0.0
      %v5279 = vadd.f32 %v5277, %v5278
      %v5280 = vsel %vm5234, %v5199, 0.0
      %v5281 = vadd.f32 %v5279, %v5280
      %v5282 = vsel %vm5234, %v5204, 0.0
      %v5283 = vadd.f32 %v5281, %v5282
      %v5284 = vsel %vm5234, %v5207, 0.0
      %v5285 = vadd.f32 %v5283, %v5284
      %v5286 = vsel %vm5234, %v5212, 0.0
      %v5287 = vadd.f32 %v5285, %v5286
      %v5288 = vsel %vm5234, %v5215, 0.0
      %v5289 = vadd.f32 %v5287, %v5288
      %v5290 = vsel %vm5234, %v5220, 0.0
      %v5291 = vadd.f32 %v5289, %v5290
      %v5292 = vsel %vm5234, %v5223, 0.0
      %v5293 = vadd.f32 %v5291, %v5292
      %v5294 = vsel %vm5234, %v5228, 0.0
      %v5295 = vadd.f32 %v5293, %v5294
      %v5296 = vsel %vm5234, %v5231, 0.0
      %v5297 = vadd.f32 %v5295, %v5296
      %v5298 = vrot.slane %v5297, 4
      %v5299 = vadd.f32 %v5297, %v5298
      %v5300 = vrot.slane %v5299, 2
      %v5301 = vadd.f32 %v5299, %v5300
      %v5302 = vrot.slane %v5301, 1
      %v5303 = vadd.f32 %v5301, %v5302
      %v5304 = vmul.f32 %v5108, %v5108
      %v5305 = vmul.f32 %v5111, %v5111
      %v5306 = vmul.f32 %v5116, %v5116
      %v5307 = vmul.f32 %v5119, %v5119
      %v5308 = vmul.f32 %v5124, %v5124
      %v5309 = vmul.f32 %v5127, %v5127
      %v5310 = vmul.f32 %v5132, %v5132
      %v5311 = vmul.f32 %v5135, %v5135
      %v5312 = vmul.f32 %v5140, %v5140
      %v5313 = vmul.f32 %v5143, %v5143
      %v5314 = vmul.f32 %v5148, %v5148
      %v5315 = vmul.f32 %v5151, %v5151
      %v5316 = vmul.f32 %v5156, %v5156
      %v5317 = vmul.f32 %v5159, %v5159
      %v5318 = vmul.f32 %v5164, %v5164
      %v5319 = vmul.f32 %v5167, %v5167
      %v5320 = vmul.f32 %v5172, %v5172
      %v5321 = vmul.f32 %v5175, %v5175
      %v5322 = vmul.f32 %v5180, %v5180
      %v5323 = vmul.f32 %v5183, %v5183
      %v5324 = vmul.f32 %v5188, %v5188
      %v5325 = vmul.f32 %v5191, %v5191
      %v5326 = vmul.f32 %v5196, %v5196
      %v5327 = vmul.f32 %v5199, %v5199
      %v5328 = vmul.f32 %v5204, %v5204
      %v5329 = vmul.f32 %v5207, %v5207
      %v5330 = vmul.f32 %v5212, %v5212
      %v5331 = vmul.f32 %v5215, %v5215
      %v5332 = vmul.f32 %v5220, %v5220
      %v5333 = vmul.f32 %v5223, %v5223
      %v5334 = vmul.f32 %v5228, %v5228
      %v5335 = vmul.f32 %v5231, %v5231
      %v5336 = vsel %vm5234, %v5304, 0.0
      %v5337 = vsel %vm5234, %v5305, 0.0
      %v5338 = vadd.f32 %v5336, %v5337
      %v5339 = vsel %vm5234, %v5306, 0.0
      %v5340 = vadd.f32 %v5338, %v5339
      %v5341 = vsel %vm5234, %v5307, 0.0
      %v5342 = vadd.f32 %v5340, %v5341
      %v5343 = vsel %vm5234, %v5308, 0.0
      %v5344 = vadd.f32 %v5342, %v5343
      %v5345 = vsel %vm5234, %v5309, 0.0
      %v5346 = vadd.f32 %v5344, %v5345
      %v5347 = vsel %vm5234, %v5310, 0.0
      %v5348 = vadd.f32 %v5346, %v5347
      %v5349 = vsel %vm5234, %v5311, 0.0
      %v5350 = vadd.f32 %v5348, %v5349
      %v5351 = vsel %vm5234, %v5312, 0.0
      %v5352 = vadd.f32 %v5350, %v5351
      %v5353 = vsel %vm5234, %v5313, 0.0
      %v5354 = vadd.f32 %v5352, %v5353
      %v5355 = vsel %vm5234, %v5314, 0.0
      %v5356 = vadd.f32 %v5354, %v5355
      %v5357 = vsel %vm5234, %v5315, 0.0
      %v5358 = vadd.f32 %v5356, %v5357
      %v5359 = vsel %vm5234, %v5316, 0.0
      %v5360 = vadd.f32 %v5358, %v5359
      %v5361 = vsel %vm5234, %v5317, 0.0
      %v5362 = vadd.f32 %v5360, %v5361
      %v5363 = vsel %vm5234, %v5318, 0.0
      %v5364 = vadd.f32 %v5362, %v5363
      %v5365 = vsel %vm5234, %v5319, 0.0
      %v5366 = vadd.f32 %v5364, %v5365
      %v5367 = vsel %vm5234, %v5320, 0.0
      %v5368 = vadd.f32 %v5366, %v5367
      %v5369 = vsel %vm5234, %v5321, 0.0
      %v5370 = vadd.f32 %v5368, %v5369
      %v5371 = vsel %vm5234, %v5322, 0.0
      %v5372 = vadd.f32 %v5370, %v5371
      %v5373 = vsel %vm5234, %v5323, 0.0
      %v5374 = vadd.f32 %v5372, %v5373
      %v5375 = vsel %vm5234, %v5324, 0.0
      %v5376 = vadd.f32 %v5374, %v5375
      %v5377 = vsel %vm5234, %v5325, 0.0
      %v5378 = vadd.f32 %v5376, %v5377
      %v5379 = vsel %vm5234, %v5326, 0.0
      %v5380 = vadd.f32 %v5378, %v5379
      %v5381 = vsel %vm5234, %v5327, 0.0
      %v5382 = vadd.f32 %v5380, %v5381
      %v5383 = vsel %vm5234, %v5328, 0.0
      %v5384 = vadd.f32 %v5382, %v5383
      %v5385 = vsel %vm5234, %v5329, 0.0
      %v5386 = vadd.f32 %v5384, %v5385
      %v5387 = vsel %vm5234, %v5330, 0.0
      %v5388 = vadd.f32 %v5386, %v5387
      %v5389 = vsel %vm5234, %v5331, 0.0
      %v5390 = vadd.f32 %v5388, %v5389
      %v5391 = vsel %vm5234, %v5332, 0.0
      %v5392 = vadd.f32 %v5390, %v5391
      %v5393 = vsel %vm5234, %v5333, 0.0
      %v5394 = vadd.f32 %v5392, %v5393
      %v5395 = vsel %vm5234, %v5334, 0.0
      %v5396 = vadd.f32 %v5394, %v5395
      %v5397 = vsel %vm5234, %v5335, 0.0
      %v5398 = vadd.f32 %v5396, %v5397
      %v5399 = vrot.slane %v5398, 4
      %v5400 = vadd.f32 %v5398, %v5399
      %v5401 = vrot.slane %v5400, 2
      %v5402 = vadd.f32 %v5400, %v5401
      %v5403 = vrot.slane %v5402, 1
      %v5404 = vadd.f32 %v5402, %v5403
      %vm5405 = vcmask 1040384
      %v5406 = vsel %vm5405, %v5303, %v5404
      %vm5407 = vcmask 25600
      %5408 = vst.msk [vmem:[%s312] sm:$0x3] %vm5407, %v5406
      %v5409 = vpack.c.bf16 %v5111, %v5108
      %v5410 = vpack.c.bf16 %v5119, %v5116
      %v5411 = vpack.c.bf16 %v5127, %v5124
      %v5412 = vpack.c.bf16 %v5135, %v5132
      %v5413 = vpack.c.bf16 %v5143, %v5140
      %v5414 = vpack.c.bf16 %v5151, %v5148
      %v5415 = vpack.c.bf16 %v5159, %v5156
      %v5416 = vpack.c.bf16 %v5167, %v5164
      %v5417 = vpack.c.bf16 %v5175, %v5172
      %v5418 = vpack.c.bf16 %v5183, %v5180
      %v5419 = vpack.c.bf16 %v5191, %v5188
      %v5420 = vpack.c.bf16 %v5199, %v5196
      %v5421 = vpack.c.bf16 %v5207, %v5204
      %v5422 = vpack.c.bf16 %v5215, %v5212
      %v5423 = vpack.c.bf16 %v5223, %v5220
      %v5424 = vpack.c.bf16 %v5231, %v5228
      %v5441 = vunpack.c.l.b16 %v5409
      %v5442 = vunpack.c.h.b16 %v5409
      %v5443 = vunpack.c.l.b16 %v5410
      %v5444 = vunpack.c.h.b16 %v5410
      %v5445 = vunpack.c.l.b16 %v5411
      %v5446 = vunpack.c.h.b16 %v5411
      %v5447 = vunpack.c.l.b16 %v5412
      %v5448 = vunpack.c.h.b16 %v5412
      %v5449 = vunpack.c.l.b16 %v5413
      %v5450 = vunpack.c.h.b16 %v5413
      %v5451 = vunpack.c.l.b16 %v5414
      %v5452 = vunpack.c.h.b16 %v5414
      %v5453 = vunpack.c.l.b16 %v5415
      %v5454 = vunpack.c.h.b16 %v5415
      %v5455 = vunpack.c.l.b16 %v5416
      %v5456 = vunpack.c.h.b16 %v5416
      %v5457 = vunpack.c.l.b16 %v5417
      %v5458 = vunpack.c.h.b16 %v5417
      %v5459 = vunpack.c.l.b16 %v5418
      %v5460 = vunpack.c.h.b16 %v5418
      %v5461 = vunpack.c.l.b16 %v5419
      %v5462 = vunpack.c.h.b16 %v5419
      %v5463 = vunpack.c.l.b16 %v5420
      %v5464 = vunpack.c.h.b16 %v5420
      %v5465 = vunpack.c.l.b16 %v5421
      %v5466 = vunpack.c.h.b16 %v5421
      %v5467 = vunpack.c.l.b16 %v5422
      %v5468 = vunpack.c.h.b16 %v5422
      %v5469 = vunpack.c.l.b16 %v5423
      %v5470 = vunpack.c.h.b16 %v5423
      %v5471 = vunpack.c.l.b16 %v5424
      %v5472 = vunpack.c.h.b16 %v5424
      %v5473 = vpack.c.b16 %v5441, %v5441
      %v5474 = vpack.c.b16 %v5442, %v5442
      %v5475 = vpack.c.b16 %v5443, %v5443
      %v5476 = vpack.c.b16 %v5444, %v5444
      %v5477 = vpack.c.b16 %v5445, %v5445
      %v5478 = vpack.c.b16 %v5446, %v5446
      %v5479 = vpack.c.b16 %v5447, %v5447
      %v5480 = vpack.c.b16 %v5448, %v5448
      %v5481 = vpack.c.b16 %v5449, %v5449
      %v5482 = vpack.c.b16 %v5450, %v5450
      %v5483 = vpack.c.b16 %v5451, %v5451
      %v5484 = vpack.c.b16 %v5452, %v5452
      %v5485 = vpack.c.b16 %v5453, %v5453
      %v5486 = vpack.c.b16 %v5454, %v5454
      %v5487 = vpack.c.b16 %v5455, %v5455
      %v5488 = vpack.c.b16 %v5456, %v5456
      %v5489 = vpack.c.b16 %v5457, %v5457
      %v5490 = vpack.c.b16 %v5458, %v5458
      %v5491 = vpack.c.b16 %v5459, %v5459
      %v5492 = vpack.c.b16 %v5460, %v5460
      %v5493 = vpack.c.b16 %v5461, %v5461
      %v5494 = vpack.c.b16 %v5462, %v5462
      %v5495 = vpack.c.b16 %v5463, %v5463
      %v5496 = vpack.c.b16 %v5464, %v5464
      %v5497 = vpack.c.b16 %v5465, %v5465
      %v5498 = vpack.c.b16 %v5466, %v5466
      %v5499 = vpack.c.b16 %v5467, %v5467
      %v5500 = vpack.c.b16 %v5468, %v5468
      %v5501 = vpack.c.b16 %v5469, %v5469
      %v5502 = vpack.c.b16 %v5470, %v5470
      %v5503 = vpack.c.b16 %v5471, %v5471
      %v5504 = vpack.c.b16 %v5472, %v5472
      %5537 = vst.msk [vmem:[%s304] sm:$0xf] %vm2460, %v5473
      %5538 = vst.msk [vmem:[%s304 + $0x4] sm:$0xf] %vm2460, %v5474
      %5539 = vst.msk [vmem:[%s304 + $0x8] sm:$0xf] %vm2460, %v5475
      %5540 = vst.msk [vmem:[%s304 + $0xc] sm:$0xf] %vm2460, %v5476
      %5541 = vst.msk [vmem:[%s304 + $0x10] sm:$0xf] %vm2460, %v5477
      %5542 = vst.msk [vmem:[%s304 + $0x14] sm:$0xf] %vm2460, %v5478
      %5543 = vst.msk [vmem:[%s304 + $0x18] sm:$0xf] %vm2460, %v5479
      %5544 = vst.msk [vmem:[%s304 + $0x1c] sm:$0xf] %vm2460, %v5480
      %5545 = vst.msk [vmem:[%s304 + $0x20] sm:$0xf] %vm2460, %v5481
      %5546 = vst.msk [vmem:[%s304 + $0x24] sm:$0xf] %vm2460, %v5482
      %5547 = vst.msk [vmem:[%s304 + $0x28] sm:$0xf] %vm2460, %v5483
      %5548 = vst.msk [vmem:[%s304 + $0x2c] sm:$0xf] %vm2460, %v5484
      %5549 = vst.msk [vmem:[%s304 + $0x30] sm:$0xf] %vm2460, %v5485
      %5550 = vst.msk [vmem:[%s304 + $0x34] sm:$0xf] %vm2460, %v5486
      %5551 = vst.msk [vmem:[%s304 + $0x38] sm:$0xf] %vm2460, %v5487
      %5552 = vst.msk [vmem:[%s304 + $0x3c] sm:$0xf] %vm2460, %v5488
      %5553 = vst.msk [vmem:[%s304 + $0x40] sm:$0xf] %vm2460, %v5489
      %5554 = vst.msk [vmem:[%s304 + $0x44] sm:$0xf] %vm2460, %v5490
      %5555 = vst.msk [vmem:[%s304 + $0x48] sm:$0xf] %vm2460, %v5491
      %5556 = vst.msk [vmem:[%s304 + $0x4c] sm:$0xf] %vm2460, %v5492
      %5557 = vst.msk [vmem:[%s304 + $0x50] sm:$0xf] %vm2460, %v5493
      %5558 = vst.msk [vmem:[%s304 + $0x54] sm:$0xf] %vm2460, %v5494
      %5559 = vst.msk [vmem:[%s304 + $0x58] sm:$0xf] %vm2460, %v5495
      %5560 = vst.msk [vmem:[%s304 + $0x5c] sm:$0xf] %vm2460, %v5496
      %5561 = vst.msk [vmem:[%s304 + $0x60] sm:$0xf] %vm2460, %v5497
      %5562 = vst.msk [vmem:[%s304 + $0x64] sm:$0xf] %vm2460, %v5498
      %5563 = vst.msk [vmem:[%s304 + $0x68] sm:$0xf] %vm2460, %v5499
      %5564 = vst.msk [vmem:[%s304 + $0x6c] sm:$0xf] %vm2460, %v5500
      %5565 = vst.msk [vmem:[%s304 + $0x70] sm:$0xf] %vm2460, %v5501
      %5566 = vst.msk [vmem:[%s304 + $0x74] sm:$0xf] %vm2460, %v5502
      %5567 = vst.msk [vmem:[%s304 + $0x78] sm:$0xf] %vm2460, %v5503
      %5568 = vst.msk [vmem:[%s304 + $0x7c] sm:$0xf] %vm2460, %v5504
      %s5569 = smul.u32 16, %s23
      %p5570 = scmp.lt.s32.totalorder %s22, 1
      %s5571 = scalar_select %p5570, %s22, 1
      %p5572 = scmp.lt.s32.totalorder %s5569, 15
      %s5573 = scalar_select %p5572, %s5569, 15
      %s5574 = smul.addr %s5573, 2
      %s5575 = smul.addr %s5571, 32
      %s5576 = sadd.s32 %s5574, %s5575
      %s5577 = smul.addr %s5576, 4
      %s5578 = scalar_lea.vmem %s5, %s5577
      %p5579 = scmp.lt.s32.totalorder %s22, 1
      %s5580 = scalar_select %p5579, %s22, 1
      %p5581 = scmp.lt.s32.totalorder %s23, 0
      %s5582 = scalar_select %p5581, %s23, 0
      %s5583 = sadd.s32 %s5582, %s5580
      %s5584 = smul.addr %s5583, 2
      %s5585 = scalar_lea.vmem %s6, %s5584
      // Predicated region
      $region41: #{up_forward.3} parent=39 // pred_check
        %p5586 = pneg %p165
      $region42: #{up_forward.3} parent=39 // pred_check_branch
        %5588 = sbr.rel (%p5586) target = $region44
      $region43: #{up_forward.3} parent=39 // pred_region
        %s5589 = smul.u32 16, %s23
      $region44: #{up_forward.3} parent=39 // pred_fallthru
        _
      // Predicated region
      $region45: #{up_forward.3} parent=39 // pred_check
        %p5590 = pneg %p193
      $region46: #{up_forward.3} parent=39 // pred_check_branch
        %5592 = sbr.rel (%p5590) target = $region48
      $region47: #{up_forward.3} parent=39 // pred_region
        _
      $region48: #{up_forward.3} parent=39 // pred_fallthru
        _
    $region40: #{up_forward.3} parent=5 // pred_fallthru
      _
    %p5593 = scmp.le.s32.totalorder 2, %s13
    // Predicated region
    $region49: #{up_forward.3} parent=5 // pred_check
      %p5594 = pneg %p5593
    $region50: #{up_forward.3} parent=5 // pred_check_branch
      %5596 = sbr.rel (%p5594) target = $region52
    $region51: #{up_forward.3} parent=5 // pred_region
      %s5597 = ssub.s32 %s13, 2
      // Predicated region
      $region53: #{up_forward.3} parent=51 // pred_check
        %p5598 = pneg %p171
      $region54: #{up_forward.3} parent=51 // pred_check_branch
        %5600 = sbr.rel (%p5598) target = $region56
      $region55: #{up_forward.3} parent=51 // pred_region
        %s5601 = smul.u32 16, %s25
        %p5602 = scmp.lt.s32.totalorder %s24, 1
        %s5603 = scalar_select %p5602, %s24, 1
        %p5604 = scmp.lt.s32.totalorder %s5601, 15
        %s5605 = scalar_select %p5604, %s5601, 15
        %s5606 = smul.addr %s5605, 2
        %s5607 = smul.addr %s5603, 32
        %s5608 = sadd.s32 %s5606, %s5607
        %s5609 = smul.addr %s5608, 4
        %s5610 = scalar_lea.vmem %s5, %s5609
      $region56: #{up_forward.3} parent=51 // pred_fallthru
        _
      // Predicated region
      $region57: #{up_forward.3} parent=51 // pred_check
        %p5611 = pneg %p199
      $region58: #{up_forward.3} parent=51 // pred_check_branch
        %5613 = sbr.rel (%p5611) target = $region60
      $region59: #{up_forward.3} parent=51 // pred_region
        %p5614 = scmp.lt.s32.totalorder %s24, 1
        %s5615 = scalar_select %p5614, %s24, 1
        %p5616 = scmp.lt.s32.totalorder %s25, 0
        %s5617 = scalar_select %p5616, %s25, 0
        %s5618 = sadd.s32 %s5617, %s5615
        %s5619 = smul.addr %s5618, 2
        %s5620 = scalar_lea.vmem %s6, %s5619
      $region60: #{up_forward.3} parent=51 // pred_fallthru
        _
    $region52: #{up_forward.3} parent=5 // pred_fallthru
      _
  $region6: #{up_forward.3} parent=0 // loop_footer
    %s17 = sadd.s32 1, %s13
  $region7: #{up_forward.3} parent=0 // loop_footer_branch
    %12 = sbr.rel target = $region3
  $region8: #{up_forward.3} parent=0 // loop_exit
    _

</llo_original>
